<compile_context>
chip_gen: v7x
topology: tpu7x:2x2x1
jax: 0.10.0
libtpu: 0.0.40
codegen_flags: <defaults>
</compile_context>

<pallas_src>
import functools

import numpy as np
import jax
import jax.numpy as jnp
from jax import lax
from jax.experimental import pallas as pl
from jax.experimental.pallas import tpu as pltpu


def _round_up(x, m):
    return (x + m - 1) // m * m


_LN_EPS = 1e-6          # timm/pytorchvideo MViTv2 uses eps=1e-6
_NEG_INF = -1e30


def _ln(x, g, b):
    mu = jnp.mean(x, axis=-1, keepdims=True)
    var = jnp.mean(jnp.square(x - mu), axis=-1, keepdims=True)
    return (x - mu) * lax.rsqrt(var + _LN_EPS) * g + b


# ----------------------------------------------------------------------------
# The single fused Pallas kernel: patch-embed -> blocks -> head (one batch elem / grid step)
# ----------------------------------------------------------------------------
def _fused_forward_kernel(patches_ref, add_ref, pool_ref, pw_ref,
                          ln1g_ref, ln1b_ref, qkvw_ref, qkvb_ref, projw_ref, projb_ref,
                          ln2g_ref, ln2b_ref, w1_ref, b1_ref, w2_ref, b2_ref,
                          ng_ref, nb_ref, hw_ref, hb_ref,
                          o_ref, *, heads, head_dim, nk_real, depth):
    f32, bf16 = jnp.float32, jnp.bfloat16
    C = heads * head_dim

    # --- patch embed: bias + cls token + pos emb pre-folded into `add` (padded rows = 0) ---
    x = jnp.dot(patches_ref[0], pw_ref[...], preferred_element_type=f32) + add_ref[...]
    # x: (Np, C) fp32; row 0 = cls + pos, rows 1..L = tokens, padded rows exactly 0.

    pool = pool_ref[...]                                          # (nk_pad, Np) bf16
    nk_pad = pool.shape[0]
    kcol = lax.broadcasted_iota(jnp.int32, (1, nk_pad), 1)
    key_bias = jnp.where(kcol < nk_real, jnp.float32(0.0), jnp.float32(_NEG_INF))
    lane = lax.broadcasted_iota(jnp.int32, (1, C), 1)
    scale = 1.0 / float(head_dim) ** 0.5

    for d in range(depth):                                        # depth=2, fully unrolled
        # ------------------- attention half-block -------------------
        xn = _ln(x, ln1g_ref[d], ln1b_ref[d])
        qkv = jnp.dot(xn.astype(bf16), qkvw_ref[d],
                      preferred_element_type=f32) + qkvb_ref[d]   # (Np, 3C)
        q = qkv[:, :C]                                            # (Np, C)
        kv = qkv[:, C:]                                           # (Np, 2C)

        # K and V pooled together in ONE matmul against the precomputed averaging matrix.
        # Padded key rows of `pool` are all-zero; padded query rows never contribute
        # (pool has zero columns there).
        kvp = jnp.dot(pool, kv.astype(bf16), preferred_element_type=f32)   # (nk_pad, 2C)
        kp = kvp[:, :C]
        vp_b = kvp[:, C:].astype(bf16)                            # (nk_pad, C)

        # Per-head softmax attention; head outputs merged with a lane select so that the
        # output projection below is one full-width (Np, C) @ (C, C) matmul.
        pv = None
        for h in range(heads):
            sl = slice(h * head_dim, (h + 1) * head_dim)
            s = lax.dot_general(q[:, sl].astype(bf16), kp[:, sl].astype(bf16),
                                dimension_numbers=(((1,), (1,)), ((), ())),
                                preferred_element_type=f32)       # (Np, nk_pad) lane-dense
            s = s * scale + key_bias
            m = jnp.max(s, axis=-1, keepdims=True)
            p = jnp.exp(s - m)
            p = p * pl.reciprocal(jnp.sum(p, axis=-1, keepdims=True), approx=True)
            pv_h = jnp.dot(p.astype(bf16), vp_b, preferred_element_type=f32)  # (Np, C)
            pv = pv_h if pv is None else jnp.where(lane < h * head_dim, pv, pv_h)

        o_heads = pv + q            # MViTv2 pooled-query residual (q-pool is identity here)
        attn = jnp.dot(o_heads.astype(bf16), projw_ref[d],
                       preferred_element_type=f32) + projb_ref[d]
        x = x + attn

        # ------------------- MLP half-block -------------------
        xn2 = _ln(x, ln2g_ref[d], ln2b_ref[d])
        h1 = jnp.dot(xn2.astype(bf16), w1_ref[d], preferred_element_type=f32) + b1_ref[d]
        # TODO(synk): PyTorch nn.GELU defaults to exact erf; tanh approximation used (EUP friendly).
        h1 = jax.nn.gelu(h1, approximate=True)
        y = jnp.dot(h1.astype(bf16), w2_ref[d], preferred_element_type=f32) + b2_ref[d]
        x = x + y

    # --- head: final LayerNorm on the cls row -> (dropout = identity in eval) -> Linear ---
    cls = x[0:1, :]
    cn = _ln(cls, ng_ref[...], nb_ref[...])
    logits = jnp.dot(cn, hw_ref[...], preferred_element_type=f32) + hb_ref[...]
    o_ref[0] = logits.astype(o_ref.dtype)


# ----------------------------------------------------------------------------
# Model config / synthetic params / host-side prep (bf16 casts, stacking, pooling matrix)
# ----------------------------------------------------------------------------
CFG = dict(
    in_ch=3,
    embed_dim=32,
    heads=2,
    depth=2,
    mlp_ratio=4,
    num_classes=5,
    patch_kernel=(3, 7, 7),
    patch_stride=(2, 4, 4),
    patch_pad=(1, 3, 3),
    kv_stride=2,
)


def _patch_grid(cfg, input_shape):
    _, _, T, H, W = input_shape
    kT, kH, kW = cfg["patch_kernel"]
    sT, sH, sW = cfg["patch_stride"]
    pT, pH, pW = cfg["patch_pad"]
    Tp = (T + 2 * pT - kT) // sT + 1
    Hp = (H + 2 * pH - kH) // sH + 1
    Wp = (W + 2 * pW - kW) // sW + 1
    return Tp, Hp, Wp


def init_params(key, cfg, input_shape):
    _, Cin, _, _, _ = input_shape
    kT, kH, kW = cfg["patch_kernel"]
    Tp, Hp, Wp = _patch_grid(cfg, input_shape)
    N = 1 + Tp * Hp * Wp
    C = cfg["embed_dim"]
    Ck = Cin * kT * kH * kW
    hid = cfg["mlp_ratio"] * C

    keys = iter(jax.random.split(key, 64))

    def w(shape):
        return (0.02 * jax.random.normal(next(keys), shape)).astype(jnp.float32)

    def z(shape):
        return jnp.zeros(shape, jnp.float32)

    params = dict(
        patch_w=w((Ck, C)),
        patch_b=z((C,)),
        cls=w((1, 1, C)),
        pos=w((1, N, C)),
        norm_g=jnp.ones((C,), jnp.float32),
        norm_b=z((C,)),
        head_w=w((C, cfg["num_classes"])),   # replaces head.proj -> Linear(num_features, 5)
        head_b=z((cfg["num_classes"],)),
        blocks=[],
    )
    for _ in range(cfg["depth"]):
        params["blocks"].append(
            dict(
                ln1_g=jnp.ones((C,), jnp.float32), ln1_b=z((C,)),
                qkv_w=w((C, 3 * C)), qkv_b=z((3 * C,)),
                proj_w=w((C, C)), proj_b=z((C,)),
                ln2_g=jnp.ones((C,), jnp.float32), ln2_b=z((C,)),
                mlp_w1=w((C, hid)), mlp_b1=z((hid,)),
                mlp_w2=w((hid, C)), mlp_b2=z((C,)),
            )
        )
    return params


def build_pool_matrix(thw, kv_stride, n_pad, nk_pad):
    """(nk_pad, n_pad) matrix: row 0 passes the cls token, rows 1..Nk-1 average a
    kv_stride x kv_stride spatial window (temporal dim not pooled); remaining rows zero."""
    T, H, W = thw
    # TODO(synk): assumes H and W divisible by kv_stride (true for the shapes used here).
    Hs, Ws = H // kv_stride, W // kv_stride
    nk = 1 + T * Hs * Ws
    assert nk <= nk_pad
    P = np.zeros((nk_pad, n_pad), np.float32)
    P[0, 0] = 1.0
    inv = 1.0 / float(kv_stride * kv_stride)
    for t in range(T):
        for i in range(Hs):
            for j in range(Ws):
                r = 1 + (t * Hs + i) * Ws + j
                for a in range(kv_stride):
                    for b in range(kv_stride):
                        c = 1 + (t * H + i * kv_stride + a) * W + j * kv_stride + b
                        P[r, c] = inv
    return jnp.asarray(P, dtype=jnp.bfloat16), nk


def prepare_params(params, cfg, input_shape):
    """Host-side, once: stack per-block params along depth, pre-cast weights to bf16,
    pad patch_w to a lane-dense contraction, fold bias+cls+pos into one `add` tensor,
    build the K/V pooling matrix."""
    _, Cin, _, _, _ = input_shape
    kT, kH, kW = cfg["patch_kernel"]
    Tp, Hp, Wp = _patch_grid(cfg, input_shape)
    L = Tp * Hp * Wp
    N = 1 + L
    C = cfg["embed_dim"]
    Ck = Cin * kT * kH * kW
    n_pad = _round_up(N, 8)
    ck_pad = _round_up(Ck, 128)
    bf16 = jnp.bfloat16

    patch_w = jnp.pad(params["patch_w"], ((0, ck_pad - Ck), (0, 0))).astype(bf16)

    add_parts = [
        params["cls"].reshape(1, C) + params["pos"][0, :1],                 # cls + pos[0]
        params["patch_b"].reshape(1, C) + params["pos"][0, 1:N],            # bias + pos[1:]
    ]
    if n_pad > N:
        add_parts.append(jnp.zeros((n_pad - N, C), jnp.float32))
    add = jnp.concatenate(add_parts, axis=0)                                # (n_pad, C)

    nk_raw = 1 + Tp * (Hp // cfg["kv_stride"]) * (Wp // cfg["kv_stride"])
    nk_pad = max(128, _round_up(nk_raw, 128))
    pool, _ = build_pool_matrix((Tp, Hp, Wp), cfg["kv_stride"], n_pad, nk_pad)

    def stack(name):
        return jnp.stack([b[name] for b in params["blocks"]], axis=0)

    prep = dict(
        patch_w=patch_w, add=add, pool=pool,
        ln1_g=stack("ln1_g")[:, None, :], ln1_b=stack("ln1_b")[:, None, :],
        qkv_w=stack("qkv_w").astype(bf16), qkv_b=stack("qkv_b")[:, None, :],
        proj_w=stack("proj_w").astype(bf16), proj_b=stack("proj_b")[:, None, :],
        ln2_g=stack("ln2_g")[:, None, :], ln2_b=stack("ln2_b")[:, None, :],
        mlp_w1=stack("mlp_w1").astype(bf16), mlp_b1=stack("mlp_b1")[:, None, :],
        mlp_w2=stack("mlp_w2").astype(bf16), mlp_b2=stack("mlp_b2")[:, None, :],
        norm_g=params["norm_g"].reshape(1, C), norm_b=params["norm_b"].reshape(1, C),
        head_w=params["head_w"], head_b=params["head_b"].reshape(1, -1),
    )
    return prep


# ----------------------------------------------------------------------------
# Forward: im2col glue in XLA, then ONE fused pallas_call for the whole network
# ----------------------------------------------------------------------------
def custom_mvitv2_forward(prep, x, cfg=CFG):
    """x: (B, 3, T, H, W) float32 -> logits (B, num_classes)."""
    B = x.shape[0]
    kT, kH, kW = cfg["patch_kernel"]
    sT, sH, sW = cfg["patch_stride"]
    pT, pH, pW = cfg["patch_pad"]
    C = cfg["embed_dim"]
    heads = cfg["heads"]
    depth = cfg["depth"]
    ncls = cfg["num_classes"]
    hid = prep["mlp_w1"].shape[2]
    n_pad = prep["add"].shape[0]
    ck_pad = prep["patch_w"].shape[0]
    nk_pad = prep["pool"].shape[0]

    # --- patch embed im2col (XLA glue); the big buffer is materialized and read exactly once ---
    patches = lax.conv_general_dilated_patches(
        x,
        filter_shape=(kT, kH, kW),
        window_strides=(sT, sH, sW),
        padding=[(pT, pT), (pH, pH), (pW, pW)],
    )  # (B, Ck, T', H', W')
    _, Ck, Tp, Hp, Wp = patches.shape
    L = Tp * Hp * Wp
    assert 1 + L <= n_pad
    nk_real = 1 + Tp * (Hp // cfg["kv_stride"]) * (Wp // cfg["kv_stride"])
    patches = jnp.transpose(patches, (0, 2, 3, 4, 1)).reshape(B, L, Ck)
    # one fused pad: row 0 reserved for the cls token (zeros -> matmul contributes nothing),
    # trailing token rows and feature columns zero-padded; cast to bf16 (halves DMA bytes).
    patches = jnp.pad(patches, ((0, 0), (1, n_pad - 1 - L), (0, ck_pad - Ck))).astype(jnp.bfloat16)

    kernel = functools.partial(_fused_forward_kernel, heads=heads, head_dim=C // heads,
                               nk_real=nk_real, depth=depth)

    def full(shape):
        return pl.BlockSpec(shape, lambda b, _s=shape: (0,) * len(_s))

    logits = pl.pallas_call(
        kernel,
        out_shape=jax.ShapeDtypeStruct((B, 1, ncls), jnp.float32),
        grid=(B,),
        in_specs=[
            pl.BlockSpec((1, n_pad, ck_pad), lambda b: (b, 0, 0)),   # patches (per batch elem)
            full((n_pad, C)),                                        # add (bias+cls+pos)
            full((nk_pad, n_pad)),                                   # pooling matrix
            full((ck_pad, C)),                                       # patch_w
            full((depth, 1, C)), full((depth, 1, C)),                # ln1 g/b
            full((depth, C, 3 * C)), full((depth, 1, 3 * C)),        # qkv w/b
            full((depth, C, C)), full((depth, 1, C)),                # proj w/b
            full((depth, 1, C)), full((depth, 1, C)),                # ln2 g/b
            full((depth, C, hid)), full((depth, 1, hid)),            # mlp w1/b1
            full((depth, hid, C)), full((depth, 1, C)),              # mlp w2/b2
            full((1, C)), full((1, C)),                              # final norm g/b
            full((C, ncls)), full((1, ncls)),                        # head w/b
        ],
        out_specs=pl.BlockSpec((1, 1, ncls), lambda b: (b, 0, 0)),
        compiler_params=pltpu.CompilerParams(dimension_semantics=("parallel",)),
    )(patches, prep["add"], prep["pool"], prep["patch_w"],
      prep["ln1_g"], prep["ln1_b"], prep["qkv_w"], prep["qkv_b"],
      prep["proj_w"], prep["proj_b"], prep["ln2_g"], prep["ln2_b"],
      prep["mlp_w1"], prep["mlp_b1"], prep["mlp_w2"], prep["mlp_b2"],
      prep["norm_g"], prep["norm_b"], prep["head_w"], prep["head_b"])

    # TODO(synk): self.dropout(x) after the backbone is identity in eval mode.
    return logits.reshape(B, ncls)


# ----------------------------------------------------------------------------
if __name__ == "__main__":
    key = jax.random.PRNGKey(0)
    k_in, k_par = jax.random.split(key)

    # Small video input consistent with the module: (B, 3, T, H, W)
    x = jax.random.normal(k_in, (2, 3, 8, 32, 32), dtype=jnp.float32)

    params = init_params(k_par, CFG, x.shape)
    prep = prepare_params(params, CFG, x.shape)     # host-side once: bf16 casts, stacking, pool

    fwd = jax.jit(functools.partial(custom_mvitv2_forward, cfg=CFG))
    logits = jax.block_until_ready(fwd(prep, x))

    assert logits.shape == (2, CFG["num_classes"]), logits.shape
    assert bool(jnp.all(jnp.isfinite(logits)))
    print("KERNEL_OK")
</pallas_src>

<mosaic_0001>
module attributes {stable_mosaic.version = 11 : i64} {
  func.func @_fused_forward_kernel(%arg0: i32, %arg1: memref<1x264x512xbf16, #tpu.memory_space<vmem>>, %arg2: memref<264x32xf32, #tpu.memory_space<vmem>>, %arg3: memref<128x264xbf16, #tpu.memory_space<vmem>>, %arg4: memref<512x32xbf16, #tpu.memory_space<vmem>>, %arg5: memref<2x1x32xf32, #tpu.memory_space<vmem>>, %arg6: memref<2x1x32xf32, #tpu.memory_space<vmem>>, %arg7: memref<2x32x96xbf16, #tpu.memory_space<vmem>>, %arg8: memref<2x1x96xf32, #tpu.memory_space<vmem>>, %arg9: memref<2x32x32xbf16, #tpu.memory_space<vmem>>, %arg10: memref<2x1x32xf32, #tpu.memory_space<vmem>>, %arg11: memref<2x1x32xf32, #tpu.memory_space<vmem>>, %arg12: memref<2x1x32xf32, #tpu.memory_space<vmem>>, %arg13: memref<2x32x128xbf16, #tpu.memory_space<vmem>>, %arg14: memref<2x1x128xf32, #tpu.memory_space<vmem>>, %arg15: memref<2x128x32xbf16, #tpu.memory_space<vmem>>, %arg16: memref<2x1x32xf32, #tpu.memory_space<vmem>>, %arg17: memref<1x32xf32, #tpu.memory_space<vmem>>, %arg18: memref<1x32xf32, #tpu.memory_space<vmem>>, %arg19: memref<32x5xf32, #tpu.memory_space<vmem>>, %arg20: memref<1x5xf32, #tpu.memory_space<vmem>>, %arg21: memref<1x1x5xf32, #tpu.memory_space<vmem>>) attributes {dimension_semantics = [#tpu.dimension_semantics<parallel>], iteration_bounds = array<i64: 2>, scalar_prefetch = 0 : i64, scratch_operands = 0 : i64, tpu.core_type = #tpu.core_type<tc>, window_params = [{transform_indices = @transform_0, window_bounds = array<i64: 1, 264, 512>}, {pipeline_mode = #tpu.pipeline_mode<synchronous>, transform_indices = @transform_1, window_bounds = array<i64: 264, 32>}, {pipeline_mode = #tpu.pipeline_mode<synchronous>, transform_indices = @transform_2, window_bounds = array<i64: 128, 264>}, {pipeline_mode = #tpu.pipeline_mode<synchronous>, transform_indices = @transform_3, window_bounds = array<i64: 512, 32>}, {pipeline_mode = #tpu.pipeline_mode<synchronous>, transform_indices = @transform_4, window_bounds = array<i64: 2, 1, 32>}, {pipeline_mode = #tpu.pipeline_mode<synchronous>, transform_indices = @transform_5, window_bounds = array<i64: 2, 1, 32>}, {pipeline_mode = #tpu.pipeline_mode<synchronous>, transform_indices = @transform_6, window_bounds = array<i64: 2, 32, 96>}, {pipeline_mode = #tpu.pipeline_mode<synchronous>, transform_indices = @transform_7, window_bounds = array<i64: 2, 1, 96>}, {pipeline_mode = #tpu.pipeline_mode<synchronous>, transform_indices = @transform_8, window_bounds = array<i64: 2, 32, 32>}, {pipeline_mode = #tpu.pipeline_mode<synchronous>, transform_indices = @transform_9, window_bounds = array<i64: 2, 1, 32>}, {pipeline_mode = #tpu.pipeline_mode<synchronous>, transform_indices = @transform_10, window_bounds = array<i64: 2, 1, 32>}, {pipeline_mode = #tpu.pipeline_mode<synchronous>, transform_indices = @transform_11, window_bounds = array<i64: 2, 1, 32>}, {pipeline_mode = #tpu.pipeline_mode<synchronous>, transform_indices = @transform_12, window_bounds = array<i64: 2, 32, 128>}, {pipeline_mode = #tpu.pipeline_mode<synchronous>, transform_indices = @transform_13, window_bounds = array<i64: 2, 1, 128>}, {pipeline_mode = #tpu.pipeline_mode<synchronous>, transform_indices = @transform_14, window_bounds = array<i64: 2, 128, 32>}, {pipeline_mode = #tpu.pipeline_mode<synchronous>, transform_indices = @transform_15, window_bounds = array<i64: 2, 1, 32>}, {pipeline_mode = #tpu.pipeline_mode<synchronous>, transform_indices = @transform_16, window_bounds = array<i64: 1, 32>}, {pipeline_mode = #tpu.pipeline_mode<synchronous>, transform_indices = @transform_17, window_bounds = array<i64: 1, 32>}, {pipeline_mode = #tpu.pipeline_mode<synchronous>, transform_indices = @transform_18, window_bounds = array<i64: 32, 5>}, {pipeline_mode = #tpu.pipeline_mode<synchronous>, transform_indices = @transform_19, window_bounds = array<i64: 1, 5>}, {transform_indices = @transform_20, window_bounds = array<i64: 1, 1, 5>}]} {
    %c0 = arith.constant 0 : index
    %c0_0 = arith.constant 0 : index
    %c0_1 = arith.constant 0 : index
    %0 = vector.load %arg1[%c0, %c0_0, %c0_1] : memref<1x264x512xbf16, #tpu.memory_space<vmem>>, vector<1x264x512xbf16>
    %1 = vector.shape_cast %0 : vector<1x264x512xbf16> to vector<264x512xbf16>
    %c0_2 = arith.constant 0 : index
    %c0_3 = arith.constant 0 : index
    %2 = vector.load %arg4[%c0_2, %c0_3] : memref<512x32xbf16, #tpu.memory_space<vmem>>, vector<512x32xbf16>
    %cst = arith.constant dense<0.000000e+00> : vector<264x32xf32>
    %3 = tpu.matmul %1, %2, %cst {dimension_numbers = #tpu.dot_dimension_numbers<[1], [0], [0], [1], [0, 0, 1, 1], [], []>} : vector<264x512xbf16>, vector<512x32xbf16>, vector<264x32xf32> -> vector<264x32xf32>
    %c0_4 = arith.constant 0 : index
    %c0_5 = arith.constant 0 : index
    %4 = vector.load %arg2[%c0_4, %c0_5] : memref<264x32xf32, #tpu.memory_space<vmem>>, vector<264x32xf32>
    %5 = arith.addf %3, %4 : vector<264x32xf32>
    %c0_6 = arith.constant 0 : index
    %c0_7 = arith.constant 0 : index
    %6 = vector.load %arg3[%c0_6, %c0_7] : memref<128x264xbf16, #tpu.memory_space<vmem>>, vector<128x264xbf16>
    %7 = tpu.iota {dimensions = array<i32: 1>} : vector<1x128xi32>
    %c65_i32 = arith.constant 65 : i32
    %8 = vector.broadcast %c65_i32 : i32 to vector<1x128xi32>
    %9 = arith.cmpi slt, %7, %8 : vector<1x128xi32>
    %cst_8 = arith.constant 0.000000e+00 : f32
    %cst_9 = arith.constant -1.000000e+30 : f32
    %10 = vector.broadcast %cst_8 : f32 to vector<1x128xf32>
    %11 = vector.broadcast %cst_9 : f32 to vector<1x128xf32>
    %12 = arith.select %9, %10, %11 : vector<1x128xi1>, vector<1x128xf32>
    %13 = tpu.iota {dimensions = array<i32: 1>} : vector<1x32xi32>
    %c0_10 = arith.constant 0 : index
    %c0_11 = arith.constant 0 : index
    %c0_12 = arith.constant 0 : index
    %14 = vector.load %arg5[%c0_10, %c0_11, %c0_12] : memref<2x1x32xf32, #tpu.memory_space<vmem>>, vector<1x1x32xf32>
    %15 = vector.shape_cast %14 : vector<1x1x32xf32> to vector<1x32xf32>
    %c0_13 = arith.constant 0 : index
    %c0_14 = arith.constant 0 : index
    %c0_15 = arith.constant 0 : index
    %16 = vector.load %arg6[%c0_13, %c0_14, %c0_15] : memref<2x1x32xf32, #tpu.memory_space<vmem>>, vector<1x1x32xf32>
    %17 = vector.shape_cast %16 : vector<1x1x32xf32> to vector<1x32xf32>
    %cst_16 = arith.constant dense<0.000000e+00> : vector<264xf32>
    %18 = vector.multi_reduction <add>, %5, %cst_16 [1] : vector<264x32xf32> to vector<264xf32>
    %19 = vector.shape_cast %18 : vector<264xf32> to vector<264x1xf32>
    %cst_17 = arith.constant 3.200000e+01 : f32
    %20 = vector.broadcast %cst_17 : f32 to vector<264x1xf32>
    %21 = arith.divf %19, %20 : vector<264x1xf32>
    %22 = vector.broadcast %21 : vector<264x1xf32> to vector<264x32xf32>
    %23 = arith.subf %5, %22 : vector<264x32xf32>
    %24 = arith.mulf %23, %23 : vector<264x32xf32>
    %cst_18 = arith.constant dense<0.000000e+00> : vector<264xf32>
    %25 = vector.multi_reduction <add>, %24, %cst_18 [1] : vector<264x32xf32> to vector<264xf32>
    %26 = vector.shape_cast %25 : vector<264xf32> to vector<264x1xf32>
    %cst_19 = arith.constant 3.200000e+01 : f32
    %27 = vector.broadcast %cst_19 : f32 to vector<264x1xf32>
    %28 = arith.divf %26, %27 : vector<264x1xf32>
    %29 = vector.broadcast %21 : vector<264x1xf32> to vector<264x32xf32>
    %30 = arith.subf %5, %29 : vector<264x32xf32>
    %cst_20 = arith.constant 9.99999997E-7 : f32
    %31 = vector.broadcast %cst_20 : f32 to vector<264x1xf32>
    %32 = arith.addf %28, %31 : vector<264x1xf32>
    %33 = math.rsqrt %32 : vector<264x1xf32>
    %34 = vector.broadcast %33 : vector<264x1xf32> to vector<264x32xf32>
    %35 = arith.mulf %30, %34 : vector<264x32xf32>
    %36 = vector.broadcast %15 : vector<1x32xf32> to vector<264x32xf32>
    %37 = arith.mulf %35, %36 : vector<264x32xf32>
    %38 = vector.broadcast %17 : vector<1x32xf32> to vector<264x32xf32>
    %39 = arith.addf %37, %38 : vector<264x32xf32>
    %40 = arith.truncf %39 : vector<264x32xf32> to vector<264x32xbf16>
    %c0_21 = arith.constant 0 : index
    %c0_22 = arith.constant 0 : index
    %c0_23 = arith.constant 0 : index
    %41 = vector.load %arg7[%c0_21, %c0_22, %c0_23] : memref<2x32x96xbf16, #tpu.memory_space<vmem>>, vector<1x32x96xbf16>
    %42 = vector.shape_cast %41 : vector<1x32x96xbf16> to vector<32x96xbf16>
    %cst_24 = arith.constant dense<0.000000e+00> : vector<264x96xf32>
    %43 = tpu.matmul %40, %42, %cst_24 {dimension_numbers = #tpu.dot_dimension_numbers<[1], [0], [0], [1], [0, 0, 1, 1], [], []>} : vector<264x32xbf16>, vector<32x96xbf16>, vector<264x96xf32> -> vector<264x96xf32>
    %c0_25 = arith.constant 0 : index
    %c0_26 = arith.constant 0 : index
    %c0_27 = arith.constant 0 : index
    %44 = vector.load %arg8[%c0_25, %c0_26, %c0_27] : memref<2x1x96xf32, #tpu.memory_space<vmem>>, vector<1x1x96xf32>
    %45 = vector.shape_cast %44 : vector<1x1x96xf32> to vector<1x96xf32>
    %46 = vector.broadcast %45 : vector<1x96xf32> to vector<264x96xf32>
    %47 = arith.addf %43, %46 : vector<264x96xf32>
    %48 = vector.extract_strided_slice %47 {offsets = [0, 0], sizes = [264, 32], strides = [1, 1]} : vector<264x96xf32> to vector<264x32xf32>
    %49 = vector.extract_strided_slice %47 {offsets = [0, 32], sizes = [264, 64], strides = [1, 1]} : vector<264x96xf32> to vector<264x64xf32>
    %50 = arith.truncf %49 : vector<264x64xf32> to vector<264x64xbf16>
    %cst_28 = arith.constant dense<0.000000e+00> : vector<128x64xf32>
    %51 = tpu.matmul %6, %50, %cst_28 {dimension_numbers = #tpu.dot_dimension_numbers<[1], [0], [0], [1], [0, 0, 1, 1], [], []>} : vector<128x264xbf16>, vector<264x64xbf16>, vector<128x64xf32> -> vector<128x64xf32>
    %52 = vector.extract_strided_slice %51 {offsets = [0, 0], sizes = [128, 32], strides = [1, 1]} : vector<128x64xf32> to vector<128x32xf32>
    %53 = vector.extract_strided_slice %51 {offsets = [0, 32], sizes = [128, 32], strides = [1, 1]} : vector<128x64xf32> to vector<128x32xf32>
    %54 = arith.truncf %53 : vector<128x32xf32> to vector<128x32xbf16>
    %55 = vector.extract_strided_slice %48 {offsets = [0, 0], sizes = [264, 16], strides = [1, 1]} : vector<264x32xf32> to vector<264x16xf32>
    %56 = arith.truncf %55 : vector<264x16xf32> to vector<264x16xbf16>
    %57 = vector.extract_strided_slice %52 {offsets = [0, 0], sizes = [128, 16], strides = [1, 1]} : vector<128x32xf32> to vector<128x16xf32>
    %58 = arith.truncf %57 : vector<128x16xf32> to vector<128x16xbf16>
    %cst_29 = arith.constant dense<0.000000e+00> : vector<264x128xf32>
    %59 = tpu.matmul %56, %58, %cst_29 {dimension_numbers = #tpu.dot_dimension_numbers<[1], [1], [0], [0], [0, 0, 1, 0], [], []>} : vector<264x16xbf16>, vector<128x16xbf16>, vector<264x128xf32> -> vector<264x128xf32>
    %cst_30 = arith.constant 2.500000e-01 : f32
    %60 = vector.broadcast %cst_30 : f32 to vector<264x128xf32>
    %61 = arith.mulf %59, %60 : vector<264x128xf32>
    %62 = vector.broadcast %12 : vector<1x128xf32> to vector<264x128xf32>
    %63 = arith.addf %61, %62 : vector<264x128xf32>
    %cst_31 = arith.constant dense<0xFF800000> : vector<264xf32>
    %64 = vector.multi_reduction <maximumf>, %63, %cst_31 [1] : vector<264x128xf32> to vector<264xf32>
    %65 = vector.shape_cast %64 : vector<264xf32> to vector<264x1xf32>
    %66 = vector.broadcast %65 : vector<264x1xf32> to vector<264x128xf32>
    %67 = arith.subf %63, %66 : vector<264x128xf32>
    %68 = math.exp %67 : vector<264x128xf32>
    %cst_32 = arith.constant dense<0.000000e+00> : vector<264xf32>
    %69 = vector.multi_reduction <add>, %68, %cst_32 [1] : vector<264x128xf32> to vector<264xf32>
    %70 = vector.shape_cast %69 : vector<264xf32> to vector<264x1xf32>
    %71 = tpu.reciprocal %70 {approx = true} : vector<264x1xf32> -> vector<264x1xf32>
    %72 = vector.broadcast %71 : vector<264x1xf32> to vector<264x128xf32>
    %73 = arith.mulf %68, %72 : vector<264x128xf32>
    %74 = arith.truncf %73 : vector<264x128xf32> to vector<264x128xbf16>
    %cst_33 = arith.constant dense<0.000000e+00> : vector<264x32xf32>
    %75 = tpu.matmul %74, %54, %cst_33 {dimension_numbers = #tpu.dot_dimension_numbers<[1], [0], [0], [1], [0, 0, 1, 1], [], []>} : vector<264x128xbf16>, vector<128x32xbf16>, vector<264x32xf32> -> vector<264x32xf32>
    %76 = vector.extract_strided_slice %48 {offsets = [0, 16], sizes = [264, 16], strides = [1, 1]} : vector<264x32xf32> to vector<264x16xf32>
    %77 = arith.truncf %76 : vector<264x16xf32> to vector<264x16xbf16>
    %78 = vector.extract_strided_slice %52 {offsets = [0, 16], sizes = [128, 16], strides = [1, 1]} : vector<128x32xf32> to vector<128x16xf32>
    %79 = arith.truncf %78 : vector<128x16xf32> to vector<128x16xbf16>
    %cst_34 = arith.constant dense<0.000000e+00> : vector<264x128xf32>
    %80 = tpu.matmul %77, %79, %cst_34 {dimension_numbers = #tpu.dot_dimension_numbers<[1], [1], [0], [0], [0, 0, 1, 0], [], []>} : vector<264x16xbf16>, vector<128x16xbf16>, vector<264x128xf32> -> vector<264x128xf32>
    %cst_35 = arith.constant 2.500000e-01 : f32
    %81 = vector.broadcast %cst_35 : f32 to vector<264x128xf32>
    %82 = arith.mulf %80, %81 : vector<264x128xf32>
    %83 = vector.broadcast %12 : vector<1x128xf32> to vector<264x128xf32>
    %84 = arith.addf %82, %83 : vector<264x128xf32>
    %cst_36 = arith.constant dense<0xFF800000> : vector<264xf32>
    %85 = vector.multi_reduction <maximumf>, %84, %cst_36 [1] : vector<264x128xf32> to vector<264xf32>
    %86 = vector.shape_cast %85 : vector<264xf32> to vector<264x1xf32>
    %87 = vector.broadcast %86 : vector<264x1xf32> to vector<264x128xf32>
    %88 = arith.subf %84, %87 : vector<264x128xf32>
    %89 = math.exp %88 : vector<264x128xf32>
    %cst_37 = arith.constant dense<0.000000e+00> : vector<264xf32>
    %90 = vector.multi_reduction <add>, %89, %cst_37 [1] : vector<264x128xf32> to vector<264xf32>
    %91 = vector.shape_cast %90 : vector<264xf32> to vector<264x1xf32>
    %92 = tpu.reciprocal %91 {approx = true} : vector<264x1xf32> -> vector<264x1xf32>
    %93 = vector.broadcast %92 : vector<264x1xf32> to vector<264x128xf32>
    %94 = arith.mulf %89, %93 : vector<264x128xf32>
    %95 = arith.truncf %94 : vector<264x128xf32> to vector<264x128xbf16>
    %cst_38 = arith.constant dense<0.000000e+00> : vector<264x32xf32>
    %96 = tpu.matmul %95, %54, %cst_38 {dimension_numbers = #tpu.dot_dimension_numbers<[1], [0], [0], [1], [0, 0, 1, 1], [], []>} : vector<264x128xbf16>, vector<128x32xbf16>, vector<264x32xf32> -> vector<264x32xf32>
    %c16_i32 = arith.constant 16 : i32
    %97 = vector.broadcast %c16_i32 : i32 to vector<1x32xi32>
    %98 = arith.cmpi slt, %13, %97 : vector<1x32xi32>
    %99 = vector.shape_cast %98 : vector<1x32xi1> to vector<1x32xi1>
    %100 = vector.broadcast %99 : vector<1x32xi1> to vector<264x32xi1>
    %101 = arith.select %100, %75, %96 : vector<264x32xi1>, vector<264x32xf32>
    %102 = arith.addf %101, %48 : vector<264x32xf32>
    %103 = arith.truncf %102 : vector<264x32xf32> to vector<264x32xbf16>
    %c0_39 = arith.constant 0 : index
    %c0_40 = arith.constant 0 : index
    %c0_41 = arith.constant 0 : index
    %104 = vector.load %arg9[%c0_39, %c0_40, %c0_41] : memref<2x32x32xbf16, #tpu.memory_space<vmem>>, vector<1x32x32xbf16>
    %105 = vector.shape_cast %104 : vector<1x32x32xbf16> to vector<32x32xbf16>
    %cst_42 = arith.constant dense<0.000000e+00> : vector<264x32xf32>
    %106 = tpu.matmul %103, %105, %cst_42 {dimension_numbers = #tpu.dot_dimension_numbers<[1], [0], [0], [1], [0, 0, 1, 1], [], []>} : vector<264x32xbf16>, vector<32x32xbf16>, vector<264x32xf32> -> vector<264x32xf32>
    %c0_43 = arith.constant 0 : index
    %c0_44 = arith.constant 0 : index
    %c0_45 = arith.constant 0 : index
    %107 = vector.load %arg10[%c0_43, %c0_44, %c0_45] : memref<2x1x32xf32, #tpu.memory_space<vmem>>, vector<1x1x32xf32>
    %108 = vector.shape_cast %107 : vector<1x1x32xf32> to vector<1x32xf32>
    %109 = vector.broadcast %108 : vector<1x32xf32> to vector<264x32xf32>
    %110 = arith.addf %106, %109 : vector<264x32xf32>
    %111 = arith.addf %5, %110 : vector<264x32xf32>
    %c0_46 = arith.constant 0 : index
    %c0_47 = arith.constant 0 : index
    %c0_48 = arith.constant 0 : index
    %112 = vector.load %arg11[%c0_46, %c0_47, %c0_48] : memref<2x1x32xf32, #tpu.memory_space<vmem>>, vector<1x1x32xf32>
    %113 = vector.shape_cast %112 : vector<1x1x32xf32> to vector<1x32xf32>
    %c0_49 = arith.constant 0 : index
    %c0_50 = arith.constant 0 : index
    %c0_51 = arith.constant 0 : index
    %114 = vector.load %arg12[%c0_49, %c0_50, %c0_51] : memref<2x1x32xf32, #tpu.memory_space<vmem>>, vector<1x1x32xf32>
    %115 = vector.shape_cast %114 : vector<1x1x32xf32> to vector<1x32xf32>
    %cst_52 = arith.constant dense<0.000000e+00> : vector<264xf32>
    %116 = vector.multi_reduction <add>, %111, %cst_52 [1] : vector<264x32xf32> to vector<264xf32>
    %117 = vector.shape_cast %116 : vector<264xf32> to vector<264x1xf32>
    %cst_53 = arith.constant 3.200000e+01 : f32
    %118 = vector.broadcast %cst_53 : f32 to vector<264x1xf32>
    %119 = arith.divf %117, %118 : vector<264x1xf32>
    %120 = vector.broadcast %119 : vector<264x1xf32> to vector<264x32xf32>
    %121 = arith.subf %111, %120 : vector<264x32xf32>
    %122 = arith.mulf %121, %121 : vector<264x32xf32>
    %cst_54 = arith.constant dense<0.000000e+00> : vector<264xf32>
    %123 = vector.multi_reduction <add>, %122, %cst_54 [1] : vector<264x32xf32> to vector<264xf32>
    %124 = vector.shape_cast %123 : vector<264xf32> to vector<264x1xf32>
    %cst_55 = arith.constant 3.200000e+01 : f32
    %125 = vector.broadcast %cst_55 : f32 to vector<264x1xf32>
    %126 = arith.divf %124, %125 : vector<264x1xf32>
    %127 = vector.broadcast %119 : vector<264x1xf32> to vector<264x32xf32>
    %128 = arith.subf %111, %127 : vector<264x32xf32>
    %cst_56 = arith.constant 9.99999997E-7 : f32
    %129 = vector.broadcast %cst_56 : f32 to vector<264x1xf32>
    %130 = arith.addf %126, %129 : vector<264x1xf32>
    %131 = math.rsqrt %130 : vector<264x1xf32>
    %132 = vector.broadcast %131 : vector<264x1xf32> to vector<264x32xf32>
    %133 = arith.mulf %128, %132 : vector<264x32xf32>
    %134 = vector.broadcast %113 : vector<1x32xf32> to vector<264x32xf32>
    %135 = arith.mulf %133, %134 : vector<264x32xf32>
    %136 = vector.broadcast %115 : vector<1x32xf32> to vector<264x32xf32>
    %137 = arith.addf %135, %136 : vector<264x32xf32>
    %138 = arith.truncf %137 : vector<264x32xf32> to vector<264x32xbf16>
    %c0_57 = arith.constant 0 : index
    %c0_58 = arith.constant 0 : index
    %c0_59 = arith.constant 0 : index
    %139 = vector.load %arg13[%c0_57, %c0_58, %c0_59] : memref<2x32x128xbf16, #tpu.memory_space<vmem>>, vector<1x32x128xbf16>
    %140 = vector.shape_cast %139 : vector<1x32x128xbf16> to vector<32x128xbf16>
    %cst_60 = arith.constant dense<0.000000e+00> : vector<264x128xf32>
    %141 = tpu.matmul %138, %140, %cst_60 {dimension_numbers = #tpu.dot_dimension_numbers<[1], [0], [0], [1], [0, 0, 1, 1], [], []>} : vector<264x32xbf16>, vector<32x128xbf16>, vector<264x128xf32> -> vector<264x128xf32>
    %c0_61 = arith.constant 0 : index
    %c0_62 = arith.constant 0 : index
    %c0_63 = arith.constant 0 : index
    %142 = vector.load %arg14[%c0_61, %c0_62, %c0_63] : memref<2x1x128xf32, #tpu.memory_space<vmem>>, vector<1x1x128xf32>
    %143 = vector.shape_cast %142 : vector<1x1x128xf32> to vector<1x128xf32>
    %144 = vector.broadcast %143 : vector<1x128xf32> to vector<264x128xf32>
    %145 = arith.addf %141, %144 : vector<264x128xf32>
    %146 = arith.mulf %145, %145 : vector<264x128xf32>
    %147 = arith.mulf %145, %146 : vector<264x128xf32>
    %cst_64 = arith.constant 4.471500e-02 : f32
    %148 = vector.broadcast %cst_64 : f32 to vector<264x128xf32>
    %149 = arith.mulf %148, %147 : vector<264x128xf32>
    %150 = arith.addf %145, %149 : vector<264x128xf32>
    %cst_65 = arith.constant 0.797884583 : f32
    %151 = vector.broadcast %cst_65 : f32 to vector<264x128xf32>
    %152 = arith.mulf %151, %150 : vector<264x128xf32>
    %153 = math.tanh %152 : vector<264x128xf32>
    %cst_66 = arith.constant 1.000000e+00 : f32
    %154 = vector.broadcast %cst_66 : f32 to vector<264x128xf32>
    %155 = arith.addf %154, %153 : vector<264x128xf32>
    %cst_67 = arith.constant 5.000000e-01 : f32
    %156 = vector.broadcast %cst_67 : f32 to vector<264x128xf32>
    %157 = arith.mulf %156, %155 : vector<264x128xf32>
    %158 = arith.mulf %145, %157 : vector<264x128xf32>
    %159 = arith.truncf %158 : vector<264x128xf32> to vector<264x128xbf16>
    %c0_68 = arith.constant 0 : index
    %c0_69 = arith.constant 0 : index
    %c0_70 = arith.constant 0 : index
    %160 = vector.load %arg15[%c0_68, %c0_69, %c0_70] : memref<2x128x32xbf16, #tpu.memory_space<vmem>>, vector<1x128x32xbf16>
    %161 = vector.shape_cast %160 : vector<1x128x32xbf16> to vector<128x32xbf16>
    %cst_71 = arith.constant dense<0.000000e+00> : vector<264x32xf32>
    %162 = tpu.matmul %159, %161, %cst_71 {dimension_numbers = #tpu.dot_dimension_numbers<[1], [0], [0], [1], [0, 0, 1, 1], [], []>} : vector<264x128xbf16>, vector<128x32xbf16>, vector<264x32xf32> -> vector<264x32xf32>
    %c0_72 = arith.constant 0 : index
    %c0_73 = arith.constant 0 : index
    %c0_74 = arith.constant 0 : index
    %163 = vector.load %arg16[%c0_72, %c0_73, %c0_74] : memref<2x1x32xf32, #tpu.memory_space<vmem>>, vector<1x1x32xf32>
    %164 = vector.shape_cast %163 : vector<1x1x32xf32> to vector<1x32xf32>
    %165 = vector.broadcast %164 : vector<1x32xf32> to vector<264x32xf32>
    %166 = arith.addf %162, %165 : vector<264x32xf32>
    %167 = arith.addf %111, %166 : vector<264x32xf32>
    %c1 = arith.constant 1 : index
    %c0_75 = arith.constant 0 : index
    %c0_76 = arith.constant 0 : index
    %168 = vector.load %arg5[%c1, %c0_75, %c0_76] : memref<2x1x32xf32, #tpu.memory_space<vmem>>, vector<1x1x32xf32>
    %169 = vector.shape_cast %168 : vector<1x1x32xf32> to vector<1x32xf32>
    %c1_77 = arith.constant 1 : index
    %c0_78 = arith.constant 0 : index
    %c0_79 = arith.constant 0 : index
    %170 = vector.load %arg6[%c1_77, %c0_78, %c0_79] : memref<2x1x32xf32, #tpu.memory_space<vmem>>, vector<1x1x32xf32>
    %171 = vector.shape_cast %170 : vector<1x1x32xf32> to vector<1x32xf32>
    %cst_80 = arith.constant dense<0.000000e+00> : vector<264xf32>
    %172 = vector.multi_reduction <add>, %167, %cst_80 [1] : vector<264x32xf32> to vector<264xf32>
    %173 = vector.shape_cast %172 : vector<264xf32> to vector<264x1xf32>
    %cst_81 = arith.constant 3.200000e+01 : f32
    %174 = vector.broadcast %cst_81 : f32 to vector<264x1xf32>
    %175 = arith.divf %173, %174 : vector<264x1xf32>
    %176 = vector.broadcast %175 : vector<264x1xf32> to vector<264x32xf32>
    %177 = arith.subf %167, %176 : vector<264x32xf32>
    %178 = arith.mulf %177, %177 : vector<264x32xf32>
    %cst_82 = arith.constant dense<0.000000e+00> : vector<264xf32>
    %179 = vector.multi_reduction <add>, %178, %cst_82 [1] : vector<264x32xf32> to vector<264xf32>
    %180 = vector.shape_cast %179 : vector<264xf32> to vector<264x1xf32>
    %cst_83 = arith.constant 3.200000e+01 : f32
    %181 = vector.broadcast %cst_83 : f32 to vector<264x1xf32>
    %182 = arith.divf %180, %181 : vector<264x1xf32>
    %183 = vector.broadcast %175 : vector<264x1xf32> to vector<264x32xf32>
    %184 = arith.subf %167, %183 : vector<264x32xf32>
    %cst_84 = arith.constant 9.99999997E-7 : f32
    %185 = vector.broadcast %cst_84 : f32 to vector<264x1xf32>
    %186 = arith.addf %182, %185 : vector<264x1xf32>
    %187 = math.rsqrt %186 : vector<264x1xf32>
    %188 = vector.broadcast %187 : vector<264x1xf32> to vector<264x32xf32>
    %189 = arith.mulf %184, %188 : vector<264x32xf32>
    %190 = vector.broadcast %169 : vector<1x32xf32> to vector<264x32xf32>
    %191 = arith.mulf %189, %190 : vector<264x32xf32>
    %192 = vector.broadcast %171 : vector<1x32xf32> to vector<264x32xf32>
    %193 = arith.addf %191, %192 : vector<264x32xf32>
    %194 = arith.truncf %193 : vector<264x32xf32> to vector<264x32xbf16>
    %c1_85 = arith.constant 1 : index
    %c0_86 = arith.constant 0 : index
    %c0_87 = arith.constant 0 : index
    %195 = vector.load %arg7[%c1_85, %c0_86, %c0_87] : memref<2x32x96xbf16, #tpu.memory_space<vmem>>, vector<1x32x96xbf16>
    %196 = vector.shape_cast %195 : vector<1x32x96xbf16> to vector<32x96xbf16>
    %cst_88 = arith.constant dense<0.000000e+00> : vector<264x96xf32>
    %197 = tpu.matmul %194, %196, %cst_88 {dimension_numbers = #tpu.dot_dimension_numbers<[1], [0], [0], [1], [0, 0, 1, 1], [], []>} : vector<264x32xbf16>, vector<32x96xbf16>, vector<264x96xf32> -> vector<264x96xf32>
    %c1_89 = arith.constant 1 : index
    %c0_90 = arith.constant 0 : index
    %c0_91 = arith.constant 0 : index
    %198 = vector.load %arg8[%c1_89, %c0_90, %c0_91] : memref<2x1x96xf32, #tpu.memory_space<vmem>>, vector<1x1x96xf32>
    %199 = vector.shape_cast %198 : vector<1x1x96xf32> to vector<1x96xf32>
    %200 = vector.broadcast %199 : vector<1x96xf32> to vector<264x96xf32>
    %201 = arith.addf %197, %200 : vector<264x96xf32>
    %202 = vector.extract_strided_slice %201 {offsets = [0, 0], sizes = [264, 32], strides = [1, 1]} : vector<264x96xf32> to vector<264x32xf32>
    %203 = vector.extract_strided_slice %201 {offsets = [0, 32], sizes = [264, 64], strides = [1, 1]} : vector<264x96xf32> to vector<264x64xf32>
    %204 = arith.truncf %203 : vector<264x64xf32> to vector<264x64xbf16>
    %cst_92 = arith.constant dense<0.000000e+00> : vector<128x64xf32>
    %205 = tpu.matmul %6, %204, %cst_92 {dimension_numbers = #tpu.dot_dimension_numbers<[1], [0], [0], [1], [0, 0, 1, 1], [], []>} : vector<128x264xbf16>, vector<264x64xbf16>, vector<128x64xf32> -> vector<128x64xf32>
    %206 = vector.extract_strided_slice %205 {offsets = [0, 0], sizes = [128, 32], strides = [1, 1]} : vector<128x64xf32> to vector<128x32xf32>
    %207 = vector.extract_strided_slice %205 {offsets = [0, 32], sizes = [128, 32], strides = [1, 1]} : vector<128x64xf32> to vector<128x32xf32>
    %208 = arith.truncf %207 : vector<128x32xf32> to vector<128x32xbf16>
    %209 = vector.extract_strided_slice %202 {offsets = [0, 0], sizes = [264, 16], strides = [1, 1]} : vector<264x32xf32> to vector<264x16xf32>
    %210 = arith.truncf %209 : vector<264x16xf32> to vector<264x16xbf16>
    %211 = vector.extract_strided_slice %206 {offsets = [0, 0], sizes = [128, 16], strides = [1, 1]} : vector<128x32xf32> to vector<128x16xf32>
    %212 = arith.truncf %211 : vector<128x16xf32> to vector<128x16xbf16>
    %cst_93 = arith.constant dense<0.000000e+00> : vector<264x128xf32>
    %213 = tpu.matmul %210, %212, %cst_93 {dimension_numbers = #tpu.dot_dimension_numbers<[1], [1], [0], [0], [0, 0, 1, 0], [], []>} : vector<264x16xbf16>, vector<128x16xbf16>, vector<264x128xf32> -> vector<264x128xf32>
    %cst_94 = arith.constant 2.500000e-01 : f32
    %214 = vector.broadcast %cst_94 : f32 to vector<264x128xf32>
    %215 = arith.mulf %213, %214 : vector<264x128xf32>
    %216 = vector.broadcast %12 : vector<1x128xf32> to vector<264x128xf32>
    %217 = arith.addf %215, %216 : vector<264x128xf32>
    %cst_95 = arith.constant dense<0xFF800000> : vector<264xf32>
    %218 = vector.multi_reduction <maximumf>, %217, %cst_95 [1] : vector<264x128xf32> to vector<264xf32>
    %219 = vector.shape_cast %218 : vector<264xf32> to vector<264x1xf32>
    %220 = vector.broadcast %219 : vector<264x1xf32> to vector<264x128xf32>
    %221 = arith.subf %217, %220 : vector<264x128xf32>
    %222 = math.exp %221 : vector<264x128xf32>
    %cst_96 = arith.constant dense<0.000000e+00> : vector<264xf32>
    %223 = vector.multi_reduction <add>, %222, %cst_96 [1] : vector<264x128xf32> to vector<264xf32>
    %224 = vector.shape_cast %223 : vector<264xf32> to vector<264x1xf32>
    %225 = tpu.reciprocal %224 {approx = true} : vector<264x1xf32> -> vector<264x1xf32>
    %226 = vector.broadcast %225 : vector<264x1xf32> to vector<264x128xf32>
    %227 = arith.mulf %222, %226 : vector<264x128xf32>
    %228 = arith.truncf %227 : vector<264x128xf32> to vector<264x128xbf16>
    %cst_97 = arith.constant dense<0.000000e+00> : vector<264x32xf32>
    %229 = tpu.matmul %228, %208, %cst_97 {dimension_numbers = #tpu.dot_dimension_numbers<[1], [0], [0], [1], [0, 0, 1, 1], [], []>} : vector<264x128xbf16>, vector<128x32xbf16>, vector<264x32xf32> -> vector<264x32xf32>
    %230 = vector.extract_strided_slice %202 {offsets = [0, 16], sizes = [264, 16], strides = [1, 1]} : vector<264x32xf32> to vector<264x16xf32>
    %231 = arith.truncf %230 : vector<264x16xf32> to vector<264x16xbf16>
    %232 = vector.extract_strided_slice %206 {offsets = [0, 16], sizes = [128, 16], strides = [1, 1]} : vector<128x32xf32> to vector<128x16xf32>
    %233 = arith.truncf %232 : vector<128x16xf32> to vector<128x16xbf16>
    %cst_98 = arith.constant dense<0.000000e+00> : vector<264x128xf32>
    %234 = tpu.matmul %231, %233, %cst_98 {dimension_numbers = #tpu.dot_dimension_numbers<[1], [1], [0], [0], [0, 0, 1, 0], [], []>} : vector<264x16xbf16>, vector<128x16xbf16>, vector<264x128xf32> -> vector<264x128xf32>
    %cst_99 = arith.constant 2.500000e-01 : f32
    %235 = vector.broadcast %cst_99 : f32 to vector<264x128xf32>
    %236 = arith.mulf %234, %235 : vector<264x128xf32>
    %237 = vector.broadcast %12 : vector<1x128xf32> to vector<264x128xf32>
    %238 = arith.addf %236, %237 : vector<264x128xf32>
    %cst_100 = arith.constant dense<0xFF800000> : vector<264xf32>
    %239 = vector.multi_reduction <maximumf>, %238, %cst_100 [1] : vector<264x128xf32> to vector<264xf32>
    %240 = vector.shape_cast %239 : vector<264xf32> to vector<264x1xf32>
    %241 = vector.broadcast %240 : vector<264x1xf32> to vector<264x128xf32>
    %242 = arith.subf %238, %241 : vector<264x128xf32>
    %243 = math.exp %242 : vector<264x128xf32>
    %cst_101 = arith.constant dense<0.000000e+00> : vector<264xf32>
    %244 = vector.multi_reduction <add>, %243, %cst_101 [1] : vector<264x128xf32> to vector<264xf32>
    %245 = vector.shape_cast %244 : vector<264xf32> to vector<264x1xf32>
    %246 = tpu.reciprocal %245 {approx = true} : vector<264x1xf32> -> vector<264x1xf32>
    %247 = vector.broadcast %246 : vector<264x1xf32> to vector<264x128xf32>
    %248 = arith.mulf %243, %247 : vector<264x128xf32>
    %249 = arith.truncf %248 : vector<264x128xf32> to vector<264x128xbf16>
    %cst_102 = arith.constant dense<0.000000e+00> : vector<264x32xf32>
    %250 = tpu.matmul %249, %208, %cst_102 {dimension_numbers = #tpu.dot_dimension_numbers<[1], [0], [0], [1], [0, 0, 1, 1], [], []>} : vector<264x128xbf16>, vector<128x32xbf16>, vector<264x32xf32> -> vector<264x32xf32>
    %c16_i32_103 = arith.constant 16 : i32
    %251 = vector.broadcast %c16_i32_103 : i32 to vector<1x32xi32>
    %252 = arith.cmpi slt, %13, %251 : vector<1x32xi32>
    %253 = vector.shape_cast %252 : vector<1x32xi1> to vector<1x32xi1>
    %254 = vector.broadcast %253 : vector<1x32xi1> to vector<264x32xi1>
    %255 = arith.select %254, %229, %250 : vector<264x32xi1>, vector<264x32xf32>
    %256 = arith.addf %255, %202 : vector<264x32xf32>
    %257 = arith.truncf %256 : vector<264x32xf32> to vector<264x32xbf16>
    %c1_104 = arith.constant 1 : index
    %c0_105 = arith.constant 0 : index
    %c0_106 = arith.constant 0 : index
    %258 = vector.load %arg9[%c1_104, %c0_105, %c0_106] : memref<2x32x32xbf16, #tpu.memory_space<vmem>>, vector<1x32x32xbf16>
    %259 = vector.shape_cast %258 : vector<1x32x32xbf16> to vector<32x32xbf16>
    %cst_107 = arith.constant dense<0.000000e+00> : vector<264x32xf32>
    %260 = tpu.matmul %257, %259, %cst_107 {dimension_numbers = #tpu.dot_dimension_numbers<[1], [0], [0], [1], [0, 0, 1, 1], [], []>} : vector<264x32xbf16>, vector<32x32xbf16>, vector<264x32xf32> -> vector<264x32xf32>
    %c1_108 = arith.constant 1 : index
    %c0_109 = arith.constant 0 : index
    %c0_110 = arith.constant 0 : index
    %261 = vector.load %arg10[%c1_108, %c0_109, %c0_110] : memref<2x1x32xf32, #tpu.memory_space<vmem>>, vector<1x1x32xf32>
    %262 = vector.shape_cast %261 : vector<1x1x32xf32> to vector<1x32xf32>
    %263 = vector.broadcast %262 : vector<1x32xf32> to vector<264x32xf32>
    %264 = arith.addf %260, %263 : vector<264x32xf32>
    %265 = arith.addf %167, %264 : vector<264x32xf32>
    %c1_111 = arith.constant 1 : index
    %c0_112 = arith.constant 0 : index
    %c0_113 = arith.constant 0 : index
    %266 = vector.load %arg11[%c1_111, %c0_112, %c0_113] : memref<2x1x32xf32, #tpu.memory_space<vmem>>, vector<1x1x32xf32>
    %267 = vector.shape_cast %266 : vector<1x1x32xf32> to vector<1x32xf32>
    %c1_114 = arith.constant 1 : index
    %c0_115 = arith.constant 0 : index
    %c0_116 = arith.constant 0 : index
    %268 = vector.load %arg12[%c1_114, %c0_115, %c0_116] : memref<2x1x32xf32, #tpu.memory_space<vmem>>, vector<1x1x32xf32>
    %269 = vector.shape_cast %268 : vector<1x1x32xf32> to vector<1x32xf32>
    %cst_117 = arith.constant dense<0.000000e+00> : vector<264xf32>
    %270 = vector.multi_reduction <add>, %265, %cst_117 [1] : vector<264x32xf32> to vector<264xf32>
    %271 = vector.shape_cast %270 : vector<264xf32> to vector<264x1xf32>
    %cst_118 = arith.constant 3.200000e+01 : f32
    %272 = vector.broadcast %cst_118 : f32 to vector<264x1xf32>
    %273 = arith.divf %271, %272 : vector<264x1xf32>
    %274 = vector.broadcast %273 : vector<264x1xf32> to vector<264x32xf32>
    %275 = arith.subf %265, %274 : vector<264x32xf32>
    %276 = arith.mulf %275, %275 : vector<264x32xf32>
    %cst_119 = arith.constant dense<0.000000e+00> : vector<264xf32>
    %277 = vector.multi_reduction <add>, %276, %cst_119 [1] : vector<264x32xf32> to vector<264xf32>
    %278 = vector.shape_cast %277 : vector<264xf32> to vector<264x1xf32>
    %cst_120 = arith.constant 3.200000e+01 : f32
    %279 = vector.broadcast %cst_120 : f32 to vector<264x1xf32>
    %280 = arith.divf %278, %279 : vector<264x1xf32>
    %281 = vector.broadcast %273 : vector<264x1xf32> to vector<264x32xf32>
    %282 = arith.subf %265, %281 : vector<264x32xf32>
    %cst_121 = arith.constant 9.99999997E-7 : f32
    %283 = vector.broadcast %cst_121 : f32 to vector<264x1xf32>
    %284 = arith.addf %280, %283 : vector<264x1xf32>
    %285 = math.rsqrt %284 : vector<264x1xf32>
    %286 = vector.broadcast %285 : vector<264x1xf32> to vector<264x32xf32>
    %287 = arith.mulf %282, %286 : vector<264x32xf32>
    %288 = vector.broadcast %267 : vector<1x32xf32> to vector<264x32xf32>
    %289 = arith.mulf %287, %288 : vector<264x32xf32>
    %290 = vector.broadcast %269 : vector<1x32xf32> to vector<264x32xf32>
    %291 = arith.addf %289, %290 : vector<264x32xf32>
    %292 = arith.truncf %291 : vector<264x32xf32> to vector<264x32xbf16>
    %c1_122 = arith.constant 1 : index
    %c0_123 = arith.constant 0 : index
    %c0_124 = arith.constant 0 : index
    %293 = vector.load %arg13[%c1_122, %c0_123, %c0_124] : memref<2x32x128xbf16, #tpu.memory_space<vmem>>, vector<1x32x128xbf16>
    %294 = vector.shape_cast %293 : vector<1x32x128xbf16> to vector<32x128xbf16>
    %cst_125 = arith.constant dense<0.000000e+00> : vector<264x128xf32>
    %295 = tpu.matmul %292, %294, %cst_125 {dimension_numbers = #tpu.dot_dimension_numbers<[1], [0], [0], [1], [0, 0, 1, 1], [], []>} : vector<264x32xbf16>, vector<32x128xbf16>, vector<264x128xf32> -> vector<264x128xf32>
    %c1_126 = arith.constant 1 : index
    %c0_127 = arith.constant 0 : index
    %c0_128 = arith.constant 0 : index
    %296 = vector.load %arg14[%c1_126, %c0_127, %c0_128] : memref<2x1x128xf32, #tpu.memory_space<vmem>>, vector<1x1x128xf32>
    %297 = vector.shape_cast %296 : vector<1x1x128xf32> to vector<1x128xf32>
    %298 = vector.broadcast %297 : vector<1x128xf32> to vector<264x128xf32>
    %299 = arith.addf %295, %298 : vector<264x128xf32>
    %300 = arith.mulf %299, %299 : vector<264x128xf32>
    %301 = arith.mulf %299, %300 : vector<264x128xf32>
    %cst_129 = arith.constant 4.471500e-02 : f32
    %302 = vector.broadcast %cst_129 : f32 to vector<264x128xf32>
    %303 = arith.mulf %302, %301 : vector<264x128xf32>
    %304 = arith.addf %299, %303 : vector<264x128xf32>
    %cst_130 = arith.constant 0.797884583 : f32
    %305 = vector.broadcast %cst_130 : f32 to vector<264x128xf32>
    %306 = arith.mulf %305, %304 : vector<264x128xf32>
    %307 = math.tanh %306 : vector<264x128xf32>
    %cst_131 = arith.constant 1.000000e+00 : f32
    %308 = vector.broadcast %cst_131 : f32 to vector<264x128xf32>
    %309 = arith.addf %308, %307 : vector<264x128xf32>
    %cst_132 = arith.constant 5.000000e-01 : f32
    %310 = vector.broadcast %cst_132 : f32 to vector<264x128xf32>
    %311 = arith.mulf %310, %309 : vector<264x128xf32>
    %312 = arith.mulf %299, %311 : vector<264x128xf32>
    %313 = arith.truncf %312 : vector<264x128xf32> to vector<264x128xbf16>
    %c1_133 = arith.constant 1 : index
    %c0_134 = arith.constant 0 : index
    %c0_135 = arith.constant 0 : index
    %314 = vector.load %arg15[%c1_133, %c0_134, %c0_135] : memref<2x128x32xbf16, #tpu.memory_space<vmem>>, vector<1x128x32xbf16>
    %315 = vector.shape_cast %314 : vector<1x128x32xbf16> to vector<128x32xbf16>
    %cst_136 = arith.constant dense<0.000000e+00> : vector<264x32xf32>
    %316 = tpu.matmul %313, %315, %cst_136 {dimension_numbers = #tpu.dot_dimension_numbers<[1], [0], [0], [1], [0, 0, 1, 1], [], []>} : vector<264x128xbf16>, vector<128x32xbf16>, vector<264x32xf32> -> vector<264x32xf32>
    %c1_137 = arith.constant 1 : index
    %c0_138 = arith.constant 0 : index
    %c0_139 = arith.constant 0 : index
    %317 = vector.load %arg16[%c1_137, %c0_138, %c0_139] : memref<2x1x32xf32, #tpu.memory_space<vmem>>, vector<1x1x32xf32>
    %318 = vector.shape_cast %317 : vector<1x1x32xf32> to vector<1x32xf32>
    %319 = vector.broadcast %318 : vector<1x32xf32> to vector<264x32xf32>
    %320 = arith.addf %316, %319 : vector<264x32xf32>
    %321 = arith.addf %265, %320 : vector<264x32xf32>
    %322 = vector.extract_strided_slice %321 {offsets = [0, 0], sizes = [1, 32], strides = [1, 1]} : vector<264x32xf32> to vector<1x32xf32>
    %c0_140 = arith.constant 0 : index
    %c0_141 = arith.constant 0 : index
    %323 = vector.load %arg17[%c0_140, %c0_141] : memref<1x32xf32, #tpu.memory_space<vmem>>, vector<1x32xf32>
    %c0_142 = arith.constant 0 : index
    %c0_143 = arith.constant 0 : index
    %324 = vector.load %arg18[%c0_142, %c0_143] : memref<1x32xf32, #tpu.memory_space<vmem>>, vector<1x32xf32>
    %cst_144 = arith.constant dense<0.000000e+00> : vector<1xf32>
    %325 = vector.multi_reduction <add>, %322, %cst_144 [1] : vector<1x32xf32> to vector<1xf32>
    %326 = vector.shape_cast %325 : vector<1xf32> to vector<1x1xf32>
    %cst_145 = arith.constant 3.200000e+01 : f32
    %327 = vector.broadcast %cst_145 : f32 to vector<1x1xf32>
    %328 = arith.divf %326, %327 : vector<1x1xf32>
    %329 = vector.broadcast %328 : vector<1x1xf32> to vector<1x32xf32>
    %330 = arith.subf %322, %329 : vector<1x32xf32>
    %331 = arith.mulf %330, %330 : vector<1x32xf32>
    %cst_146 = arith.constant dense<0.000000e+00> : vector<1xf32>
    %332 = vector.multi_reduction <add>, %331, %cst_146 [1] : vector<1x32xf32> to vector<1xf32>
    %333 = vector.shape_cast %332 : vector<1xf32> to vector<1x1xf32>
    %cst_147 = arith.constant 3.200000e+01 : f32
    %334 = vector.broadcast %cst_147 : f32 to vector<1x1xf32>
    %335 = arith.divf %333, %334 : vector<1x1xf32>
    %336 = vector.broadcast %328 : vector<1x1xf32> to vector<1x32xf32>
    %337 = arith.subf %322, %336 : vector<1x32xf32>
    %cst_148 = arith.constant 9.99999997E-7 : f32
    %338 = vector.broadcast %cst_148 : f32 to vector<1x1xf32>
    %339 = arith.addf %335, %338 : vector<1x1xf32>
    %340 = math.rsqrt %339 : vector<1x1xf32>
    %341 = vector.broadcast %340 : vector<1x1xf32> to vector<1x32xf32>
    %342 = arith.mulf %337, %341 : vector<1x32xf32>
    %343 = arith.mulf %342, %323 : vector<1x32xf32>
    %344 = arith.addf %343, %324 : vector<1x32xf32>
    %c0_149 = arith.constant 0 : index
    %c0_150 = arith.constant 0 : index
    %345 = vector.load %arg19[%c0_149, %c0_150] : memref<32x5xf32, #tpu.memory_space<vmem>>, vector<32x5xf32>
    %cst_151 = arith.constant dense<0.000000e+00> : vector<1x5xf32>
    %346 = tpu.matmul %344, %345, %cst_151 {dimension_numbers = #tpu.dot_dimension_numbers<[1], [0], [0], [1], [0, 0, 1, 1], [], []>} : vector<1x32xf32>, vector<32x5xf32>, vector<1x5xf32> -> vector<1x5xf32>
    %c0_152 = arith.constant 0 : index
    %c0_153 = arith.constant 0 : index
    %347 = vector.load %arg20[%c0_152, %c0_153] : memref<1x5xf32, #tpu.memory_space<vmem>>, vector<1x5xf32>
    %348 = arith.addf %346, %347 : vector<1x5xf32>
    %c0_154 = arith.constant 0 : index
    %c0_155 = arith.constant 0 : index
    %c0_156 = arith.constant 0 : index
    %349 = vector.load %arg21[%c0_154, %c0_155, %c0_156] : memref<1x1x5xf32, #tpu.memory_space<vmem>>, vector<1x1x5xf32>
    %350 = vector.shape_cast %349 : vector<1x1x5xf32> to vector<1x5xf32>
    %351 = vector.shape_cast %348 : vector<1x5xf32> to vector<1x1x5xf32>
    tpu.vector_store %arg21[%c0_154, %c0_155, %c0_156], %351 {strides = array<i32>} : memref<1x1x5xf32, #tpu.memory_space<vmem>>, vector<1x1x5xf32>,
    return
  }
  func.func @transform_0(%arg0: i32) -> (i32, i32, i32) {
    %c0_i32 = arith.constant 0 : i32
    %c0_i32_0 = arith.constant 0 : i32
    %c0_i32_1 = arith.constant 0 : i32
    return %arg0, %c0_i32, %c0_i32_0 : i32, i32, i32
  }
  func.func @transform_1(%arg0: i32) -> (i32, i32) {
    %c0_i32 = arith.constant 0 : i32
    %c0_i32_0 = arith.constant 0 : i32
    %c0_i32_1 = arith.constant 0 : i32
    return %c0_i32, %c0_i32_0 : i32, i32
  }
  func.func @transform_2(%arg0: i32) -> (i32, i32) {
    %c0_i32 = arith.constant 0 : i32
    %c0_i32_0 = arith.constant 0 : i32
    %c0_i32_1 = arith.constant 0 : i32
    return %c0_i32, %c0_i32_0 : i32, i32
  }
  func.func @transform_3(%arg0: i32) -> (i32, i32) {
    %c0_i32 = arith.constant 0 : i32
    %c0_i32_0 = arith.constant 0 : i32
    %c0_i32_1 = arith.constant 0 : i32
    return %c0_i32, %c0_i32_0 : i32, i32
  }
  func.func @transform_4(%arg0: i32) -> (i32, i32, i32) {
    %c0_i32 = arith.constant 0 : i32
    %c0_i32_0 = arith.constant 0 : i32
    %c0_i32_1 = arith.constant 0 : i32
    %c0_i32_2 = arith.constant 0 : i32
    return %c0_i32, %c0_i32_0, %c0_i32_1 : i32, i32, i32
  }
  func.func @transform_5(%arg0: i32) -> (i32, i32, i32) {
    %c0_i32 = arith.constant 0 : i32
    %c0_i32_0 = arith.constant 0 : i32
    %c0_i32_1 = arith.constant 0 : i32
    %c0_i32_2 = arith.constant 0 : i32
    return %c0_i32, %c0_i32_0, %c0_i32_1 : i32, i32, i32
  }
  func.func @transform_6(%arg0: i32) -> (i32, i32, i32) {
    %c0_i32 = arith.constant 0 : i32
    %c0_i32_0 = arith.constant 0 : i32
    %c0_i32_1 = arith.constant 0 : i32
    %c0_i32_2 = arith.constant 0 : i32
    return %c0_i32, %c0_i32_0, %c0_i32_1 : i32, i32, i32
  }
  func.func @transform_7(%arg0: i32) -> (i32, i32, i32) {
    %c0_i32 = arith.constant 0 : i32
    %c0_i32_0 = arith.constant 0 : i32
    %c0_i32_1 = arith.constant 0 : i32
    %c0_i32_2 = arith.constant 0 : i32
    return %c0_i32, %c0_i32_0, %c0_i32_1 : i32, i32, i32
  }
  func.func @transform_8(%arg0: i32) -> (i32, i32, i32) {
    %c0_i32 = arith.constant 0 : i32
    %c0_i32_0 = arith.constant 0 : i32
    %c0_i32_1 = arith.constant 0 : i32
    %c0_i32_2 = arith.constant 0 : i32
    return %c0_i32, %c0_i32_0, %c0_i32_1 : i32, i32, i32
  }
  func.func @transform_9(%arg0: i32) -> (i32, i32, i32) {
    %c0_i32 = arith.constant 0 : i32
    %c0_i32_0 = arith.constant 0 : i32
    %c0_i32_1 = arith.constant 0 : i32
    %c0_i32_2 = arith.constant 0 : i32
    return %c0_i32, %c0_i32_0, %c0_i32_1 : i32, i32, i32
  }
  func.func @transform_10(%arg0: i32) -> (i32, i32, i32) {
    %c0_i32 = arith.constant 0 : i32
    %c0_i32_0 = arith.constant 0 : i32
    %c0_i32_1 = arith.constant 0 : i32
    %c0_i32_2 = arith.constant 0 : i32
    return %c0_i32, %c0_i32_0, %c0_i32_1 : i32, i32, i32
  }
  func.func @transform_11(%arg0: i32) -> (i32, i32, i32) {
    %c0_i32 = arith.constant 0 : i32
    %c0_i32_0 = arith.constant 0 : i32
    %c0_i32_1 = arith.constant 0 : i32
    %c0_i32_2 = arith.constant 0 : i32
    return %c0_i32, %c0_i32_0, %c0_i32_1 : i32, i32, i32
  }
  func.func @transform_12(%arg0: i32) -> (i32, i32, i32) {
    %c0_i32 = arith.constant 0 : i32
    %c0_i32_0 = arith.constant 0 : i32
    %c0_i32_1 = arith.constant 0 : i32
    %c0_i32_2 = arith.constant 0 : i32
    return %c0_i32, %c0_i32_0, %c0_i32_1 : i32, i32, i32
  }
  func.func @transform_13(%arg0: i32) -> (i32, i32, i32) {
    %c0_i32 = arith.constant 0 : i32
    %c0_i32_0 = arith.constant 0 : i32
    %c0_i32_1 = arith.constant 0 : i32
    %c0_i32_2 = arith.constant 0 : i32
    return %c0_i32, %c0_i32_0, %c0_i32_1 : i32, i32, i32
  }
  func.func @transform_14(%arg0: i32) -> (i32, i32, i32) {
    %c0_i32 = arith.constant 0 : i32
    %c0_i32_0 = arith.constant 0 : i32
    %c0_i32_1 = arith.constant 0 : i32
    %c0_i32_2 = arith.constant 0 : i32
    return %c0_i32, %c0_i32_0, %c0_i32_1 : i32, i32, i32
  }
  func.func @transform_15(%arg0: i32) -> (i32, i32, i32) {
    %c0_i32 = arith.constant 0 : i32
    %c0_i32_0 = arith.constant 0 : i32
    %c0_i32_1 = arith.constant 0 : i32
    %c0_i32_2 = arith.constant 0 : i32
    return %c0_i32, %c0_i32_0, %c0_i32_1 : i32, i32, i32
  }
  func.func @transform_16(%arg0: i32) -> (i32, i32) {
    %c0_i32 = arith.constant 0 : i32
    %c0_i32_0 = arith.constant 0 : i32
    %c0_i32_1 = arith.constant 0 : i32
    return %c0_i32, %c0_i32_0 : i32, i32
  }
  func.func @transform_17(%arg0: i32) -> (i32, i32) {
    %c0_i32 = arith.constant 0 : i32
    %c0_i32_0 = arith.constant 0 : i32
    %c0_i32_1 = arith.constant 0 : i32
    return %c0_i32, %c0_i32_0 : i32, i32
  }
  func.func @transform_18(%arg0: i32) -> (i32, i32) {
    %c0_i32 = arith.constant 0 : i32
    %c0_i32_0 = arith.constant 0 : i32
    %c0_i32_1 = arith.constant 0 : i32
    return %c0_i32, %c0_i32_0 : i32, i32
  }
  func.func @transform_19(%arg0: i32) -> (i32, i32) {
    %c0_i32 = arith.constant 0 : i32
    %c0_i32_0 = arith.constant 0 : i32
    %c0_i32_1 = arith.constant 0 : i32
    return %c0_i32, %c0_i32_0 : i32, i32
  }
  func.func @transform_20(%arg0: i32) -> (i32, i32, i32) {
    %c0_i32 = arith.constant 0 : i32
    %c0_i32_0 = arith.constant 0 : i32
    %c0_i32_1 = arith.constant 0 : i32
    return %arg0, %c0_i32, %c0_i32_0 : i32, i32, i32
  }
}

</mosaic_0001>

<llo_original>
// kernel: custom_mvitv2_forward.1
$region0: #{custom_mvitv2_forward.1}
  #allocation0 [shape = 'u32[]', space=smem, size = 0x4, offset = 0x4, fixed_abs, tag = 'smem constant byte address 0x4 - core index']
  #allocation1 [shape = 'u32[144,128]{1,0:T(1,128)}', space=vmem, size = 0x12000, scoped, tag = 'internal scratch']
  %s0 = inlined_call_operand.vmem [shape: bf16[2,264,512], index: 0, kind: input, shape index: {}]
  %s1 = inlined_call_operand.vmem [shape: f32[264,32], index: 1, kind: input, shape index: {}]
  %s2 = inlined_call_operand.vmem [shape: bf16[128,264], index: 2, kind: input, shape index: {}]
  %s3 = inlined_call_operand.vmem [shape: bf16[512,32], index: 3, kind: input, shape index: {}]
  %s4 = inlined_call_operand.vmem [shape: f32[2,1,32], index: 4, kind: input, shape index: {}]
  %s5 = inlined_call_operand.vmem [shape: f32[2,1,32], index: 5, kind: input, shape index: {}]
  %s6 = inlined_call_operand.vmem [shape: bf16[2,32,96], index: 6, kind: input, shape index: {}]
  %s7 = inlined_call_operand.vmem [shape: f32[2,1,96], index: 7, kind: input, shape index: {}]
  %s8 = inlined_call_operand.vmem [shape: bf16[2,32,32], index: 8, kind: input, shape index: {}]
  %s9 = inlined_call_operand.vmem [shape: f32[2,1,32], index: 9, kind: input, shape index: {}]
  %s10 = inlined_call_operand.vmem [shape: f32[2,1,32], index: 10, kind: input, shape index: {}]
  %s11 = inlined_call_operand.vmem [shape: f32[2,1,32], index: 11, kind: input, shape index: {}]
  %s12 = inlined_call_operand.vmem [shape: bf16[2,32,128], index: 12, kind: input, shape index: {}]
  %s13 = inlined_call_operand.vmem [shape: f32[2,1,128], index: 13, kind: input, shape index: {}]
  %s14 = inlined_call_operand.vmem [shape: bf16[2,128,32], index: 14, kind: input, shape index: {}]
  %s15 = inlined_call_operand.vmem [shape: f32[2,1,32], index: 15, kind: input, shape index: {}]
  %s16 = inlined_call_operand.vmem [shape: f32[1,32], index: 16, kind: input, shape index: {}]
  %s17 = inlined_call_operand.vmem [shape: f32[1,32], index: 17, kind: input, shape index: {}]
  %s18 = inlined_call_operand.vmem [shape: f32[32,5], index: 18, kind: input, shape index: {}]
  %s19 = inlined_call_operand.vmem [shape: f32[1,5], index: 19, kind: input, shape index: {}]
  %s20 = inlined_call_operand.hbm [shape: f32[2,1,5], index: 20, kind: output, shape index: {}]
  %s21 = sld [smem:[#allocation0]]
  $region113: #{custom_mvitv2_forward.1} parent=0
    _
  %s23 = ssub.s32 1, %s21
  %s24 = scalar_select 0, %s23, %s21
  $region1: #{custom_mvitv2_forward.1} parent=0
    #allocation2 [shape = 'u8[1024]{0}', space=vmem, size = 0x400, scoped, tag = 'output window, operand 0']
    #allocation3 [shape = 's32[2]{0}', space=sflag, size = 0x8, scoped, tag = 'scoped memory for custom_mvitv2_forward.1']
    %25 = vsyncpa [#allocation3], 0
    %s26 = scalar_lea.sflag [#allocation3], 1
    %27 = vsyncpa %s26, 0
    loop: start=0, step=1, limit=4
    $region2: #{custom_mvitv2_forward.1} parent=1 // loop_pre_header
      _
    $region3: #{custom_mvitv2_forward.1} parent=1 // loop_header
      %s29 = sphi 0, %s33
      %p30 = scmp.ge.s32.totalorder %s29, 4
      %s39 = sphi 0, %s41
      %s42 = sphi 0, %s39
      %s43 = sphi 0, %s42
      %s59 = sphi 0, %s43
      %s63 = sphi 0, %s63
      %s65 = sphi 0, %s63
      %s66 = sphi 0, %s65
      %s80 = sphi 0, %s66
      %s84 = sphi 0, %s84
      %s86 = sphi 0, %s84
      %s87 = sphi 0, %s86
      %s101 = sphi 0, %s87
      %s105 = sphi 0, %s105
      %s107 = sphi 0, %s105
      %s108 = sphi 0, %s107
      %s122 = sphi 0, %s108
      %s126 = sphi 0, %s126
      %s128 = sphi 0, %s126
      %s129 = sphi 0, %s128
      %s143 = sphi 0, %s129
      %s147 = sphi 0, %s147
      %s149 = sphi 0, %s147
      %s150 = sphi 0, %s149
      %s164 = sphi 0, %s150
      %s168 = sphi 0, %s168
      %s170 = sphi 0, %s168
      %s171 = sphi 0, %s170
      %s185 = sphi 0, %s171
      %s189 = sphi 0, %s189
      %s191 = sphi 0, %s189
      %s192 = sphi 0, %s191
      %s206 = sphi 0, %s192
      %s210 = sphi 0, %s210
      %s212 = sphi 0, %s210
      %s213 = sphi 0, %s212
      %s227 = sphi 0, %s213
      %s231 = sphi 0, %s231
      %s233 = sphi 0, %s231
      %s234 = sphi 0, %s233
      %s248 = sphi 0, %s234
      %s252 = sphi 0, %s252
      %s254 = sphi 0, %s252
      %s255 = sphi 0, %s254
      %s269 = sphi 0, %s255
      %s273 = sphi 0, %s273
      %s275 = sphi 0, %s273
      %s276 = sphi 0, %s275
      %s290 = sphi 0, %s276
      %s294 = sphi 0, %s294
      %s296 = sphi 0, %s294
      %s297 = sphi 0, %s296
      %s311 = sphi 0, %s297
      %s315 = sphi 0, %s315
      %s317 = sphi 0, %s315
      %s318 = sphi 0, %s317
      %s332 = sphi 0, %s318
      %s336 = sphi 0, %s336
      %s338 = sphi 0, %s336
      %s339 = sphi 0, %s338
      %s353 = sphi 0, %s339
      %s357 = sphi 0, %s357
      %s359 = sphi 0, %s357
      %s360 = sphi 0, %s359
      %s374 = sphi 0, %s360
      %s378 = sphi 0, %s378
      %s380 = sphi 0, %s378
      %s381 = sphi 0, %s380
      %s395 = sphi 0, %s381
      %s399 = sphi 0, %s399
      %s401 = sphi 0, %s399
      %s402 = sphi 0, %s401
      %s416 = sphi 0, %s402
      %s420 = sphi 0, %s420
      %s422 = sphi 0, %s420
      %s423 = sphi 0, %s422
      %s437 = sphi 0, %s423
      %s441 = sphi 0, %s441
      %s443 = sphi 0, %s441
      %s444 = sphi 0, %s443
      %s458 = sphi 0, %s444
      %s464 = sphi 0, %s466
      %s467 = sphi 0, %s464
      %s468 = sphi 0, %s467
      %s484 = sphi 0, %s468
    $region4: #{custom_mvitv2_forward.1} parent=1 // loop_header_branch
      %32 = sbr.rel (%p30) target = $region8
    $region5: #{custom_mvitv2_forward.1} parent=1 // loop_body
      %s34 = ssub.s32 %s29, 1
      %s35 = ssub.s32 %s29, 2
      %s36 = sadd.s32 %s29, 1
      %s37 = ssub.s32 %s29, %s36
      %p38 = scmp.eq.s32.totalorder %s37, 0
      %s40 = sadd.s32 %s39, 1
      %s41 = scalar_select %p38, %s39, %s40
      %p44 = pneg %p38
      %p45 = scmp.eq.s32.totalorder %s29, 1
      %p46 = por %p44, %p45
      %p47 = scmp.ne.s32.totalorder %s39, %s42
      %p48 = scmp.eq.s32.totalorder %s29, 0
      %p49 = por %p47, %p48
      %p50 = scmp.ne.s32.totalorder %s39, %s42
      %p51 = scmp.eq.s32.totalorder %s34, 1
      %p52 = por %p50, %p51
      %p53 = scmp.ne.s32.totalorder %s42, %s43
      %p54 = scmp.eq.s32.totalorder %s34, 0
      %p55 = por %p53, %p54
      %p56 = scmp.ne.s32.totalorder %s42, %s43
      %p57 = scmp.eq.s32.totalorder %s35, 1
      %p58 = por %p56, %p57
      %p60 = scmp.ne.s32.totalorder %s43, %s59
      %p61 = scmp.eq.s32.totalorder %s35, 0
      %p62 = por %p60, %p61
      %s64 = sadd.s32 %s63, 1
      %p67 = scmp.eq.s32.totalorder %s29, 1
      %p68 = scmp.ne.s32.totalorder %s63, %s65
      %p69 = scmp.eq.s32.totalorder %s29, 0
      %p70 = por %p68, %p69
      %p71 = scmp.ne.s32.totalorder %s63, %s65
      %p72 = scmp.eq.s32.totalorder %s34, 1
      %p73 = por %p71, %p72
      %p74 = scmp.ne.s32.totalorder %s65, %s66
      %p75 = scmp.eq.s32.totalorder %s34, 0
      %p76 = por %p74, %p75
      %p77 = scmp.ne.s32.totalorder %s65, %s66
      %p78 = scmp.eq.s32.totalorder %s35, 1
      %p79 = por %p77, %p78
      %p81 = scmp.ne.s32.totalorder %s66, %s80
      %p82 = scmp.eq.s32.totalorder %s35, 0
      %p83 = por %p81, %p82
      %s85 = sadd.s32 %s84, 1
      %p88 = scmp.eq.s32.totalorder %s29, 1
      %p89 = scmp.ne.s32.totalorder %s84, %s86
      %p90 = scmp.eq.s32.totalorder %s29, 0
      %p91 = por %p89, %p90
      %p92 = scmp.ne.s32.totalorder %s84, %s86
      %p93 = scmp.eq.s32.totalorder %s34, 1
      %p94 = por %p92, %p93
      %p95 = scmp.ne.s32.totalorder %s86, %s87
      %p96 = scmp.eq.s32.totalorder %s34, 0
      %p97 = por %p95, %p96
      %p98 = scmp.ne.s32.totalorder %s86, %s87
      %p99 = scmp.eq.s32.totalorder %s35, 1
      %p100 = por %p98, %p99
      %p102 = scmp.ne.s32.totalorder %s87, %s101
      %p103 = scmp.eq.s32.totalorder %s35, 0
      %p104 = por %p102, %p103
      %s106 = sadd.s32 %s105, 1
      %p109 = scmp.eq.s32.totalorder %s29, 1
      %p110 = scmp.ne.s32.totalorder %s105, %s107
      %p111 = scmp.eq.s32.totalorder %s29, 0
      %p112 = por %p110, %p111
      %p113 = scmp.ne.s32.totalorder %s105, %s107
      %p114 = scmp.eq.s32.totalorder %s34, 1
      %p115 = por %p113, %p114
      %p116 = scmp.ne.s32.totalorder %s107, %s108
      %p117 = scmp.eq.s32.totalorder %s34, 0
      %p118 = por %p116, %p117
      %p119 = scmp.ne.s32.totalorder %s107, %s108
      %p120 = scmp.eq.s32.totalorder %s35, 1
      %p121 = por %p119, %p120
      %p123 = scmp.ne.s32.totalorder %s108, %s122
      %p124 = scmp.eq.s32.totalorder %s35, 0
      %p125 = por %p123, %p124
      %s127 = sadd.s32 %s126, 1
      %p130 = scmp.eq.s32.totalorder %s29, 1
      %p131 = scmp.ne.s32.totalorder %s126, %s128
      %p132 = scmp.eq.s32.totalorder %s29, 0
      %p133 = por %p131, %p132
      %p134 = scmp.ne.s32.totalorder %s126, %s128
      %p135 = scmp.eq.s32.totalorder %s34, 1
      %p136 = por %p134, %p135
      %p137 = scmp.ne.s32.totalorder %s128, %s129
      %p138 = scmp.eq.s32.totalorder %s34, 0
      %p139 = por %p137, %p138
      %p140 = scmp.ne.s32.totalorder %s128, %s129
      %p141 = scmp.eq.s32.totalorder %s35, 1
      %p142 = por %p140, %p141
      %p144 = scmp.ne.s32.totalorder %s129, %s143
      %p145 = scmp.eq.s32.totalorder %s35, 0
      %p146 = por %p144, %p145
      %s148 = sadd.s32 %s147, 1
      %p151 = scmp.eq.s32.totalorder %s29, 1
      %p152 = scmp.ne.s32.totalorder %s147, %s149
      %p153 = scmp.eq.s32.totalorder %s29, 0
      %p154 = por %p152, %p153
      %p155 = scmp.ne.s32.totalorder %s147, %s149
      %p156 = scmp.eq.s32.totalorder %s34, 1
      %p157 = por %p155, %p156
      %p158 = scmp.ne.s32.totalorder %s149, %s150
      %p159 = scmp.eq.s32.totalorder %s34, 0
      %p160 = por %p158, %p159
      %p161 = scmp.ne.s32.totalorder %s149, %s150
      %p162 = scmp.eq.s32.totalorder %s35, 1
      %p163 = por %p161, %p162
      %p165 = scmp.ne.s32.totalorder %s150, %s164
      %p166 = scmp.eq.s32.totalorder %s35, 0
      %p167 = por %p165, %p166
      %s169 = sadd.s32 %s168, 1
      %p172 = scmp.eq.s32.totalorder %s29, 1
      %p173 = scmp.ne.s32.totalorder %s168, %s170
      %p174 = scmp.eq.s32.totalorder %s29, 0
      %p175 = por %p173, %p174
      %p176 = scmp.ne.s32.totalorder %s168, %s170
      %p177 = scmp.eq.s32.totalorder %s34, 1
      %p178 = por %p176, %p177
      %p179 = scmp.ne.s32.totalorder %s170, %s171
      %p180 = scmp.eq.s32.totalorder %s34, 0
      %p181 = por %p179, %p180
      %p182 = scmp.ne.s32.totalorder %s170, %s171
      %p183 = scmp.eq.s32.totalorder %s35, 1
      %p184 = por %p182, %p183
      %p186 = scmp.ne.s32.totalorder %s171, %s185
      %p187 = scmp.eq.s32.totalorder %s35, 0
      %p188 = por %p186, %p187
      %s190 = sadd.s32 %s189, 1
      %p193 = scmp.eq.s32.totalorder %s29, 1
      %p194 = scmp.ne.s32.totalorder %s189, %s191
      %p195 = scmp.eq.s32.totalorder %s29, 0
      %p196 = por %p194, %p195
      %p197 = scmp.ne.s32.totalorder %s189, %s191
      %p198 = scmp.eq.s32.totalorder %s34, 1
      %p199 = por %p197, %p198
      %p200 = scmp.ne.s32.totalorder %s191, %s192
      %p201 = scmp.eq.s32.totalorder %s34, 0
      %p202 = por %p200, %p201
      %p203 = scmp.ne.s32.totalorder %s191, %s192
      %p204 = scmp.eq.s32.totalorder %s35, 1
      %p205 = por %p203, %p204
      %p207 = scmp.ne.s32.totalorder %s192, %s206
      %p208 = scmp.eq.s32.totalorder %s35, 0
      %p209 = por %p207, %p208
      %s211 = sadd.s32 %s210, 1
      %p214 = scmp.eq.s32.totalorder %s29, 1
      %p215 = scmp.ne.s32.totalorder %s210, %s212
      %p216 = scmp.eq.s32.totalorder %s29, 0
      %p217 = por %p215, %p216
      %p218 = scmp.ne.s32.totalorder %s210, %s212
      %p219 = scmp.eq.s32.totalorder %s34, 1
      %p220 = por %p218, %p219
      %p221 = scmp.ne.s32.totalorder %s212, %s213
      %p222 = scmp.eq.s32.totalorder %s34, 0
      %p223 = por %p221, %p222
      %p224 = scmp.ne.s32.totalorder %s212, %s213
      %p225 = scmp.eq.s32.totalorder %s35, 1
      %p226 = por %p224, %p225
      %p228 = scmp.ne.s32.totalorder %s213, %s227
      %p229 = scmp.eq.s32.totalorder %s35, 0
      %p230 = por %p228, %p229
      %s232 = sadd.s32 %s231, 1
      %p235 = scmp.eq.s32.totalorder %s29, 1
      %p236 = scmp.ne.s32.totalorder %s231, %s233
      %p237 = scmp.eq.s32.totalorder %s29, 0
      %p238 = por %p236, %p237
      %p239 = scmp.ne.s32.totalorder %s231, %s233
      %p240 = scmp.eq.s32.totalorder %s34, 1
      %p241 = por %p239, %p240
      %p242 = scmp.ne.s32.totalorder %s233, %s234
      %p243 = scmp.eq.s32.totalorder %s34, 0
      %p244 = por %p242, %p243
      %p245 = scmp.ne.s32.totalorder %s233, %s234
      %p246 = scmp.eq.s32.totalorder %s35, 1
      %p247 = por %p245, %p246
      %p249 = scmp.ne.s32.totalorder %s234, %s248
      %p250 = scmp.eq.s32.totalorder %s35, 0
      %p251 = por %p249, %p250
      %s253 = sadd.s32 %s252, 1
      %p256 = scmp.eq.s32.totalorder %s29, 1
      %p257 = scmp.ne.s32.totalorder %s252, %s254
      %p258 = scmp.eq.s32.totalorder %s29, 0
      %p259 = por %p257, %p258
      %p260 = scmp.ne.s32.totalorder %s252, %s254
      %p261 = scmp.eq.s32.totalorder %s34, 1
      %p262 = por %p260, %p261
      %p263 = scmp.ne.s32.totalorder %s254, %s255
      %p264 = scmp.eq.s32.totalorder %s34, 0
      %p265 = por %p263, %p264
      %p266 = scmp.ne.s32.totalorder %s254, %s255
      %p267 = scmp.eq.s32.totalorder %s35, 1
      %p268 = por %p266, %p267
      %p270 = scmp.ne.s32.totalorder %s255, %s269
      %p271 = scmp.eq.s32.totalorder %s35, 0
      %p272 = por %p270, %p271
      %s274 = sadd.s32 %s273, 1
      %p277 = scmp.eq.s32.totalorder %s29, 1
      %p278 = scmp.ne.s32.totalorder %s273, %s275
      %p279 = scmp.eq.s32.totalorder %s29, 0
      %p280 = por %p278, %p279
      %p281 = scmp.ne.s32.totalorder %s273, %s275
      %p282 = scmp.eq.s32.totalorder %s34, 1
      %p283 = por %p281, %p282
      %p284 = scmp.ne.s32.totalorder %s275, %s276
      %p285 = scmp.eq.s32.totalorder %s34, 0
      %p286 = por %p284, %p285
      %p287 = scmp.ne.s32.totalorder %s275, %s276
      %p288 = scmp.eq.s32.totalorder %s35, 1
      %p289 = por %p287, %p288
      %p291 = scmp.ne.s32.totalorder %s276, %s290
      %p292 = scmp.eq.s32.totalorder %s35, 0
      %p293 = por %p291, %p292
      %s295 = sadd.s32 %s294, 1
      %p298 = scmp.eq.s32.totalorder %s29, 1
      %p299 = scmp.ne.s32.totalorder %s294, %s296
      %p300 = scmp.eq.s32.totalorder %s29, 0
      %p301 = por %p299, %p300
      %p302 = scmp.ne.s32.totalorder %s294, %s296
      %p303 = scmp.eq.s32.totalorder %s34, 1
      %p304 = por %p302, %p303
      %p305 = scmp.ne.s32.totalorder %s296, %s297
      %p306 = scmp.eq.s32.totalorder %s34, 0
      %p307 = por %p305, %p306
      %p308 = scmp.ne.s32.totalorder %s296, %s297
      %p309 = scmp.eq.s32.totalorder %s35, 1
      %p310 = por %p308, %p309
      %p312 = scmp.ne.s32.totalorder %s297, %s311
      %p313 = scmp.eq.s32.totalorder %s35, 0
      %p314 = por %p312, %p313
      %s316 = sadd.s32 %s315, 1
      %p319 = scmp.eq.s32.totalorder %s29, 1
      %p320 = scmp.ne.s32.totalorder %s315, %s317
      %p321 = scmp.eq.s32.totalorder %s29, 0
      %p322 = por %p320, %p321
      %p323 = scmp.ne.s32.totalorder %s315, %s317
      %p324 = scmp.eq.s32.totalorder %s34, 1
      %p325 = por %p323, %p324
      %p326 = scmp.ne.s32.totalorder %s317, %s318
      %p327 = scmp.eq.s32.totalorder %s34, 0
      %p328 = por %p326, %p327
      %p329 = scmp.ne.s32.totalorder %s317, %s318
      %p330 = scmp.eq.s32.totalorder %s35, 1
      %p331 = por %p329, %p330
      %p333 = scmp.ne.s32.totalorder %s318, %s332
      %p334 = scmp.eq.s32.totalorder %s35, 0
      %p335 = por %p333, %p334
      %s337 = sadd.s32 %s336, 1
      %p340 = scmp.eq.s32.totalorder %s29, 1
      %p341 = scmp.ne.s32.totalorder %s336, %s338
      %p342 = scmp.eq.s32.totalorder %s29, 0
      %p343 = por %p341, %p342
      %p344 = scmp.ne.s32.totalorder %s336, %s338
      %p345 = scmp.eq.s32.totalorder %s34, 1
      %p346 = por %p344, %p345
      %p347 = scmp.ne.s32.totalorder %s338, %s339
      %p348 = scmp.eq.s32.totalorder %s34, 0
      %p349 = por %p347, %p348
      %p350 = scmp.ne.s32.totalorder %s338, %s339
      %p351 = scmp.eq.s32.totalorder %s35, 1
      %p352 = por %p350, %p351
      %p354 = scmp.ne.s32.totalorder %s339, %s353
      %p355 = scmp.eq.s32.totalorder %s35, 0
      %p356 = por %p354, %p355
      %s358 = sadd.s32 %s357, 1
      %p361 = scmp.eq.s32.totalorder %s29, 1
      %p362 = scmp.ne.s32.totalorder %s357, %s359
      %p363 = scmp.eq.s32.totalorder %s29, 0
      %p364 = por %p362, %p363
      %p365 = scmp.ne.s32.totalorder %s357, %s359
      %p366 = scmp.eq.s32.totalorder %s34, 1
      %p367 = por %p365, %p366
      %p368 = scmp.ne.s32.totalorder %s359, %s360
      %p369 = scmp.eq.s32.totalorder %s34, 0
      %p370 = por %p368, %p369
      %p371 = scmp.ne.s32.totalorder %s359, %s360
      %p372 = scmp.eq.s32.totalorder %s35, 1
      %p373 = por %p371, %p372
      %p375 = scmp.ne.s32.totalorder %s360, %s374
      %p376 = scmp.eq.s32.totalorder %s35, 0
      %p377 = por %p375, %p376
      %s379 = sadd.s32 %s378, 1
      %p382 = scmp.eq.s32.totalorder %s29, 1
      %p383 = scmp.ne.s32.totalorder %s378, %s380
      %p384 = scmp.eq.s32.totalorder %s29, 0
      %p385 = por %p383, %p384
      %p386 = scmp.ne.s32.totalorder %s378, %s380
      %p387 = scmp.eq.s32.totalorder %s34, 1
      %p388 = por %p386, %p387
      %p389 = scmp.ne.s32.totalorder %s380, %s381
      %p390 = scmp.eq.s32.totalorder %s34, 0
      %p391 = por %p389, %p390
      %p392 = scmp.ne.s32.totalorder %s380, %s381
      %p393 = scmp.eq.s32.totalorder %s35, 1
      %p394 = por %p392, %p393
      %p396 = scmp.ne.s32.totalorder %s381, %s395
      %p397 = scmp.eq.s32.totalorder %s35, 0
      %p398 = por %p396, %p397
      %s400 = sadd.s32 %s399, 1
      %p403 = scmp.eq.s32.totalorder %s29, 1
      %p404 = scmp.ne.s32.totalorder %s399, %s401
      %p405 = scmp.eq.s32.totalorder %s29, 0
      %p406 = por %p404, %p405
      %p407 = scmp.ne.s32.totalorder %s399, %s401
      %p408 = scmp.eq.s32.totalorder %s34, 1
      %p409 = por %p407, %p408
      %p410 = scmp.ne.s32.totalorder %s401, %s402
      %p411 = scmp.eq.s32.totalorder %s34, 0
      %p412 = por %p410, %p411
      %p413 = scmp.ne.s32.totalorder %s401, %s402
      %p414 = scmp.eq.s32.totalorder %s35, 1
      %p415 = por %p413, %p414
      %p417 = scmp.ne.s32.totalorder %s402, %s416
      %p418 = scmp.eq.s32.totalorder %s35, 0
      %p419 = por %p417, %p418
      %s421 = sadd.s32 %s420, 1
      %p424 = scmp.eq.s32.totalorder %s29, 1
      %p425 = scmp.ne.s32.totalorder %s420, %s422
      %p426 = scmp.eq.s32.totalorder %s29, 0
      %p427 = por %p425, %p426
      %p428 = scmp.ne.s32.totalorder %s420, %s422
      %p429 = scmp.eq.s32.totalorder %s34, 1
      %p430 = por %p428, %p429
      %p431 = scmp.ne.s32.totalorder %s422, %s423
      %p432 = scmp.eq.s32.totalorder %s34, 0
      %p433 = por %p431, %p432
      %p434 = scmp.ne.s32.totalorder %s422, %s423
      %p435 = scmp.eq.s32.totalorder %s35, 1
      %p436 = por %p434, %p435
      %p438 = scmp.ne.s32.totalorder %s423, %s437
      %p439 = scmp.eq.s32.totalorder %s35, 0
      %p440 = por %p438, %p439
      %s442 = sadd.s32 %s441, 1
      %p445 = scmp.eq.s32.totalorder %s29, 1
      %p446 = scmp.ne.s32.totalorder %s441, %s443
      %p447 = scmp.eq.s32.totalorder %s29, 0
      %p448 = por %p446, %p447
      %p449 = scmp.ne.s32.totalorder %s441, %s443
      %p450 = scmp.eq.s32.totalorder %s34, 1
      %p451 = por %p449, %p450
      %p452 = scmp.ne.s32.totalorder %s443, %s444
      %p453 = scmp.eq.s32.totalorder %s34, 0
      %p454 = por %p452, %p453
      %p455 = scmp.ne.s32.totalorder %s443, %s444
      %p456 = scmp.eq.s32.totalorder %s35, 1
      %p457 = por %p455, %p456
      %p459 = scmp.ne.s32.totalorder %s444, %s458
      %p460 = scmp.eq.s32.totalorder %s35, 0
      %p461 = por %p459, %p460
      %s462 = ssub.s32 %s29, %s36
      %p463 = scmp.eq.s32.totalorder %s462, 0
      %s465 = sadd.s32 %s464, 1
      %s466 = scalar_select %p463, %s464, %s465
      %p469 = pneg %p463
      %p470 = scmp.eq.s32.totalorder %s29, 1
      %p471 = por %p469, %p470
      %p472 = scmp.ne.s32.totalorder %s464, %s467
      %p473 = scmp.eq.s32.totalorder %s29, 0
      %p474 = por %p472, %p473
      %p475 = scmp.ne.s32.totalorder %s464, %s467
      %p476 = scmp.eq.s32.totalorder %s34, 1
      %p477 = por %p475, %p476
      %p478 = scmp.ne.s32.totalorder %s467, %s468
      %p479 = scmp.eq.s32.totalorder %s34, 0
      %p480 = por %p478, %p479
      %p481 = scmp.ne.s32.totalorder %s467, %s468
      %p482 = scmp.eq.s32.totalorder %s35, 1
      %p483 = por %p481, %p482
      %p485 = scmp.ne.s32.totalorder %s468, %s484
      %p486 = scmp.eq.s32.totalorder %s35, 0
      %p487 = por %p485, %p486
      %p488 = scmp.le.s32.totalorder 1, %s29
      %p489 = scmp.lt.s32.totalorder %s29, 3
      %p490 = pnand %p488, %p489
      %p491 = pneg %p490
      // Predicated region
      $region9: #{custom_mvitv2_forward.1} parent=5 // pred_check
        _
      $region10: #{custom_mvitv2_forward.1} parent=5 // pred_check_branch
        %493 = sbr.rel (%p490) target = $region12
      $region11: #{custom_mvitv2_forward.1} parent=5 // pred_region
        %s494 = ssub.s32 %s29, 1
        // Predicated region
        $region13: #{custom_mvitv2_forward.1} parent=11 // pred_check
          %p495 = pneg %p76
        $region14: #{custom_mvitv2_forward.1} parent=11 // pred_check_branch
          %497 = sbr.rel (%p495) target = $region16
        $region15: #{custom_mvitv2_forward.1} parent=11 // pred_region
          _
        $region16: #{custom_mvitv2_forward.1} parent=11 // pred_fallthru
          _
        // Predicated region
        $region17: #{custom_mvitv2_forward.1} parent=11 // pred_check
          %p498 = pneg %p97
        $region18: #{custom_mvitv2_forward.1} parent=11 // pred_check_branch
          %500 = sbr.rel (%p498) target = $region20
        $region19: #{custom_mvitv2_forward.1} parent=11 // pred_region
          _
        $region20: #{custom_mvitv2_forward.1} parent=11 // pred_fallthru
          _
        // Predicated region
        $region21: #{custom_mvitv2_forward.1} parent=11 // pred_check
          %p501 = pneg %p118
        $region22: #{custom_mvitv2_forward.1} parent=11 // pred_check_branch
          %503 = sbr.rel (%p501) target = $region24
        $region23: #{custom_mvitv2_forward.1} parent=11 // pred_region
          _
        $region24: #{custom_mvitv2_forward.1} parent=11 // pred_fallthru
          _
        // Predicated region
        $region25: #{custom_mvitv2_forward.1} parent=11 // pred_check
          %p504 = pneg %p139
        $region26: #{custom_mvitv2_forward.1} parent=11 // pred_check_branch
          %506 = sbr.rel (%p504) target = $region28
        $region27: #{custom_mvitv2_forward.1} parent=11 // pred_region
          _
        $region28: #{custom_mvitv2_forward.1} parent=11 // pred_fallthru
          _
        // Predicated region
        $region29: #{custom_mvitv2_forward.1} parent=11 // pred_check
          %p507 = pneg %p160
        $region30: #{custom_mvitv2_forward.1} parent=11 // pred_check_branch
          %509 = sbr.rel (%p507) target = $region32
        $region31: #{custom_mvitv2_forward.1} parent=11 // pred_region
          _
        $region32: #{custom_mvitv2_forward.1} parent=11 // pred_fallthru
          _
        // Predicated region
        $region33: #{custom_mvitv2_forward.1} parent=11 // pred_check
          %p510 = pneg %p181
        $region34: #{custom_mvitv2_forward.1} parent=11 // pred_check_branch
          %512 = sbr.rel (%p510) target = $region36
        $region35: #{custom_mvitv2_forward.1} parent=11 // pred_region
          _
        $region36: #{custom_mvitv2_forward.1} parent=11 // pred_fallthru
          _
        // Predicated region
        $region37: #{custom_mvitv2_forward.1} parent=11 // pred_check
          %p513 = pneg %p202
        $region38: #{custom_mvitv2_forward.1} parent=11 // pred_check_branch
          %515 = sbr.rel (%p513) target = $region40
        $region39: #{custom_mvitv2_forward.1} parent=11 // pred_region
          _
        $region40: #{custom_mvitv2_forward.1} parent=11 // pred_fallthru
          _
        // Predicated region
        $region41: #{custom_mvitv2_forward.1} parent=11 // pred_check
          %p516 = pneg %p223
        $region42: #{custom_mvitv2_forward.1} parent=11 // pred_check_branch
          %518 = sbr.rel (%p516) target = $region44
        $region43: #{custom_mvitv2_forward.1} parent=11 // pred_region
          _
        $region44: #{custom_mvitv2_forward.1} parent=11 // pred_fallthru
          _
        // Predicated region
        $region45: #{custom_mvitv2_forward.1} parent=11 // pred_check
          %p519 = pneg %p244
        $region46: #{custom_mvitv2_forward.1} parent=11 // pred_check_branch
          %521 = sbr.rel (%p519) target = $region48
        $region47: #{custom_mvitv2_forward.1} parent=11 // pred_region
          _
        $region48: #{custom_mvitv2_forward.1} parent=11 // pred_fallthru
          _
        // Predicated region
        $region49: #{custom_mvitv2_forward.1} parent=11 // pred_check
          %p522 = pneg %p265
        $region50: #{custom_mvitv2_forward.1} parent=11 // pred_check_branch
          %524 = sbr.rel (%p522) target = $region52
        $region51: #{custom_mvitv2_forward.1} parent=11 // pred_region
          _
        $region52: #{custom_mvitv2_forward.1} parent=11 // pred_fallthru
          _
        // Predicated region
        $region53: #{custom_mvitv2_forward.1} parent=11 // pred_check
          %p525 = pneg %p286
        $region54: #{custom_mvitv2_forward.1} parent=11 // pred_check_branch
          %527 = sbr.rel (%p525) target = $region56
        $region55: #{custom_mvitv2_forward.1} parent=11 // pred_region
          _
        $region56: #{custom_mvitv2_forward.1} parent=11 // pred_fallthru
          _
        // Predicated region
        $region57: #{custom_mvitv2_forward.1} parent=11 // pred_check
          %p528 = pneg %p307
        $region58: #{custom_mvitv2_forward.1} parent=11 // pred_check_branch
          %530 = sbr.rel (%p528) target = $region60
        $region59: #{custom_mvitv2_forward.1} parent=11 // pred_region
          _
        $region60: #{custom_mvitv2_forward.1} parent=11 // pred_fallthru
          _
        // Predicated region
        $region61: #{custom_mvitv2_forward.1} parent=11 // pred_check
          %p531 = pneg %p328
        $region62: #{custom_mvitv2_forward.1} parent=11 // pred_check_branch
          %533 = sbr.rel (%p531) target = $region64
        $region63: #{custom_mvitv2_forward.1} parent=11 // pred_region
          _
        $region64: #{custom_mvitv2_forward.1} parent=11 // pred_fallthru
          _
        // Predicated region
        $region65: #{custom_mvitv2_forward.1} parent=11 // pred_check
          %p534 = pneg %p349
        $region66: #{custom_mvitv2_forward.1} parent=11 // pred_check_branch
          %536 = sbr.rel (%p534) target = $region68
        $region67: #{custom_mvitv2_forward.1} parent=11 // pred_region
          _
        $region68: #{custom_mvitv2_forward.1} parent=11 // pred_fallthru
          _
        // Predicated region
        $region69: #{custom_mvitv2_forward.1} parent=11 // pred_check
          %p537 = pneg %p370
        $region70: #{custom_mvitv2_forward.1} parent=11 // pred_check_branch
          %539 = sbr.rel (%p537) target = $region72
        $region71: #{custom_mvitv2_forward.1} parent=11 // pred_region
          _
        $region72: #{custom_mvitv2_forward.1} parent=11 // pred_fallthru
          _
        // Predicated region
        $region73: #{custom_mvitv2_forward.1} parent=11 // pred_check
          %p540 = pneg %p391
        $region74: #{custom_mvitv2_forward.1} parent=11 // pred_check_branch
          %542 = sbr.rel (%p540) target = $region76
        $region75: #{custom_mvitv2_forward.1} parent=11 // pred_region
          _
        $region76: #{custom_mvitv2_forward.1} parent=11 // pred_fallthru
          _
        // Predicated region
        $region77: #{custom_mvitv2_forward.1} parent=11 // pred_check
          %p543 = pneg %p412
        $region78: #{custom_mvitv2_forward.1} parent=11 // pred_check_branch
          %545 = sbr.rel (%p543) target = $region80
        $region79: #{custom_mvitv2_forward.1} parent=11 // pred_region
          _
        $region80: #{custom_mvitv2_forward.1} parent=11 // pred_fallthru
          _
        // Predicated region
        $region81: #{custom_mvitv2_forward.1} parent=11 // pred_check
          %p546 = pneg %p433
        $region82: #{custom_mvitv2_forward.1} parent=11 // pred_check_branch
          %548 = sbr.rel (%p546) target = $region84
        $region83: #{custom_mvitv2_forward.1} parent=11 // pred_region
          _
        $region84: #{custom_mvitv2_forward.1} parent=11 // pred_fallthru
          _
        // Predicated region
        $region85: #{custom_mvitv2_forward.1} parent=11 // pred_check
          %p549 = pneg %p454
        $region86: #{custom_mvitv2_forward.1} parent=11 // pred_check_branch
          %551 = sbr.rel (%p549) target = $region88
        $region87: #{custom_mvitv2_forward.1} parent=11 // pred_region
          _
        $region88: #{custom_mvitv2_forward.1} parent=11 // pred_fallthru
          _
      $region12: #{custom_mvitv2_forward.1} parent=5 // pred_fallthru
        _
      %p552 = scmp.lt.s32.totalorder %s29, 2
      // Predicated region
      $region89: #{custom_mvitv2_forward.1} parent=5 // pred_check
        %p553 = pneg %p552
      $region90: #{custom_mvitv2_forward.1} parent=5 // pred_check_branch
        %555 = sbr.rel (%p553) target = $region92
      $region91: #{custom_mvitv2_forward.1} parent=5 // pred_region
        // Predicated region
        $region93: #{custom_mvitv2_forward.1} parent=91 // pred_check
          %p556 = pneg %p49
        $region94: #{custom_mvitv2_forward.1} parent=91 // pred_check_branch
          %558 = sbr.rel (%p556) target = $region96
        $region95: #{custom_mvitv2_forward.1} parent=91 // pred_region
          %p559 = scmp.lt.s32.totalorder %s29, 1
          %s560 = scalar_select %p559, %s29, 1
          %s561 = smul.addr %s560, 132
          %s562 = smul.addr %s561, 4
          %s563 = scalar_lea.vmem %s0, %s562
        $region96: #{custom_mvitv2_forward.1} parent=91 // pred_fallthru
          _
      $region92: #{custom_mvitv2_forward.1} parent=5 // pred_fallthru
        _
      %p564 = scmp.le.s32.totalorder 1, %s29
      %p565 = scmp.lt.s32.totalorder %s29, 3
      %p566 = pnand %p564, %p565
      %p567 = pneg %p566
      // Predicated region
      $region97: #{custom_mvitv2_forward.1} parent=5 // pred_check
        _
      $region98: #{custom_mvitv2_forward.1} parent=5 // pred_check_branch
        %569 = sbr.rel (%p566) target = $region100
      $region99: #{custom_mvitv2_forward.1} parent=5 // pred_region
        %s570 = ssub.s32 %s29, 1
        %p571 = scmp.lt.s32.totalorder %s34, 1
        %s572 = scalar_select %p571, %s34, 1
        %s573 = smul.addr %s572, 132
        %s574 = smul.addr %s573, 4
        %s575 = scalar_lea.vmem %s0, %s574
        %p576 = pneg %p55
        %p577 = pneg %p52
        %p578 = pneg %p76
        %p579 = pneg %p73
        %p580 = pneg %p97
        %p581 = pneg %p94
        %p582 = pneg %p118
        %p583 = pneg %p115
        %p584 = pneg %p139
        %p585 = pneg %p136
        %p586 = pneg %p160
        %p587 = pneg %p157
        %p588 = pneg %p181
        %p589 = pneg %p178
        %p590 = pneg %p202
        %p591 = pneg %p199
        %p592 = pneg %p223
        %p593 = pneg %p220
        %p594 = pneg %p244
        %p595 = pneg %p241
        %p596 = pneg %p265
        %p597 = pneg %p262
        %p598 = pneg %p286
        %p599 = pneg %p283
        %p600 = pneg %p307
        %p601 = pneg %p304
        %p602 = pneg %p328
        %p603 = pneg %p325
        %p604 = pneg %p349
        %p605 = pneg %p346
        %p606 = pneg %p370
        %p607 = pneg %p367
        %p608 = pneg %p391
        %p609 = pneg %p388
        %p610 = pneg %p412
        %p611 = pneg %p409
        %p612 = pneg %p433
        %p613 = pneg %p430
        %p614 = pneg %p454
        %p615 = pneg %p451
        %p616 = pneg %p480
        %p617 = pneg %p477
        %s618 = sand.u32 %s467, 1
        %s619 = scalar_lea.sflag [#allocation3], %s618
        %s620 = sand.u32 %s467, 1
        %s621 = scalar_lea.vmem [#allocation2], %s620
        %p622 = scmp.lt.s32.totalorder %s34, 1
        %s623 = scalar_select %p622, %s34, 1
        %s624 = smul.addr %s623, 132
        %s625 = smul.addr %s624, 4
        %s626 = scalar_lea.vmem %s0, %s625
        %v628 = vld [vmem:[%s626] sm:$0xff]
        %v629 = vld [vmem:[%s626 + $0x8] sm:$0xff]
        %v630 = vld [vmem:[%s626 + $0x10] sm:$0xff]
        %v631 = vld [vmem:[%s626 + $0x18] sm:$0xff]
        %v632 = vld [vmem:[%s626 + $0x20] sm:$0xff]
        %v633 = vld [vmem:[%s626 + $0x28] sm:$0xff]
        %v634 = vld [vmem:[%s626 + $0x30] sm:$0xff]
        %v635 = vld [vmem:[%s626 + $0x38] sm:$0xff]
        %v636 = vld [vmem:[%s626 + $0x40] sm:$0xff]
        %v637 = vld [vmem:[%s626 + $0x48] sm:$0xff]
        %v638 = vld [vmem:[%s626 + $0x50] sm:$0xff]
        %v639 = vld [vmem:[%s626 + $0x58] sm:$0xff]
        %v640 = vld [vmem:[%s626 + $0x60] sm:$0xff]
        %v641 = vld [vmem:[%s626 + $0x68] sm:$0xff]
        %v642 = vld [vmem:[%s626 + $0x70] sm:$0xff]
        %v643 = vld [vmem:[%s626 + $0x78] sm:$0xff]
        %v644 = vld [vmem:[%s626 + $0x80] sm:$0xff]
        %v645 = vld [vmem:[%s626 + $0x88] sm:$0xff]
        %v646 = vld [vmem:[%s626 + $0x90] sm:$0xff]
        %v647 = vld [vmem:[%s626 + $0x98] sm:$0xff]
        %v648 = vld [vmem:[%s626 + $0xa0] sm:$0xff]
        %v649 = vld [vmem:[%s626 + $0xa8] sm:$0xff]
        %v650 = vld [vmem:[%s626 + $0xb0] sm:$0xff]
        %v651 = vld [vmem:[%s626 + $0xb8] sm:$0xff]
        %v652 = vld [vmem:[%s626 + $0xc0] sm:$0xff]
        %v653 = vld [vmem:[%s626 + $0xc8] sm:$0xff]
        %v654 = vld [vmem:[%s626 + $0xd0] sm:$0xff]
        %v655 = vld [vmem:[%s626 + $0xd8] sm:$0xff]
        %v656 = vld [vmem:[%s626 + $0xe0] sm:$0xff]
        %v657 = vld [vmem:[%s626 + $0xe8] sm:$0xff]
        %v658 = vld [vmem:[%s626 + $0xf0] sm:$0xff]
        %v659 = vld [vmem:[%s626 + $0xf8] sm:$0xff]
        %v660 = vld [vmem:[%s626 + $0x100] sm:$0xff]
        %v661 = vld [vmem:[%s626 + $0x108] sm:$0xff]
        %v662 = vld [vmem:[%s626 + $0x110] sm:$0xff]
        %v663 = vld [vmem:[%s626 + $0x118] sm:$0xff]
        %v664 = vld [vmem:[%s626 + $0x120] sm:$0xff]
        %v665 = vld [vmem:[%s626 + $0x128] sm:$0xff]
        %v666 = vld [vmem:[%s626 + $0x130] sm:$0xff]
        %v667 = vld [vmem:[%s626 + $0x138] sm:$0xff]
        %v668 = vld [vmem:[%s626 + $0x140] sm:$0xff]
        %v669 = vld [vmem:[%s626 + $0x148] sm:$0xff]
        %v670 = vld [vmem:[%s626 + $0x150] sm:$0xff]
        %v671 = vld [vmem:[%s626 + $0x158] sm:$0xff]
        %v672 = vld [vmem:[%s626 + $0x160] sm:$0xff]
        %v673 = vld [vmem:[%s626 + $0x168] sm:$0xff]
        %v674 = vld [vmem:[%s626 + $0x170] sm:$0xff]
        %v675 = vld [vmem:[%s626 + $0x178] sm:$0xff]
        %v676 = vld [vmem:[%s626 + $0x180] sm:$0xff]
        %v677 = vld [vmem:[%s626 + $0x188] sm:$0xff]
        %v678 = vld [vmem:[%s626 + $0x190] sm:$0xff]
        %v679 = vld [vmem:[%s626 + $0x198] sm:$0xff]
        %v680 = vld [vmem:[%s626 + $0x1a0] sm:$0xff]
        %v681 = vld [vmem:[%s626 + $0x1a8] sm:$0xff]
        %v682 = vld [vmem:[%s626 + $0x1b0] sm:$0xff]
        %v683 = vld [vmem:[%s626 + $0x1b8] sm:$0xff]
        %v684 = vld [vmem:[%s626 + $0x1c0] sm:$0xff]
        %v685 = vld [vmem:[%s626 + $0x1c8] sm:$0xff]
        %v686 = vld [vmem:[%s626 + $0x1d0] sm:$0xff]
        %v687 = vld [vmem:[%s626 + $0x1d8] sm:$0xff]
        %v688 = vld [vmem:[%s626 + $0x1e0] sm:$0xff]
        %v689 = vld [vmem:[%s626 + $0x1e8] sm:$0xff]
        %v690 = vld [vmem:[%s626 + $0x1f0] sm:$0xff]
        %v691 = vld [vmem:[%s626 + $0x1f8] sm:$0xff]
        %v692 = vld [vmem:[%s626 + $0x200] sm:$0xff]
        %v693 = vld [vmem:[%s626 + $0x208] sm:$0xff]
        %v694 = vld [vmem:[%s3] sm:$0xf]
        %v695 = vld [vmem:[%s3 + $0x4] sm:$0xf]
        %v696 = vld [vmem:[%s3 + $0x8] sm:$0xf]
        %v697 = vld [vmem:[%s3 + $0xc] sm:$0xf]
        %v698 = vld [vmem:[%s3 + $0x10] sm:$0xf]
        %v699 = vld [vmem:[%s3 + $0x14] sm:$0xf]
        %v700 = vld [vmem:[%s3 + $0x18] sm:$0xf]
        %v701 = vld [vmem:[%s3 + $0x1c] sm:$0xf]
        %v702 = vld [vmem:[%s3 + $0x20] sm:$0xf]
        %v703 = vld [vmem:[%s3 + $0x24] sm:$0xf]
        %v704 = vld [vmem:[%s3 + $0x28] sm:$0xf]
        %v705 = vld [vmem:[%s3 + $0x2c] sm:$0xf]
        %v706 = vld [vmem:[%s3 + $0x30] sm:$0xf]
        %v707 = vld [vmem:[%s3 + $0x34] sm:$0xf]
        %v708 = vld [vmem:[%s3 + $0x38] sm:$0xf]
        %v709 = vld [vmem:[%s3 + $0x3c] sm:$0xf]
        %v710 = vld [vmem:[%s3 + $0x40] sm:$0xf]
        %v711 = vld [vmem:[%s3 + $0x44] sm:$0xf]
        %v712 = vld [vmem:[%s3 + $0x48] sm:$0xf]
        %v713 = vld [vmem:[%s3 + $0x4c] sm:$0xf]
        %v714 = vld [vmem:[%s3 + $0x50] sm:$0xf]
        %v715 = vld [vmem:[%s3 + $0x54] sm:$0xf]
        %v716 = vld [vmem:[%s3 + $0x58] sm:$0xf]
        %v717 = vld [vmem:[%s3 + $0x5c] sm:$0xf]
        %v718 = vld [vmem:[%s3 + $0x60] sm:$0xf]
        %v719 = vld [vmem:[%s3 + $0x64] sm:$0xf]
        %v720 = vld [vmem:[%s3 + $0x68] sm:$0xf]
        %v721 = vld [vmem:[%s3 + $0x6c] sm:$0xf]
        %v722 = vld [vmem:[%s3 + $0x70] sm:$0xf]
        %v723 = vld [vmem:[%s3 + $0x74] sm:$0xf]
        %v724 = vld [vmem:[%s3 + $0x78] sm:$0xf]
        %v725 = vld [vmem:[%s3 + $0x7c] sm:$0xf]
        %v726 = vld [vmem:[%s3 + $0x80] sm:$0xf]
        %v727 = vld [vmem:[%s3 + $0x84] sm:$0xf]
        %v728 = vld [vmem:[%s3 + $0x88] sm:$0xf]
        %v729 = vld [vmem:[%s3 + $0x8c] sm:$0xf]
        %v730 = vld [vmem:[%s3 + $0x90] sm:$0xf]
        %v731 = vld [vmem:[%s3 + $0x94] sm:$0xf]
        %v732 = vld [vmem:[%s3 + $0x98] sm:$0xf]
        %v733 = vld [vmem:[%s3 + $0x9c] sm:$0xf]
        %v734 = vld [vmem:[%s3 + $0xa0] sm:$0xf]
        %v735 = vld [vmem:[%s3 + $0xa4] sm:$0xf]
        %v736 = vld [vmem:[%s3 + $0xa8] sm:$0xf]
        %v737 = vld [vmem:[%s3 + $0xac] sm:$0xf]
        %v738 = vld [vmem:[%s3 + $0xb0] sm:$0xf]
        %v739 = vld [vmem:[%s3 + $0xb4] sm:$0xf]
        %v740 = vld [vmem:[%s3 + $0xb8] sm:$0xf]
        %v741 = vld [vmem:[%s3 + $0xbc] sm:$0xf]
        %v742 = vld [vmem:[%s3 + $0xc0] sm:$0xf]
        %v743 = vld [vmem:[%s3 + $0xc4] sm:$0xf]
        %v744 = vld [vmem:[%s3 + $0xc8] sm:$0xf]
        %v745 = vld [vmem:[%s3 + $0xcc] sm:$0xf]
        %v746 = vld [vmem:[%s3 + $0xd0] sm:$0xf]
        %v747 = vld [vmem:[%s3 + $0xd4] sm:$0xf]
        %v748 = vld [vmem:[%s3 + $0xd8] sm:$0xf]
        %v749 = vld [vmem:[%s3 + $0xdc] sm:$0xf]
        %v750 = vld [vmem:[%s3 + $0xe0] sm:$0xf]
        %v751 = vld [vmem:[%s3 + $0xe4] sm:$0xf]
        %v752 = vld [vmem:[%s3 + $0xe8] sm:$0xf]
        %v753 = vld [vmem:[%s3 + $0xec] sm:$0xf]
        %v754 = vld [vmem:[%s3 + $0xf0] sm:$0xf]
        %v755 = vld [vmem:[%s3 + $0xf4] sm:$0xf]
        %v756 = vld [vmem:[%s3 + $0xf8] sm:$0xf]
        %v757 = vld [vmem:[%s3 + $0xfc] sm:$0xf]
        %v758 = vld [vmem:[%s1] sm:$0xff]
        %v759 = vld [vmem:[%s1 + $0x8] sm:$0xff]
        %v760 = vld [vmem:[%s1 + $0x10] sm:$0xff]
        %v761 = vld [vmem:[%s1 + $0x18] sm:$0xff]
        %v762 = vld [vmem:[%s1 + $0x20] sm:$0xff]
        %v763 = vld [vmem:[%s1 + $0x28] sm:$0xff]
        %v764 = vld [vmem:[%s1 + $0x30] sm:$0xff]
        %v765 = vld [vmem:[%s1 + $0x38] sm:$0xff]
        %v766 = vld [vmem:[%s1 + $0x40] sm:$0xff]
        %v767 = vld [vmem:[%s1 + $0x48] sm:$0xff]
        %v768 = vld [vmem:[%s1 + $0x50] sm:$0xff]
        %v769 = vld [vmem:[%s1 + $0x58] sm:$0xff]
        %v770 = vld [vmem:[%s1 + $0x60] sm:$0xff]
        %v771 = vld [vmem:[%s1 + $0x68] sm:$0xff]
        %v772 = vld [vmem:[%s1 + $0x70] sm:$0xff]
        %v773 = vld [vmem:[%s1 + $0x78] sm:$0xff]
        %v774 = vld [vmem:[%s1 + $0x80] sm:$0xff]
        %v775 = vld [vmem:[%s1 + $0x88] sm:$0xff]
        %v776 = vld [vmem:[%s1 + $0x90] sm:$0xff]
        %v777 = vld [vmem:[%s1 + $0x98] sm:$0xff]
        %v778 = vld [vmem:[%s1 + $0xa0] sm:$0xff]
        %v779 = vld [vmem:[%s1 + $0xa8] sm:$0xff]
        %v780 = vld [vmem:[%s1 + $0xb0] sm:$0xff]
        %v781 = vld [vmem:[%s1 + $0xb8] sm:$0xff]
        %v782 = vld [vmem:[%s1 + $0xc0] sm:$0xff]
        %v783 = vld [vmem:[%s1 + $0xc8] sm:$0xff]
        %v784 = vld [vmem:[%s1 + $0xd0] sm:$0xff]
        %v785 = vld [vmem:[%s1 + $0xd8] sm:$0xff]
        %v786 = vld [vmem:[%s1 + $0xe0] sm:$0xff]
        %v787 = vld [vmem:[%s1 + $0xe8] sm:$0xff]
        %v788 = vld [vmem:[%s1 + $0xf0] sm:$0xff]
        %v789 = vld [vmem:[%s1 + $0xf8] sm:$0xff]
        %v790 = vld [vmem:[%s1 + $0x100] sm:$0xff]
        %v857 = vunpack.c.l.b16 %v628
        %v858 = vunpack.c.h.b16 %v628
        %v859 = vunpack.c.l.b16 %v629
        %v860 = vunpack.c.h.b16 %v629
        %v861 = vunpack.c.l.b16 %v630
        %v862 = vunpack.c.h.b16 %v630
        %v863 = vunpack.c.l.b16 %v631
        %v864 = vunpack.c.h.b16 %v631
        %v865 = vunpack.c.l.b16 %v632
        %v866 = vunpack.c.h.b16 %v632
        %v867 = vunpack.c.l.b16 %v633
        %v868 = vunpack.c.h.b16 %v633
        %v869 = vunpack.c.l.b16 %v634
        %v870 = vunpack.c.h.b16 %v634
        %v871 = vunpack.c.l.b16 %v635
        %v872 = vunpack.c.h.b16 %v635
        %v873 = vunpack.c.l.b16 %v636
        %v874 = vunpack.c.h.b16 %v636
        %v875 = vunpack.c.l.b16 %v637
        %v876 = vunpack.c.h.b16 %v637
        %v877 = vunpack.c.l.b16 %v638
        %v878 = vunpack.c.h.b16 %v638
        %v879 = vunpack.c.l.b16 %v639
        %v880 = vunpack.c.h.b16 %v639
        %v881 = vunpack.c.l.b16 %v640
        %v882 = vunpack.c.h.b16 %v640
        %v883 = vunpack.c.l.b16 %v641
        %v884 = vunpack.c.h.b16 %v641
        %v885 = vunpack.c.l.b16 %v642
        %v886 = vunpack.c.h.b16 %v642
        %v887 = vunpack.c.l.b16 %v643
        %v888 = vunpack.c.h.b16 %v643
        %v889 = vunpack.c.l.b16 %v644
        %v890 = vunpack.c.h.b16 %v644
        %v891 = vunpack.c.l.b16 %v645
        %v892 = vunpack.c.h.b16 %v645
        %v893 = vunpack.c.l.b16 %v646
        %v894 = vunpack.c.h.b16 %v646
        %v895 = vunpack.c.l.b16 %v647
        %v896 = vunpack.c.h.b16 %v647
        %v897 = vunpack.c.l.b16 %v648
        %v898 = vunpack.c.h.b16 %v648
        %v899 = vunpack.c.l.b16 %v649
        %v900 = vunpack.c.h.b16 %v649
        %v901 = vunpack.c.l.b16 %v650
        %v902 = vunpack.c.h.b16 %v650
        %v903 = vunpack.c.l.b16 %v651
        %v904 = vunpack.c.h.b16 %v651
        %v905 = vunpack.c.l.b16 %v652
        %v906 = vunpack.c.h.b16 %v652
        %v907 = vunpack.c.l.b16 %v653
        %v908 = vunpack.c.h.b16 %v653
        %v909 = vunpack.c.l.b16 %v654
        %v910 = vunpack.c.h.b16 %v654
        %v911 = vunpack.c.l.b16 %v655
        %v912 = vunpack.c.h.b16 %v655
        %v913 = vunpack.c.l.b16 %v656
        %v914 = vunpack.c.h.b16 %v656
        %v915 = vunpack.c.l.b16 %v657
        %v916 = vunpack.c.h.b16 %v657
        %v917 = vunpack.c.l.b16 %v658
        %v918 = vunpack.c.h.b16 %v658
        %v919 = vunpack.c.l.b16 %v659
        %v920 = vunpack.c.h.b16 %v659
        %v921 = vunpack.c.l.b16 %v660
        %v922 = vunpack.c.h.b16 %v660
        %v923 = vunpack.c.l.b16 %v661
        %v924 = vunpack.c.h.b16 %v661
        %v925 = vunpack.c.l.b16 %v662
        %v926 = vunpack.c.h.b16 %v662
        %v927 = vunpack.c.l.b16 %v663
        %v928 = vunpack.c.h.b16 %v663
        %v929 = vunpack.c.l.b16 %v664
        %v930 = vunpack.c.h.b16 %v664
        %v931 = vunpack.c.l.b16 %v665
        %v932 = vunpack.c.h.b16 %v665
        %v933 = vunpack.c.l.b16 %v666
        %v934 = vunpack.c.h.b16 %v666
        %v935 = vunpack.c.l.b16 %v667
        %v936 = vunpack.c.h.b16 %v667
        %v937 = vunpack.c.l.b16 %v668
        %v938 = vunpack.c.h.b16 %v668
        %v939 = vunpack.c.l.b16 %v669
        %v940 = vunpack.c.h.b16 %v669
        %v941 = vunpack.c.l.b16 %v670
        %v942 = vunpack.c.h.b16 %v670
        %v943 = vunpack.c.l.b16 %v671
        %v944 = vunpack.c.h.b16 %v671
        %v945 = vunpack.c.l.b16 %v672
        %v946 = vunpack.c.h.b16 %v672
        %v947 = vunpack.c.l.b16 %v673
        %v948 = vunpack.c.h.b16 %v673
        %v949 = vunpack.c.l.b16 %v674
        %v950 = vunpack.c.h.b16 %v674
        %v951 = vunpack.c.l.b16 %v675
        %v952 = vunpack.c.h.b16 %v675
        %v953 = vunpack.c.l.b16 %v676
        %v954 = vunpack.c.h.b16 %v676
        %v955 = vunpack.c.l.b16 %v677
        %v956 = vunpack.c.h.b16 %v677
        %v957 = vunpack.c.l.b16 %v678
        %v958 = vunpack.c.h.b16 %v678
        %v959 = vunpack.c.l.b16 %v679
        %v960 = vunpack.c.h.b16 %v679
        %v961 = vunpack.c.l.b16 %v680
        %v962 = vunpack.c.h.b16 %v680
        %v963 = vunpack.c.l.b16 %v681
        %v964 = vunpack.c.h.b16 %v681
        %v965 = vunpack.c.l.b16 %v682
        %v966 = vunpack.c.h.b16 %v682
        %v967 = vunpack.c.l.b16 %v683
        %v968 = vunpack.c.h.b16 %v683
        %v969 = vunpack.c.l.b16 %v684
        %v970 = vunpack.c.h.b16 %v684
        %v971 = vunpack.c.l.b16 %v685
        %v972 = vunpack.c.h.b16 %v685
        %v973 = vunpack.c.l.b16 %v686
        %v974 = vunpack.c.h.b16 %v686
        %v975 = vunpack.c.l.b16 %v687
        %v976 = vunpack.c.h.b16 %v687
        %v977 = vunpack.c.l.b16 %v688
        %v978 = vunpack.c.h.b16 %v688
        %v979 = vunpack.c.l.b16 %v689
        %v980 = vunpack.c.h.b16 %v689
        %v981 = vunpack.c.l.b16 %v690
        %v982 = vunpack.c.h.b16 %v690
        %v983 = vunpack.c.l.b16 %v691
        %v984 = vunpack.c.h.b16 %v691
        %v985 = vunpack.c.l.b16 %v692
        %v986 = vunpack.c.h.b16 %v692
        %v987 = vunpack.c.l.b16 %v693
        %v988 = vunpack.c.h.b16 %v693
        %v989 = vpack.c.b16 %v861, %v857
        %v990 = vpack.c.b16 %v862, %v858
        %v991 = vpack.c.b16 %v863, %v859
        %v992 = vpack.c.b16 %v864, %v860
        %v993 = vpack.c.b16 %v869, %v865
        %v994 = vpack.c.b16 %v870, %v866
        %v995 = vpack.c.b16 %v871, %v867
        %v996 = vpack.c.b16 %v872, %v868
        %v997 = vpack.c.b16 %v877, %v873
        %v998 = vpack.c.b16 %v878, %v874
        %v999 = vpack.c.b16 %v879, %v875
        %v1000 = vpack.c.b16 %v880, %v876
        %v1001 = vpack.c.b16 %v885, %v881
        %v1002 = vpack.c.b16 %v886, %v882
        %v1003 = vpack.c.b16 %v887, %v883
        %v1004 = vpack.c.b16 %v888, %v884
        %v1005 = vpack.c.b16 %v893, %v889
        %v1006 = vpack.c.b16 %v894, %v890
        %v1007 = vpack.c.b16 %v895, %v891
        %v1008 = vpack.c.b16 %v896, %v892
        %v1009 = vpack.c.b16 %v901, %v897
        %v1010 = vpack.c.b16 %v902, %v898
        %v1011 = vpack.c.b16 %v903, %v899
        %v1012 = vpack.c.b16 %v904, %v900
        %v1013 = vpack.c.b16 %v909, %v905
        %v1014 = vpack.c.b16 %v910, %v906
        %v1015 = vpack.c.b16 %v911, %v907
        %v1016 = vpack.c.b16 %v912, %v908
        %v1017 = vpack.c.b16 %v917, %v913
        %v1018 = vpack.c.b16 %v918, %v914
        %v1019 = vpack.c.b16 %v919, %v915
        %v1020 = vpack.c.b16 %v920, %v916
        %v1021 = vpack.c.b16 %v925, %v921
        %v1022 = vpack.c.b16 %v926, %v922
        %v1023 = vpack.c.b16 %v927, %v923
        %v1024 = vpack.c.b16 %v928, %v924
        %v1025 = vpack.c.b16 %v933, %v929
        %v1026 = vpack.c.b16 %v934, %v930
        %v1027 = vpack.c.b16 %v935, %v931
        %v1028 = vpack.c.b16 %v936, %v932
        %v1029 = vpack.c.b16 %v941, %v937
        %v1030 = vpack.c.b16 %v942, %v938
        %v1031 = vpack.c.b16 %v943, %v939
        %v1032 = vpack.c.b16 %v944, %v940
        %v1033 = vpack.c.b16 %v949, %v945
        %v1034 = vpack.c.b16 %v950, %v946
        %v1035 = vpack.c.b16 %v951, %v947
        %v1036 = vpack.c.b16 %v952, %v948
        %v1037 = vpack.c.b16 %v957, %v953
        %v1038 = vpack.c.b16 %v958, %v954
        %v1039 = vpack.c.b16 %v959, %v955
        %v1040 = vpack.c.b16 %v960, %v956
        %v1041 = vpack.c.b16 %v965, %v961
        %v1042 = vpack.c.b16 %v966, %v962
        %v1043 = vpack.c.b16 %v967, %v963
        %v1044 = vpack.c.b16 %v968, %v964
        %v1045 = vpack.c.b16 %v973, %v969
        %v1046 = vpack.c.b16 %v974, %v970
        %v1047 = vpack.c.b16 %v975, %v971
        %v1048 = vpack.c.b16 %v976, %v972
        %v1049 = vpack.c.b16 %v981, %v977
        %v1050 = vpack.c.b16 %v982, %v978
        %v1051 = vpack.c.b16 %v983, %v979
        %v1052 = vpack.c.b16 %v984, %v980
        %v1053 = vpack.c.b16 %v985, %v985
        %v1054 = vpack.c.b16 %v986, %v986
        %v1055 = vpack.c.b16 %v987, %v987
        %v1056 = vpack.c.b16 %v988, %v988
        %v1189 = vunpack.c.l.b16 %v694
        %v1190 = vunpack.c.l.b16 %v695
        %v1191 = vunpack.c.l.b16 %v696
        %v1192 = vunpack.c.l.b16 %v697
        %v1193 = vunpack.c.l.b16 %v698
        %v1194 = vunpack.c.l.b16 %v699
        %v1195 = vunpack.c.l.b16 %v700
        %v1196 = vunpack.c.l.b16 %v701
        %v1197 = vunpack.c.l.b16 %v702
        %v1198 = vunpack.c.l.b16 %v703
        %v1199 = vunpack.c.l.b16 %v704
        %v1200 = vunpack.c.l.b16 %v705
        %v1201 = vunpack.c.l.b16 %v706
        %v1202 = vunpack.c.l.b16 %v707
        %v1203 = vunpack.c.l.b16 %v708
        %v1204 = vunpack.c.l.b16 %v709
        %v1205 = vunpack.c.l.b16 %v710
        %v1206 = vunpack.c.l.b16 %v711
        %v1207 = vunpack.c.l.b16 %v712
        %v1208 = vunpack.c.l.b16 %v713
        %v1209 = vunpack.c.l.b16 %v714
        %v1210 = vunpack.c.l.b16 %v715
        %v1211 = vunpack.c.l.b16 %v716
        %v1212 = vunpack.c.l.b16 %v717
        %v1213 = vunpack.c.l.b16 %v718
        %v1214 = vunpack.c.l.b16 %v719
        %v1215 = vunpack.c.l.b16 %v720
        %v1216 = vunpack.c.l.b16 %v721
        %v1217 = vunpack.c.l.b16 %v722
        %v1218 = vunpack.c.l.b16 %v723
        %v1219 = vunpack.c.l.b16 %v724
        %v1220 = vunpack.c.l.b16 %v725
        %v1221 = vunpack.c.l.b16 %v726
        %v1222 = vunpack.c.l.b16 %v727
        %v1223 = vunpack.c.l.b16 %v728
        %v1224 = vunpack.c.l.b16 %v729
        %v1225 = vunpack.c.l.b16 %v730
        %v1226 = vunpack.c.l.b16 %v731
        %v1227 = vunpack.c.l.b16 %v732
        %v1228 = vunpack.c.l.b16 %v733
        %v1229 = vunpack.c.l.b16 %v734
        %v1230 = vunpack.c.l.b16 %v735
        %v1231 = vunpack.c.l.b16 %v736
        %v1232 = vunpack.c.l.b16 %v737
        %v1233 = vunpack.c.l.b16 %v738
        %v1234 = vunpack.c.l.b16 %v739
        %v1235 = vunpack.c.l.b16 %v740
        %v1236 = vunpack.c.l.b16 %v741
        %v1237 = vunpack.c.l.b16 %v742
        %v1238 = vunpack.c.l.b16 %v743
        %v1239 = vunpack.c.l.b16 %v744
        %v1240 = vunpack.c.l.b16 %v745
        %v1241 = vunpack.c.l.b16 %v746
        %v1242 = vunpack.c.l.b16 %v747
        %v1243 = vunpack.c.l.b16 %v748
        %v1244 = vunpack.c.l.b16 %v749
        %v1245 = vunpack.c.l.b16 %v750
        %v1246 = vunpack.c.l.b16 %v751
        %v1247 = vunpack.c.l.b16 %v752
        %v1248 = vunpack.c.l.b16 %v753
        %v1249 = vunpack.c.l.b16 %v754
        %v1250 = vunpack.c.l.b16 %v755
        %v1251 = vunpack.c.l.b16 %v756
        %v1252 = vunpack.c.l.b16 %v757
        %v1253 = vpack.c.b16 %v1190, %v1189
        %v1254 = vpack.c.b16 %v1192, %v1191
        %v1255 = vpack.c.b16 %v1194, %v1193
        %v1256 = vpack.c.b16 %v1196, %v1195
        %v1257 = vpack.c.b16 %v1198, %v1197
        %v1258 = vpack.c.b16 %v1200, %v1199
        %v1259 = vpack.c.b16 %v1202, %v1201
        %v1260 = vpack.c.b16 %v1204, %v1203
        %v1261 = vpack.c.b16 %v1206, %v1205
        %v1262 = vpack.c.b16 %v1208, %v1207
        %v1263 = vpack.c.b16 %v1210, %v1209
        %v1264 = vpack.c.b16 %v1212, %v1211
        %v1265 = vpack.c.b16 %v1214, %v1213
        %v1266 = vpack.c.b16 %v1216, %v1215
        %v1267 = vpack.c.b16 %v1218, %v1217
        %v1268 = vpack.c.b16 %v1220, %v1219
        %v1269 = vpack.c.b16 %v1222, %v1221
        %v1270 = vpack.c.b16 %v1224, %v1223
        %v1271 = vpack.c.b16 %v1226, %v1225
        %v1272 = vpack.c.b16 %v1228, %v1227
        %v1273 = vpack.c.b16 %v1230, %v1229
        %v1274 = vpack.c.b16 %v1232, %v1231
        %v1275 = vpack.c.b16 %v1234, %v1233
        %v1276 = vpack.c.b16 %v1236, %v1235
        %v1277 = vpack.c.b16 %v1238, %v1237
        %v1278 = vpack.c.b16 %v1240, %v1239
        %v1279 = vpack.c.b16 %v1242, %v1241
        %v1280 = vpack.c.b16 %v1244, %v1243
        %v1281 = vpack.c.b16 %v1246, %v1245
        %v1282 = vpack.c.b16 %v1248, %v1247
        %v1283 = vpack.c.b16 %v1250, %v1249
        %v1284 = vpack.c.b16 %v1252, %v1251
        %1317 = vmatprep.subr.bf16.mxu0 0
        %1318 = vmatpush1.bf16.msra.mxu0 %v1253
        %1319 = vmatprep.subr.bf16.mxu0 0
        %1320 = vmatpush1.bf16.msra.mxu0 %v1254
        %1321 = vmatprep.subr.bf16.mxu0 0
        %1322 = vmatpush1.bf16.msra.mxu0 %v1255
        %1323 = vmatprep.subr.bf16.mxu0 0
        %1324 = vmatpush1.bf16.msra.mxu0 %v1256
        %1325 = vmatprep.subr.bf16.mxu0 0
        %1326 = vmatpush1.bf16.msra.mxu0 %v1257
        %1327 = vmatprep.subr.bf16.mxu0 0
        %1328 = vmatpush1.bf16.msra.mxu0 %v1258
        %1329 = vmatprep.subr.bf16.mxu0 0
        %1330 = vmatpush1.bf16.msra.mxu0 %v1259
        %1331 = vmatprep.subr.bf16.mxu0 0
        %1332 = vmatpush1.bf16.msra.mxu0 %v1260
        %1333 = vmatprep.subr.bf16.mxu0 0
        %1334 = vmatpush1.bf16.msra.mxu0 %v1261
        %1335 = vmatprep.subr.bf16.mxu0 0
        %1336 = vmatpush1.bf16.msra.mxu0 %v1262
        %1337 = vmatprep.subr.bf16.mxu0 0
        %1338 = vmatpush1.bf16.msra.mxu0 %v1263
        %1339 = vmatprep.subr.bf16.mxu0 0
        %1340 = vmatpush1.bf16.msra.mxu0 %v1264
        %1341 = vmatprep.subr.bf16.mxu0 0
        %1342 = vmatpush1.bf16.msra.mxu0 %v1265
        %1343 = vmatprep.subr.bf16.mxu0 0
        %1344 = vmatpush1.bf16.msra.mxu0 %v1266
        %1345 = vmatprep.subr.bf16.mxu0 0
        %1346 = vmatpush1.bf16.msra.mxu0 %v1267
        %1347 = vmatprep.subr.bf16.mxu0 0
        %1348 = vmatpush1.bf16.msra.mxu0 %v1268
        %1349 = vmatprep.mubr.bf16.mxu0 %v990
        %1350 = vmatmul.mubr.bf16.gmra.mrb[0].mxu0 %v989
        %v1351 = vpop.f32.mrb[0].mxu0
        %v1352 = vadd.f32 %v758, %v1351
        %v1353 = vpop.f32.mrb[0].mxu0
        %v1354 = vpop.f32.mrb[0].mxu0
        %v1355 = vadd.f32 %v759, %v1354
        %v1356 = vpop.f32.mrb[0].mxu0
        %1357 = vmatprep.mubr.bf16.mxu0 %v994
        %1358 = vmatmul.mubr.bf16.gmra.mrb[0].mxu0 %v993
        %v1359 = vpop.f32.mrb[0].mxu0
        %v1360 = vadd.f32 %v760, %v1359
        %v1361 = vpop.f32.mrb[0].mxu0
        %v1362 = vpop.f32.mrb[0].mxu0
        %v1363 = vadd.f32 %v761, %v1362
        %v1364 = vpop.f32.mrb[0].mxu0
        %1365 = vmatprep.mubr.bf16.mxu0 %v998
        %1366 = vmatmul.mubr.bf16.gmra.mrb[0].mxu0 %v997
        %v1367 = vpop.f32.mrb[0].mxu0
        %v1368 = vadd.f32 %v762, %v1367
        %v1369 = vpop.f32.mrb[0].mxu0
        %v1370 = vpop.f32.mrb[0].mxu0
        %v1371 = vadd.f32 %v763, %v1370
        %v1372 = vpop.f32.mrb[0].mxu0
        %1373 = vmatprep.mubr.bf16.mxu0 %v1002
        %1374 = vmatmul.mubr.bf16.gmra.mrb[0].mxu0 %v1001
        %v1375 = vpop.f32.mrb[0].mxu0
        %v1376 = vadd.f32 %v764, %v1375
        %v1377 = vpop.f32.mrb[0].mxu0
        %v1378 = vpop.f32.mrb[0].mxu0
        %v1379 = vadd.f32 %v765, %v1378
        %v1380 = vpop.f32.mrb[0].mxu0
        %1381 = vmatprep.mubr.bf16.mxu0 %v1006
        %1382 = vmatmul.mubr.bf16.gmra.mrb[0].mxu0 %v1005
        %v1383 = vpop.f32.mrb[0].mxu0
        %v1384 = vadd.f32 %v766, %v1383
        %v1385 = vpop.f32.mrb[0].mxu0
        %v1386 = vpop.f32.mrb[0].mxu0
        %v1387 = vadd.f32 %v767, %v1386
        %v1388 = vpop.f32.mrb[0].mxu0
        %1389 = vmatprep.mubr.bf16.mxu0 %v1010
        %1390 = vmatmul.mubr.bf16.gmra.mrb[0].mxu0 %v1009
        %v1391 = vpop.f32.mrb[0].mxu0
        %v1392 = vadd.f32 %v768, %v1391
        %v1393 = vpop.f32.mrb[0].mxu0
        %v1394 = vpop.f32.mrb[0].mxu0
        %v1395 = vadd.f32 %v769, %v1394
        %v1396 = vpop.f32.mrb[0].mxu0
        %1397 = vmatprep.mubr.bf16.mxu0 %v1014
        %1398 = vmatmul.mubr.bf16.gmra.mrb[0].mxu0 %v1013
        %v1399 = vpop.f32.mrb[0].mxu0
        %v1400 = vadd.f32 %v770, %v1399
        %v1401 = vpop.f32.mrb[0].mxu0
        %v1402 = vpop.f32.mrb[0].mxu0
        %v1403 = vadd.f32 %v771, %v1402
        %v1404 = vpop.f32.mrb[0].mxu0
        %1405 = vmatprep.mubr.bf16.mxu0 %v1018
        %1406 = vmatmul.mubr.bf16.gmra.mrb[0].mxu0 %v1017
        %v1407 = vpop.f32.mrb[0].mxu0
        %v1408 = vadd.f32 %v772, %v1407
        %v1409 = vpop.f32.mrb[0].mxu0
        %v1410 = vpop.f32.mrb[0].mxu0
        %v1411 = vadd.f32 %v773, %v1410
        %v1412 = vpop.f32.mrb[0].mxu0
        %1413 = vmatprep.mubr.bf16.mxu0 %v1022
        %1414 = vmatmul.mubr.bf16.gmra.mrb[0].mxu0 %v1021
        %v1415 = vpop.f32.mrb[0].mxu0
        %v1416 = vadd.f32 %v774, %v1415
        %v1417 = vpop.f32.mrb[0].mxu0
        %v1418 = vpop.f32.mrb[0].mxu0
        %v1419 = vadd.f32 %v775, %v1418
        %v1420 = vpop.f32.mrb[0].mxu0
        %1421 = vmatprep.mubr.bf16.mxu0 %v1026
        %1422 = vmatmul.mubr.bf16.gmra.mrb[0].mxu0 %v1025
        %v1423 = vpop.f32.mrb[0].mxu0
        %v1424 = vadd.f32 %v776, %v1423
        %v1425 = vpop.f32.mrb[0].mxu0
        %v1426 = vpop.f32.mrb[0].mxu0
        %v1427 = vadd.f32 %v777, %v1426
        %v1428 = vpop.f32.mrb[0].mxu0
        %1429 = vmatprep.mubr.bf16.mxu0 %v1030
        %1430 = vmatmul.mubr.bf16.gmra.mrb[0].mxu0 %v1029
        %v1431 = vpop.f32.mrb[0].mxu0
        %v1432 = vadd.f32 %v778, %v1431
        %v1433 = vpop.f32.mrb[0].mxu0
        %v1434 = vpop.f32.mrb[0].mxu0
        %v1435 = vadd.f32 %v779, %v1434
        %v1436 = vpop.f32.mrb[0].mxu0
        %1437 = vmatprep.mubr.bf16.mxu0 %v1034
        %1438 = vmatmul.mubr.bf16.gmra.mrb[0].mxu0 %v1033
        %v1439 = vpop.f32.mrb[0].mxu0
        %v1440 = vadd.f32 %v780, %v1439
        %v1441 = vpop.f32.mrb[0].mxu0
        %v1442 = vpop.f32.mrb[0].mxu0
        %v1443 = vadd.f32 %v781, %v1442
        %v1444 = vpop.f32.mrb[0].mxu0
        %1445 = vmatprep.mubr.bf16.mxu0 %v1038
        %1446 = vmatmul.mubr.bf16.gmra.mrb[0].mxu0 %v1037
        %v1447 = vpop.f32.mrb[0].mxu0
        %v1448 = vadd.f32 %v782, %v1447
        %v1449 = vpop.f32.mrb[0].mxu0
        %v1450 = vpop.f32.mrb[0].mxu0
        %v1451 = vadd.f32 %v783, %v1450
        %v1452 = vpop.f32.mrb[0].mxu0
        %1453 = vmatprep.mubr.bf16.mxu0 %v1042
        %1454 = vmatmul.mubr.bf16.gmra.mrb[0].mxu0 %v1041
        %v1455 = vpop.f32.mrb[0].mxu0
        %v1456 = vadd.f32 %v784, %v1455
        %v1457 = vpop.f32.mrb[0].mxu0
        %v1458 = vpop.f32.mrb[0].mxu0
        %v1459 = vadd.f32 %v785, %v1458
        %v1460 = vpop.f32.mrb[0].mxu0
        %1461 = vmatprep.mubr.bf16.mxu0 %v1046
        %1462 = vmatmul.mubr.bf16.gmra.mrb[0].mxu0 %v1045
        %v1463 = vpop.f32.mrb[0].mxu0
        %v1464 = vadd.f32 %v786, %v1463
        %v1465 = vpop.f32.mrb[0].mxu0
        %v1466 = vpop.f32.mrb[0].mxu0
        %v1467 = vadd.f32 %v787, %v1466
        %v1468 = vpop.f32.mrb[0].mxu0
        %1469 = vmatprep.mubr.bf16.mxu0 %v1050
        %1470 = vmatmul.mubr.bf16.gmra.mrb[0].mxu0 %v1049
        %v1471 = vpop.f32.mrb[0].mxu0
        %v1472 = vadd.f32 %v788, %v1471
        %v1473 = vpop.f32.mrb[0].mxu0
        %v1474 = vpop.f32.mrb[0].mxu0
        %v1475 = vadd.f32 %v789, %v1474
        %v1476 = vpop.f32.mrb[0].mxu0
        %1477 = vmatprep.mubr.bf16.mxu0 %v1054
        %1478 = vmatmul.mubr.bf16.gmra.mrb[0].mxu0 %v1053
        %v1479 = vpop.f32.mrb[0].mxu0
        %v1480 = vadd.f32 %v790, %v1479
        %v1481 = vpop.f32.mrb[0].mxu0
        %v1482 = vpop.f32.mrb[0].mxu0
        %v1483 = vpop.f32.mrb[0].mxu0
        %1484 = vdwg.mxu0
        %1485 = vmatprep.subr.bf16.mxu0 0
        %1486 = vmatpush1.bf16.msra.mxu0 %v1269
        %1487 = vmatprep.subr.bf16.mxu0 0
        %1488 = vmatpush1.bf16.msra.mxu0 %v1270
        %1489 = vmatprep.subr.bf16.mxu0 0
        %1490 = vmatpush1.bf16.msra.mxu0 %v1271
        %1491 = vmatprep.subr.bf16.mxu0 0
        %1492 = vmatpush1.bf16.msra.mxu0 %v1272
        %1493 = vmatprep.subr.bf16.mxu0 0
        %1494 = vmatpush1.bf16.msra.mxu0 %v1273
        %1495 = vmatprep.subr.bf16.mxu0 0
        %1496 = vmatpush1.bf16.msra.mxu0 %v1274
        %1497 = vmatprep.subr.bf16.mxu0 0
        %1498 = vmatpush1.bf16.msra.mxu0 %v1275
        %1499 = vmatprep.subr.bf16.mxu0 0
        %1500 = vmatpush1.bf16.msra.mxu0 %v1276
        %1501 = vmatprep.subr.bf16.mxu0 0
        %1502 = vmatpush1.bf16.msra.mxu0 %v1277
        %1503 = vmatprep.subr.bf16.mxu0 0
        %1504 = vmatpush1.bf16.msra.mxu0 %v1278
        %1505 = vmatprep.subr.bf16.mxu0 0
        %1506 = vmatpush1.bf16.msra.mxu0 %v1279
        %1507 = vmatprep.subr.bf16.mxu0 0
        %1508 = vmatpush1.bf16.msra.mxu0 %v1280
        %1509 = vmatprep.subr.bf16.mxu0 0
        %1510 = vmatpush1.bf16.msra.mxu0 %v1281
        %1511 = vmatprep.subr.bf16.mxu0 0
        %1512 = vmatpush1.bf16.msra.mxu0 %v1282
        %1513 = vmatprep.subr.bf16.mxu0 0
        %1514 = vmatpush1.bf16.msra.mxu0 %v1283
        %1515 = vmatprep.subr.bf16.mxu0 0
        %1516 = vmatpush1.bf16.msra.mxu0 %v1284
        %1517 = vmatprep.mubr.bf16.mxu0 %v992
        %1518 = vmatmul.mubr.bf16.gmra.mrb[0].mxu0 %v991
        %v1519 = vpop.f32.mrb[0].mxu0
        %v1520 = vadd.f32 %v1352, %v1519
        %v1521 = vpop.f32.mrb[0].mxu0
        %v1522 = vpop.f32.mrb[0].mxu0
        %v1523 = vadd.f32 %v1355, %v1522
        %v1524 = vpop.f32.mrb[0].mxu0
        %1525 = vmatprep.mubr.bf16.mxu0 %v996
        %1526 = vmatmul.mubr.bf16.gmra.mrb[0].mxu0 %v995
        %v1527 = vpop.f32.mrb[0].mxu0
        %v1528 = vadd.f32 %v1360, %v1527
        %v1529 = vpop.f32.mrb[0].mxu0
        %v1530 = vpop.f32.mrb[0].mxu0
        %v1531 = vadd.f32 %v1363, %v1530
        %v1532 = vpop.f32.mrb[0].mxu0
        %1533 = vmatprep.mubr.bf16.mxu0 %v1000
        %1534 = vmatmul.mubr.bf16.gmra.mrb[0].mxu0 %v999
        %v1535 = vpop.f32.mrb[0].mxu0
        %v1536 = vadd.f32 %v1368, %v1535
        %v1537 = vpop.f32.mrb[0].mxu0
        %v1538 = vpop.f32.mrb[0].mxu0
        %v1539 = vadd.f32 %v1371, %v1538
        %v1540 = vpop.f32.mrb[0].mxu0
        %1541 = vmatprep.mubr.bf16.mxu0 %v1004
        %1542 = vmatmul.mubr.bf16.gmra.mrb[0].mxu0 %v1003
        %v1543 = vpop.f32.mrb[0].mxu0
        %v1544 = vadd.f32 %v1376, %v1543
        %v1545 = vpop.f32.mrb[0].mxu0
        %v1546 = vpop.f32.mrb[0].mxu0
        %v1547 = vadd.f32 %v1379, %v1546
        %v1548 = vpop.f32.mrb[0].mxu0
        %1549 = vmatprep.mubr.bf16.mxu0 %v1008
        %1550 = vmatmul.mubr.bf16.gmra.mrb[0].mxu0 %v1007
        %v1551 = vpop.f32.mrb[0].mxu0
        %v1552 = vadd.f32 %v1384, %v1551
        %v1553 = vpop.f32.mrb[0].mxu0
        %v1554 = vpop.f32.mrb[0].mxu0
        %v1555 = vadd.f32 %v1387, %v1554
        %v1556 = vpop.f32.mrb[0].mxu0
        %1557 = vmatprep.mubr.bf16.mxu0 %v1012
        %1558 = vmatmul.mubr.bf16.gmra.mrb[0].mxu0 %v1011
        %v1559 = vpop.f32.mrb[0].mxu0
        %v1560 = vadd.f32 %v1392, %v1559
        %v1561 = vpop.f32.mrb[0].mxu0
        %v1562 = vpop.f32.mrb[0].mxu0
        %v1563 = vadd.f32 %v1395, %v1562
        %v1564 = vpop.f32.mrb[0].mxu0
        %1565 = vmatprep.mubr.bf16.mxu0 %v1016
        %1566 = vmatmul.mubr.bf16.gmra.mrb[0].mxu0 %v1015
        %v1567 = vpop.f32.mrb[0].mxu0
        %v1568 = vadd.f32 %v1400, %v1567
        %v1569 = vpop.f32.mrb[0].mxu0
        %v1570 = vpop.f32.mrb[0].mxu0
        %v1571 = vadd.f32 %v1403, %v1570
        %v1572 = vpop.f32.mrb[0].mxu0
        %1573 = vmatprep.mubr.bf16.mxu0 %v1020
        %1574 = vmatmul.mubr.bf16.gmra.mrb[0].mxu0 %v1019
        %v1575 = vpop.f32.mrb[0].mxu0
        %v1576 = vadd.f32 %v1408, %v1575
        %v1577 = vpop.f32.mrb[0].mxu0
        %v1578 = vpop.f32.mrb[0].mxu0
        %v1579 = vadd.f32 %v1411, %v1578
        %v1580 = vpop.f32.mrb[0].mxu0
        %1581 = vmatprep.mubr.bf16.mxu0 %v1024
        %1582 = vmatmul.mubr.bf16.gmra.mrb[0].mxu0 %v1023
        %v1583 = vpop.f32.mrb[0].mxu0
        %v1584 = vadd.f32 %v1416, %v1583
        %v1585 = vpop.f32.mrb[0].mxu0
        %v1586 = vpop.f32.mrb[0].mxu0
        %v1587 = vadd.f32 %v1419, %v1586
        %v1588 = vpop.f32.mrb[0].mxu0
        %1589 = vmatprep.mubr.bf16.mxu0 %v1028
        %1590 = vmatmul.mubr.bf16.gmra.mrb[0].mxu0 %v1027
        %v1591 = vpop.f32.mrb[0].mxu0
        %v1592 = vadd.f32 %v1424, %v1591
        %v1593 = vpop.f32.mrb[0].mxu0
        %v1594 = vpop.f32.mrb[0].mxu0
        %v1595 = vadd.f32 %v1427, %v1594
        %v1596 = vpop.f32.mrb[0].mxu0
        %1597 = vmatprep.mubr.bf16.mxu0 %v1032
        %1598 = vmatmul.mubr.bf16.gmra.mrb[0].mxu0 %v1031
        %v1599 = vpop.f32.mrb[0].mxu0
        %v1600 = vadd.f32 %v1432, %v1599
        %v1601 = vpop.f32.mrb[0].mxu0
        %v1602 = vpop.f32.mrb[0].mxu0
        %v1603 = vadd.f32 %v1435, %v1602
        %v1604 = vpop.f32.mrb[0].mxu0
        %1605 = vmatprep.mubr.bf16.mxu0 %v1036
        %1606 = vmatmul.mubr.bf16.gmra.mrb[0].mxu0 %v1035
        %v1607 = vpop.f32.mrb[0].mxu0
        %v1608 = vadd.f32 %v1440, %v1607
        %v1609 = vpop.f32.mrb[0].mxu0
        %v1610 = vpop.f32.mrb[0].mxu0
        %v1611 = vadd.f32 %v1443, %v1610
        %v1612 = vpop.f32.mrb[0].mxu0
        %1613 = vmatprep.mubr.bf16.mxu0 %v1040
        %1614 = vmatmul.mubr.bf16.gmra.mrb[0].mxu0 %v1039
        %v1615 = vpop.f32.mrb[0].mxu0
        %v1616 = vadd.f32 %v1448, %v1615
        %v1617 = vpop.f32.mrb[0].mxu0
        %v1618 = vpop.f32.mrb[0].mxu0
        %v1619 = vadd.f32 %v1451, %v1618
        %v1620 = vpop.f32.mrb[0].mxu0
        %1621 = vmatprep.mubr.bf16.mxu0 %v1044
        %1622 = vmatmul.mubr.bf16.gmra.mrb[0].mxu0 %v1043
        %v1623 = vpop.f32.mrb[0].mxu0
        %v1624 = vadd.f32 %v1456, %v1623
        %v1625 = vpop.f32.mrb[0].mxu0
        %v1626 = vpop.f32.mrb[0].mxu0
        %v1627 = vadd.f32 %v1459, %v1626
        %v1628 = vpop.f32.mrb[0].mxu0
        %1629 = vmatprep.mubr.bf16.mxu0 %v1048
        %1630 = vmatmul.mubr.bf16.gmra.mrb[0].mxu0 %v1047
        %v1631 = vpop.f32.mrb[0].mxu0
        %v1632 = vadd.f32 %v1464, %v1631
        %v1633 = vpop.f32.mrb[0].mxu0
        %v1634 = vpop.f32.mrb[0].mxu0
        %v1635 = vadd.f32 %v1467, %v1634
        %v1636 = vpop.f32.mrb[0].mxu0
        %1637 = vmatprep.mubr.bf16.mxu0 %v1052
        %1638 = vmatmul.mubr.bf16.gmra.mrb[0].mxu0 %v1051
        %v1639 = vpop.f32.mrb[0].mxu0
        %v1640 = vadd.f32 %v1472, %v1639
        %v1641 = vpop.f32.mrb[0].mxu0
        %v1642 = vpop.f32.mrb[0].mxu0
        %v1643 = vadd.f32 %v1475, %v1642
        %v1644 = vpop.f32.mrb[0].mxu0
        %1645 = vmatprep.mubr.bf16.mxu0 %v1056
        %1646 = vmatmul.mubr.bf16.gmra.mrb[0].mxu0 %v1055
        %v1647 = vpop.f32.mrb[0].mxu0
        %v1648 = vadd.f32 %v1480, %v1647
        %v1649 = vpop.f32.mrb[0].mxu0
        %v1650 = vpop.f32.mrb[0].mxu0
        %v1651 = vpop.f32.mrb[0].mxu0
        %1652 = vdwg.mxu0
        %v1653 = vld [vmem:[%s2] sm:$0xff]
        %v1654 = vld [vmem:[%s2 + $0x8] sm:$0xf]
        %v1655 = vld [vmem:[%s2 + $0xc] sm:$0xff]
        %v1656 = vld [vmem:[%s2 + $0x14] sm:$0xf]
        %v1657 = vld [vmem:[%s2 + $0x18] sm:$0xff]
        %v1658 = vld [vmem:[%s2 + $0x20] sm:$0xf]
        %v1659 = vld [vmem:[%s2 + $0x24] sm:$0xff]
        %v1660 = vld [vmem:[%s2 + $0x2c] sm:$0xf]
        %v1661 = vld [vmem:[%s2 + $0x30] sm:$0xff]
        %v1662 = vld [vmem:[%s2 + $0x38] sm:$0xf]
        %v1663 = vld [vmem:[%s2 + $0x3c] sm:$0xff]
        %v1664 = vld [vmem:[%s2 + $0x44] sm:$0xf]
        %v1665 = vld [vmem:[%s2 + $0x48] sm:$0xff]
        %v1666 = vld [vmem:[%s2 + $0x50] sm:$0xf]
        %v1667 = vld [vmem:[%s2 + $0x54] sm:$0xff]
        %v1668 = vld [vmem:[%s2 + $0x5c] sm:$0xf]
        %v1669 = vld [vmem:[%s2 + $0x60] sm:$0xff]
        %v1670 = vld [vmem:[%s2 + $0x68] sm:$0xf]
        %v1671 = vld [vmem:[%s2 + $0x6c] sm:$0xff]
        %v1672 = vld [vmem:[%s2 + $0x74] sm:$0xf]
        %v1673 = vld [vmem:[%s2 + $0x78] sm:$0xff]
        %v1674 = vld [vmem:[%s2 + $0x80] sm:$0xf]
        %v1675 = vld [vmem:[%s2 + $0x84] sm:$0xff]
        %v1676 = vld [vmem:[%s2 + $0x8c] sm:$0xf]
        %v1677 = vld [vmem:[%s2 + $0x90] sm:$0xff]
        %v1678 = vld [vmem:[%s2 + $0x98] sm:$0xf]
        %v1679 = vld [vmem:[%s2 + $0x9c] sm:$0xff]
        %v1680 = vld [vmem:[%s2 + $0xa4] sm:$0xf]
        %v1681 = vld [vmem:[%s2 + $0xa8] sm:$0xff]
        %v1682 = vld [vmem:[%s2 + $0xb0] sm:$0xf]
        %v1683 = vld [vmem:[%s2 + $0xb4] sm:$0xff]
        %v1684 = vld [vmem:[%s2 + $0xbc] sm:$0xf]
        %v1685 = vlaneseq
        %v1686 = vand.u32 %v1685, 127
        %vm1687 = vcmp.lt.s32.totalorder %v1686, 65
        %v1688 = vsel %vm1687, 0.0, -1e+30
        %v1689 = vld [vmem:[%s4] sm:$0x1]
        %v1690 = vld [vmem:[%s5] sm:$0x1]
        %vm1691 = vcmask 261120
        %v1692 = vsel %vm1691, %v1520, 0.0
        %1693 = vadd.xlane.f32.xlu0 %v1692
        %v1694 = vpop.xlane.xlu0 %1693
        %v1695 = vsel %vm1691, %v1523, 0.0
        %1696 = vadd.xlane.f32.xlu0 %v1695
        %v1697 = vpop.xlane.xlu0 %1696
        %v1698 = vsel %vm1691, %v1528, 0.0
        %1699 = vadd.xlane.f32.xlu0 %v1698
        %v1700 = vpop.xlane.xlu0 %1699
        %v1701 = vsel %vm1691, %v1531, 0.0
        %1702 = vadd.xlane.f32.xlu0 %v1701
        %v1703 = vpop.xlane.xlu0 %1702
        %v1704 = vsel %vm1691, %v1536, 0.0
        %1705 = vadd.xlane.f32.xlu0 %v1704
        %v1706 = vpop.xlane.xlu0 %1705
        %v1707 = vsel %vm1691, %v1539, 0.0
        %1708 = vadd.xlane.f32.xlu0 %v1707
        %v1709 = vpop.xlane.xlu0 %1708
        %v1710 = vsel %vm1691, %v1544, 0.0
        %1711 = vadd.xlane.f32.xlu0 %v1710
        %v1712 = vpop.xlane.xlu0 %1711
        %v1713 = vsel %vm1691, %v1547, 0.0
        %1714 = vadd.xlane.f32.xlu0 %v1713
        %v1715 = vpop.xlane.xlu0 %1714
        %v1716 = vsel %vm1691, %v1552, 0.0
        %1717 = vadd.xlane.f32.xlu0 %v1716
        %v1718 = vpop.xlane.xlu0 %1717
        %v1719 = vsel %vm1691, %v1555, 0.0
        %1720 = vadd.xlane.f32.xlu0 %v1719
        %v1721 = vpop.xlane.xlu0 %1720
        %v1722 = vsel %vm1691, %v1560, 0.0
        %1723 = vadd.xlane.f32.xlu0 %v1722
        %v1724 = vpop.xlane.xlu0 %1723
        %v1725 = vsel %vm1691, %v1563, 0.0
        %1726 = vadd.xlane.f32.xlu0 %v1725
        %v1727 = vpop.xlane.xlu0 %1726
        %v1728 = vsel %vm1691, %v1568, 0.0
        %1729 = vadd.xlane.f32.xlu0 %v1728
        %v1730 = vpop.xlane.xlu0 %1729
        %v1731 = vsel %vm1691, %v1571, 0.0
        %1732 = vadd.xlane.f32.xlu0 %v1731
        %v1733 = vpop.xlane.xlu0 %1732
        %v1734 = vsel %vm1691, %v1576, 0.0
        %1735 = vadd.xlane.f32.xlu0 %v1734
        %v1736 = vpop.xlane.xlu0 %1735
        %v1737 = vsel %vm1691, %v1579, 0.0
        %1738 = vadd.xlane.f32.xlu0 %v1737
        %v1739 = vpop.xlane.xlu0 %1738
        %v1740 = vsel %vm1691, %v1584, 0.0
        %1741 = vadd.xlane.f32.xlu0 %v1740
        %v1742 = vpop.xlane.xlu0 %1741
        %v1743 = vsel %vm1691, %v1587, 0.0
        %1744 = vadd.xlane.f32.xlu0 %v1743
        %v1745 = vpop.xlane.xlu0 %1744
        %v1746 = vsel %vm1691, %v1592, 0.0
        %1747 = vadd.xlane.f32.xlu0 %v1746
        %v1748 = vpop.xlane.xlu0 %1747
        %v1749 = vsel %vm1691, %v1595, 0.0
        %1750 = vadd.xlane.f32.xlu0 %v1749
        %v1751 = vpop.xlane.xlu0 %1750
        %v1752 = vsel %vm1691, %v1600, 0.0
        %1753 = vadd.xlane.f32.xlu0 %v1752
        %v1754 = vpop.xlane.xlu0 %1753
        %v1755 = vsel %vm1691, %v1603, 0.0
        %1756 = vadd.xlane.f32.xlu0 %v1755
        %v1757 = vpop.xlane.xlu0 %1756
        %v1758 = vsel %vm1691, %v1608, 0.0
        %1759 = vadd.xlane.f32.xlu0 %v1758
        %v1760 = vpop.xlane.xlu0 %1759
        %v1761 = vsel %vm1691, %v1611, 0.0
        %1762 = vadd.xlane.f32.xlu0 %v1761
        %v1763 = vpop.xlane.xlu0 %1762
        %v1764 = vsel %vm1691, %v1616, 0.0
        %1765 = vadd.xlane.f32.xlu0 %v1764
        %v1766 = vpop.xlane.xlu0 %1765
        %v1767 = vsel %vm1691, %v1619, 0.0
        %1768 = vadd.xlane.f32.xlu0 %v1767
        %v1769 = vpop.xlane.xlu0 %1768
        %v1770 = vsel %vm1691, %v1624, 0.0
        %1771 = vadd.xlane.f32.xlu0 %v1770
        %v1772 = vpop.xlane.xlu0 %1771
        %v1773 = vsel %vm1691, %v1627, 0.0
        %1774 = vadd.xlane.f32.xlu0 %v1773
        %v1775 = vpop.xlane.xlu0 %1774
        %v1776 = vsel %vm1691, %v1632, 0.0
        %1777 = vadd.xlane.f32.xlu0 %v1776
        %v1778 = vpop.xlane.xlu0 %1777
        %v1779 = vsel %vm1691, %v1635, 0.0
        %1780 = vadd.xlane.f32.xlu0 %v1779
        %v1781 = vpop.xlane.xlu0 %1780
        %v1782 = vsel %vm1691, %v1640, 0.0
        %1783 = vadd.xlane.f32.xlu0 %v1782
        %v1784 = vpop.xlane.xlu0 %1783
        %v1785 = vsel %vm1691, %v1643, 0.0
        %1786 = vadd.xlane.f32.xlu0 %v1785
        %v1787 = vpop.xlane.xlu0 %1786
        %v1788 = vsel %vm1691, %v1648, 0.0
        %1789 = vadd.xlane.f32.xlu0 %v1788
        %v1790 = vpop.xlane.xlu0 %1789
        %v1791 = vrcp.pop 32.0
        %v1792 = vmul.f32 %v1694, %v1791
        %v1793 = vmul.f32 %v1697, %v1791
        %v1794 = vmul.f32 %v1700, %v1791
        %v1795 = vmul.f32 %v1703, %v1791
        %v1796 = vmul.f32 %v1706, %v1791
        %v1797 = vmul.f32 %v1709, %v1791
        %v1798 = vmul.f32 %v1712, %v1791
        %v1799 = vmul.f32 %v1715, %v1791
        %v1800 = vmul.f32 %v1718, %v1791
        %v1801 = vmul.f32 %v1721, %v1791
        %v1802 = vmul.f32 %v1724, %v1791
        %v1803 = vmul.f32 %v1727, %v1791
        %v1804 = vmul.f32 %v1730, %v1791
        %v1805 = vmul.f32 %v1733, %v1791
        %v1806 = vmul.f32 %v1736, %v1791
        %v1807 = vmul.f32 %v1739, %v1791
        %v1808 = vmul.f32 %v1742, %v1791
        %v1809 = vmul.f32 %v1745, %v1791
        %v1810 = vmul.f32 %v1748, %v1791
        %v1811 = vmul.f32 %v1751, %v1791
        %v1812 = vmul.f32 %v1754, %v1791
        %v1813 = vmul.f32 %v1757, %v1791
        %v1814 = vmul.f32 %v1760, %v1791
        %v1815 = vmul.f32 %v1763, %v1791
        %v1816 = vmul.f32 %v1766, %v1791
        %v1817 = vmul.f32 %v1769, %v1791
        %v1818 = vmul.f32 %v1772, %v1791
        %v1819 = vmul.f32 %v1775, %v1791
        %v1820 = vmul.f32 %v1778, %v1791
        %v1821 = vmul.f32 %v1781, %v1791
        %v1822 = vmul.f32 %v1784, %v1791
        %v1823 = vmul.f32 %v1787, %v1791
        %v1824 = vmul.f32 %v1790, %v1791
        %v1825 = vsub.f32 %v1520, %v1792
        %v1826 = vsub.f32 %v1523, %v1793
        %v1827 = vsub.f32 %v1528, %v1794
        %v1828 = vsub.f32 %v1531, %v1795
        %v1829 = vsub.f32 %v1536, %v1796
        %v1830 = vsub.f32 %v1539, %v1797
        %v1831 = vsub.f32 %v1544, %v1798
        %v1832 = vsub.f32 %v1547, %v1799
        %v1833 = vsub.f32 %v1552, %v1800
        %v1834 = vsub.f32 %v1555, %v1801
        %v1835 = vsub.f32 %v1560, %v1802
        %v1836 = vsub.f32 %v1563, %v1803
        %v1837 = vsub.f32 %v1568, %v1804
        %v1838 = vsub.f32 %v1571, %v1805
        %v1839 = vsub.f32 %v1576, %v1806
        %v1840 = vsub.f32 %v1579, %v1807
        %v1841 = vsub.f32 %v1584, %v1808
        %v1842 = vsub.f32 %v1587, %v1809
        %v1843 = vsub.f32 %v1592, %v1810
        %v1844 = vsub.f32 %v1595, %v1811
        %v1845 = vsub.f32 %v1600, %v1812
        %v1846 = vsub.f32 %v1603, %v1813
        %v1847 = vsub.f32 %v1608, %v1814
        %v1848 = vsub.f32 %v1611, %v1815
        %v1849 = vsub.f32 %v1616, %v1816
        %v1850 = vsub.f32 %v1619, %v1817
        %v1851 = vsub.f32 %v1624, %v1818
        %v1852 = vsub.f32 %v1627, %v1819
        %v1853 = vsub.f32 %v1632, %v1820
        %v1854 = vsub.f32 %v1635, %v1821
        %v1855 = vsub.f32 %v1640, %v1822
        %v1856 = vsub.f32 %v1643, %v1823
        %v1857 = vsub.f32 %v1648, %v1824
        %v1858 = vmul.f32 %v1825, %v1825
        %v1859 = vmul.f32 %v1826, %v1826
        %v1860 = vmul.f32 %v1827, %v1827
        %v1861 = vmul.f32 %v1828, %v1828
        %v1862 = vmul.f32 %v1829, %v1829
        %v1863 = vmul.f32 %v1830, %v1830
        %v1864 = vmul.f32 %v1831, %v1831
        %v1865 = vmul.f32 %v1832, %v1832
        %v1866 = vmul.f32 %v1833, %v1833
        %v1867 = vmul.f32 %v1834, %v1834
        %v1868 = vmul.f32 %v1835, %v1835
        %v1869 = vmul.f32 %v1836, %v1836
        %v1870 = vmul.f32 %v1837, %v1837
        %v1871 = vmul.f32 %v1838, %v1838
        %v1872 = vmul.f32 %v1839, %v1839
        %v1873 = vmul.f32 %v1840, %v1840
        %v1874 = vmul.f32 %v1841, %v1841
        %v1875 = vmul.f32 %v1842, %v1842
        %v1876 = vmul.f32 %v1843, %v1843
        %v1877 = vmul.f32 %v1844, %v1844
        %v1878 = vmul.f32 %v1845, %v1845
        %v1879 = vmul.f32 %v1846, %v1846
        %v1880 = vmul.f32 %v1847, %v1847
        %v1881 = vmul.f32 %v1848, %v1848
        %v1882 = vmul.f32 %v1849, %v1849
        %v1883 = vmul.f32 %v1850, %v1850
        %v1884 = vmul.f32 %v1851, %v1851
        %v1885 = vmul.f32 %v1852, %v1852
        %v1886 = vmul.f32 %v1853, %v1853
        %v1887 = vmul.f32 %v1854, %v1854
        %v1888 = vmul.f32 %v1855, %v1855
        %v1889 = vmul.f32 %v1856, %v1856
        %v1890 = vmul.f32 %v1857, %v1857
        %v1891 = vsel %vm1691, %v1858, 0.0
        %1892 = vadd.xlane.f32.xlu0 %v1891
        %v1893 = vpop.xlane.xlu0 %1892
        %v1894 = vsel %vm1691, %v1859, 0.0
        %1895 = vadd.xlane.f32.xlu0 %v1894
        %v1896 = vpop.xlane.xlu0 %1895
        %v1897 = vsel %vm1691, %v1860, 0.0
        %1898 = vadd.xlane.f32.xlu0 %v1897
        %v1899 = vpop.xlane.xlu0 %1898
        %v1900 = vsel %vm1691, %v1861, 0.0
        %1901 = vadd.xlane.f32.xlu0 %v1900
        %v1902 = vpop.xlane.xlu0 %1901
        %v1903 = vsel %vm1691, %v1862, 0.0
        %1904 = vadd.xlane.f32.xlu0 %v1903
        %v1905 = vpop.xlane.xlu0 %1904
        %v1906 = vsel %vm1691, %v1863, 0.0
        %1907 = vadd.xlane.f32.xlu0 %v1906
        %v1908 = vpop.xlane.xlu0 %1907
        %v1909 = vsel %vm1691, %v1864, 0.0
        %1910 = vadd.xlane.f32.xlu0 %v1909
        %v1911 = vpop.xlane.xlu0 %1910
        %v1912 = vsel %vm1691, %v1865, 0.0
        %1913 = vadd.xlane.f32.xlu0 %v1912
        %v1914 = vpop.xlane.xlu0 %1913
        %v1915 = vsel %vm1691, %v1866, 0.0
        %1916 = vadd.xlane.f32.xlu0 %v1915
        %v1917 = vpop.xlane.xlu0 %1916
        %v1918 = vsel %vm1691, %v1867, 0.0
        %1919 = vadd.xlane.f32.xlu0 %v1918
        %v1920 = vpop.xlane.xlu0 %1919
        %v1921 = vsel %vm1691, %v1868, 0.0
        %1922 = vadd.xlane.f32.xlu0 %v1921
        %v1923 = vpop.xlane.xlu0 %1922
        %v1924 = vsel %vm1691, %v1869, 0.0
        %1925 = vadd.xlane.f32.xlu0 %v1924
        %v1926 = vpop.xlane.xlu0 %1925
        %v1927 = vsel %vm1691, %v1870, 0.0
        %1928 = vadd.xlane.f32.xlu0 %v1927
        %v1929 = vpop.xlane.xlu0 %1928
        %v1930 = vsel %vm1691, %v1871, 0.0
        %1931 = vadd.xlane.f32.xlu0 %v1930
        %v1932 = vpop.xlane.xlu0 %1931
        %v1933 = vsel %vm1691, %v1872, 0.0
        %1934 = vadd.xlane.f32.xlu0 %v1933
        %v1935 = vpop.xlane.xlu0 %1934
        %v1936 = vsel %vm1691, %v1873, 0.0
        %1937 = vadd.xlane.f32.xlu0 %v1936
        %v1938 = vpop.xlane.xlu0 %1937
        %v1939 = vsel %vm1691, %v1874, 0.0
        %1940 = vadd.xlane.f32.xlu0 %v1939
        %v1941 = vpop.xlane.xlu0 %1940
        %v1942 = vsel %vm1691, %v1875, 0.0
        %1943 = vadd.xlane.f32.xlu0 %v1942
        %v1944 = vpop.xlane.xlu0 %1943
        %v1945 = vsel %vm1691, %v1876, 0.0
        %1946 = vadd.xlane.f32.xlu0 %v1945
        %v1947 = vpop.xlane.xlu0 %1946
        %v1948 = vsel %vm1691, %v1877, 0.0
        %1949 = vadd.xlane.f32.xlu0 %v1948
        %v1950 = vpop.xlane.xlu0 %1949
        %v1951 = vsel %vm1691, %v1878, 0.0
        %1952 = vadd.xlane.f32.xlu0 %v1951
        %v1953 = vpop.xlane.xlu0 %1952
        %v1954 = vsel %vm1691, %v1879, 0.0
        %1955 = vadd.xlane.f32.xlu0 %v1954
        %v1956 = vpop.xlane.xlu0 %1955
        %v1957 = vsel %vm1691, %v1880, 0.0
        %1958 = vadd.xlane.f32.xlu0 %v1957
        %v1959 = vpop.xlane.xlu0 %1958
        %v1960 = vsel %vm1691, %v1881, 0.0
        %1961 = vadd.xlane.f32.xlu0 %v1960
        %v1962 = vpop.xlane.xlu0 %1961
        %v1963 = vsel %vm1691, %v1882, 0.0
        %1964 = vadd.xlane.f32.xlu0 %v1963
        %v1965 = vpop.xlane.xlu0 %1964
        %v1966 = vsel %vm1691, %v1883, 0.0
        %1967 = vadd.xlane.f32.xlu0 %v1966
        %v1968 = vpop.xlane.xlu0 %1967
        %v1969 = vsel %vm1691, %v1884, 0.0
        %1970 = vadd.xlane.f32.xlu0 %v1969
        %v1971 = vpop.xlane.xlu0 %1970
        %v1972 = vsel %vm1691, %v1885, 0.0
        %1973 = vadd.xlane.f32.xlu0 %v1972
        %v1974 = vpop.xlane.xlu0 %1973
        %v1975 = vsel %vm1691, %v1886, 0.0
        %1976 = vadd.xlane.f32.xlu0 %v1975
        %v1977 = vpop.xlane.xlu0 %1976
        %v1978 = vsel %vm1691, %v1887, 0.0
        %1979 = vadd.xlane.f32.xlu0 %v1978
        %v1980 = vpop.xlane.xlu0 %1979
        %v1981 = vsel %vm1691, %v1888, 0.0
        %1982 = vadd.xlane.f32.xlu0 %v1981
        %v1983 = vpop.xlane.xlu0 %1982
        %v1984 = vsel %vm1691, %v1889, 0.0
        %1985 = vadd.xlane.f32.xlu0 %v1984
        %v1986 = vpop.xlane.xlu0 %1985
        %v1987 = vsel %vm1691, %v1890, 0.0
        %1988 = vadd.xlane.f32.xlu0 %v1987
        %v1989 = vpop.xlane.xlu0 %1988
        %v1990 = vmul.f32 %v1893, %v1791
        %v1991 = vmul.f32 %v1896, %v1791
        %v1992 = vmul.f32 %v1899, %v1791
        %v1993 = vmul.f32 %v1902, %v1791
        %v1994 = vmul.f32 %v1905, %v1791
        %v1995 = vmul.f32 %v1908, %v1791
        %v1996 = vmul.f32 %v1911, %v1791
        %v1997 = vmul.f32 %v1914, %v1791
        %v1998 = vmul.f32 %v1917, %v1791
        %v1999 = vmul.f32 %v1920, %v1791
        %v2000 = vmul.f32 %v1923, %v1791
        %v2001 = vmul.f32 %v1926, %v1791
        %v2002 = vmul.f32 %v1929, %v1791
        %v2003 = vmul.f32 %v1932, %v1791
        %v2004 = vmul.f32 %v1935, %v1791
        %v2005 = vmul.f32 %v1938, %v1791
        %v2006 = vmul.f32 %v1941, %v1791
        %v2007 = vmul.f32 %v1944, %v1791
        %v2008 = vmul.f32 %v1947, %v1791
        %v2009 = vmul.f32 %v1950, %v1791
        %v2010 = vmul.f32 %v1953, %v1791
        %v2011 = vmul.f32 %v1956, %v1791
        %v2012 = vmul.f32 %v1959, %v1791
        %v2013 = vmul.f32 %v1962, %v1791
        %v2014 = vmul.f32 %v1965, %v1791
        %v2015 = vmul.f32 %v1968, %v1791
        %v2016 = vmul.f32 %v1971, %v1791
        %v2017 = vmul.f32 %v1974, %v1791
        %v2018 = vmul.f32 %v1977, %v1791
        %v2019 = vmul.f32 %v1980, %v1791
        %v2020 = vmul.f32 %v1983, %v1791
        %v2021 = vmul.f32 %v1986, %v1791
        %v2022 = vmul.f32 %v1989, %v1791
        %v2023 = vadd.f32 %v1990, 1e-06
        %v2024 = vadd.f32 %v1991, 1e-06
        %v2025 = vadd.f32 %v1992, 1e-06
        %v2026 = vadd.f32 %v1993, 1e-06
        %v2027 = vadd.f32 %v1994, 1e-06
        %v2028 = vadd.f32 %v1995, 1e-06
        %v2029 = vadd.f32 %v1996, 1e-06
        %v2030 = vadd.f32 %v1997, 1e-06
        %v2031 = vadd.f32 %v1998, 1e-06
        %v2032 = vadd.f32 %v1999, 1e-06
        %v2033 = vadd.f32 %v2000, 1e-06
        %v2034 = vadd.f32 %v2001, 1e-06
        %v2035 = vadd.f32 %v2002, 1e-06
        %v2036 = vadd.f32 %v2003, 1e-06
        %v2037 = vadd.f32 %v2004, 1e-06
        %v2038 = vadd.f32 %v2005, 1e-06
        %v2039 = vadd.f32 %v2006, 1e-06
        %v2040 = vadd.f32 %v2007, 1e-06
        %v2041 = vadd.f32 %v2008, 1e-06
        %v2042 = vadd.f32 %v2009, 1e-06
        %v2043 = vadd.f32 %v2010, 1e-06
        %v2044 = vadd.f32 %v2011, 1e-06
        %v2045 = vadd.f32 %v2012, 1e-06
        %v2046 = vadd.f32 %v2013, 1e-06
        %v2047 = vadd.f32 %v2014, 1e-06
        %v2048 = vadd.f32 %v2015, 1e-06
        %v2049 = vadd.f32 %v2016, 1e-06
        %v2050 = vadd.f32 %v2017, 1e-06
        %v2051 = vadd.f32 %v2018, 1e-06
        %v2052 = vadd.f32 %v2019, 1e-06
        %v2053 = vadd.f32 %v2020, 1e-06
        %v2054 = vadd.f32 %v2021, 1e-06
        %v2055 = vadd.f32 %v2022, 1e-06
        %v2056 = vrsqrt.pop %v2023
        %v2057 = vrsqrt.pop %v2024
        %v2058 = vrsqrt.pop %v2025
        %v2059 = vrsqrt.pop %v2026
        %v2060 = vrsqrt.pop %v2027
        %v2061 = vrsqrt.pop %v2028
        %v2062 = vrsqrt.pop %v2029
        %v2063 = vrsqrt.pop %v2030
        %v2064 = vrsqrt.pop %v2031
        %v2065 = vrsqrt.pop %v2032
        %v2066 = vrsqrt.pop %v2033
        %v2067 = vrsqrt.pop %v2034
        %v2068 = vrsqrt.pop %v2035
        %v2069 = vrsqrt.pop %v2036
        %v2070 = vrsqrt.pop %v2037
        %v2071 = vrsqrt.pop %v2038
        %v2072 = vrsqrt.pop %v2039
        %v2073 = vrsqrt.pop %v2040
        %v2074 = vrsqrt.pop %v2041
        %v2075 = vrsqrt.pop %v2042
        %v2076 = vrsqrt.pop %v2043
        %v2077 = vrsqrt.pop %v2044
        %v2078 = vrsqrt.pop %v2045
        %v2079 = vrsqrt.pop %v2046
        %v2080 = vrsqrt.pop %v2047
        %v2081 = vrsqrt.pop %v2048
        %v2082 = vrsqrt.pop %v2049
        %v2083 = vrsqrt.pop %v2050
        %v2084 = vrsqrt.pop %v2051
        %v2085 = vrsqrt.pop %v2052
        %v2086 = vrsqrt.pop %v2053
        %v2087 = vrsqrt.pop %v2054
        %v2088 = vrsqrt.pop %v2055
        %v2089 = vmul.f32 %v1825, %v2056
        %v2090 = vmul.f32 %v1826, %v2057
        %v2091 = vmul.f32 %v1827, %v2058
        %v2092 = vmul.f32 %v1828, %v2059
        %v2093 = vmul.f32 %v1829, %v2060
        %v2094 = vmul.f32 %v1830, %v2061
        %v2095 = vmul.f32 %v1831, %v2062
        %v2096 = vmul.f32 %v1832, %v2063
        %v2097 = vmul.f32 %v1833, %v2064
        %v2098 = vmul.f32 %v1834, %v2065
        %v2099 = vmul.f32 %v1835, %v2066
        %v2100 = vmul.f32 %v1836, %v2067
        %v2101 = vmul.f32 %v1837, %v2068
        %v2102 = vmul.f32 %v1838, %v2069
        %v2103 = vmul.f32 %v1839, %v2070
        %v2104 = vmul.f32 %v1840, %v2071
        %v2105 = vmul.f32 %v1841, %v2072
        %v2106 = vmul.f32 %v1842, %v2073
        %v2107 = vmul.f32 %v1843, %v2074
        %v2108 = vmul.f32 %v1844, %v2075
        %v2109 = vmul.f32 %v1845, %v2076
        %v2110 = vmul.f32 %v1846, %v2077
        %v2111 = vmul.f32 %v1847, %v2078
        %v2112 = vmul.f32 %v1848, %v2079
        %v2113 = vmul.f32 %v1849, %v2080
        %v2114 = vmul.f32 %v1850, %v2081
        %v2115 = vmul.f32 %v1851, %v2082
        %v2116 = vmul.f32 %v1852, %v2083
        %v2117 = vmul.f32 %v1853, %v2084
        %v2118 = vmul.f32 %v1854, %v2085
        %v2119 = vmul.f32 %v1855, %v2086
        %v2120 = vmul.f32 %v1856, %v2087
        %v2121 = vmul.f32 %v1857, %v2088
        %v2123 = vlaneseq
        %v2124 = vshrl.u32 %v2123, 7
        %v2125 = vsub.s32 0, %v2124
        %v2126 = vrot.slane %v1689, %v2125
        %v2128 = vmul.f32 %v2089, %v2126
        %v2129 = vmul.f32 %v2090, %v2126
        %v2130 = vmul.f32 %v2091, %v2126
        %v2131 = vmul.f32 %v2092, %v2126
        %v2132 = vmul.f32 %v2093, %v2126
        %v2133 = vmul.f32 %v2094, %v2126
        %v2134 = vmul.f32 %v2095, %v2126
        %v2135 = vmul.f32 %v2096, %v2126
        %v2136 = vmul.f32 %v2097, %v2126
        %v2137 = vmul.f32 %v2098, %v2126
        %v2138 = vmul.f32 %v2099, %v2126
        %v2139 = vmul.f32 %v2100, %v2126
        %v2140 = vmul.f32 %v2101, %v2126
        %v2141 = vmul.f32 %v2102, %v2126
        %v2142 = vmul.f32 %v2103, %v2126
        %v2143 = vmul.f32 %v2104, %v2126
        %v2144 = vmul.f32 %v2105, %v2126
        %v2145 = vmul.f32 %v2106, %v2126
        %v2146 = vmul.f32 %v2107, %v2126
        %v2147 = vmul.f32 %v2108, %v2126
        %v2148 = vmul.f32 %v2109, %v2126
        %v2149 = vmul.f32 %v2110, %v2126
        %v2150 = vmul.f32 %v2111, %v2126
        %v2151 = vmul.f32 %v2112, %v2126
        %v2152 = vmul.f32 %v2113, %v2126
        %v2153 = vmul.f32 %v2114, %v2126
        %v2154 = vmul.f32 %v2115, %v2126
        %v2155 = vmul.f32 %v2116, %v2126
        %v2156 = vmul.f32 %v2117, %v2126
        %v2157 = vmul.f32 %v2118, %v2126
        %v2158 = vmul.f32 %v2119, %v2126
        %v2159 = vmul.f32 %v2120, %v2126
        %v2160 = vmul.f32 %v2121, %v2126
        %v2162 = vlaneseq
        %v2163 = vshrl.u32 %v2162, 7
        %v2164 = vsub.s32 0, %v2163
        %v2165 = vrot.slane %v1690, %v2164
        %v2167 = vadd.f32 %v2128, %v2165
        %v2168 = vadd.f32 %v2129, %v2165
        %v2169 = vadd.f32 %v2130, %v2165
        %v2170 = vadd.f32 %v2131, %v2165
        %v2171 = vadd.f32 %v2132, %v2165
        %v2172 = vadd.f32 %v2133, %v2165
        %v2173 = vadd.f32 %v2134, %v2165
        %v2174 = vadd.f32 %v2135, %v2165
        %v2175 = vadd.f32 %v2136, %v2165
        %v2176 = vadd.f32 %v2137, %v2165
        %v2177 = vadd.f32 %v2138, %v2165
        %v2178 = vadd.f32 %v2139, %v2165
        %v2179 = vadd.f32 %v2140, %v2165
        %v2180 = vadd.f32 %v2141, %v2165
        %v2181 = vadd.f32 %v2142, %v2165
        %v2182 = vadd.f32 %v2143, %v2165
        %v2183 = vadd.f32 %v2144, %v2165
        %v2184 = vadd.f32 %v2145, %v2165
        %v2185 = vadd.f32 %v2146, %v2165
        %v2186 = vadd.f32 %v2147, %v2165
        %v2187 = vadd.f32 %v2148, %v2165
        %v2188 = vadd.f32 %v2149, %v2165
        %v2189 = vadd.f32 %v2150, %v2165
        %v2190 = vadd.f32 %v2151, %v2165
        %v2191 = vadd.f32 %v2152, %v2165
        %v2192 = vadd.f32 %v2153, %v2165
        %v2193 = vadd.f32 %v2154, %v2165
        %v2194 = vadd.f32 %v2155, %v2165
        %v2195 = vadd.f32 %v2156, %v2165
        %v2196 = vadd.f32 %v2157, %v2165
        %v2197 = vadd.f32 %v2158, %v2165
        %v2198 = vadd.f32 %v2159, %v2165
        %v2199 = vadd.f32 %v2160, %v2165
        %v2200 = vpack.c.bf16 %v2168, %v2167
        %v2201 = vpack.c.bf16 %v2170, %v2169
        %v2202 = vpack.c.bf16 %v2172, %v2171
        %v2203 = vpack.c.bf16 %v2174, %v2173
        %v2204 = vpack.c.bf16 %v2176, %v2175
        %v2205 = vpack.c.bf16 %v2178, %v2177
        %v2206 = vpack.c.bf16 %v2180, %v2179
        %v2207 = vpack.c.bf16 %v2182, %v2181
        %v2208 = vpack.c.bf16 %v2184, %v2183
        %v2209 = vpack.c.bf16 %v2186, %v2185
        %v2210 = vpack.c.bf16 %v2188, %v2187
        %v2211 = vpack.c.bf16 %v2190, %v2189
        %v2212 = vpack.c.bf16 %v2192, %v2191
        %v2213 = vpack.c.bf16 %v2194, %v2193
        %v2214 = vpack.c.bf16 %v2196, %v2195
        %v2215 = vpack.c.bf16 %v2198, %v2197
        %v2216 = vpack.c.bf16 %v2199, %v2199
        %v2217 = vld [vmem:[%s6] sm:$0xf]
        %v2218 = vld [vmem:[%s6 + $0x4] sm:$0xf]
        %v2219 = vld [vmem:[%s6 + $0x8] sm:$0xf]
        %v2220 = vld [vmem:[%s6 + $0xc] sm:$0xf]
        %v2221 = vld [vmem:[%s7] sm:$0x1]
        %v2223 = vlaneseq
        %v2224 = vshrl.u32 %v2223, 7
        %v2225 = vsub.s32 0, %v2224
        %v2226 = vrot.slane %v2221, %v2225
        %v2232 = vunpack.c.l.b16 %v2217
        %v2233 = vunpack.c.l.b16 %v2218
        %v2234 = vunpack.c.l.b16 %v2219
        %v2235 = vunpack.c.l.b16 %v2220
        %v2236 = vpack.c.b16 %v2233, %v2232
        %v2237 = vpack.c.b16 %v2235, %v2234
        %v2241 = vsel %vm1691, %v2200, 0
        %v2244 = vsel %vm1691, %v2201, 0
        %v2247 = vsel %vm1691, %v2202, 0
        %v2250 = vsel %vm1691, %v2203, 0
        %v2253 = vsel %vm1691, %v2204, 0
        %v2256 = vsel %vm1691, %v2205, 0
        %v2259 = vsel %vm1691, %v2206, 0
        %v2262 = vsel %vm1691, %v2207, 0
        %v2265 = vsel %vm1691, %v2208, 0
        %v2268 = vsel %vm1691, %v2209, 0
        %v2271 = vsel %vm1691, %v2210, 0
        %v2274 = vsel %vm1691, %v2211, 0
        %v2277 = vsel %vm1691, %v2212, 0
        %v2280 = vsel %vm1691, %v2213, 0
        %v2283 = vsel %vm1691, %v2214, 0
        %v2286 = vsel %vm1691, %v2215, 0
        %v2289 = vsel %vm1691, %v2216, 0
        %2291 = vmatprep.subr.bf16.mxu0 0
        %2292 = vmatpush1.bf16.msra.mxu0 %v2236
        %2293 = vmatprep.subr.bf16.mxu0 0
        %2294 = vmatpush1.bf16.msra.mxu0 %v2237
        %2295 = vmatprep.subr.bf16.mxu0 0
        %2296 = vmatpush1.bf16.msra.mxu0 0
        %2297 = vmatprep.subr.bf16.mxu0 0
        %2298 = vmatpush1.bf16.msra.mxu0 0
        %2299 = vmatprep.subr.bf16.mxu0 0
        %2300 = vmatpush1.bf16.msra.mxu0 0
        %2301 = vmatprep.subr.bf16.mxu0 0
        %2302 = vmatpush1.bf16.msra.mxu0 0
        %2303 = vmatprep.subr.bf16.mxu0 0
        %2304 = vmatpush1.bf16.msra.mxu0 0
        %2305 = vmatprep.subr.bf16.mxu0 0
        %2306 = vmatpush1.bf16.msra.mxu0 0
        %2307 = vmatprep.subr.bf16.mxu0 0
        %2308 = vmatpush1.bf16.msra.mxu0 0
        %2309 = vmatprep.subr.bf16.mxu0 0
        %2310 = vmatpush1.bf16.msra.mxu0 0
        %2311 = vmatprep.subr.bf16.mxu0 0
        %2312 = vmatpush1.bf16.msra.mxu0 0
        %2313 = vmatprep.subr.bf16.mxu0 0
        %2314 = vmatpush1.bf16.msra.mxu0 0
        %2315 = vmatprep.subr.bf16.mxu0 0
        %2316 = vmatpush1.bf16.msra.mxu0 0
        %2317 = vmatprep.subr.bf16.mxu0 0
        %2318 = vmatpush1.bf16.msra.mxu0 0
        %2319 = vmatprep.subr.bf16.mxu0 0
        %2320 = vmatpush1.bf16.msra.mxu0 0
        %2321 = vmatprep.subr.bf16.mxu0 0
        %2322 = vmatpush1.bf16.msra.mxu0 0
        %2323 = vmatprep.mubr.bf16.mxu0 0
        %2324 = vmatmul.mubr.bf16.gmra.mrb[0].mxu0 %v2241
        %v2325 = vpop.f32.mrb[0].mxu0
        %v2326 = vadd.f32 %v2226, %v2325
        %v2327 = vpop.f32.mrb[0].mxu0
        %v2328 = vpop.f32.mrb[0].mxu0
        %v2329 = vadd.f32 %v2226, %v2328
        %v2330 = vpop.f32.mrb[0].mxu0
        %2331 = vmatprep.mubr.bf16.mxu0 0
        %2332 = vmatmul.mubr.bf16.gmra.mrb[0].mxu0 %v2244
        %v2333 = vpop.f32.mrb[0].mxu0
        %v2334 = vadd.f32 %v2226, %v2333
        %v2335 = vpop.f32.mrb[0].mxu0
        %v2336 = vpop.f32.mrb[0].mxu0
        %v2337 = vadd.f32 %v2226, %v2336
        %v2338 = vpop.f32.mrb[0].mxu0
        %2339 = vmatprep.mubr.bf16.mxu0 0
        %2340 = vmatmul.mubr.bf16.gmra.mrb[0].mxu0 %v2247
        %v2341 = vpop.f32.mrb[0].mxu0
        %v2342 = vadd.f32 %v2226, %v2341
        %v2343 = vpop.f32.mrb[0].mxu0
        %v2344 = vpop.f32.mrb[0].mxu0
        %v2345 = vadd.f32 %v2226, %v2344
        %v2346 = vpop.f32.mrb[0].mxu0
        %2347 = vmatprep.mubr.bf16.mxu0 0
        %2348 = vmatmul.mubr.bf16.gmra.mrb[0].mxu0 %v2250
        %v2349 = vpop.f32.mrb[0].mxu0
        %v2350 = vadd.f32 %v2226, %v2349
        %v2351 = vpop.f32.mrb[0].mxu0
        %v2352 = vpop.f32.mrb[0].mxu0
        %v2353 = vadd.f32 %v2226, %v2352
        %v2354 = vpop.f32.mrb[0].mxu0
        %2355 = vmatprep.mubr.bf16.mxu0 0
        %2356 = vmatmul.mubr.bf16.gmra.mrb[0].mxu0 %v2253
        %v2357 = vpop.f32.mrb[0].mxu0
        %v2358 = vadd.f32 %v2226, %v2357
        %v2359 = vpop.f32.mrb[0].mxu0
        %v2360 = vpop.f32.mrb[0].mxu0
        %v2361 = vadd.f32 %v2226, %v2360
        %v2362 = vpop.f32.mrb[0].mxu0
        %2363 = vmatprep.mubr.bf16.mxu0 0
        %2364 = vmatmul.mubr.bf16.gmra.mrb[0].mxu0 %v2256
        %v2365 = vpop.f32.mrb[0].mxu0
        %v2366 = vadd.f32 %v2226, %v2365
        %v2367 = vpop.f32.mrb[0].mxu0
        %v2368 = vpop.f32.mrb[0].mxu0
        %v2369 = vadd.f32 %v2226, %v2368
        %v2370 = vpop.f32.mrb[0].mxu0
        %2371 = vmatprep.mubr.bf16.mxu0 0
        %2372 = vmatmul.mubr.bf16.gmra.mrb[0].mxu0 %v2259
        %v2373 = vpop.f32.mrb[0].mxu0
        %v2374 = vadd.f32 %v2226, %v2373
        %v2375 = vpop.f32.mrb[0].mxu0
        %v2376 = vpop.f32.mrb[0].mxu0
        %v2377 = vadd.f32 %v2226, %v2376
        %v2378 = vpop.f32.mrb[0].mxu0
        %2379 = vmatprep.mubr.bf16.mxu0 0
        %2380 = vmatmul.mubr.bf16.gmra.mrb[0].mxu0 %v2262
        %v2381 = vpop.f32.mrb[0].mxu0
        %v2382 = vadd.f32 %v2226, %v2381
        %v2383 = vpop.f32.mrb[0].mxu0
        %v2384 = vpop.f32.mrb[0].mxu0
        %v2385 = vadd.f32 %v2226, %v2384
        %v2386 = vpop.f32.mrb[0].mxu0
        %2387 = vmatprep.mubr.bf16.mxu0 0
        %2388 = vmatmul.mubr.bf16.gmra.mrb[0].mxu0 %v2265
        %v2389 = vpop.f32.mrb[0].mxu0
        %v2390 = vadd.f32 %v2226, %v2389
        %v2391 = vpop.f32.mrb[0].mxu0
        %v2392 = vpop.f32.mrb[0].mxu0
        %v2393 = vadd.f32 %v2226, %v2392
        %v2394 = vpop.f32.mrb[0].mxu0
        %2395 = vmatprep.mubr.bf16.mxu0 0
        %2396 = vmatmul.mubr.bf16.gmra.mrb[0].mxu0 %v2268
        %v2397 = vpop.f32.mrb[0].mxu0
        %v2398 = vadd.f32 %v2226, %v2397
        %v2399 = vpop.f32.mrb[0].mxu0
        %v2400 = vpop.f32.mrb[0].mxu0
        %v2401 = vadd.f32 %v2226, %v2400
        %v2402 = vpop.f32.mrb[0].mxu0
        %2403 = vmatprep.mubr.bf16.mxu0 0
        %2404 = vmatmul.mubr.bf16.gmra.mrb[0].mxu0 %v2271
        %v2405 = vpop.f32.mrb[0].mxu0
        %v2406 = vadd.f32 %v2226, %v2405
        %v2407 = vpop.f32.mrb[0].mxu0
        %v2408 = vpop.f32.mrb[0].mxu0
        %v2409 = vadd.f32 %v2226, %v2408
        %v2410 = vpop.f32.mrb[0].mxu0
        %2411 = vmatprep.mubr.bf16.mxu0 0
        %2412 = vmatmul.mubr.bf16.gmra.mrb[0].mxu0 %v2274
        %v2413 = vpop.f32.mrb[0].mxu0
        %v2414 = vadd.f32 %v2226, %v2413
        %v2415 = vpop.f32.mrb[0].mxu0
        %v2416 = vpop.f32.mrb[0].mxu0
        %v2417 = vadd.f32 %v2226, %v2416
        %v2418 = vpop.f32.mrb[0].mxu0
        %2419 = vmatprep.mubr.bf16.mxu0 0
        %2420 = vmatmul.mubr.bf16.gmra.mrb[0].mxu0 %v2277
        %v2421 = vpop.f32.mrb[0].mxu0
        %v2422 = vadd.f32 %v2226, %v2421
        %v2423 = vpop.f32.mrb[0].mxu0
        %v2424 = vpop.f32.mrb[0].mxu0
        %v2425 = vadd.f32 %v2226, %v2424
        %v2426 = vpop.f32.mrb[0].mxu0
        %2427 = vmatprep.mubr.bf16.mxu0 0
        %2428 = vmatmul.mubr.bf16.gmra.mrb[0].mxu0 %v2280
        %v2429 = vpop.f32.mrb[0].mxu0
        %v2430 = vadd.f32 %v2226, %v2429
        %v2431 = vpop.f32.mrb[0].mxu0
        %v2432 = vpop.f32.mrb[0].mxu0
        %v2433 = vadd.f32 %v2226, %v2432
        %v2434 = vpop.f32.mrb[0].mxu0
        %2435 = vmatprep.mubr.bf16.mxu0 0
        %2436 = vmatmul.mubr.bf16.gmra.mrb[0].mxu0 %v2283
        %v2437 = vpop.f32.mrb[0].mxu0
        %v2438 = vadd.f32 %v2226, %v2437
        %v2439 = vpop.f32.mrb[0].mxu0
        %v2440 = vpop.f32.mrb[0].mxu0
        %v2441 = vadd.f32 %v2226, %v2440
        %v2442 = vpop.f32.mrb[0].mxu0
        %2443 = vmatprep.mubr.bf16.mxu0 0
        %2444 = vmatmul.mubr.bf16.gmra.mrb[0].mxu0 %v2286
        %v2445 = vpop.f32.mrb[0].mxu0
        %v2446 = vadd.f32 %v2226, %v2445
        %v2447 = vpop.f32.mrb[0].mxu0
        %v2448 = vpop.f32.mrb[0].mxu0
        %v2449 = vadd.f32 %v2226, %v2448
        %v2450 = vpop.f32.mrb[0].mxu0
        %2451 = vmatprep.mubr.bf16.mxu0 0
        %2452 = vmatmul.mubr.bf16.gmra.mrb[0].mxu0 %v2289
        %v2453 = vpop.f32.mrb[0].mxu0
        %v2454 = vadd.f32 %v2226, %v2453
        %v2455 = vpop.f32.mrb[0].mxu0
        %v2456 = vpop.f32.mrb[0].mxu0
        %v2457 = vpop.f32.mrb[0].mxu0
        %2458 = vdwg.mxu0
        %v2459 = vpack.c.bf16 %v2329, %v2326
        %v2460 = vpack.c.bf16 %v2337, %v2334
        %v2461 = vpack.c.bf16 %v2345, %v2342
        %v2462 = vpack.c.bf16 %v2353, %v2350
        %v2463 = vpack.c.bf16 %v2361, %v2358
        %v2464 = vpack.c.bf16 %v2369, %v2366
        %v2465 = vpack.c.bf16 %v2377, %v2374
        %v2466 = vpack.c.bf16 %v2385, %v2382
        %v2467 = vpack.c.bf16 %v2393, %v2390
        %v2468 = vpack.c.bf16 %v2401, %v2398
        %v2469 = vpack.c.bf16 %v2409, %v2406
        %v2470 = vpack.c.bf16 %v2417, %v2414
        %v2471 = vpack.c.bf16 %v2425, %v2422
        %v2472 = vpack.c.bf16 %v2433, %v2430
        %v2473 = vpack.c.bf16 %v2441, %v2438
        %v2474 = vpack.c.bf16 %v2449, %v2446
        %v2475 = vpack.c.bf16 %v2454, %v2454
        %v2508 = vunpack.c.l.b16 %v1653
        %v2509 = vunpack.c.h.b16 %v1653
        %v2510 = vunpack.c.l.b16 %v1654
        %v2511 = vunpack.c.l.b16 %v1655
        %v2512 = vunpack.c.h.b16 %v1655
        %v2513 = vunpack.c.l.b16 %v1656
        %v2514 = vunpack.c.l.b16 %v1657
        %v2515 = vunpack.c.h.b16 %v1657
        %v2516 = vunpack.c.l.b16 %v1658
        %v2517 = vunpack.c.l.b16 %v1659
        %v2518 = vunpack.c.h.b16 %v1659
        %v2519 = vunpack.c.l.b16 %v1660
        %v2520 = vunpack.c.l.b16 %v1661
        %v2521 = vunpack.c.h.b16 %v1661
        %v2522 = vunpack.c.l.b16 %v1662
        %v2523 = vunpack.c.l.b16 %v1663
        %v2524 = vunpack.c.h.b16 %v1663
        %v2525 = vunpack.c.l.b16 %v1664
        %v2526 = vunpack.c.l.b16 %v1665
        %v2527 = vunpack.c.h.b16 %v1665
        %v2528 = vunpack.c.l.b16 %v1666
        %v2529 = vunpack.c.l.b16 %v1667
        %v2530 = vunpack.c.h.b16 %v1667
        %v2531 = vunpack.c.l.b16 %v1668
        %v2532 = vunpack.c.l.b16 %v1669
        %v2533 = vunpack.c.h.b16 %v1669
        %v2534 = vunpack.c.l.b16 %v1670
        %v2535 = vunpack.c.l.b16 %v1671
        %v2536 = vunpack.c.h.b16 %v1671
        %v2537 = vunpack.c.l.b16 %v1672
        %v2538 = vunpack.c.l.b16 %v1673
        %v2539 = vunpack.c.h.b16 %v1673
        %v2540 = vunpack.c.l.b16 %v1674
        %v2541 = vunpack.c.l.b16 %v1675
        %v2542 = vunpack.c.h.b16 %v1675
        %v2543 = vunpack.c.l.b16 %v1676
        %v2544 = vunpack.c.l.b16 %v1677
        %v2545 = vunpack.c.h.b16 %v1677
        %v2546 = vunpack.c.l.b16 %v1678
        %v2547 = vunpack.c.l.b16 %v1679
        %v2548 = vunpack.c.h.b16 %v1679
        %v2549 = vunpack.c.l.b16 %v1680
        %v2550 = vunpack.c.l.b16 %v1681
        %v2551 = vunpack.c.h.b16 %v1681
        %v2552 = vunpack.c.l.b16 %v1682
        %v2553 = vunpack.c.l.b16 %v1683
        %v2554 = vunpack.c.h.b16 %v1683
        %v2555 = vunpack.c.l.b16 %v1684
        %v2556 = vpack.c.b16 %v2511, %v2508
        %v2557 = vpack.c.b16 %v2512, %v2509
        %v2558 = vpack.c.b16 %v2513, %v2510
        %v2559 = vpack.c.b16 %v2517, %v2514
        %v2560 = vpack.c.b16 %v2518, %v2515
        %v2561 = vpack.c.b16 %v2519, %v2516
        %v2562 = vpack.c.b16 %v2523, %v2520
        %v2563 = vpack.c.b16 %v2524, %v2521
        %v2564 = vpack.c.b16 %v2525, %v2522
        %v2565 = vpack.c.b16 %v2529, %v2526
        %v2566 = vpack.c.b16 %v2530, %v2527
        %v2567 = vpack.c.b16 %v2531, %v2528
        %v2568 = vpack.c.b16 %v2535, %v2532
        %v2569 = vpack.c.b16 %v2536, %v2533
        %v2570 = vpack.c.b16 %v2537, %v2534
        %v2571 = vpack.c.b16 %v2541, %v2538
        %v2572 = vpack.c.b16 %v2542, %v2539
        %v2573 = vpack.c.b16 %v2543, %v2540
        %v2574 = vpack.c.b16 %v2547, %v2544
        %v2575 = vpack.c.b16 %v2548, %v2545
        %v2576 = vpack.c.b16 %v2549, %v2546
        %v2577 = vpack.c.b16 %v2553, %v2550
        %v2578 = vpack.c.b16 %v2554, %v2551
        %v2579 = vpack.c.b16 %v2555, %v2552
        %2613 = vrot.lane.b32.xlu0 %v2459, 96
        %v2614 = vpop.permute.xlu0 %2613
        %2615 = vrot.lane.b32.xlu0 %v2460, 96
        %v2616 = vpop.permute.xlu0 %2615
        %2617 = vrot.lane.b32.xlu0 %v2461, 96
        %v2618 = vpop.permute.xlu0 %2617
        %2619 = vrot.lane.b32.xlu0 %v2462, 96
        %v2620 = vpop.permute.xlu0 %2619
        %2621 = vrot.lane.b32.xlu0 %v2463, 96
        %v2622 = vpop.permute.xlu0 %2621
        %2623 = vrot.lane.b32.xlu0 %v2464, 96
        %v2624 = vpop.permute.xlu0 %2623
        %2625 = vrot.lane.b32.xlu0 %v2465, 96
        %v2626 = vpop.permute.xlu0 %2625
        %2627 = vrot.lane.b32.xlu0 %v2466, 96
        %v2628 = vpop.permute.xlu0 %2627
        %2629 = vrot.lane.b32.xlu0 %v2467, 96
        %v2630 = vpop.permute.xlu0 %2629
        %2631 = vrot.lane.b32.xlu0 %v2468, 96
        %v2632 = vpop.permute.xlu0 %2631
        %2633 = vrot.lane.b32.xlu0 %v2469, 96
        %v2634 = vpop.permute.xlu0 %2633
        %2635 = vrot.lane.b32.xlu0 %v2470, 96
        %v2636 = vpop.permute.xlu0 %2635
        %2637 = vrot.lane.b32.xlu0 %v2471, 96
        %v2638 = vpop.permute.xlu0 %2637
        %2639 = vrot.lane.b32.xlu0 %v2472, 96
        %v2640 = vpop.permute.xlu0 %2639
        %2641 = vrot.lane.b32.xlu0 %v2473, 96
        %v2642 = vpop.permute.xlu0 %2641
        %2643 = vrot.lane.b32.xlu0 %v2474, 96
        %v2644 = vpop.permute.xlu0 %2643
        %2645 = vrot.lane.b32.xlu0 %v2475, 96
        %v2646 = vpop.permute.xlu0 %2645
        %vm2663 = vcmask 64512
        %v2665 = vsel %vm2663, %v2558, 0
        %v2668 = vsel %vm2663, %v2561, 0
        %v2671 = vsel %vm2663, %v2564, 0
        %v2674 = vsel %vm2663, %v2567, 0
        %v2677 = vsel %vm2663, %v2570, 0
        %v2680 = vsel %vm2663, %v2573, 0
        %v2683 = vsel %vm2663, %v2576, 0
        %v2686 = vsel %vm2663, %v2579, 0
        %vm2688 = vcmask 1043456
        %v2690 = vsel %vm2688, %v2646, 0
        %2692 = vmatprep.subr.bf16.mxu0 0
        %2693 = vmatpush1.bf16.msra.mxu0 %v2614
        %2694 = vmatprep.subr.bf16.mxu0 0
        %2695 = vmatpush1.bf16.msra.mxu0 %v2616
        %2696 = vmatprep.subr.bf16.mxu0 0
        %2697 = vmatpush1.bf16.msra.mxu0 %v2618
        %2698 = vmatprep.subr.bf16.mxu0 0
        %2699 = vmatpush1.bf16.msra.mxu0 %v2620
        %2700 = vmatprep.subr.bf16.mxu0 0
        %2701 = vmatpush1.bf16.msra.mxu0 %v2622
        %2702 = vmatprep.subr.bf16.mxu0 0
        %2703 = vmatpush1.bf16.msra.mxu0 %v2624
        %2704 = vmatprep.subr.bf16.mxu0 0
        %2705 = vmatpush1.bf16.msra.mxu0 %v2626
        %2706 = vmatprep.subr.bf16.mxu0 0
        %2707 = vmatpush1.bf16.msra.mxu0 %v2628
        %2708 = vmatprep.subr.bf16.mxu0 0
        %2709 = vmatpush1.bf16.msra.mxu0 %v2630
        %2710 = vmatprep.subr.bf16.mxu0 0
        %2711 = vmatpush1.bf16.msra.mxu0 %v2632
        %2712 = vmatprep.subr.bf16.mxu0 0
        %2713 = vmatpush1.bf16.msra.mxu0 %v2634
        %2714 = vmatprep.subr.bf16.mxu0 0
        %2715 = vmatpush1.bf16.msra.mxu0 %v2636
        %2716 = vmatprep.subr.bf16.mxu0 0
        %2717 = vmatpush1.bf16.msra.mxu0 %v2638
        %2718 = vmatprep.subr.bf16.mxu0 0
        %2719 = vmatpush1.bf16.msra.mxu0 %v2640
        %2720 = vmatprep.subr.bf16.mxu0 0
        %2721 = vmatpush1.bf16.msra.mxu0 %v2642
        %2722 = vmatprep.subr.bf16.mxu0 0
        %2723 = vmatpush1.bf16.msra.mxu0 %v2644
        %2724 = vmatprep.mubr.bf16.mxu0 %v2557
        %2725 = vmatmul.mubr.bf16.gmra.mrb[0].mxu0 %v2556
        %v2726 = vpop.f32.mrb[0].mxu0
        %v2727 = vadd.f32 0.0, %v2726
        %v2728 = vpop.f32.mrb[0].mxu0
        %v2729 = vpop.f32.mrb[0].mxu0
        %v2730 = vadd.f32 0.0, %v2729
        %v2731 = vpop.f32.mrb[0].mxu0
        %2732 = vmatprep.mubr.bf16.mxu0 %v2560
        %2733 = vmatmul.mubr.bf16.gmra.mrb[0].mxu0 %v2559
        %v2734 = vpop.f32.mrb[0].mxu0
        %v2735 = vadd.f32 0.0, %v2734
        %v2736 = vpop.f32.mrb[0].mxu0
        %v2737 = vpop.f32.mrb[0].mxu0
        %v2738 = vadd.f32 0.0, %v2737
        %v2739 = vpop.f32.mrb[0].mxu0
        %2740 = vmatprep.mubr.bf16.mxu0 %v2563
        %2741 = vmatmul.mubr.bf16.gmra.mrb[0].mxu0 %v2562
        %v2742 = vpop.f32.mrb[0].mxu0
        %v2743 = vadd.f32 0.0, %v2742
        %v2744 = vpop.f32.mrb[0].mxu0
        %v2745 = vpop.f32.mrb[0].mxu0
        %v2746 = vadd.f32 0.0, %v2745
        %v2747 = vpop.f32.mrb[0].mxu0
        %2748 = vmatprep.mubr.bf16.mxu0 %v2566
        %2749 = vmatmul.mubr.bf16.gmra.mrb[0].mxu0 %v2565
        %v2750 = vpop.f32.mrb[0].mxu0
        %v2751 = vadd.f32 0.0, %v2750
        %v2752 = vpop.f32.mrb[0].mxu0
        %v2753 = vpop.f32.mrb[0].mxu0
        %v2754 = vadd.f32 0.0, %v2753
        %v2755 = vpop.f32.mrb[0].mxu0
        %2756 = vmatprep.mubr.bf16.mxu0 %v2569
        %2757 = vmatmul.mubr.bf16.gmra.mrb[0].mxu0 %v2568
        %v2758 = vpop.f32.mrb[0].mxu0
        %v2759 = vadd.f32 0.0, %v2758
        %v2760 = vpop.f32.mrb[0].mxu0
        %v2761 = vpop.f32.mrb[0].mxu0
        %v2762 = vadd.f32 0.0, %v2761
        %v2763 = vpop.f32.mrb[0].mxu0
        %2764 = vmatprep.mubr.bf16.mxu0 %v2572
        %2765 = vmatmul.mubr.bf16.gmra.mrb[0].mxu0 %v2571
        %v2766 = vpop.f32.mrb[0].mxu0
        %v2767 = vadd.f32 0.0, %v2766
        %v2768 = vpop.f32.mrb[0].mxu0
        %v2769 = vpop.f32.mrb[0].mxu0
        %v2770 = vadd.f32 0.0, %v2769
        %v2771 = vpop.f32.mrb[0].mxu0
        %2772 = vmatprep.mubr.bf16.mxu0 %v2575
        %2773 = vmatmul.mubr.bf16.gmra.mrb[0].mxu0 %v2574
        %v2774 = vpop.f32.mrb[0].mxu0
        %v2775 = vadd.f32 0.0, %v2774
        %v2776 = vpop.f32.mrb[0].mxu0
        %v2777 = vpop.f32.mrb[0].mxu0
        %v2778 = vadd.f32 0.0, %v2777
        %v2779 = vpop.f32.mrb[0].mxu0
        %2780 = vmatprep.mubr.bf16.mxu0 %v2578
        %2781 = vmatmul.mubr.bf16.gmra.mrb[0].mxu0 %v2577
        %v2782 = vpop.f32.mrb[0].mxu0
        %v2783 = vadd.f32 0.0, %v2782
        %v2784 = vpop.f32.mrb[0].mxu0
        %v2785 = vpop.f32.mrb[0].mxu0
        %v2786 = vadd.f32 0.0, %v2785
        %v2787 = vpop.f32.mrb[0].mxu0
        %2788 = vdwg.mxu0
        %2789 = vmatprep.subr.bf16.mxu0 0
        %2790 = vmatpush1.bf16.msra.mxu0 %v2690
        %2791 = vmatprep.subr.bf16.mxu0 0
        %2792 = vmatpush1.bf16.msra.mxu0 0
        %2793 = vmatprep.subr.bf16.mxu0 0
        %2794 = vmatpush1.bf16.msra.mxu0 0
        %2795 = vmatprep.subr.bf16.mxu0 0
        %2796 = vmatpush1.bf16.msra.mxu0 0
        %2797 = vmatprep.subr.bf16.mxu0 0
        %2798 = vmatpush1.bf16.msra.mxu0 0
        %2799 = vmatprep.subr.bf16.mxu0 0
        %2800 = vmatpush1.bf16.msra.mxu0 0
        %2801 = vmatprep.subr.bf16.mxu0 0
        %2802 = vmatpush1.bf16.msra.mxu0 0
        %2803 = vmatprep.subr.bf16.mxu0 0
        %2804 = vmatpush1.bf16.msra.mxu0 0
        %2805 = vmatprep.subr.bf16.mxu0 0
        %2806 = vmatpush1.bf16.msra.mxu0 0
        %2807 = vmatprep.subr.bf16.mxu0 0
        %2808 = vmatpush1.bf16.msra.mxu0 0
        %2809 = vmatprep.subr.bf16.mxu0 0
        %2810 = vmatpush1.bf16.msra.mxu0 0
        %2811 = vmatprep.subr.bf16.mxu0 0
        %2812 = vmatpush1.bf16.msra.mxu0 0
        %2813 = vmatprep.subr.bf16.mxu0 0
        %2814 = vmatpush1.bf16.msra.mxu0 0
        %2815 = vmatprep.subr.bf16.mxu0 0
        %2816 = vmatpush1.bf16.msra.mxu0 0
        %2817 = vmatprep.subr.bf16.mxu0 0
        %2818 = vmatpush1.bf16.msra.mxu0 0
        %2819 = vmatprep.subr.bf16.mxu0 0
        %2820 = vmatpush1.bf16.msra.mxu0 0
        %2821 = vmatprep.mubr.bf16.mxu0 0
        %2822 = vmatmul.mubr.bf16.gmra.mrb[0].mxu0 %v2665
        %v2823 = vpop.f32.mrb[0].mxu0
        %v2824 = vadd.f32 %v2727, %v2823
        %v2825 = vpop.f32.mrb[0].mxu0
        %v2826 = vpop.f32.mrb[0].mxu0
        %v2827 = vadd.f32 %v2730, %v2826
        %v2828 = vpop.f32.mrb[0].mxu0
        %2829 = vmatprep.mubr.bf16.mxu0 0
        %2830 = vmatmul.mubr.bf16.gmra.mrb[0].mxu0 %v2668
        %v2831 = vpop.f32.mrb[0].mxu0
        %v2832 = vadd.f32 %v2735, %v2831
        %v2833 = vpop.f32.mrb[0].mxu0
        %v2834 = vpop.f32.mrb[0].mxu0
        %v2835 = vadd.f32 %v2738, %v2834
        %v2836 = vpop.f32.mrb[0].mxu0
        %2837 = vmatprep.mubr.bf16.mxu0 0
        %2838 = vmatmul.mubr.bf16.gmra.mrb[0].mxu0 %v2671
        %v2839 = vpop.f32.mrb[0].mxu0
        %v2840 = vadd.f32 %v2743, %v2839
        %v2841 = vpop.f32.mrb[0].mxu0
        %v2842 = vpop.f32.mrb[0].mxu0
        %v2843 = vadd.f32 %v2746, %v2842
        %v2844 = vpop.f32.mrb[0].mxu0
        %2845 = vmatprep.mubr.bf16.mxu0 0
        %2846 = vmatmul.mubr.bf16.gmra.mrb[0].mxu0 %v2674
        %v2847 = vpop.f32.mrb[0].mxu0
        %v2848 = vadd.f32 %v2751, %v2847
        %v2849 = vpop.f32.mrb[0].mxu0
        %v2850 = vpop.f32.mrb[0].mxu0
        %v2851 = vadd.f32 %v2754, %v2850
        %v2852 = vpop.f32.mrb[0].mxu0
        %2853 = vmatprep.mubr.bf16.mxu0 0
        %2854 = vmatmul.mubr.bf16.gmra.mrb[0].mxu0 %v2677
        %v2855 = vpop.f32.mrb[0].mxu0
        %v2856 = vadd.f32 %v2759, %v2855
        %v2857 = vpop.f32.mrb[0].mxu0
        %v2858 = vpop.f32.mrb[0].mxu0
        %v2859 = vadd.f32 %v2762, %v2858
        %v2860 = vpop.f32.mrb[0].mxu0
        %2861 = vmatprep.mubr.bf16.mxu0 0
        %2862 = vmatmul.mubr.bf16.gmra.mrb[0].mxu0 %v2680
        %v2863 = vpop.f32.mrb[0].mxu0
        %v2864 = vadd.f32 %v2767, %v2863
        %v2865 = vpop.f32.mrb[0].mxu0
        %v2866 = vpop.f32.mrb[0].mxu0
        %v2867 = vadd.f32 %v2770, %v2866
        %v2868 = vpop.f32.mrb[0].mxu0
        %2869 = vmatprep.mubr.bf16.mxu0 0
        %2870 = vmatmul.mubr.bf16.gmra.mrb[0].mxu0 %v2683
        %v2871 = vpop.f32.mrb[0].mxu0
        %v2872 = vadd.f32 %v2775, %v2871
        %v2873 = vpop.f32.mrb[0].mxu0
        %v2874 = vpop.f32.mrb[0].mxu0
        %v2875 = vadd.f32 %v2778, %v2874
        %v2876 = vpop.f32.mrb[0].mxu0
        %2877 = vmatprep.mubr.bf16.mxu0 0
        %2878 = vmatmul.mubr.bf16.gmra.mrb[0].mxu0 %v2686
        %v2879 = vpop.f32.mrb[0].mxu0
        %v2880 = vadd.f32 %v2783, %v2879
        %v2881 = vpop.f32.mrb[0].mxu0
        %v2882 = vpop.f32.mrb[0].mxu0
        %v2883 = vadd.f32 %v2786, %v2882
        %v2884 = vpop.f32.mrb[0].mxu0
        %2885 = vdwg.mxu0
        %v2886 = vpack.c.bf16 %v2827, %v2824
        %v2887 = vpack.c.bf16 %v2835, %v2832
        %v2888 = vpack.c.bf16 %v2843, %v2840
        %v2889 = vpack.c.bf16 %v2851, %v2848
        %v2890 = vpack.c.bf16 %v2859, %v2856
        %v2891 = vpack.c.bf16 %v2867, %v2864
        %v2892 = vpack.c.bf16 %v2875, %v2872
        %v2893 = vpack.c.bf16 %v2883, %v2880
        %vm2894 = vcmask 130048
        %v2896 = vsel %vm2894, %v2459, 0
        %v2899 = vsel %vm2894, %v2460, 0
        %v2902 = vsel %vm2894, %v2461, 0
        %v2905 = vsel %vm2894, %v2462, 0
        %v2908 = vsel %vm2894, %v2463, 0
        %v2911 = vsel %vm2894, %v2464, 0
        %v2914 = vsel %vm2894, %v2465, 0
        %v2917 = vsel %vm2894, %v2466, 0
        %v2920 = vsel %vm2894, %v2467, 0
        %v2923 = vsel %vm2894, %v2468, 0
        %v2926 = vsel %vm2894, %v2469, 0
        %v2929 = vsel %vm2894, %v2470, 0
        %v2932 = vsel %vm2894, %v2471, 0
        %v2935 = vsel %vm2894, %v2472, 0
        %v2938 = vsel %vm2894, %v2473, 0
        %v2941 = vsel %vm2894, %v2474, 0
        %v2944 = vsel %vm2894, %v2475, 0
        %v2947 = vsel %vm2894, %v2886, 0
        %v2950 = vsel %vm2894, %v2887, 0
        %v2953 = vsel %vm2894, %v2888, 0
        %v2956 = vsel %vm2894, %v2889, 0
        %v2959 = vsel %vm2894, %v2890, 0
        %v2962 = vsel %vm2894, %v2891, 0
        %v2965 = vsel %vm2894, %v2892, 0
        %v2968 = vsel %vm2894, %v2893, 0
        %2970 = vmatprep.subr.bf16.mxu0 0
        %2971 = vmatpush1.bf16.xpose.msra.mxu0 %v2947
        %2972 = vmatprep.subr.bf16.mxu0 0
        %2973 = vmatpush1.bf16.xpose.msra.mxu0 %v2950
        %2974 = vmatprep.subr.bf16.mxu0 0
        %2975 = vmatpush1.bf16.xpose.msra.mxu0 %v2953
        %2976 = vmatprep.subr.bf16.mxu0 0
        %2977 = vmatpush1.bf16.xpose.msra.mxu0 %v2956
        %2978 = vmatprep.subr.bf16.mxu0 0
        %2979 = vmatpush1.bf16.xpose.msra.mxu0 %v2959
        %2980 = vmatprep.subr.bf16.mxu0 0
        %2981 = vmatpush1.bf16.xpose.msra.mxu0 %v2962
        %2982 = vmatprep.subr.bf16.mxu0 0
        %2983 = vmatpush1.bf16.xpose.msra.mxu0 %v2965
        %2984 = vmatprep.subr.bf16.mxu0 0
        %2985 = vmatpush1.bf16.xpose.msra.mxu0 %v2968
        %2986 = vmatprep.subr.bf16.mxu0 0
        %2987 = vmatpush1.bf16.xpose.msra.mxu0 0
        %2988 = vmatprep.subr.bf16.mxu0 0
        %2989 = vmatpush1.bf16.xpose.msra.mxu0 0
        %2990 = vmatprep.subr.bf16.mxu0 0
        %2991 = vmatpush1.bf16.xpose.msra.mxu0 0
        %2992 = vmatprep.subr.bf16.mxu0 0
        %2993 = vmatpush1.bf16.xpose.msra.mxu0 0
        %2994 = vmatprep.subr.bf16.mxu0 0
        %2995 = vmatpush1.bf16.xpose.msra.mxu0 0
        %2996 = vmatprep.subr.bf16.mxu0 0
        %2997 = vmatpush1.bf16.xpose.msra.mxu0 0
        %2998 = vmatprep.subr.bf16.mxu0 0
        %2999 = vmatpush1.bf16.xpose.msra.mxu0 0
        %3000 = vmatprep.subr.bf16.mxu0 0
        %3001 = vmatpush1.bf16.xpose.msra.mxu0 0
        %3002 = vmatprep.mubr.bf16.mxu0 0
        %3003 = vmatmul.mubr.bf16.gmra.mrb[0].mxu0 %v2896
        %v3004 = vpop.f32.mrb[0].mxu0
        %v3005 = vadd.f32 0.0, %v3004
        %v3006 = vpop.f32.mrb[0].mxu0
        %v3007 = vpop.f32.mrb[0].mxu0
        %v3008 = vadd.f32 0.0, %v3007
        %v3009 = vpop.f32.mrb[0].mxu0
        %3010 = vmatprep.mubr.bf16.mxu0 0
        %3011 = vmatmul.mubr.bf16.gmra.mrb[0].mxu0 %v2899
        %v3012 = vpop.f32.mrb[0].mxu0
        %v3013 = vadd.f32 0.0, %v3012
        %v3014 = vpop.f32.mrb[0].mxu0
        %v3015 = vpop.f32.mrb[0].mxu0
        %v3016 = vadd.f32 0.0, %v3015
        %v3017 = vpop.f32.mrb[0].mxu0
        %3018 = vmatprep.mubr.bf16.mxu0 0
        %3019 = vmatmul.mubr.bf16.gmra.mrb[0].mxu0 %v2902
        %v3020 = vpop.f32.mrb[0].mxu0
        %v3021 = vadd.f32 0.0, %v3020
        %v3022 = vpop.f32.mrb[0].mxu0
        %v3023 = vpop.f32.mrb[0].mxu0
        %v3024 = vadd.f32 0.0, %v3023
        %v3025 = vpop.f32.mrb[0].mxu0
        %3026 = vmatprep.mubr.bf16.mxu0 0
        %3027 = vmatmul.mubr.bf16.gmra.mrb[0].mxu0 %v2905
        %v3028 = vpop.f32.mrb[0].mxu0
        %v3029 = vadd.f32 0.0, %v3028
        %v3030 = vpop.f32.mrb[0].mxu0
        %v3031 = vpop.f32.mrb[0].mxu0
        %v3032 = vadd.f32 0.0, %v3031
        %v3033 = vpop.f32.mrb[0].mxu0
        %3034 = vmatprep.mubr.bf16.mxu0 0
        %3035 = vmatmul.mubr.bf16.gmra.mrb[0].mxu0 %v2908
        %v3036 = vpop.f32.mrb[0].mxu0
        %v3037 = vadd.f32 0.0, %v3036
        %v3038 = vpop.f32.mrb[0].mxu0
        %v3039 = vpop.f32.mrb[0].mxu0
        %v3040 = vadd.f32 0.0, %v3039
        %v3041 = vpop.f32.mrb[0].mxu0
        %3042 = vmatprep.mubr.bf16.mxu0 0
        %3043 = vmatmul.mubr.bf16.gmra.mrb[0].mxu0 %v2911
        %v3044 = vpop.f32.mrb[0].mxu0
        %v3045 = vadd.f32 0.0, %v3044
        %v3046 = vpop.f32.mrb[0].mxu0
        %v3047 = vpop.f32.mrb[0].mxu0
        %v3048 = vadd.f32 0.0, %v3047
        %v3049 = vpop.f32.mrb[0].mxu0
        %3050 = vmatprep.mubr.bf16.mxu0 0
        %3051 = vmatmul.mubr.bf16.gmra.mrb[0].mxu0 %v2914
        %v3052 = vpop.f32.mrb[0].mxu0
        %v3053 = vadd.f32 0.0, %v3052
        %v3054 = vpop.f32.mrb[0].mxu0
        %v3055 = vpop.f32.mrb[0].mxu0
        %v3056 = vadd.f32 0.0, %v3055
        %v3057 = vpop.f32.mrb[0].mxu0
        %3058 = vmatprep.mubr.bf16.mxu0 0
        %3059 = vmatmul.mubr.bf16.gmra.mrb[0].mxu0 %v2917
        %v3060 = vpop.f32.mrb[0].mxu0
        %v3061 = vadd.f32 0.0, %v3060
        %v3062 = vpop.f32.mrb[0].mxu0
        %v3063 = vpop.f32.mrb[0].mxu0
        %v3064 = vadd.f32 0.0, %v3063
        %v3065 = vpop.f32.mrb[0].mxu0
        %3066 = vmatprep.mubr.bf16.mxu0 0
        %3067 = vmatmul.mubr.bf16.gmra.mrb[0].mxu0 %v2920
        %v3068 = vpop.f32.mrb[0].mxu0
        %v3069 = vadd.f32 0.0, %v3068
        %v3070 = vpop.f32.mrb[0].mxu0
        %v3071 = vpop.f32.mrb[0].mxu0
        %v3072 = vadd.f32 0.0, %v3071
        %v3073 = vpop.f32.mrb[0].mxu0
        %3074 = vmatprep.mubr.bf16.mxu0 0
        %3075 = vmatmul.mubr.bf16.gmra.mrb[0].mxu0 %v2923
        %v3076 = vpop.f32.mrb[0].mxu0
        %v3077 = vadd.f32 0.0, %v3076
        %v3078 = vpop.f32.mrb[0].mxu0
        %v3079 = vpop.f32.mrb[0].mxu0
        %v3080 = vadd.f32 0.0, %v3079
        %v3081 = vpop.f32.mrb[0].mxu0
        %3082 = vmatprep.mubr.bf16.mxu0 0
        %3083 = vmatmul.mubr.bf16.gmra.mrb[0].mxu0 %v2926
        %v3084 = vpop.f32.mrb[0].mxu0
        %v3085 = vadd.f32 0.0, %v3084
        %v3086 = vpop.f32.mrb[0].mxu0
        %v3087 = vpop.f32.mrb[0].mxu0
        %v3088 = vadd.f32 0.0, %v3087
        %v3089 = vpop.f32.mrb[0].mxu0
        %3090 = vmatprep.mubr.bf16.mxu0 0
        %3091 = vmatmul.mubr.bf16.gmra.mrb[0].mxu0 %v2929
        %v3092 = vpop.f32.mrb[0].mxu0
        %v3093 = vadd.f32 0.0, %v3092
        %v3094 = vpop.f32.mrb[0].mxu0
        %v3095 = vpop.f32.mrb[0].mxu0
        %v3096 = vadd.f32 0.0, %v3095
        %v3097 = vpop.f32.mrb[0].mxu0
        %3098 = vmatprep.mubr.bf16.mxu0 0
        %3099 = vmatmul.mubr.bf16.gmra.mrb[0].mxu0 %v2932
        %v3100 = vpop.f32.mrb[0].mxu0
        %v3101 = vadd.f32 0.0, %v3100
        %v3102 = vpop.f32.mrb[0].mxu0
        %v3103 = vpop.f32.mrb[0].mxu0
        %v3104 = vadd.f32 0.0, %v3103
        %v3105 = vpop.f32.mrb[0].mxu0
        %3106 = vmatprep.mubr.bf16.mxu0 0
        %3107 = vmatmul.mubr.bf16.gmra.mrb[0].mxu0 %v2935
        %v3108 = vpop.f32.mrb[0].mxu0
        %v3109 = vadd.f32 0.0, %v3108
        %v3110 = vpop.f32.mrb[0].mxu0
        %v3111 = vpop.f32.mrb[0].mxu0
        %v3112 = vadd.f32 0.0, %v3111
        %v3113 = vpop.f32.mrb[0].mxu0
        %3114 = vmatprep.mubr.bf16.mxu0 0
        %3115 = vmatmul.mubr.bf16.gmra.mrb[0].mxu0 %v2938
        %v3116 = vpop.f32.mrb[0].mxu0
        %v3117 = vadd.f32 0.0, %v3116
        %v3118 = vpop.f32.mrb[0].mxu0
        %v3119 = vpop.f32.mrb[0].mxu0
        %v3120 = vadd.f32 0.0, %v3119
        %v3121 = vpop.f32.mrb[0].mxu0
        %3122 = vmatprep.mubr.bf16.mxu0 0
        %3123 = vmatmul.mubr.bf16.gmra.mrb[0].mxu0 %v2941
        %v3124 = vpop.f32.mrb[0].mxu0
        %v3125 = vadd.f32 0.0, %v3124
        %v3126 = vpop.f32.mrb[0].mxu0
        %v3127 = vpop.f32.mrb[0].mxu0
        %v3128 = vadd.f32 0.0, %v3127
        %v3129 = vpop.f32.mrb[0].mxu0
        %3130 = vmatprep.mubr.bf16.mxu0 0
        %3131 = vmatmul.mubr.bf16.gmra.mrb[0].mxu0 %v2944
        %v3132 = vpop.f32.mrb[0].mxu0
        %v3133 = vadd.f32 0.0, %v3132
        %v3134 = vpop.f32.mrb[0].mxu0
        %v3135 = vpop.f32.mrb[0].mxu0
        %v3136 = vpop.f32.mrb[0].mxu0
        %3137 = vdwg.mxu0
        %v3138 = vmul.f32 %v3005, 0.25
        %v3139 = vmul.f32 %v3008, 0.25
        %v3140 = vmul.f32 %v3013, 0.25
        %v3141 = vmul.f32 %v3016, 0.25
        %v3142 = vmul.f32 %v3021, 0.25
        %v3143 = vmul.f32 %v3024, 0.25
        %v3144 = vmul.f32 %v3029, 0.25
        %v3145 = vmul.f32 %v3032, 0.25
        %v3146 = vmul.f32 %v3037, 0.25
        %v3147 = vmul.f32 %v3040, 0.25
        %v3148 = vmul.f32 %v3045, 0.25
        %v3149 = vmul.f32 %v3048, 0.25
        %v3150 = vmul.f32 %v3053, 0.25
        %v3151 = vmul.f32 %v3056, 0.25
        %v3152 = vmul.f32 %v3061, 0.25
        %v3153 = vmul.f32 %v3064, 0.25
        %v3154 = vmul.f32 %v3069, 0.25
        %v3155 = vmul.f32 %v3072, 0.25
        %v3156 = vmul.f32 %v3077, 0.25
        %v3157 = vmul.f32 %v3080, 0.25
        %v3158 = vmul.f32 %v3085, 0.25
        %v3159 = vmul.f32 %v3088, 0.25
        %v3160 = vmul.f32 %v3093, 0.25
        %v3161 = vmul.f32 %v3096, 0.25
        %v3162 = vmul.f32 %v3101, 0.25
        %v3163 = vmul.f32 %v3104, 0.25
        %v3164 = vmul.f32 %v3109, 0.25
        %v3165 = vmul.f32 %v3112, 0.25
        %v3166 = vmul.f32 %v3117, 0.25
        %v3167 = vmul.f32 %v3120, 0.25
        %v3168 = vmul.f32 %v3125, 0.25
        %v3169 = vmul.f32 %v3128, 0.25
        %v3170 = vmul.f32 %v3133, 0.25
        %v3171 = vadd.f32 %v3138, %v1688
        %v3172 = vadd.f32 %v3139, %v1688
        %v3173 = vadd.f32 %v3140, %v1688
        %v3174 = vadd.f32 %v3141, %v1688
        %v3175 = vadd.f32 %v3142, %v1688
        %v3176 = vadd.f32 %v3143, %v1688
        %v3177 = vadd.f32 %v3144, %v1688
        %v3178 = vadd.f32 %v3145, %v1688
        %v3179 = vadd.f32 %v3146, %v1688
        %v3180 = vadd.f32 %v3147, %v1688
        %v3181 = vadd.f32 %v3148, %v1688
        %v3182 = vadd.f32 %v3149, %v1688
        %v3183 = vadd.f32 %v3150, %v1688
        %v3184 = vadd.f32 %v3151, %v1688
        %v3185 = vadd.f32 %v3152, %v1688
        %v3186 = vadd.f32 %v3153, %v1688
        %v3187 = vadd.f32 %v3154, %v1688
        %v3188 = vadd.f32 %v3155, %v1688
        %v3189 = vadd.f32 %v3156, %v1688
        %v3190 = vadd.f32 %v3157, %v1688
        %v3191 = vadd.f32 %v3158, %v1688
        %v3192 = vadd.f32 %v3159, %v1688
        %v3193 = vadd.f32 %v3160, %v1688
        %v3194 = vadd.f32 %v3161, %v1688
        %v3195 = vadd.f32 %v3162, %v1688
        %v3196 = vadd.f32 %v3163, %v1688
        %v3197 = vadd.f32 %v3164, %v1688
        %v3198 = vadd.f32 %v3165, %v1688
        %v3199 = vadd.f32 %v3166, %v1688
        %v3200 = vadd.f32 %v3167, %v1688
        %v3201 = vadd.f32 %v3168, %v1688
        %v3202 = vadd.f32 %v3169, %v1688
        %v3203 = vadd.f32 %v3170, %v1688
        %3204 = vmax.xlane.f32.xlu0 %v3171
        %v3205 = vpop.xlane.xlu0 %3204
        %3206 = vmax.xlane.f32.xlu0 %v3172
        %v3207 = vpop.xlane.xlu0 %3206
        %3208 = vmax.xlane.f32.xlu0 %v3173
        %v3209 = vpop.xlane.xlu0 %3208
        %3210 = vmax.xlane.f32.xlu0 %v3174
        %v3211 = vpop.xlane.xlu0 %3210
        %3212 = vmax.xlane.f32.xlu0 %v3175
        %v3213 = vpop.xlane.xlu0 %3212
        %3214 = vmax.xlane.f32.xlu0 %v3176
        %v3215 = vpop.xlane.xlu0 %3214
        %3216 = vmax.xlane.f32.xlu0 %v3177
        %v3217 = vpop.xlane.xlu0 %3216
        %3218 = vmax.xlane.f32.xlu0 %v3178
        %v3219 = vpop.xlane.xlu0 %3218
        %3220 = vmax.xlane.f32.xlu0 %v3179
        %v3221 = vpop.xlane.xlu0 %3220
        %3222 = vmax.xlane.f32.xlu0 %v3180
        %v3223 = vpop.xlane.xlu0 %3222
        %3224 = vmax.xlane.f32.xlu0 %v3181
        %v3225 = vpop.xlane.xlu0 %3224
        %3226 = vmax.xlane.f32.xlu0 %v3182
        %v3227 = vpop.xlane.xlu0 %3226
        %3228 = vmax.xlane.f32.xlu0 %v3183
        %v3229 = vpop.xlane.xlu0 %3228
        %3230 = vmax.xlane.f32.xlu0 %v3184
        %v3231 = vpop.xlane.xlu0 %3230
        %3232 = vmax.xlane.f32.xlu0 %v3185
        %v3233 = vpop.xlane.xlu0 %3232
        %3234 = vmax.xlane.f32.xlu0 %v3186
        %v3235 = vpop.xlane.xlu0 %3234
        %3236 = vmax.xlane.f32.xlu0 %v3187
        %v3237 = vpop.xlane.xlu0 %3236
        %3238 = vmax.xlane.f32.xlu0 %v3188
        %v3239 = vpop.xlane.xlu0 %3238
        %3240 = vmax.xlane.f32.xlu0 %v3189
        %v3241 = vpop.xlane.xlu0 %3240
        %3242 = vmax.xlane.f32.xlu0 %v3190
        %v3243 = vpop.xlane.xlu0 %3242
        %3244 = vmax.xlane.f32.xlu0 %v3191
        %v3245 = vpop.xlane.xlu0 %3244
        %3246 = vmax.xlane.f32.xlu0 %v3192
        %v3247 = vpop.xlane.xlu0 %3246
        %3248 = vmax.xlane.f32.xlu0 %v3193
        %v3249 = vpop.xlane.xlu0 %3248
        %3250 = vmax.xlane.f32.xlu0 %v3194
        %v3251 = vpop.xlane.xlu0 %3250
        %3252 = vmax.xlane.f32.xlu0 %v3195
        %v3253 = vpop.xlane.xlu0 %3252
        %3254 = vmax.xlane.f32.xlu0 %v3196
        %v3255 = vpop.xlane.xlu0 %3254
        %3256 = vmax.xlane.f32.xlu0 %v3197
        %v3257 = vpop.xlane.xlu0 %3256
        %3258 = vmax.xlane.f32.xlu0 %v3198
        %v3259 = vpop.xlane.xlu0 %3258
        %3260 = vmax.xlane.f32.xlu0 %v3199
        %v3261 = vpop.xlane.xlu0 %3260
        %3262 = vmax.xlane.f32.xlu0 %v3200
        %v3263 = vpop.xlane.xlu0 %3262
        %3264 = vmax.xlane.f32.xlu0 %v3201
        %v3265 = vpop.xlane.xlu0 %3264
        %3266 = vmax.xlane.f32.xlu0 %v3202
        %v3267 = vpop.xlane.xlu0 %3266
        %3268 = vmax.xlane.f32.xlu0 %v3203
        %v3269 = vpop.xlane.xlu0 %3268
        %v3270 = vsub.f32 %v3171, %v3205
        %v3271 = vsub.f32 %v3172, %v3207
        %v3272 = vsub.f32 %v3173, %v3209
        %v3273 = vsub.f32 %v3174, %v3211
        %v3274 = vsub.f32 %v3175, %v3213
        %v3275 = vsub.f32 %v3176, %v3215
        %v3276 = vsub.f32 %v3177, %v3217
        %v3277 = vsub.f32 %v3178, %v3219
        %v3278 = vsub.f32 %v3179, %v3221
        %v3279 = vsub.f32 %v3180, %v3223
        %v3280 = vsub.f32 %v3181, %v3225
        %v3281 = vsub.f32 %v3182, %v3227
        %v3282 = vsub.f32 %v3183, %v3229
        %v3283 = vsub.f32 %v3184, %v3231
        %v3284 = vsub.f32 %v3185, %v3233
        %v3285 = vsub.f32 %v3186, %v3235
        %v3286 = vsub.f32 %v3187, %v3237
        %v3287 = vsub.f32 %v3188, %v3239
        %v3288 = vsub.f32 %v3189, %v3241
        %v3289 = vsub.f32 %v3190, %v3243
        %v3290 = vsub.f32 %v3191, %v3245
        %v3291 = vsub.f32 %v3192, %v3247
        %v3292 = vsub.f32 %v3193, %v3249
        %v3293 = vsub.f32 %v3194, %v3251
        %v3294 = vsub.f32 %v3195, %v3253
        %v3295 = vsub.f32 %v3196, %v3255
        %v3296 = vsub.f32 %v3197, %v3257
        %v3297 = vsub.f32 %v3198, %v3259
        %v3298 = vsub.f32 %v3199, %v3261
        %v3299 = vsub.f32 %v3200, %v3263
        %v3300 = vsub.f32 %v3201, %v3265
        %v3301 = vsub.f32 %v3202, %v3267
        %v3302 = vsub.f32 %v3203, %v3269
        %v3303 = vmul.f32 %v3270, 1.442695
        %v3304 = vpow.pop %v3303
        %v3305 = vmul.f32 %v3271, 1.442695
        %v3306 = vpow.pop %v3305
        %v3307 = vmul.f32 %v3272, 1.442695
        %v3308 = vpow.pop %v3307
        %v3309 = vmul.f32 %v3273, 1.442695
        %v3310 = vpow.pop %v3309
        %v3311 = vmul.f32 %v3274, 1.442695
        %v3312 = vpow.pop %v3311
        %v3313 = vmul.f32 %v3275, 1.442695
        %v3314 = vpow.pop %v3313
        %v3315 = vmul.f32 %v3276, 1.442695
        %v3316 = vpow.pop %v3315
        %v3317 = vmul.f32 %v3277, 1.442695
        %v3318 = vpow.pop %v3317
        %v3319 = vmul.f32 %v3278, 1.442695
        %v3320 = vpow.pop %v3319
        %v3321 = vmul.f32 %v3279, 1.442695
        %v3322 = vpow.pop %v3321
        %v3323 = vmul.f32 %v3280, 1.442695
        %v3324 = vpow.pop %v3323
        %v3325 = vmul.f32 %v3281, 1.442695
        %v3326 = vpow.pop %v3325
        %v3327 = vmul.f32 %v3282, 1.442695
        %v3328 = vpow.pop %v3327
        %v3329 = vmul.f32 %v3283, 1.442695
        %v3330 = vpow.pop %v3329
        %v3331 = vmul.f32 %v3284, 1.442695
        %v3332 = vpow.pop %v3331
        %v3333 = vmul.f32 %v3285, 1.442695
        %v3334 = vpow.pop %v3333
        %v3335 = vmul.f32 %v3286, 1.442695
        %v3336 = vpow.pop %v3335
        %v3337 = vmul.f32 %v3287, 1.442695
        %v3338 = vpow.pop %v3337
        %v3339 = vmul.f32 %v3288, 1.442695
        %v3340 = vpow.pop %v3339
        %v3341 = vmul.f32 %v3289, 1.442695
        %v3342 = vpow.pop %v3341
        %v3343 = vmul.f32 %v3290, 1.442695
        %v3344 = vpow.pop %v3343
        %v3345 = vmul.f32 %v3291, 1.442695
        %v3346 = vpow.pop %v3345
        %v3347 = vmul.f32 %v3292, 1.442695
        %v3348 = vpow.pop %v3347
        %v3349 = vmul.f32 %v3293, 1.442695
        %v3350 = vpow.pop %v3349
        %v3351 = vmul.f32 %v3294, 1.442695
        %v3352 = vpow.pop %v3351
        %v3353 = vmul.f32 %v3295, 1.442695
        %v3354 = vpow.pop %v3353
        %v3355 = vmul.f32 %v3296, 1.442695
        %v3356 = vpow.pop %v3355
        %v3357 = vmul.f32 %v3297, 1.442695
        %v3358 = vpow.pop %v3357
        %v3359 = vmul.f32 %v3298, 1.442695
        %v3360 = vpow.pop %v3359
        %v3361 = vmul.f32 %v3299, 1.442695
        %v3362 = vpow.pop %v3361
        %v3363 = vmul.f32 %v3300, 1.442695
        %v3364 = vpow.pop %v3363
        %v3365 = vmul.f32 %v3301, 1.442695
        %v3366 = vpow.pop %v3365
        %v3367 = vmul.f32 %v3302, 1.442695
        %v3368 = vpow.pop %v3367
        %3369 = vadd.xlane.f32.xlu0 %v3304
        %v3370 = vpop.xlane.xlu0 %3369
        %3371 = vadd.xlane.f32.xlu0 %v3306
        %v3372 = vpop.xlane.xlu0 %3371
        %3373 = vadd.xlane.f32.xlu0 %v3308
        %v3374 = vpop.xlane.xlu0 %3373
        %3375 = vadd.xlane.f32.xlu0 %v3310
        %v3376 = vpop.xlane.xlu0 %3375
        %3377 = vadd.xlane.f32.xlu0 %v3312
        %v3378 = vpop.xlane.xlu0 %3377
        %3379 = vadd.xlane.f32.xlu0 %v3314
        %v3380 = vpop.xlane.xlu0 %3379
        %3381 = vadd.xlane.f32.xlu0 %v3316
        %v3382 = vpop.xlane.xlu0 %3381
        %3383 = vadd.xlane.f32.xlu0 %v3318
        %v3384 = vpop.xlane.xlu0 %3383
        %3385 = vadd.xlane.f32.xlu0 %v3320
        %v3386 = vpop.xlane.xlu0 %3385
        %3387 = vadd.xlane.f32.xlu0 %v3322
        %v3388 = vpop.xlane.xlu0 %3387
        %3389 = vadd.xlane.f32.xlu0 %v3324
        %v3390 = vpop.xlane.xlu0 %3389
        %3391 = vadd.xlane.f32.xlu0 %v3326
        %v3392 = vpop.xlane.xlu0 %3391
        %3393 = vadd.xlane.f32.xlu0 %v3328
        %v3394 = vpop.xlane.xlu0 %3393
        %3395 = vadd.xlane.f32.xlu0 %v3330
        %v3396 = vpop.xlane.xlu0 %3395
        %3397 = vadd.xlane.f32.xlu0 %v3332
        %v3398 = vpop.xlane.xlu0 %3397
        %3399 = vadd.xlane.f32.xlu0 %v3334
        %v3400 = vpop.xlane.xlu0 %3399
        %3401 = vadd.xlane.f32.xlu0 %v3336
        %v3402 = vpop.xlane.xlu0 %3401
        %3403 = vadd.xlane.f32.xlu0 %v3338
        %v3404 = vpop.xlane.xlu0 %3403
        %3405 = vadd.xlane.f32.xlu0 %v3340
        %v3406 = vpop.xlane.xlu0 %3405
        %3407 = vadd.xlane.f32.xlu0 %v3342
        %v3408 = vpop.xlane.xlu0 %3407
        %3409 = vadd.xlane.f32.xlu0 %v3344
        %v3410 = vpop.xlane.xlu0 %3409
        %3411 = vadd.xlane.f32.xlu0 %v3346
        %v3412 = vpop.xlane.xlu0 %3411
        %3413 = vadd.xlane.f32.xlu0 %v3348
        %v3414 = vpop.xlane.xlu0 %3413
        %3415 = vadd.xlane.f32.xlu0 %v3350
        %v3416 = vpop.xlane.xlu0 %3415
        %3417 = vadd.xlane.f32.xlu0 %v3352
        %v3418 = vpop.xlane.xlu0 %3417
        %3419 = vadd.xlane.f32.xlu0 %v3354
        %v3420 = vpop.xlane.xlu0 %3419
        %3421 = vadd.xlane.f32.xlu0 %v3356
        %v3422 = vpop.xlane.xlu0 %3421
        %3423 = vadd.xlane.f32.xlu0 %v3358
        %v3424 = vpop.xlane.xlu0 %3423
        %3425 = vadd.xlane.f32.xlu0 %v3360
        %v3426 = vpop.xlane.xlu0 %3425
        %3427 = vadd.xlane.f32.xlu0 %v3362
        %v3428 = vpop.xlane.xlu0 %3427
        %3429 = vadd.xlane.f32.xlu0 %v3364
        %v3430 = vpop.xlane.xlu0 %3429
        %3431 = vadd.xlane.f32.xlu0 %v3366
        %v3432 = vpop.xlane.xlu0 %3431
        %3433 = vadd.xlane.f32.xlu0 %v3368
        %v3434 = vpop.xlane.xlu0 %3433
        %v3435 = vrcp.pop %v3370
        %v3436 = vrcp.pop %v3372
        %v3437 = vrcp.pop %v3374
        %v3438 = vrcp.pop %v3376
        %v3439 = vrcp.pop %v3378
        %v3440 = vrcp.pop %v3380
        %v3441 = vrcp.pop %v3382
        %v3442 = vrcp.pop %v3384
        %v3443 = vrcp.pop %v3386
        %v3444 = vrcp.pop %v3388
        %v3445 = vrcp.pop %v3390
        %v3446 = vrcp.pop %v3392
        %v3447 = vrcp.pop %v3394
        %v3448 = vrcp.pop %v3396
        %v3449 = vrcp.pop %v3398
        %v3450 = vrcp.pop %v3400
        %v3451 = vrcp.pop %v3402
        %v3452 = vrcp.pop %v3404
        %v3453 = vrcp.pop %v3406
        %v3454 = vrcp.pop %v3408
        %v3455 = vrcp.pop %v3410
        %v3456 = vrcp.pop %v3412
        %v3457 = vrcp.pop %v3414
        %v3458 = vrcp.pop %v3416
        %v3459 = vrcp.pop %v3418
        %v3460 = vrcp.pop %v3420
        %v3461 = vrcp.pop %v3422
        %v3462 = vrcp.pop %v3424
        %v3463 = vrcp.pop %v3426
        %v3464 = vrcp.pop %v3428
        %v3465 = vrcp.pop %v3430
        %v3466 = vrcp.pop %v3432
        %v3467 = vrcp.pop %v3434
        %v3468 = vmul.f32 %v3304, %v3435
        %v3469 = vmul.f32 %v3306, %v3436
        %v3470 = vmul.f32 %v3308, %v3437
        %v3471 = vmul.f32 %v3310, %v3438
        %v3472 = vmul.f32 %v3312, %v3439
        %v3473 = vmul.f32 %v3314, %v3440
        %v3474 = vmul.f32 %v3316, %v3441
        %v3475 = vmul.f32 %v3318, %v3442
        %v3476 = vmul.f32 %v3320, %v3443
        %v3477 = vmul.f32 %v3322, %v3444
        %v3478 = vmul.f32 %v3324, %v3445
        %v3479 = vmul.f32 %v3326, %v3446
        %v3480 = vmul.f32 %v3328, %v3447
        %v3481 = vmul.f32 %v3330, %v3448
        %v3482 = vmul.f32 %v3332, %v3449
        %v3483 = vmul.f32 %v3334, %v3450
        %v3484 = vmul.f32 %v3336, %v3451
        %v3485 = vmul.f32 %v3338, %v3452
        %v3486 = vmul.f32 %v3340, %v3453
        %v3487 = vmul.f32 %v3342, %v3454
        %v3488 = vmul.f32 %v3344, %v3455
        %v3489 = vmul.f32 %v3346, %v3456
        %v3490 = vmul.f32 %v3348, %v3457
        %v3491 = vmul.f32 %v3350, %v3458
        %v3492 = vmul.f32 %v3352, %v3459
        %v3493 = vmul.f32 %v3354, %v3460
        %v3494 = vmul.f32 %v3356, %v3461
        %v3495 = vmul.f32 %v3358, %v3462
        %v3496 = vmul.f32 %v3360, %v3463
        %v3497 = vmul.f32 %v3362, %v3464
        %v3498 = vmul.f32 %v3364, %v3465
        %v3499 = vmul.f32 %v3366, %v3466
        %v3500 = vmul.f32 %v3368, %v3467
        %v3501 = vpack.c.bf16 %v3469, %v3468
        %v3502 = vpack.c.bf16 %v3471, %v3470
        %v3503 = vpack.c.bf16 %v3473, %v3472
        %v3504 = vpack.c.bf16 %v3475, %v3474
        %v3505 = vpack.c.bf16 %v3477, %v3476
        %v3506 = vpack.c.bf16 %v3479, %v3478
        %v3507 = vpack.c.bf16 %v3481, %v3480
        %v3508 = vpack.c.bf16 %v3483, %v3482
        %v3509 = vpack.c.bf16 %v3485, %v3484
        %v3510 = vpack.c.bf16 %v3487, %v3486
        %v3511 = vpack.c.bf16 %v3489, %v3488
        %v3512 = vpack.c.bf16 %v3491, %v3490
        %v3513 = vpack.c.bf16 %v3493, %v3492
        %v3514 = vpack.c.bf16 %v3495, %v3494
        %v3515 = vpack.c.bf16 %v3497, %v3496
        %v3516 = vpack.c.bf16 %v3499, %v3498
        %v3517 = vpack.c.bf16 %v3500, %v3500
        %3526 = vrot.lane.b32.xlu0 %v2886, 96
        %v3527 = vpop.permute.xlu0 %3526
        %3528 = vrot.lane.b32.xlu0 %v2887, 96
        %v3529 = vpop.permute.xlu0 %3528
        %3530 = vrot.lane.b32.xlu0 %v2888, 96
        %v3531 = vpop.permute.xlu0 %3530
        %3532 = vrot.lane.b32.xlu0 %v2889, 96
        %v3533 = vpop.permute.xlu0 %3532
        %3534 = vrot.lane.b32.xlu0 %v2890, 96
        %v3535 = vpop.permute.xlu0 %3534
        %3536 = vrot.lane.b32.xlu0 %v2891, 96
        %v3537 = vpop.permute.xlu0 %3536
        %3538 = vrot.lane.b32.xlu0 %v2892, 96
        %v3539 = vpop.permute.xlu0 %3538
        %3540 = vrot.lane.b32.xlu0 %v2893, 96
        %v3541 = vpop.permute.xlu0 %3540
        %3550 = vmatprep.subr.bf16.mxu0 0
        %3551 = vmatpush1.bf16.msra.mxu0 %v3527
        %3552 = vmatprep.subr.bf16.mxu0 0
        %3553 = vmatpush1.bf16.msra.mxu0 %v3529
        %3554 = vmatprep.subr.bf16.mxu0 0
        %3555 = vmatpush1.bf16.msra.mxu0 %v3531
        %3556 = vmatprep.subr.bf16.mxu0 0
        %3557 = vmatpush1.bf16.msra.mxu0 %v3533
        %3558 = vmatprep.subr.bf16.mxu0 0
        %3559 = vmatpush1.bf16.msra.mxu0 %v3535
        %3560 = vmatprep.subr.bf16.mxu0 0
        %3561 = vmatpush1.bf16.msra.mxu0 %v3537
        %3562 = vmatprep.subr.bf16.mxu0 0
        %3563 = vmatpush1.bf16.msra.mxu0 %v3539
        %3564 = vmatprep.subr.bf16.mxu0 0
        %3565 = vmatpush1.bf16.msra.mxu0 %v3541
        %3566 = vmatprep.subr.bf16.mxu0 0
        %3567 = vmatpush1.bf16.msra.mxu0 0
        %3568 = vmatprep.subr.bf16.mxu0 0
        %3569 = vmatpush1.bf16.msra.mxu0 0
        %3570 = vmatprep.subr.bf16.mxu0 0
        %3571 = vmatpush1.bf16.msra.mxu0 0
        %3572 = vmatprep.subr.bf16.mxu0 0
        %3573 = vmatpush1.bf16.msra.mxu0 0
        %3574 = vmatprep.subr.bf16.mxu0 0
        %3575 = vmatpush1.bf16.msra.mxu0 0
        %3576 = vmatprep.subr.bf16.mxu0 0
        %3577 = vmatpush1.bf16.msra.mxu0 0
        %3578 = vmatprep.subr.bf16.mxu0 0
        %3579 = vmatpush1.bf16.msra.mxu0 0
        %3580 = vmatprep.subr.bf16.mxu0 0
        %3581 = vmatpush1.bf16.msra.mxu0 0
        %3582 = vmatprep.mubr.bf16.mxu0 0
        %3583 = vmatmul.mubr.bf16.gmra.mrb[0].mxu0 %v3501
        %v3584 = vpop.f32.mrb[0].mxu0
        %v3585 = vadd.f32 0.0, %v3584
        %v3586 = vpop.f32.mrb[0].mxu0
        %v3587 = vpop.f32.mrb[0].mxu0
        %v3588 = vadd.f32 0.0, %v3587
        %v3589 = vpop.f32.mrb[0].mxu0
        %3590 = vmatprep.mubr.bf16.mxu0 0
        %3591 = vmatmul.mubr.bf16.gmra.mrb[0].mxu0 %v3502
        %v3592 = vpop.f32.mrb[0].mxu0
        %v3593 = vadd.f32 0.0, %v3592
        %v3594 = vpop.f32.mrb[0].mxu0
        %v3595 = vpop.f32.mrb[0].mxu0
        %v3596 = vadd.f32 0.0, %v3595
        %v3597 = vpop.f32.mrb[0].mxu0
        %3598 = vmatprep.mubr.bf16.mxu0 0
        %3599 = vmatmul.mubr.bf16.gmra.mrb[0].mxu0 %v3503
        %v3600 = vpop.f32.mrb[0].mxu0
        %v3601 = vadd.f32 0.0, %v3600
        %v3602 = vpop.f32.mrb[0].mxu0
        %v3603 = vpop.f32.mrb[0].mxu0
        %v3604 = vadd.f32 0.0, %v3603
        %v3605 = vpop.f32.mrb[0].mxu0
        %3606 = vmatprep.mubr.bf16.mxu0 0
        %3607 = vmatmul.mubr.bf16.gmra.mrb[0].mxu0 %v3504
        %v3608 = vpop.f32.mrb[0].mxu0
        %v3609 = vadd.f32 0.0, %v3608
        %v3610 = vpop.f32.mrb[0].mxu0
        %v3611 = vpop.f32.mrb[0].mxu0
        %v3612 = vadd.f32 0.0, %v3611
        %v3613 = vpop.f32.mrb[0].mxu0
        %3614 = vmatprep.mubr.bf16.mxu0 0
        %3615 = vmatmul.mubr.bf16.gmra.mrb[0].mxu0 %v3505
        %v3616 = vpop.f32.mrb[0].mxu0
        %v3617 = vadd.f32 0.0, %v3616
        %v3618 = vpop.f32.mrb[0].mxu0
        %v3619 = vpop.f32.mrb[0].mxu0
        %v3620 = vadd.f32 0.0, %v3619
        %v3621 = vpop.f32.mrb[0].mxu0
        %3622 = vmatprep.mubr.bf16.mxu0 0
        %3623 = vmatmul.mubr.bf16.gmra.mrb[0].mxu0 %v3506
        %v3624 = vpop.f32.mrb[0].mxu0
        %v3625 = vadd.f32 0.0, %v3624
        %v3626 = vpop.f32.mrb[0].mxu0
        %v3627 = vpop.f32.mrb[0].mxu0
        %v3628 = vadd.f32 0.0, %v3627
        %v3629 = vpop.f32.mrb[0].mxu0
        %3630 = vmatprep.mubr.bf16.mxu0 0
        %3631 = vmatmul.mubr.bf16.gmra.mrb[0].mxu0 %v3507
        %v3632 = vpop.f32.mrb[0].mxu0
        %v3633 = vadd.f32 0.0, %v3632
        %v3634 = vpop.f32.mrb[0].mxu0
        %v3635 = vpop.f32.mrb[0].mxu0
        %v3636 = vadd.f32 0.0, %v3635
        %v3637 = vpop.f32.mrb[0].mxu0
        %3638 = vmatprep.mubr.bf16.mxu0 0
        %3639 = vmatmul.mubr.bf16.gmra.mrb[0].mxu0 %v3508
        %v3640 = vpop.f32.mrb[0].mxu0
        %v3641 = vadd.f32 0.0, %v3640
        %v3642 = vpop.f32.mrb[0].mxu0
        %v3643 = vpop.f32.mrb[0].mxu0
        %v3644 = vadd.f32 0.0, %v3643
        %v3645 = vpop.f32.mrb[0].mxu0
        %3646 = vmatprep.mubr.bf16.mxu0 0
        %3647 = vmatmul.mubr.bf16.gmra.mrb[0].mxu0 %v3509
        %v3648 = vpop.f32.mrb[0].mxu0
        %v3649 = vadd.f32 0.0, %v3648
        %v3650 = vpop.f32.mrb[0].mxu0
        %v3651 = vpop.f32.mrb[0].mxu0
        %v3652 = vadd.f32 0.0, %v3651
        %v3653 = vpop.f32.mrb[0].mxu0
        %3654 = vmatprep.mubr.bf16.mxu0 0
        %3655 = vmatmul.mubr.bf16.gmra.mrb[0].mxu0 %v3510
        %v3656 = vpop.f32.mrb[0].mxu0
        %v3657 = vadd.f32 0.0, %v3656
        %v3658 = vpop.f32.mrb[0].mxu0
        %v3659 = vpop.f32.mrb[0].mxu0
        %v3660 = vadd.f32 0.0, %v3659
        %v3661 = vpop.f32.mrb[0].mxu0
        %3662 = vmatprep.mubr.bf16.mxu0 0
        %3663 = vmatmul.mubr.bf16.gmra.mrb[0].mxu0 %v3511
        %v3664 = vpop.f32.mrb[0].mxu0
        %v3665 = vadd.f32 0.0, %v3664
        %v3666 = vpop.f32.mrb[0].mxu0
        %v3667 = vpop.f32.mrb[0].mxu0
        %v3668 = vadd.f32 0.0, %v3667
        %v3669 = vpop.f32.mrb[0].mxu0
        %3670 = vmatprep.mubr.bf16.mxu0 0
        %3671 = vmatmul.mubr.bf16.gmra.mrb[0].mxu0 %v3512
        %v3672 = vpop.f32.mrb[0].mxu0
        %v3673 = vadd.f32 0.0, %v3672
        %v3674 = vpop.f32.mrb[0].mxu0
        %v3675 = vpop.f32.mrb[0].mxu0
        %v3676 = vadd.f32 0.0, %v3675
        %v3677 = vpop.f32.mrb[0].mxu0
        %3678 = vmatprep.mubr.bf16.mxu0 0
        %3679 = vmatmul.mubr.bf16.gmra.mrb[0].mxu0 %v3513
        %v3680 = vpop.f32.mrb[0].mxu0
        %v3681 = vadd.f32 0.0, %v3680
        %v3682 = vpop.f32.mrb[0].mxu0
        %v3683 = vpop.f32.mrb[0].mxu0
        %v3684 = vadd.f32 0.0, %v3683
        %v3685 = vpop.f32.mrb[0].mxu0
        %3686 = vmatprep.mubr.bf16.mxu0 0
        %3687 = vmatmul.mubr.bf16.gmra.mrb[0].mxu0 %v3514
        %v3688 = vpop.f32.mrb[0].mxu0
        %v3689 = vadd.f32 0.0, %v3688
        %v3690 = vpop.f32.mrb[0].mxu0
        %v3691 = vpop.f32.mrb[0].mxu0
        %v3692 = vadd.f32 0.0, %v3691
        %v3693 = vpop.f32.mrb[0].mxu0
        %3694 = vmatprep.mubr.bf16.mxu0 0
        %3695 = vmatmul.mubr.bf16.gmra.mrb[0].mxu0 %v3515
        %v3696 = vpop.f32.mrb[0].mxu0
        %v3697 = vadd.f32 0.0, %v3696
        %v3698 = vpop.f32.mrb[0].mxu0
        %v3699 = vpop.f32.mrb[0].mxu0
        %v3700 = vadd.f32 0.0, %v3699
        %v3701 = vpop.f32.mrb[0].mxu0
        %3702 = vmatprep.mubr.bf16.mxu0 0
        %3703 = vmatmul.mubr.bf16.gmra.mrb[0].mxu0 %v3516
        %v3704 = vpop.f32.mrb[0].mxu0
        %v3705 = vadd.f32 0.0, %v3704
        %v3706 = vpop.f32.mrb[0].mxu0
        %v3707 = vpop.f32.mrb[0].mxu0
        %v3708 = vadd.f32 0.0, %v3707
        %v3709 = vpop.f32.mrb[0].mxu0
        %3710 = vmatprep.mubr.bf16.mxu0 0
        %3711 = vmatmul.mubr.bf16.gmra.mrb[0].mxu0 %v3517
        %v3712 = vpop.f32.mrb[0].mxu0
        %v3713 = vadd.f32 0.0, %v3712
        %v3714 = vpop.f32.mrb[0].mxu0
        %v3715 = vpop.f32.mrb[0].mxu0
        %v3716 = vpop.f32.mrb[0].mxu0
        %3717 = vdwg.mxu0
        %3718 = vrot.lane.b32.xlu0 %v2459, 112
        %v3719 = vpop.permute.xlu0 %3718
        %3720 = vrot.lane.b32.xlu0 %v2460, 112
        %v3721 = vpop.permute.xlu0 %3720
        %3722 = vrot.lane.b32.xlu0 %v2461, 112
        %v3723 = vpop.permute.xlu0 %3722
        %3724 = vrot.lane.b32.xlu0 %v2462, 112
        %v3725 = vpop.permute.xlu0 %3724
        %3726 = vrot.lane.b32.xlu0 %v2463, 112
        %v3727 = vpop.permute.xlu0 %3726
        %3728 = vrot.lane.b32.xlu0 %v2464, 112
        %v3729 = vpop.permute.xlu0 %3728
        %3730 = vrot.lane.b32.xlu0 %v2465, 112
        %v3731 = vpop.permute.xlu0 %3730
        %3732 = vrot.lane.b32.xlu0 %v2466, 112
        %v3733 = vpop.permute.xlu0 %3732
        %3734 = vrot.lane.b32.xlu0 %v2467, 112
        %v3735 = vpop.permute.xlu0 %3734
        %3736 = vrot.lane.b32.xlu0 %v2468, 112
        %v3737 = vpop.permute.xlu0 %3736
        %3738 = vrot.lane.b32.xlu0 %v2469, 112
        %v3739 = vpop.permute.xlu0 %3738
        %3740 = vrot.lane.b32.xlu0 %v2470, 112
        %v3741 = vpop.permute.xlu0 %3740
        %3742 = vrot.lane.b32.xlu0 %v2471, 112
        %v3743 = vpop.permute.xlu0 %3742
        %3744 = vrot.lane.b32.xlu0 %v2472, 112
        %v3745 = vpop.permute.xlu0 %3744
        %3746 = vrot.lane.b32.xlu0 %v2473, 112
        %v3747 = vpop.permute.xlu0 %3746
        %3748 = vrot.lane.b32.xlu0 %v2474, 112
        %v3749 = vpop.permute.xlu0 %3748
        %3750 = vrot.lane.b32.xlu0 %v2475, 112
        %v3751 = vpop.permute.xlu0 %3750
        %3752 = vrot.lane.b32.xlu0 %v2886, 112
        %v3753 = vpop.permute.xlu0 %3752
        %3754 = vrot.lane.b32.xlu0 %v2887, 112
        %v3755 = vpop.permute.xlu0 %3754
        %3756 = vrot.lane.b32.xlu0 %v2888, 112
        %v3757 = vpop.permute.xlu0 %3756
        %3758 = vrot.lane.b32.xlu0 %v2889, 112
        %v3759 = vpop.permute.xlu0 %3758
        %3760 = vrot.lane.b32.xlu0 %v2890, 112
        %v3761 = vpop.permute.xlu0 %3760
        %3762 = vrot.lane.b32.xlu0 %v2891, 112
        %v3763 = vpop.permute.xlu0 %3762
        %3764 = vrot.lane.b32.xlu0 %v2892, 112
        %v3765 = vpop.permute.xlu0 %3764
        %3766 = vrot.lane.b32.xlu0 %v2893, 112
        %v3767 = vpop.permute.xlu0 %3766
        %v3769 = vsel %vm2894, %v3719, 0
        %v3772 = vsel %vm2894, %v3721, 0
        %v3775 = vsel %vm2894, %v3723, 0
        %v3778 = vsel %vm2894, %v3725, 0
        %v3781 = vsel %vm2894, %v3727, 0
        %v3784 = vsel %vm2894, %v3729, 0
        %v3787 = vsel %vm2894, %v3731, 0
        %v3790 = vsel %vm2894, %v3733, 0
        %v3793 = vsel %vm2894, %v3735, 0
        %v3796 = vsel %vm2894, %v3737, 0
        %v3799 = vsel %vm2894, %v3739, 0
        %v3802 = vsel %vm2894, %v3741, 0
        %v3805 = vsel %vm2894, %v3743, 0
        %v3808 = vsel %vm2894, %v3745, 0
        %v3811 = vsel %vm2894, %v3747, 0
        %v3814 = vsel %vm2894, %v3749, 0
        %v3817 = vsel %vm2894, %v3751, 0
        %v3820 = vsel %vm2894, %v3753, 0
        %v3823 = vsel %vm2894, %v3755, 0
        %v3826 = vsel %vm2894, %v3757, 0
        %v3829 = vsel %vm2894, %v3759, 0
        %v3832 = vsel %vm2894, %v3761, 0
        %v3835 = vsel %vm2894, %v3763, 0
        %v3838 = vsel %vm2894, %v3765, 0
        %v3841 = vsel %vm2894, %v3767, 0
        %3843 = vmatprep.subr.bf16.mxu0 0
        %3844 = vmatpush1.bf16.xpose.msra.mxu0 %v3820
        %3845 = vmatprep.subr.bf16.mxu0 0
        %3846 = vmatpush1.bf16.xpose.msra.mxu0 %v3823
        %3847 = vmatprep.subr.bf16.mxu0 0
        %3848 = vmatpush1.bf16.xpose.msra.mxu0 %v3826
        %3849 = vmatprep.subr.bf16.mxu0 0
        %3850 = vmatpush1.bf16.xpose.msra.mxu0 %v3829
        %3851 = vmatprep.subr.bf16.mxu0 0
        %3852 = vmatpush1.bf16.xpose.msra.mxu0 %v3832
        %3853 = vmatprep.subr.bf16.mxu0 0
        %3854 = vmatpush1.bf16.xpose.msra.mxu0 %v3835
        %3855 = vmatprep.subr.bf16.mxu0 0
        %3856 = vmatpush1.bf16.xpose.msra.mxu0 %v3838
        %3857 = vmatprep.subr.bf16.mxu0 0
        %3858 = vmatpush1.bf16.xpose.msra.mxu0 %v3841
        %3859 = vmatprep.subr.bf16.mxu0 0
        %3860 = vmatpush1.bf16.xpose.msra.mxu0 0
        %3861 = vmatprep.subr.bf16.mxu0 0
        %3862 = vmatpush1.bf16.xpose.msra.mxu0 0
        %3863 = vmatprep.subr.bf16.mxu0 0
        %3864 = vmatpush1.bf16.xpose.msra.mxu0 0
        %3865 = vmatprep.subr.bf16.mxu0 0
        %3866 = vmatpush1.bf16.xpose.msra.mxu0 0
        %3867 = vmatprep.subr.bf16.mxu0 0
        %3868 = vmatpush1.bf16.xpose.msra.mxu0 0
        %3869 = vmatprep.subr.bf16.mxu0 0
        %3870 = vmatpush1.bf16.xpose.msra.mxu0 0
        %3871 = vmatprep.subr.bf16.mxu0 0
        %3872 = vmatpush1.bf16.xpose.msra.mxu0 0
        %3873 = vmatprep.subr.bf16.mxu0 0
        %3874 = vmatpush1.bf16.xpose.msra.mxu0 0
        %3875 = vmatprep.mubr.bf16.mxu0 0
        %3876 = vmatmul.mubr.bf16.gmra.mrb[0].mxu0 %v3769
        %v3877 = vpop.f32.mrb[0].mxu0
        %v3878 = vadd.f32 0.0, %v3877
        %v3879 = vpop.f32.mrb[0].mxu0
        %v3880 = vpop.f32.mrb[0].mxu0
        %v3881 = vadd.f32 0.0, %v3880
        %v3882 = vpop.f32.mrb[0].mxu0
        %3883 = vmatprep.mubr.bf16.mxu0 0
        %3884 = vmatmul.mubr.bf16.gmra.mrb[0].mxu0 %v3772
        %v3885 = vpop.f32.mrb[0].mxu0
        %v3886 = vadd.f32 0.0, %v3885
        %v3887 = vpop.f32.mrb[0].mxu0
        %v3888 = vpop.f32.mrb[0].mxu0
        %v3889 = vadd.f32 0.0, %v3888
        %v3890 = vpop.f32.mrb[0].mxu0
        %3891 = vmatprep.mubr.bf16.mxu0 0
        %3892 = vmatmul.mubr.bf16.gmra.mrb[0].mxu0 %v3775
        %v3893 = vpop.f32.mrb[0].mxu0
        %v3894 = vadd.f32 0.0, %v3893
        %v3895 = vpop.f32.mrb[0].mxu0
        %v3896 = vpop.f32.mrb[0].mxu0
        %v3897 = vadd.f32 0.0, %v3896
        %v3898 = vpop.f32.mrb[0].mxu0
        %3899 = vmatprep.mubr.bf16.mxu0 0
        %3900 = vmatmul.mubr.bf16.gmra.mrb[0].mxu0 %v3778
        %v3901 = vpop.f32.mrb[0].mxu0
        %v3902 = vadd.f32 0.0, %v3901
        %v3903 = vpop.f32.mrb[0].mxu0
        %v3904 = vpop.f32.mrb[0].mxu0
        %v3905 = vadd.f32 0.0, %v3904
        %v3906 = vpop.f32.mrb[0].mxu0
        %3907 = vmatprep.mubr.bf16.mxu0 0
        %3908 = vmatmul.mubr.bf16.gmra.mrb[0].mxu0 %v3781
        %v3909 = vpop.f32.mrb[0].mxu0
        %v3910 = vadd.f32 0.0, %v3909
        %v3911 = vpop.f32.mrb[0].mxu0
        %v3912 = vpop.f32.mrb[0].mxu0
        %v3913 = vadd.f32 0.0, %v3912
        %v3914 = vpop.f32.mrb[0].mxu0
        %3915 = vmatprep.mubr.bf16.mxu0 0
        %3916 = vmatmul.mubr.bf16.gmra.mrb[0].mxu0 %v3784
        %v3917 = vpop.f32.mrb[0].mxu0
        %v3918 = vadd.f32 0.0, %v3917
        %v3919 = vpop.f32.mrb[0].mxu0
        %v3920 = vpop.f32.mrb[0].mxu0
        %v3921 = vadd.f32 0.0, %v3920
        %v3922 = vpop.f32.mrb[0].mxu0
        %3923 = vmatprep.mubr.bf16.mxu0 0
        %3924 = vmatmul.mubr.bf16.gmra.mrb[0].mxu0 %v3787
        %v3925 = vpop.f32.mrb[0].mxu0
        %v3926 = vadd.f32 0.0, %v3925
        %v3927 = vpop.f32.mrb[0].mxu0
        %v3928 = vpop.f32.mrb[0].mxu0
        %v3929 = vadd.f32 0.0, %v3928
        %v3930 = vpop.f32.mrb[0].mxu0
        %3931 = vmatprep.mubr.bf16.mxu0 0
        %3932 = vmatmul.mubr.bf16.gmra.mrb[0].mxu0 %v3790
        %v3933 = vpop.f32.mrb[0].mxu0
        %v3934 = vadd.f32 0.0, %v3933
        %v3935 = vpop.f32.mrb[0].mxu0
        %v3936 = vpop.f32.mrb[0].mxu0
        %v3937 = vadd.f32 0.0, %v3936
        %v3938 = vpop.f32.mrb[0].mxu0
        %3939 = vmatprep.mubr.bf16.mxu0 0
        %3940 = vmatmul.mubr.bf16.gmra.mrb[0].mxu0 %v3793
        %v3941 = vpop.f32.mrb[0].mxu0
        %v3942 = vadd.f32 0.0, %v3941
        %v3943 = vpop.f32.mrb[0].mxu0
        %v3944 = vpop.f32.mrb[0].mxu0
        %v3945 = vadd.f32 0.0, %v3944
        %v3946 = vpop.f32.mrb[0].mxu0
        %3947 = vmatprep.mubr.bf16.mxu0 0
        %3948 = vmatmul.mubr.bf16.gmra.mrb[0].mxu0 %v3796
        %v3949 = vpop.f32.mrb[0].mxu0
        %v3950 = vadd.f32 0.0, %v3949
        %v3951 = vpop.f32.mrb[0].mxu0
        %v3952 = vpop.f32.mrb[0].mxu0
        %v3953 = vadd.f32 0.0, %v3952
        %v3954 = vpop.f32.mrb[0].mxu0
        %3955 = vmatprep.mubr.bf16.mxu0 0
        %3956 = vmatmul.mubr.bf16.gmra.mrb[0].mxu0 %v3799
        %v3957 = vpop.f32.mrb[0].mxu0
        %v3958 = vadd.f32 0.0, %v3957
        %v3959 = vpop.f32.mrb[0].mxu0
        %v3960 = vpop.f32.mrb[0].mxu0
        %v3961 = vadd.f32 0.0, %v3960
        %v3962 = vpop.f32.mrb[0].mxu0
        %3963 = vmatprep.mubr.bf16.mxu0 0
        %3964 = vmatmul.mubr.bf16.gmra.mrb[0].mxu0 %v3802
        %v3965 = vpop.f32.mrb[0].mxu0
        %v3966 = vadd.f32 0.0, %v3965
        %v3967 = vpop.f32.mrb[0].mxu0
        %v3968 = vpop.f32.mrb[0].mxu0
        %v3969 = vadd.f32 0.0, %v3968
        %v3970 = vpop.f32.mrb[0].mxu0
        %3971 = vmatprep.mubr.bf16.mxu0 0
        %3972 = vmatmul.mubr.bf16.gmra.mrb[0].mxu0 %v3805
        %v3973 = vpop.f32.mrb[0].mxu0
        %v3974 = vadd.f32 0.0, %v3973
        %v3975 = vpop.f32.mrb[0].mxu0
        %v3976 = vpop.f32.mrb[0].mxu0
        %v3977 = vadd.f32 0.0, %v3976
        %v3978 = vpop.f32.mrb[0].mxu0
        %3979 = vmatprep.mubr.bf16.mxu0 0
        %3980 = vmatmul.mubr.bf16.gmra.mrb[0].mxu0 %v3808
        %v3981 = vpop.f32.mrb[0].mxu0
        %v3982 = vadd.f32 0.0, %v3981
        %v3983 = vpop.f32.mrb[0].mxu0
        %v3984 = vpop.f32.mrb[0].mxu0
        %v3985 = vadd.f32 0.0, %v3984
        %v3986 = vpop.f32.mrb[0].mxu0
        %3987 = vmatprep.mubr.bf16.mxu0 0
        %3988 = vmatmul.mubr.bf16.gmra.mrb[0].mxu0 %v3811
        %v3989 = vpop.f32.mrb[0].mxu0
        %v3990 = vadd.f32 0.0, %v3989
        %v3991 = vpop.f32.mrb[0].mxu0
        %v3992 = vpop.f32.mrb[0].mxu0
        %v3993 = vadd.f32 0.0, %v3992
        %v3994 = vpop.f32.mrb[0].mxu0
        %3995 = vmatprep.mubr.bf16.mxu0 0
        %3996 = vmatmul.mubr.bf16.gmra.mrb[0].mxu0 %v3814
        %v3997 = vpop.f32.mrb[0].mxu0
        %v3998 = vadd.f32 0.0, %v3997
        %v3999 = vpop.f32.mrb[0].mxu0
        %v4000 = vpop.f32.mrb[0].mxu0
        %v4001 = vadd.f32 0.0, %v4000
        %v4002 = vpop.f32.mrb[0].mxu0
        %4003 = vmatprep.mubr.bf16.mxu0 0
        %4004 = vmatmul.mubr.bf16.gmra.mrb[0].mxu0 %v3817
        %v4005 = vpop.f32.mrb[0].mxu0
        %v4006 = vadd.f32 0.0, %v4005
        %v4007 = vpop.f32.mrb[0].mxu0
        %v4008 = vpop.f32.mrb[0].mxu0
        %v4009 = vpop.f32.mrb[0].mxu0
        %4010 = vdwg.mxu0
        %v4011 = vmul.f32 %v3878, 0.25
        %v4012 = vmul.f32 %v3881, 0.25
        %v4013 = vmul.f32 %v3886, 0.25
        %v4014 = vmul.f32 %v3889, 0.25
        %v4015 = vmul.f32 %v3894, 0.25
        %v4016 = vmul.f32 %v3897, 0.25
        %v4017 = vmul.f32 %v3902, 0.25
        %v4018 = vmul.f32 %v3905, 0.25
        %v4019 = vmul.f32 %v3910, 0.25
        %v4020 = vmul.f32 %v3913, 0.25
        %v4021 = vmul.f32 %v3918, 0.25
        %v4022 = vmul.f32 %v3921, 0.25
        %v4023 = vmul.f32 %v3926, 0.25
        %v4024 = vmul.f32 %v3929, 0.25
        %v4025 = vmul.f32 %v3934, 0.25
        %v4026 = vmul.f32 %v3937, 0.25
        %v4027 = vmul.f32 %v3942, 0.25
        %v4028 = vmul.f32 %v3945, 0.25
        %v4029 = vmul.f32 %v3950, 0.25
        %v4030 = vmul.f32 %v3953, 0.25
        %v4031 = vmul.f32 %v3958, 0.25
        %v4032 = vmul.f32 %v3961, 0.25
        %v4033 = vmul.f32 %v3966, 0.25
        %v4034 = vmul.f32 %v3969, 0.25
        %v4035 = vmul.f32 %v3974, 0.25
        %v4036 = vmul.f32 %v3977, 0.25
        %v4037 = vmul.f32 %v3982, 0.25
        %v4038 = vmul.f32 %v3985, 0.25
        %v4039 = vmul.f32 %v3990, 0.25
        %v4040 = vmul.f32 %v3993, 0.25
        %v4041 = vmul.f32 %v3998, 0.25
        %v4042 = vmul.f32 %v4001, 0.25
        %v4043 = vmul.f32 %v4006, 0.25
        %v4044 = vadd.f32 %v4011, %v1688
        %v4045 = vadd.f32 %v4012, %v1688
        %v4046 = vadd.f32 %v4013, %v1688
        %v4047 = vadd.f32 %v4014, %v1688
        %v4048 = vadd.f32 %v4015, %v1688
        %v4049 = vadd.f32 %v4016, %v1688
        %v4050 = vadd.f32 %v4017, %v1688
        %v4051 = vadd.f32 %v4018, %v1688
        %v4052 = vadd.f32 %v4019, %v1688
        %v4053 = vadd.f32 %v4020, %v1688
        %v4054 = vadd.f32 %v4021, %v1688
        %v4055 = vadd.f32 %v4022, %v1688
        %v4056 = vadd.f32 %v4023, %v1688
        %v4057 = vadd.f32 %v4024, %v1688
        %v4058 = vadd.f32 %v4025, %v1688
        %v4059 = vadd.f32 %v4026, %v1688
        %v4060 = vadd.f32 %v4027, %v1688
        %v4061 = vadd.f32 %v4028, %v1688
        %v4062 = vadd.f32 %v4029, %v1688
        %v4063 = vadd.f32 %v4030, %v1688
        %v4064 = vadd.f32 %v4031, %v1688
        %v4065 = vadd.f32 %v4032, %v1688
        %v4066 = vadd.f32 %v4033, %v1688
        %v4067 = vadd.f32 %v4034, %v1688
        %v4068 = vadd.f32 %v4035, %v1688
        %v4069 = vadd.f32 %v4036, %v1688
        %v4070 = vadd.f32 %v4037, %v1688
        %v4071 = vadd.f32 %v4038, %v1688
        %v4072 = vadd.f32 %v4039, %v1688
        %v4073 = vadd.f32 %v4040, %v1688
        %v4074 = vadd.f32 %v4041, %v1688
        %v4075 = vadd.f32 %v4042, %v1688
        %v4076 = vadd.f32 %v4043, %v1688
        %4077 = vmax.xlane.f32.xlu0 %v4044
        %v4078 = vpop.xlane.xlu0 %4077
        %4079 = vmax.xlane.f32.xlu0 %v4045
        %v4080 = vpop.xlane.xlu0 %4079
        %4081 = vmax.xlane.f32.xlu0 %v4046
        %v4082 = vpop.xlane.xlu0 %4081
        %4083 = vmax.xlane.f32.xlu0 %v4047
        %v4084 = vpop.xlane.xlu0 %4083
        %4085 = vmax.xlane.f32.xlu0 %v4048
        %v4086 = vpop.xlane.xlu0 %4085
        %4087 = vmax.xlane.f32.xlu0 %v4049
        %v4088 = vpop.xlane.xlu0 %4087
        %4089 = vmax.xlane.f32.xlu0 %v4050
        %v4090 = vpop.xlane.xlu0 %4089
        %4091 = vmax.xlane.f32.xlu0 %v4051
        %v4092 = vpop.xlane.xlu0 %4091
        %4093 = vmax.xlane.f32.xlu0 %v4052
        %v4094 = vpop.xlane.xlu0 %4093
        %4095 = vmax.xlane.f32.xlu0 %v4053
        %v4096 = vpop.xlane.xlu0 %4095
        %4097 = vmax.xlane.f32.xlu0 %v4054
        %v4098 = vpop.xlane.xlu0 %4097
        %4099 = vmax.xlane.f32.xlu0 %v4055
        %v4100 = vpop.xlane.xlu0 %4099
        %4101 = vmax.xlane.f32.xlu0 %v4056
        %v4102 = vpop.xlane.xlu0 %4101
        %4103 = vmax.xlane.f32.xlu0 %v4057
        %v4104 = vpop.xlane.xlu0 %4103
        %4105 = vmax.xlane.f32.xlu0 %v4058
        %v4106 = vpop.xlane.xlu0 %4105
        %4107 = vmax.xlane.f32.xlu0 %v4059
        %v4108 = vpop.xlane.xlu0 %4107
        %4109 = vmax.xlane.f32.xlu0 %v4060
        %v4110 = vpop.xlane.xlu0 %4109
        %4111 = vmax.xlane.f32.xlu0 %v4061
        %v4112 = vpop.xlane.xlu0 %4111
        %4113 = vmax.xlane.f32.xlu0 %v4062
        %v4114 = vpop.xlane.xlu0 %4113
        %4115 = vmax.xlane.f32.xlu0 %v4063
        %v4116 = vpop.xlane.xlu0 %4115
        %4117 = vmax.xlane.f32.xlu0 %v4064
        %v4118 = vpop.xlane.xlu0 %4117
        %4119 = vmax.xlane.f32.xlu0 %v4065
        %v4120 = vpop.xlane.xlu0 %4119
        %4121 = vmax.xlane.f32.xlu0 %v4066
        %v4122 = vpop.xlane.xlu0 %4121
        %4123 = vmax.xlane.f32.xlu0 %v4067
        %v4124 = vpop.xlane.xlu0 %4123
        %4125 = vmax.xlane.f32.xlu0 %v4068
        %v4126 = vpop.xlane.xlu0 %4125
        %4127 = vmax.xlane.f32.xlu0 %v4069
        %v4128 = vpop.xlane.xlu0 %4127
        %4129 = vmax.xlane.f32.xlu0 %v4070
        %v4130 = vpop.xlane.xlu0 %4129
        %4131 = vmax.xlane.f32.xlu0 %v4071
        %v4132 = vpop.xlane.xlu0 %4131
        %4133 = vmax.xlane.f32.xlu0 %v4072
        %v4134 = vpop.xlane.xlu0 %4133
        %4135 = vmax.xlane.f32.xlu0 %v4073
        %v4136 = vpop.xlane.xlu0 %4135
        %4137 = vmax.xlane.f32.xlu0 %v4074
        %v4138 = vpop.xlane.xlu0 %4137
        %4139 = vmax.xlane.f32.xlu0 %v4075
        %v4140 = vpop.xlane.xlu0 %4139
        %4141 = vmax.xlane.f32.xlu0 %v4076
        %v4142 = vpop.xlane.xlu0 %4141
        %v4143 = vsub.f32 %v4044, %v4078
        %v4144 = vsub.f32 %v4045, %v4080
        %v4145 = vsub.f32 %v4046, %v4082
        %v4146 = vsub.f32 %v4047, %v4084
        %v4147 = vsub.f32 %v4048, %v4086
        %v4148 = vsub.f32 %v4049, %v4088
        %v4149 = vsub.f32 %v4050, %v4090
        %v4150 = vsub.f32 %v4051, %v4092
        %v4151 = vsub.f32 %v4052, %v4094
        %v4152 = vsub.f32 %v4053, %v4096
        %v4153 = vsub.f32 %v4054, %v4098
        %v4154 = vsub.f32 %v4055, %v4100
        %v4155 = vsub.f32 %v4056, %v4102
        %v4156 = vsub.f32 %v4057, %v4104
        %v4157 = vsub.f32 %v4058, %v4106
        %v4158 = vsub.f32 %v4059, %v4108
        %v4159 = vsub.f32 %v4060, %v4110
        %v4160 = vsub.f32 %v4061, %v4112
        %v4161 = vsub.f32 %v4062, %v4114
        %v4162 = vsub.f32 %v4063, %v4116
        %v4163 = vsub.f32 %v4064, %v4118
        %v4164 = vsub.f32 %v4065, %v4120
        %v4165 = vsub.f32 %v4066, %v4122
        %v4166 = vsub.f32 %v4067, %v4124
        %v4167 = vsub.f32 %v4068, %v4126
        %v4168 = vsub.f32 %v4069, %v4128
        %v4169 = vsub.f32 %v4070, %v4130
        %v4170 = vsub.f32 %v4071, %v4132
        %v4171 = vsub.f32 %v4072, %v4134
        %v4172 = vsub.f32 %v4073, %v4136
        %v4173 = vsub.f32 %v4074, %v4138
        %v4174 = vsub.f32 %v4075, %v4140
        %v4175 = vsub.f32 %v4076, %v4142
        %v4176 = vmul.f32 %v4143, 1.442695
        %v4177 = vpow.pop %v4176
        %v4178 = vmul.f32 %v4144, 1.442695
        %v4179 = vpow.pop %v4178
        %v4180 = vmul.f32 %v4145, 1.442695
        %v4181 = vpow.pop %v4180
        %v4182 = vmul.f32 %v4146, 1.442695
        %v4183 = vpow.pop %v4182
        %v4184 = vmul.f32 %v4147, 1.442695
        %v4185 = vpow.pop %v4184
        %v4186 = vmul.f32 %v4148, 1.442695
        %v4187 = vpow.pop %v4186
        %v4188 = vmul.f32 %v4149, 1.442695
        %v4189 = vpow.pop %v4188
        %v4190 = vmul.f32 %v4150, 1.442695
        %v4191 = vpow.pop %v4190
        %v4192 = vmul.f32 %v4151, 1.442695
        %v4193 = vpow.pop %v4192
        %v4194 = vmul.f32 %v4152, 1.442695
        %v4195 = vpow.pop %v4194
        %v4196 = vmul.f32 %v4153, 1.442695
        %v4197 = vpow.pop %v4196
        %v4198 = vmul.f32 %v4154, 1.442695
        %v4199 = vpow.pop %v4198
        %v4200 = vmul.f32 %v4155, 1.442695
        %v4201 = vpow.pop %v4200
        %v4202 = vmul.f32 %v4156, 1.442695
        %v4203 = vpow.pop %v4202
        %v4204 = vmul.f32 %v4157, 1.442695
        %v4205 = vpow.pop %v4204
        %v4206 = vmul.f32 %v4158, 1.442695
        %v4207 = vpow.pop %v4206
        %v4208 = vmul.f32 %v4159, 1.442695
        %v4209 = vpow.pop %v4208
        %v4210 = vmul.f32 %v4160, 1.442695
        %v4211 = vpow.pop %v4210
        %v4212 = vmul.f32 %v4161, 1.442695
        %v4213 = vpow.pop %v4212
        %v4214 = vmul.f32 %v4162, 1.442695
        %v4215 = vpow.pop %v4214
        %v4216 = vmul.f32 %v4163, 1.442695
        %v4217 = vpow.pop %v4216
        %v4218 = vmul.f32 %v4164, 1.442695
        %v4219 = vpow.pop %v4218
        %v4220 = vmul.f32 %v4165, 1.442695
        %v4221 = vpow.pop %v4220
        %v4222 = vmul.f32 %v4166, 1.442695
        %v4223 = vpow.pop %v4222
        %v4224 = vmul.f32 %v4167, 1.442695
        %v4225 = vpow.pop %v4224
        %v4226 = vmul.f32 %v4168, 1.442695
        %v4227 = vpow.pop %v4226
        %v4228 = vmul.f32 %v4169, 1.442695
        %v4229 = vpow.pop %v4228
        %v4230 = vmul.f32 %v4170, 1.442695
        %v4231 = vpow.pop %v4230
        %v4232 = vmul.f32 %v4171, 1.442695
        %v4233 = vpow.pop %v4232
        %v4234 = vmul.f32 %v4172, 1.442695
        %v4235 = vpow.pop %v4234
        %v4236 = vmul.f32 %v4173, 1.442695
        %v4237 = vpow.pop %v4236
        %v4238 = vmul.f32 %v4174, 1.442695
        %v4239 = vpow.pop %v4238
        %v4240 = vmul.f32 %v4175, 1.442695
        %v4241 = vpow.pop %v4240
        %4242 = vadd.xlane.f32.xlu0 %v4177
        %v4243 = vpop.xlane.xlu0 %4242
        %4244 = vadd.xlane.f32.xlu0 %v4179
        %v4245 = vpop.xlane.xlu0 %4244
        %4246 = vadd.xlane.f32.xlu0 %v4181
        %v4247 = vpop.xlane.xlu0 %4246
        %4248 = vadd.xlane.f32.xlu0 %v4183
        %v4249 = vpop.xlane.xlu0 %4248
        %4250 = vadd.xlane.f32.xlu0 %v4185
        %v4251 = vpop.xlane.xlu0 %4250
        %4252 = vadd.xlane.f32.xlu0 %v4187
        %v4253 = vpop.xlane.xlu0 %4252
        %4254 = vadd.xlane.f32.xlu0 %v4189
        %v4255 = vpop.xlane.xlu0 %4254
        %4256 = vadd.xlane.f32.xlu0 %v4191
        %v4257 = vpop.xlane.xlu0 %4256
        %4258 = vadd.xlane.f32.xlu0 %v4193
        %v4259 = vpop.xlane.xlu0 %4258
        %4260 = vadd.xlane.f32.xlu0 %v4195
        %v4261 = vpop.xlane.xlu0 %4260
        %4262 = vadd.xlane.f32.xlu0 %v4197
        %v4263 = vpop.xlane.xlu0 %4262
        %4264 = vadd.xlane.f32.xlu0 %v4199
        %v4265 = vpop.xlane.xlu0 %4264
        %4266 = vadd.xlane.f32.xlu0 %v4201
        %v4267 = vpop.xlane.xlu0 %4266
        %4268 = vadd.xlane.f32.xlu0 %v4203
        %v4269 = vpop.xlane.xlu0 %4268
        %4270 = vadd.xlane.f32.xlu0 %v4205
        %v4271 = vpop.xlane.xlu0 %4270
        %4272 = vadd.xlane.f32.xlu0 %v4207
        %v4273 = vpop.xlane.xlu0 %4272
        %4274 = vadd.xlane.f32.xlu0 %v4209
        %v4275 = vpop.xlane.xlu0 %4274
        %4276 = vadd.xlane.f32.xlu0 %v4211
        %v4277 = vpop.xlane.xlu0 %4276
        %4278 = vadd.xlane.f32.xlu0 %v4213
        %v4279 = vpop.xlane.xlu0 %4278
        %4280 = vadd.xlane.f32.xlu0 %v4215
        %v4281 = vpop.xlane.xlu0 %4280
        %4282 = vadd.xlane.f32.xlu0 %v4217
        %v4283 = vpop.xlane.xlu0 %4282
        %4284 = vadd.xlane.f32.xlu0 %v4219
        %v4285 = vpop.xlane.xlu0 %4284
        %4286 = vadd.xlane.f32.xlu0 %v4221
        %v4287 = vpop.xlane.xlu0 %4286
        %4288 = vadd.xlane.f32.xlu0 %v4223
        %v4289 = vpop.xlane.xlu0 %4288
        %4290 = vadd.xlane.f32.xlu0 %v4225
        %v4291 = vpop.xlane.xlu0 %4290
        %4292 = vadd.xlane.f32.xlu0 %v4227
        %v4293 = vpop.xlane.xlu0 %4292
        %4294 = vadd.xlane.f32.xlu0 %v4229
        %v4295 = vpop.xlane.xlu0 %4294
        %4296 = vadd.xlane.f32.xlu0 %v4231
        %v4297 = vpop.xlane.xlu0 %4296
        %4298 = vadd.xlane.f32.xlu0 %v4233
        %v4299 = vpop.xlane.xlu0 %4298
        %4300 = vadd.xlane.f32.xlu0 %v4235
        %v4301 = vpop.xlane.xlu0 %4300
        %4302 = vadd.xlane.f32.xlu0 %v4237
        %v4303 = vpop.xlane.xlu0 %4302
        %4304 = vadd.xlane.f32.xlu0 %v4239
        %v4305 = vpop.xlane.xlu0 %4304
        %4306 = vadd.xlane.f32.xlu0 %v4241
        %v4307 = vpop.xlane.xlu0 %4306
        %v4308 = vrcp.pop %v4243
        %v4309 = vrcp.pop %v4245
        %v4310 = vrcp.pop %v4247
        %v4311 = vrcp.pop %v4249
        %v4312 = vrcp.pop %v4251
        %v4313 = vrcp.pop %v4253
        %v4314 = vrcp.pop %v4255
        %v4315 = vrcp.pop %v4257
        %v4316 = vrcp.pop %v4259
        %v4317 = vrcp.pop %v4261
        %v4318 = vrcp.pop %v4263
        %v4319 = vrcp.pop %v4265
        %v4320 = vrcp.pop %v4267
        %v4321 = vrcp.pop %v4269
        %v4322 = vrcp.pop %v4271
        %v4323 = vrcp.pop %v4273
        %v4324 = vrcp.pop %v4275
        %v4325 = vrcp.pop %v4277
        %v4326 = vrcp.pop %v4279
        %v4327 = vrcp.pop %v4281
        %v4328 = vrcp.pop %v4283
        %v4329 = vrcp.pop %v4285
        %v4330 = vrcp.pop %v4287
        %v4331 = vrcp.pop %v4289
        %v4332 = vrcp.pop %v4291
        %v4333 = vrcp.pop %v4293
        %v4334 = vrcp.pop %v4295
        %v4335 = vrcp.pop %v4297
        %v4336 = vrcp.pop %v4299
        %v4337 = vrcp.pop %v4301
        %v4338 = vrcp.pop %v4303
        %v4339 = vrcp.pop %v4305
        %v4340 = vrcp.pop %v4307
        %v4341 = vmul.f32 %v4177, %v4308
        %v4342 = vmul.f32 %v4179, %v4309
        %v4343 = vmul.f32 %v4181, %v4310
        %v4344 = vmul.f32 %v4183, %v4311
        %v4345 = vmul.f32 %v4185, %v4312
        %v4346 = vmul.f32 %v4187, %v4313
        %v4347 = vmul.f32 %v4189, %v4314
        %v4348 = vmul.f32 %v4191, %v4315
        %v4349 = vmul.f32 %v4193, %v4316
        %v4350 = vmul.f32 %v4195, %v4317
        %v4351 = vmul.f32 %v4197, %v4318
        %v4352 = vmul.f32 %v4199, %v4319
        %v4353 = vmul.f32 %v4201, %v4320
        %v4354 = vmul.f32 %v4203, %v4321
        %v4355 = vmul.f32 %v4205, %v4322
        %v4356 = vmul.f32 %v4207, %v4323
        %v4357 = vmul.f32 %v4209, %v4324
        %v4358 = vmul.f32 %v4211, %v4325
        %v4359 = vmul.f32 %v4213, %v4326
        %v4360 = vmul.f32 %v4215, %v4327
        %v4361 = vmul.f32 %v4217, %v4328
        %v4362 = vmul.f32 %v4219, %v4329
        %v4363 = vmul.f32 %v4221, %v4330
        %v4364 = vmul.f32 %v4223, %v4331
        %v4365 = vmul.f32 %v4225, %v4332
        %v4366 = vmul.f32 %v4227, %v4333
        %v4367 = vmul.f32 %v4229, %v4334
        %v4368 = vmul.f32 %v4231, %v4335
        %v4369 = vmul.f32 %v4233, %v4336
        %v4370 = vmul.f32 %v4235, %v4337
        %v4371 = vmul.f32 %v4237, %v4338
        %v4372 = vmul.f32 %v4239, %v4339
        %v4373 = vmul.f32 %v4241, %v4340
        %v4374 = vpack.c.bf16 %v4342, %v4341
        %v4375 = vpack.c.bf16 %v4344, %v4343
        %v4376 = vpack.c.bf16 %v4346, %v4345
        %v4377 = vpack.c.bf16 %v4348, %v4347
        %v4378 = vpack.c.bf16 %v4350, %v4349
        %v4379 = vpack.c.bf16 %v4352, %v4351
        %v4380 = vpack.c.bf16 %v4354, %v4353
        %v4381 = vpack.c.bf16 %v4356, %v4355
        %v4382 = vpack.c.bf16 %v4358, %v4357
        %v4383 = vpack.c.bf16 %v4360, %v4359
        %v4384 = vpack.c.bf16 %v4362, %v4361
        %v4385 = vpack.c.bf16 %v4364, %v4363
        %v4386 = vpack.c.bf16 %v4366, %v4365
        %v4387 = vpack.c.bf16 %v4368, %v4367
        %v4388 = vpack.c.bf16 %v4370, %v4369
        %v4389 = vpack.c.bf16 %v4372, %v4371
        %v4390 = vpack.c.bf16 %v4373, %v4373
        %4391 = vmatprep.subr.bf16.mxu0 0
        %4392 = vmatpush1.bf16.msra.mxu0 %v3527
        %4393 = vmatprep.subr.bf16.mxu0 0
        %4394 = vmatpush1.bf16.msra.mxu0 %v3529
        %4395 = vmatprep.subr.bf16.mxu0 0
        %4396 = vmatpush1.bf16.msra.mxu0 %v3531
        %4397 = vmatprep.subr.bf16.mxu0 0
        %4398 = vmatpush1.bf16.msra.mxu0 %v3533
        %4399 = vmatprep.subr.bf16.mxu0 0
        %4400 = vmatpush1.bf16.msra.mxu0 %v3535
        %4401 = vmatprep.subr.bf16.mxu0 0
        %4402 = vmatpush1.bf16.msra.mxu0 %v3537
        %4403 = vmatprep.subr.bf16.mxu0 0
        %4404 = vmatpush1.bf16.msra.mxu0 %v3539
        %4405 = vmatprep.subr.bf16.mxu0 0
        %4406 = vmatpush1.bf16.msra.mxu0 %v3541
        %4407 = vmatprep.subr.bf16.mxu0 0
        %4408 = vmatpush1.bf16.msra.mxu0 0
        %4409 = vmatprep.subr.bf16.mxu0 0
        %4410 = vmatpush1.bf16.msra.mxu0 0
        %4411 = vmatprep.subr.bf16.mxu0 0
        %4412 = vmatpush1.bf16.msra.mxu0 0
        %4413 = vmatprep.subr.bf16.mxu0 0
        %4414 = vmatpush1.bf16.msra.mxu0 0
        %4415 = vmatprep.subr.bf16.mxu0 0
        %4416 = vmatpush1.bf16.msra.mxu0 0
        %4417 = vmatprep.subr.bf16.mxu0 0
        %4418 = vmatpush1.bf16.msra.mxu0 0
        %4419 = vmatprep.subr.bf16.mxu0 0
        %4420 = vmatpush1.bf16.msra.mxu0 0
        %4421 = vmatprep.subr.bf16.mxu0 0
        %4422 = vmatpush1.bf16.msra.mxu0 0
        %4423 = vmatprep.mubr.bf16.mxu0 0
        %4424 = vmatmul.mubr.bf16.gmra.mrb[0].mxu0 %v4374
        %v4425 = vpop.f32.mrb[0].mxu0
        %v4426 = vadd.f32 0.0, %v4425
        %v4427 = vpop.f32.mrb[0].mxu0
        %v4428 = vpop.f32.mrb[0].mxu0
        %v4429 = vadd.f32 0.0, %v4428
        %v4430 = vpop.f32.mrb[0].mxu0
        %4431 = vmatprep.mubr.bf16.mxu0 0
        %4432 = vmatmul.mubr.bf16.gmra.mrb[0].mxu0 %v4375
        %v4433 = vpop.f32.mrb[0].mxu0
        %v4434 = vadd.f32 0.0, %v4433
        %v4435 = vpop.f32.mrb[0].mxu0
        %v4436 = vpop.f32.mrb[0].mxu0
        %v4437 = vadd.f32 0.0, %v4436
        %v4438 = vpop.f32.mrb[0].mxu0
        %4439 = vmatprep.mubr.bf16.mxu0 0
        %4440 = vmatmul.mubr.bf16.gmra.mrb[0].mxu0 %v4376
        %v4441 = vpop.f32.mrb[0].mxu0
        %v4442 = vadd.f32 0.0, %v4441
        %v4443 = vpop.f32.mrb[0].mxu0
        %v4444 = vpop.f32.mrb[0].mxu0
        %v4445 = vadd.f32 0.0, %v4444
        %v4446 = vpop.f32.mrb[0].mxu0
        %4447 = vmatprep.mubr.bf16.mxu0 0
        %4448 = vmatmul.mubr.bf16.gmra.mrb[0].mxu0 %v4377
        %v4449 = vpop.f32.mrb[0].mxu0
        %v4450 = vadd.f32 0.0, %v4449
        %v4451 = vpop.f32.mrb[0].mxu0
        %v4452 = vpop.f32.mrb[0].mxu0
        %v4453 = vadd.f32 0.0, %v4452
        %v4454 = vpop.f32.mrb[0].mxu0
        %4455 = vmatprep.mubr.bf16.mxu0 0
        %4456 = vmatmul.mubr.bf16.gmra.mrb[0].mxu0 %v4378
        %v4457 = vpop.f32.mrb[0].mxu0
        %v4458 = vadd.f32 0.0, %v4457
        %v4459 = vpop.f32.mrb[0].mxu0
        %v4460 = vpop.f32.mrb[0].mxu0
        %v4461 = vadd.f32 0.0, %v4460
        %v4462 = vpop.f32.mrb[0].mxu0
        %4463 = vmatprep.mubr.bf16.mxu0 0
        %4464 = vmatmul.mubr.bf16.gmra.mrb[0].mxu0 %v4379
        %v4465 = vpop.f32.mrb[0].mxu0
        %v4466 = vadd.f32 0.0, %v4465
        %v4467 = vpop.f32.mrb[0].mxu0
        %v4468 = vpop.f32.mrb[0].mxu0
        %v4469 = vadd.f32 0.0, %v4468
        %v4470 = vpop.f32.mrb[0].mxu0
        %4471 = vmatprep.mubr.bf16.mxu0 0
        %4472 = vmatmul.mubr.bf16.gmra.mrb[0].mxu0 %v4380
        %v4473 = vpop.f32.mrb[0].mxu0
        %v4474 = vadd.f32 0.0, %v4473
        %v4475 = vpop.f32.mrb[0].mxu0
        %v4476 = vpop.f32.mrb[0].mxu0
        %v4477 = vadd.f32 0.0, %v4476
        %v4478 = vpop.f32.mrb[0].mxu0
        %4479 = vmatprep.mubr.bf16.mxu0 0
        %4480 = vmatmul.mubr.bf16.gmra.mrb[0].mxu0 %v4381
        %v4481 = vpop.f32.mrb[0].mxu0
        %v4482 = vadd.f32 0.0, %v4481
        %v4483 = vpop.f32.mrb[0].mxu0
        %v4484 = vpop.f32.mrb[0].mxu0
        %v4485 = vadd.f32 0.0, %v4484
        %v4486 = vpop.f32.mrb[0].mxu0
        %4487 = vmatprep.mubr.bf16.mxu0 0
        %4488 = vmatmul.mubr.bf16.gmra.mrb[0].mxu0 %v4382
        %v4489 = vpop.f32.mrb[0].mxu0
        %v4490 = vadd.f32 0.0, %v4489
        %v4491 = vpop.f32.mrb[0].mxu0
        %v4492 = vpop.f32.mrb[0].mxu0
        %v4493 = vadd.f32 0.0, %v4492
        %v4494 = vpop.f32.mrb[0].mxu0
        %4495 = vmatprep.mubr.bf16.mxu0 0
        %4496 = vmatmul.mubr.bf16.gmra.mrb[0].mxu0 %v4383
        %v4497 = vpop.f32.mrb[0].mxu0
        %v4498 = vadd.f32 0.0, %v4497
        %v4499 = vpop.f32.mrb[0].mxu0
        %v4500 = vpop.f32.mrb[0].mxu0
        %v4501 = vadd.f32 0.0, %v4500
        %v4502 = vpop.f32.mrb[0].mxu0
        %4503 = vmatprep.mubr.bf16.mxu0 0
        %4504 = vmatmul.mubr.bf16.gmra.mrb[0].mxu0 %v4384
        %v4505 = vpop.f32.mrb[0].mxu0
        %v4506 = vadd.f32 0.0, %v4505
        %v4507 = vpop.f32.mrb[0].mxu0
        %v4508 = vpop.f32.mrb[0].mxu0
        %v4509 = vadd.f32 0.0, %v4508
        %v4510 = vpop.f32.mrb[0].mxu0
        %4511 = vmatprep.mubr.bf16.mxu0 0
        %4512 = vmatmul.mubr.bf16.gmra.mrb[0].mxu0 %v4385
        %v4513 = vpop.f32.mrb[0].mxu0
        %v4514 = vadd.f32 0.0, %v4513
        %v4515 = vpop.f32.mrb[0].mxu0
        %v4516 = vpop.f32.mrb[0].mxu0
        %v4517 = vadd.f32 0.0, %v4516
        %v4518 = vpop.f32.mrb[0].mxu0
        %4519 = vmatprep.mubr.bf16.mxu0 0
        %4520 = vmatmul.mubr.bf16.gmra.mrb[0].mxu0 %v4386
        %v4521 = vpop.f32.mrb[0].mxu0
        %v4522 = vadd.f32 0.0, %v4521
        %v4523 = vpop.f32.mrb[0].mxu0
        %v4524 = vpop.f32.mrb[0].mxu0
        %v4525 = vadd.f32 0.0, %v4524
        %v4526 = vpop.f32.mrb[0].mxu0
        %4527 = vmatprep.mubr.bf16.mxu0 0
        %4528 = vmatmul.mubr.bf16.gmra.mrb[0].mxu0 %v4387
        %v4529 = vpop.f32.mrb[0].mxu0
        %v4530 = vadd.f32 0.0, %v4529
        %v4531 = vpop.f32.mrb[0].mxu0
        %v4532 = vpop.f32.mrb[0].mxu0
        %v4533 = vadd.f32 0.0, %v4532
        %v4534 = vpop.f32.mrb[0].mxu0
        %4535 = vmatprep.mubr.bf16.mxu0 0
        %4536 = vmatmul.mubr.bf16.gmra.mrb[0].mxu0 %v4388
        %v4537 = vpop.f32.mrb[0].mxu0
        %v4538 = vadd.f32 0.0, %v4537
        %v4539 = vpop.f32.mrb[0].mxu0
        %v4540 = vpop.f32.mrb[0].mxu0
        %v4541 = vadd.f32 0.0, %v4540
        %v4542 = vpop.f32.mrb[0].mxu0
        %4543 = vmatprep.mubr.bf16.mxu0 0
        %4544 = vmatmul.mubr.bf16.gmra.mrb[0].mxu0 %v4389
        %v4545 = vpop.f32.mrb[0].mxu0
        %v4546 = vadd.f32 0.0, %v4545
        %v4547 = vpop.f32.mrb[0].mxu0
        %v4548 = vpop.f32.mrb[0].mxu0
        %v4549 = vadd.f32 0.0, %v4548
        %v4550 = vpop.f32.mrb[0].mxu0
        %4551 = vmatprep.mubr.bf16.mxu0 0
        %4552 = vmatmul.mubr.bf16.gmra.mrb[0].mxu0 %v4390
        %v4553 = vpop.f32.mrb[0].mxu0
        %v4554 = vadd.f32 0.0, %v4553
        %v4555 = vpop.f32.mrb[0].mxu0
        %v4556 = vpop.f32.mrb[0].mxu0
        %v4557 = vpop.f32.mrb[0].mxu0
        %4558 = vdwg.mxu0
        %vm4559 = vcmp.lt.s32.totalorder %v1686, 16
        %v4560 = vsel %vm4559, 1, 0
        %vm4561 = vcmp.eq.s32.totalorder %v4560, 1
        %v4562 = vsel %vm4561, %v3585, %v4426
        %v4563 = vsel %vm4561, %v3588, %v4429
        %v4564 = vsel %vm4561, %v3593, %v4434
        %v4565 = vsel %vm4561, %v3596, %v4437
        %v4566 = vsel %vm4561, %v3601, %v4442
        %v4567 = vsel %vm4561, %v3604, %v4445
        %v4568 = vsel %vm4561, %v3609, %v4450
        %v4569 = vsel %vm4561, %v3612, %v4453
        %v4570 = vsel %vm4561, %v3617, %v4458
        %v4571 = vsel %vm4561, %v3620, %v4461
        %v4572 = vsel %vm4561, %v3625, %v4466
        %v4573 = vsel %vm4561, %v3628, %v4469
        %v4574 = vsel %vm4561, %v3633, %v4474
        %v4575 = vsel %vm4561, %v3636, %v4477
        %v4576 = vsel %vm4561, %v3641, %v4482
        %v4577 = vsel %vm4561, %v3644, %v4485
        %v4578 = vsel %vm4561, %v3649, %v4490
        %v4579 = vsel %vm4561, %v3652, %v4493
        %v4580 = vsel %vm4561, %v3657, %v4498
        %v4581 = vsel %vm4561, %v3660, %v4501
        %v4582 = vsel %vm4561, %v3665, %v4506
        %v4583 = vsel %vm4561, %v3668, %v4509
        %v4584 = vsel %vm4561, %v3673, %v4514
        %v4585 = vsel %vm4561, %v3676, %v4517
        %v4586 = vsel %vm4561, %v3681, %v4522
        %v4587 = vsel %vm4561, %v3684, %v4525
        %v4588 = vsel %vm4561, %v3689, %v4530
        %v4589 = vsel %vm4561, %v3692, %v4533
        %v4590 = vsel %vm4561, %v3697, %v4538
        %v4591 = vsel %vm4561, %v3700, %v4541
        %v4592 = vsel %vm4561, %v3705, %v4546
        %v4593 = vsel %vm4561, %v3708, %v4549
        %v4594 = vsel %vm4561, %v3713, %v4554
        %v4595 = vadd.f32 %v4562, %v2326
        %v4596 = vadd.f32 %v4563, %v2329
        %v4597 = vadd.f32 %v4564, %v2334
        %v4598 = vadd.f32 %v4565, %v2337
        %v4599 = vadd.f32 %v4566, %v2342
        %v4600 = vadd.f32 %v4567, %v2345
        %v4601 = vadd.f32 %v4568, %v2350
        %v4602 = vadd.f32 %v4569, %v2353
        %v4603 = vadd.f32 %v4570, %v2358
        %v4604 = vadd.f32 %v4571, %v2361
        %v4605 = vadd.f32 %v4572, %v2366
        %v4606 = vadd.f32 %v4573, %v2369
        %v4607 = vadd.f32 %v4574, %v2374
        %v4608 = vadd.f32 %v4575, %v2377
        %v4609 = vadd.f32 %v4576, %v2382
        %v4610 = vadd.f32 %v4577, %v2385
        %v4611 = vadd.f32 %v4578, %v2390
        %v4612 = vadd.f32 %v4579, %v2393
        %v4613 = vadd.f32 %v4580, %v2398
        %v4614 = vadd.f32 %v4581, %v2401
        %v4615 = vadd.f32 %v4582, %v2406
        %v4616 = vadd.f32 %v4583, %v2409
        %v4617 = vadd.f32 %v4584, %v2414
        %v4618 = vadd.f32 %v4585, %v2417
        %v4619 = vadd.f32 %v4586, %v2422
        %v4620 = vadd.f32 %v4587, %v2425
        %v4621 = vadd.f32 %v4588, %v2430
        %v4622 = vadd.f32 %v4589, %v2433
        %v4623 = vadd.f32 %v4590, %v2438
        %v4624 = vadd.f32 %v4591, %v2441
        %v4625 = vadd.f32 %v4592, %v2446
        %v4626 = vadd.f32 %v4593, %v2449
        %v4627 = vadd.f32 %v4594, %v2454
        %v4628 = vpack.c.bf16 %v4596, %v4595
        %v4629 = vpack.c.bf16 %v4598, %v4597
        %v4630 = vpack.c.bf16 %v4600, %v4599
        %v4631 = vpack.c.bf16 %v4602, %v4601
        %v4632 = vpack.c.bf16 %v4604, %v4603
        %v4633 = vpack.c.bf16 %v4606, %v4605
        %v4634 = vpack.c.bf16 %v4608, %v4607
        %v4635 = vpack.c.bf16 %v4610, %v4609
        %v4636 = vpack.c.bf16 %v4612, %v4611
        %v4637 = vpack.c.bf16 %v4614, %v4613
        %v4638 = vpack.c.bf16 %v4616, %v4615
        %v4639 = vpack.c.bf16 %v4618, %v4617
        %v4640 = vpack.c.bf16 %v4620, %v4619
        %v4641 = vpack.c.bf16 %v4622, %v4621
        %v4642 = vpack.c.bf16 %v4624, %v4623
        %v4643 = vpack.c.bf16 %v4626, %v4625
        %v4644 = vpack.c.bf16 %v4627, %v4627
        %v4645 = vld [vmem:[%s8] sm:$0xf]
        %v4646 = vld [vmem:[%s8 + $0x4] sm:$0xf]
        %v4647 = vld [vmem:[%s8 + $0x8] sm:$0xf]
        %v4648 = vld [vmem:[%s8 + $0xc] sm:$0xf]
        %v4649 = vld [vmem:[%s9] sm:$0x1]
        %v4651 = vlaneseq
        %v4652 = vshrl.u32 %v4651, 7
        %v4653 = vsub.s32 0, %v4652
        %v4654 = vrot.slane %v4649, %v4653
        %v4660 = vunpack.c.l.b16 %v4645
        %v4661 = vunpack.c.l.b16 %v4646
        %v4662 = vunpack.c.l.b16 %v4647
        %v4663 = vunpack.c.l.b16 %v4648
        %v4664 = vpack.c.b16 %v4661, %v4660
        %v4665 = vpack.c.b16 %v4663, %v4662
        %v4669 = vsel %vm1691, %v4628, 0
        %v4672 = vsel %vm1691, %v4629, 0
        %v4675 = vsel %vm1691, %v4630, 0
        %v4678 = vsel %vm1691, %v4631, 0
        %v4681 = vsel %vm1691, %v4632, 0
        %v4684 = vsel %vm1691, %v4633, 0
        %v4687 = vsel %vm1691, %v4634, 0
        %v4690 = vsel %vm1691, %v4635, 0
        %v4693 = vsel %vm1691, %v4636, 0
        %v4696 = vsel %vm1691, %v4637, 0
        %v4699 = vsel %vm1691, %v4638, 0
        %v4702 = vsel %vm1691, %v4639, 0
        %v4705 = vsel %vm1691, %v4640, 0
        %v4708 = vsel %vm1691, %v4641, 0
        %v4711 = vsel %vm1691, %v4642, 0
        %v4714 = vsel %vm1691, %v4643, 0
        %v4717 = vsel %vm1691, %v4644, 0
        %4719 = vmatprep.subr.bf16.mxu0 0
        %4720 = vmatpush1.bf16.msra.mxu0 %v4664
        %4721 = vmatprep.subr.bf16.mxu0 0
        %4722 = vmatpush1.bf16.msra.mxu0 %v4665
        %4723 = vmatprep.subr.bf16.mxu0 0
        %4724 = vmatpush1.bf16.msra.mxu0 0
        %4725 = vmatprep.subr.bf16.mxu0 0
        %4726 = vmatpush1.bf16.msra.mxu0 0
        %4727 = vmatprep.subr.bf16.mxu0 0
        %4728 = vmatpush1.bf16.msra.mxu0 0
        %4729 = vmatprep.subr.bf16.mxu0 0
        %4730 = vmatpush1.bf16.msra.mxu0 0
        %4731 = vmatprep.subr.bf16.mxu0 0
        %4732 = vmatpush1.bf16.msra.mxu0 0
        %4733 = vmatprep.subr.bf16.mxu0 0
        %4734 = vmatpush1.bf16.msra.mxu0 0
        %4735 = vmatprep.subr.bf16.mxu0 0
        %4736 = vmatpush1.bf16.msra.mxu0 0
        %4737 = vmatprep.subr.bf16.mxu0 0
        %4738 = vmatpush1.bf16.msra.mxu0 0
        %4739 = vmatprep.subr.bf16.mxu0 0
        %4740 = vmatpush1.bf16.msra.mxu0 0
        %4741 = vmatprep.subr.bf16.mxu0 0
        %4742 = vmatpush1.bf16.msra.mxu0 0
        %4743 = vmatprep.subr.bf16.mxu0 0
        %4744 = vmatpush1.bf16.msra.mxu0 0
        %4745 = vmatprep.subr.bf16.mxu0 0
        %4746 = vmatpush1.bf16.msra.mxu0 0
        %4747 = vmatprep.subr.bf16.mxu0 0
        %4748 = vmatpush1.bf16.msra.mxu0 0
        %4749 = vmatprep.subr.bf16.mxu0 0
        %4750 = vmatpush1.bf16.msra.mxu0 0
        %4751 = vmatprep.mubr.bf16.mxu0 0
        %4752 = vmatmul.mubr.bf16.gmra.mrb[0].mxu0 %v4669
        %v4753 = vpop.f32.mrb[0].mxu0
        %v4754 = vadd.f32 %v4654, %v4753
        %v4755 = vpop.f32.mrb[0].mxu0
        %v4756 = vpop.f32.mrb[0].mxu0
        %v4757 = vadd.f32 %v4654, %v4756
        %v4758 = vpop.f32.mrb[0].mxu0
        %4759 = vmatprep.mubr.bf16.mxu0 0
        %4760 = vmatmul.mubr.bf16.gmra.mrb[0].mxu0 %v4672
        %v4761 = vpop.f32.mrb[0].mxu0
        %v4762 = vadd.f32 %v4654, %v4761
        %v4763 = vpop.f32.mrb[0].mxu0
        %v4764 = vpop.f32.mrb[0].mxu0
        %v4765 = vadd.f32 %v4654, %v4764
        %v4766 = vpop.f32.mrb[0].mxu0
        %4767 = vmatprep.mubr.bf16.mxu0 0
        %4768 = vmatmul.mubr.bf16.gmra.mrb[0].mxu0 %v4675
        %v4769 = vpop.f32.mrb[0].mxu0
        %v4770 = vadd.f32 %v4654, %v4769
        %v4771 = vpop.f32.mrb[0].mxu0
        %v4772 = vpop.f32.mrb[0].mxu0
        %v4773 = vadd.f32 %v4654, %v4772
        %v4774 = vpop.f32.mrb[0].mxu0
        %4775 = vmatprep.mubr.bf16.mxu0 0
        %4776 = vmatmul.mubr.bf16.gmra.mrb[0].mxu0 %v4678
        %v4777 = vpop.f32.mrb[0].mxu0
        %v4778 = vadd.f32 %v4654, %v4777
        %v4779 = vpop.f32.mrb[0].mxu0
        %v4780 = vpop.f32.mrb[0].mxu0
        %v4781 = vadd.f32 %v4654, %v4780
        %v4782 = vpop.f32.mrb[0].mxu0
        %4783 = vmatprep.mubr.bf16.mxu0 0
        %4784 = vmatmul.mubr.bf16.gmra.mrb[0].mxu0 %v4681
        %v4785 = vpop.f32.mrb[0].mxu0
        %v4786 = vadd.f32 %v4654, %v4785
        %v4787 = vpop.f32.mrb[0].mxu0
        %v4788 = vpop.f32.mrb[0].mxu0
        %v4789 = vadd.f32 %v4654, %v4788
        %v4790 = vpop.f32.mrb[0].mxu0
        %4791 = vmatprep.mubr.bf16.mxu0 0
        %4792 = vmatmul.mubr.bf16.gmra.mrb[0].mxu0 %v4684
        %v4793 = vpop.f32.mrb[0].mxu0
        %v4794 = vadd.f32 %v4654, %v4793
        %v4795 = vpop.f32.mrb[0].mxu0
        %v4796 = vpop.f32.mrb[0].mxu0
        %v4797 = vadd.f32 %v4654, %v4796
        %v4798 = vpop.f32.mrb[0].mxu0
        %4799 = vmatprep.mubr.bf16.mxu0 0
        %4800 = vmatmul.mubr.bf16.gmra.mrb[0].mxu0 %v4687
        %v4801 = vpop.f32.mrb[0].mxu0
        %v4802 = vadd.f32 %v4654, %v4801
        %v4803 = vpop.f32.mrb[0].mxu0
        %v4804 = vpop.f32.mrb[0].mxu0
        %v4805 = vadd.f32 %v4654, %v4804
        %v4806 = vpop.f32.mrb[0].mxu0
        %4807 = vmatprep.mubr.bf16.mxu0 0
        %4808 = vmatmul.mubr.bf16.gmra.mrb[0].mxu0 %v4690
        %v4809 = vpop.f32.mrb[0].mxu0
        %v4810 = vadd.f32 %v4654, %v4809
        %v4811 = vpop.f32.mrb[0].mxu0
        %v4812 = vpop.f32.mrb[0].mxu0
        %v4813 = vadd.f32 %v4654, %v4812
        %v4814 = vpop.f32.mrb[0].mxu0
        %4815 = vmatprep.mubr.bf16.mxu0 0
        %4816 = vmatmul.mubr.bf16.gmra.mrb[0].mxu0 %v4693
        %v4817 = vpop.f32.mrb[0].mxu0
        %v4818 = vadd.f32 %v4654, %v4817
        %v4819 = vpop.f32.mrb[0].mxu0
        %v4820 = vpop.f32.mrb[0].mxu0
        %v4821 = vadd.f32 %v4654, %v4820
        %v4822 = vpop.f32.mrb[0].mxu0
        %4823 = vmatprep.mubr.bf16.mxu0 0
        %4824 = vmatmul.mubr.bf16.gmra.mrb[0].mxu0 %v4696
        %v4825 = vpop.f32.mrb[0].mxu0
        %v4826 = vadd.f32 %v4654, %v4825
        %v4827 = vpop.f32.mrb[0].mxu0
        %v4828 = vpop.f32.mrb[0].mxu0
        %v4829 = vadd.f32 %v4654, %v4828
        %v4830 = vpop.f32.mrb[0].mxu0
        %4831 = vmatprep.mubr.bf16.mxu0 0
        %4832 = vmatmul.mubr.bf16.gmra.mrb[0].mxu0 %v4699
        %v4833 = vpop.f32.mrb[0].mxu0
        %v4834 = vadd.f32 %v4654, %v4833
        %v4835 = vpop.f32.mrb[0].mxu0
        %v4836 = vpop.f32.mrb[0].mxu0
        %v4837 = vadd.f32 %v4654, %v4836
        %v4838 = vpop.f32.mrb[0].mxu0
        %4839 = vmatprep.mubr.bf16.mxu0 0
        %4840 = vmatmul.mubr.bf16.gmra.mrb[0].mxu0 %v4702
        %v4841 = vpop.f32.mrb[0].mxu0
        %v4842 = vadd.f32 %v4654, %v4841
        %v4843 = vpop.f32.mrb[0].mxu0
        %v4844 = vpop.f32.mrb[0].mxu0
        %v4845 = vadd.f32 %v4654, %v4844
        %v4846 = vpop.f32.mrb[0].mxu0
        %4847 = vmatprep.mubr.bf16.mxu0 0
        %4848 = vmatmul.mubr.bf16.gmra.mrb[0].mxu0 %v4705
        %v4849 = vpop.f32.mrb[0].mxu0
        %v4850 = vadd.f32 %v4654, %v4849
        %v4851 = vpop.f32.mrb[0].mxu0
        %v4852 = vpop.f32.mrb[0].mxu0
        %v4853 = vadd.f32 %v4654, %v4852
        %v4854 = vpop.f32.mrb[0].mxu0
        %4855 = vmatprep.mubr.bf16.mxu0 0
        %4856 = vmatmul.mubr.bf16.gmra.mrb[0].mxu0 %v4708
        %v4857 = vpop.f32.mrb[0].mxu0
        %v4858 = vadd.f32 %v4654, %v4857
        %v4859 = vpop.f32.mrb[0].mxu0
        %v4860 = vpop.f32.mrb[0].mxu0
        %v4861 = vadd.f32 %v4654, %v4860
        %v4862 = vpop.f32.mrb[0].mxu0
        %4863 = vmatprep.mubr.bf16.mxu0 0
        %4864 = vmatmul.mubr.bf16.gmra.mrb[0].mxu0 %v4711
        %v4865 = vpop.f32.mrb[0].mxu0
        %v4866 = vadd.f32 %v4654, %v4865
        %v4867 = vpop.f32.mrb[0].mxu0
        %v4868 = vpop.f32.mrb[0].mxu0
        %v4869 = vadd.f32 %v4654, %v4868
        %v4870 = vpop.f32.mrb[0].mxu0
        %4871 = vmatprep.mubr.bf16.mxu0 0
        %4872 = vmatmul.mubr.bf16.gmra.mrb[0].mxu0 %v4714
        %v4873 = vpop.f32.mrb[0].mxu0
        %v4874 = vadd.f32 %v4654, %v4873
        %v4875 = vpop.f32.mrb[0].mxu0
        %v4876 = vpop.f32.mrb[0].mxu0
        %v4877 = vadd.f32 %v4654, %v4876
        %v4878 = vpop.f32.mrb[0].mxu0
        %4879 = vmatprep.mubr.bf16.mxu0 0
        %4880 = vmatmul.mubr.bf16.gmra.mrb[0].mxu0 %v4717
        %v4881 = vpop.f32.mrb[0].mxu0
        %v4882 = vadd.f32 %v4654, %v4881
        %v4883 = vpop.f32.mrb[0].mxu0
        %v4884 = vpop.f32.mrb[0].mxu0
        %v4885 = vpop.f32.mrb[0].mxu0
        %4886 = vdwg.mxu0
        %v4887 = vadd.f32 %v1520, %v4754
        %v4888 = vadd.f32 %v1523, %v4757
        %v4889 = vadd.f32 %v1528, %v4762
        %v4890 = vadd.f32 %v1531, %v4765
        %v4891 = vadd.f32 %v1536, %v4770
        %v4892 = vadd.f32 %v1539, %v4773
        %v4893 = vadd.f32 %v1544, %v4778
        %v4894 = vadd.f32 %v1547, %v4781
        %v4895 = vadd.f32 %v1552, %v4786
        %v4896 = vadd.f32 %v1555, %v4789
        %v4897 = vadd.f32 %v1560, %v4794
        %v4898 = vadd.f32 %v1563, %v4797
        %v4899 = vadd.f32 %v1568, %v4802
        %v4900 = vadd.f32 %v1571, %v4805
        %v4901 = vadd.f32 %v1576, %v4810
        %v4902 = vadd.f32 %v1579, %v4813
        %v4903 = vadd.f32 %v1584, %v4818
        %v4904 = vadd.f32 %v1587, %v4821
        %v4905 = vadd.f32 %v1592, %v4826
        %v4906 = vadd.f32 %v1595, %v4829
        %v4907 = vadd.f32 %v1600, %v4834
        %v4908 = vadd.f32 %v1603, %v4837
        %v4909 = vadd.f32 %v1608, %v4842
        %v4910 = vadd.f32 %v1611, %v4845
        %v4911 = vadd.f32 %v1616, %v4850
        %v4912 = vadd.f32 %v1619, %v4853
        %v4913 = vadd.f32 %v1624, %v4858
        %v4914 = vadd.f32 %v1627, %v4861
        %v4915 = vadd.f32 %v1632, %v4866
        %v4916 = vadd.f32 %v1635, %v4869
        %v4917 = vadd.f32 %v1640, %v4874
        %v4918 = vadd.f32 %v1643, %v4877
        %v4919 = vadd.f32 %v1648, %v4882
        %v4920 = vld [vmem:[%s10] sm:$0x1]
        %v4921 = vld [vmem:[%s11] sm:$0x1]
        %v4922 = vsel %vm1691, %v4887, 0.0
        %4923 = vadd.xlane.f32.xlu0 %v4922
        %v4924 = vpop.xlane.xlu0 %4923
        %v4925 = vsel %vm1691, %v4888, 0.0
        %4926 = vadd.xlane.f32.xlu0 %v4925
        %v4927 = vpop.xlane.xlu0 %4926
        %v4928 = vsel %vm1691, %v4889, 0.0
        %4929 = vadd.xlane.f32.xlu0 %v4928
        %v4930 = vpop.xlane.xlu0 %4929
        %v4931 = vsel %vm1691, %v4890, 0.0
        %4932 = vadd.xlane.f32.xlu0 %v4931
        %v4933 = vpop.xlane.xlu0 %4932
        %v4934 = vsel %vm1691, %v4891, 0.0
        %4935 = vadd.xlane.f32.xlu0 %v4934
        %v4936 = vpop.xlane.xlu0 %4935
        %v4937 = vsel %vm1691, %v4892, 0.0
        %4938 = vadd.xlane.f32.xlu0 %v4937
        %v4939 = vpop.xlane.xlu0 %4938
        %v4940 = vsel %vm1691, %v4893, 0.0
        %4941 = vadd.xlane.f32.xlu0 %v4940
        %v4942 = vpop.xlane.xlu0 %4941
        %v4943 = vsel %vm1691, %v4894, 0.0
        %4944 = vadd.xlane.f32.xlu0 %v4943
        %v4945 = vpop.xlane.xlu0 %4944
        %v4946 = vsel %vm1691, %v4895, 0.0
        %4947 = vadd.xlane.f32.xlu0 %v4946
        %v4948 = vpop.xlane.xlu0 %4947
        %v4949 = vsel %vm1691, %v4896, 0.0
        %4950 = vadd.xlane.f32.xlu0 %v4949
        %v4951 = vpop.xlane.xlu0 %4950
        %v4952 = vsel %vm1691, %v4897, 0.0
        %4953 = vadd.xlane.f32.xlu0 %v4952
        %v4954 = vpop.xlane.xlu0 %4953
        %v4955 = vsel %vm1691, %v4898, 0.0
        %4956 = vadd.xlane.f32.xlu0 %v4955
        %v4957 = vpop.xlane.xlu0 %4956
        %v4958 = vsel %vm1691, %v4899, 0.0
        %4959 = vadd.xlane.f32.xlu0 %v4958
        %v4960 = vpop.xlane.xlu0 %4959
        %v4961 = vsel %vm1691, %v4900, 0.0
        %4962 = vadd.xlane.f32.xlu0 %v4961
        %v4963 = vpop.xlane.xlu0 %4962
        %v4964 = vsel %vm1691, %v4901, 0.0
        %4965 = vadd.xlane.f32.xlu0 %v4964
        %v4966 = vpop.xlane.xlu0 %4965
        %v4967 = vsel %vm1691, %v4902, 0.0
        %4968 = vadd.xlane.f32.xlu0 %v4967
        %v4969 = vpop.xlane.xlu0 %4968
        %v4970 = vsel %vm1691, %v4903, 0.0
        %4971 = vadd.xlane.f32.xlu0 %v4970
        %v4972 = vpop.xlane.xlu0 %4971
        %v4973 = vsel %vm1691, %v4904, 0.0
        %4974 = vadd.xlane.f32.xlu0 %v4973
        %v4975 = vpop.xlane.xlu0 %4974
        %v4976 = vsel %vm1691, %v4905, 0.0
        %4977 = vadd.xlane.f32.xlu0 %v4976
        %v4978 = vpop.xlane.xlu0 %4977
        %v4979 = vsel %vm1691, %v4906, 0.0
        %4980 = vadd.xlane.f32.xlu0 %v4979
        %v4981 = vpop.xlane.xlu0 %4980
        %v4982 = vsel %vm1691, %v4907, 0.0
        %4983 = vadd.xlane.f32.xlu0 %v4982
        %v4984 = vpop.xlane.xlu0 %4983
        %v4985 = vsel %vm1691, %v4908, 0.0
        %4986 = vadd.xlane.f32.xlu0 %v4985
        %v4987 = vpop.xlane.xlu0 %4986
        %v4988 = vsel %vm1691, %v4909, 0.0
        %4989 = vadd.xlane.f32.xlu0 %v4988
        %v4990 = vpop.xlane.xlu0 %4989
        %v4991 = vsel %vm1691, %v4910, 0.0
        %4992 = vadd.xlane.f32.xlu0 %v4991
        %v4993 = vpop.xlane.xlu0 %4992
        %v4994 = vsel %vm1691, %v4911, 0.0
        %4995 = vadd.xlane.f32.xlu0 %v4994
        %v4996 = vpop.xlane.xlu0 %4995
        %v4997 = vsel %vm1691, %v4912, 0.0
        %4998 = vadd.xlane.f32.xlu0 %v4997
        %v4999 = vpop.xlane.xlu0 %4998
        %v5000 = vsel %vm1691, %v4913, 0.0
        %5001 = vadd.xlane.f32.xlu0 %v5000
        %v5002 = vpop.xlane.xlu0 %5001
        %v5003 = vsel %vm1691, %v4914, 0.0
        %5004 = vadd.xlane.f32.xlu0 %v5003
        %v5005 = vpop.xlane.xlu0 %5004
        %v5006 = vsel %vm1691, %v4915, 0.0
        %5007 = vadd.xlane.f32.xlu0 %v5006
        %v5008 = vpop.xlane.xlu0 %5007
        %v5009 = vsel %vm1691, %v4916, 0.0
        %5010 = vadd.xlane.f32.xlu0 %v5009
        %v5011 = vpop.xlane.xlu0 %5010
        %v5012 = vsel %vm1691, %v4917, 0.0
        %5013 = vadd.xlane.f32.xlu0 %v5012
        %v5014 = vpop.xlane.xlu0 %5013
        %v5015 = vsel %vm1691, %v4918, 0.0
        %5016 = vadd.xlane.f32.xlu0 %v5015
        %v5017 = vpop.xlane.xlu0 %5016
        %v5018 = vsel %vm1691, %v4919, 0.0
        %5019 = vadd.xlane.f32.xlu0 %v5018
        %v5020 = vpop.xlane.xlu0 %5019
        %v5021 = vmul.f32 %v4924, %v1791
        %v5022 = vmul.f32 %v4927, %v1791
        %v5023 = vmul.f32 %v4930, %v1791
        %v5024 = vmul.f32 %v4933, %v1791
        %v5025 = vmul.f32 %v4936, %v1791
        %v5026 = vmul.f32 %v4939, %v1791
        %v5027 = vmul.f32 %v4942, %v1791
        %v5028 = vmul.f32 %v4945, %v1791
        %v5029 = vmul.f32 %v4948, %v1791
        %v5030 = vmul.f32 %v4951, %v1791
        %v5031 = vmul.f32 %v4954, %v1791
        %v5032 = vmul.f32 %v4957, %v1791
        %v5033 = vmul.f32 %v4960, %v1791
        %v5034 = vmul.f32 %v4963, %v1791
        %v5035 = vmul.f32 %v4966, %v1791
        %v5036 = vmul.f32 %v4969, %v1791
        %v5037 = vmul.f32 %v4972, %v1791
        %v5038 = vmul.f32 %v4975, %v1791
        %v5039 = vmul.f32 %v4978, %v1791
        %v5040 = vmul.f32 %v4981, %v1791
        %v5041 = vmul.f32 %v4984, %v1791
        %v5042 = vmul.f32 %v4987, %v1791
        %v5043 = vmul.f32 %v4990, %v1791
        %v5044 = vmul.f32 %v4993, %v1791
        %v5045 = vmul.f32 %v4996, %v1791
        %v5046 = vmul.f32 %v4999, %v1791
        %v5047 = vmul.f32 %v5002, %v1791
        %v5048 = vmul.f32 %v5005, %v1791
        %v5049 = vmul.f32 %v5008, %v1791
        %v5050 = vmul.f32 %v5011, %v1791
        %v5051 = vmul.f32 %v5014, %v1791
        %v5052 = vmul.f32 %v5017, %v1791
        %v5053 = vmul.f32 %v5020, %v1791
        %v5054 = vsub.f32 %v4887, %v5021
        %v5055 = vsub.f32 %v4888, %v5022
        %v5056 = vsub.f32 %v4889, %v5023
        %v5057 = vsub.f32 %v4890, %v5024
        %v5058 = vsub.f32 %v4891, %v5025
        %v5059 = vsub.f32 %v4892, %v5026
        %v5060 = vsub.f32 %v4893, %v5027
        %v5061 = vsub.f32 %v4894, %v5028
        %v5062 = vsub.f32 %v4895, %v5029
        %v5063 = vsub.f32 %v4896, %v5030
        %v5064 = vsub.f32 %v4897, %v5031
        %v5065 = vsub.f32 %v4898, %v5032
        %v5066 = vsub.f32 %v4899, %v5033
        %v5067 = vsub.f32 %v4900, %v5034
        %v5068 = vsub.f32 %v4901, %v5035
        %v5069 = vsub.f32 %v4902, %v5036
        %v5070 = vsub.f32 %v4903, %v5037
        %v5071 = vsub.f32 %v4904, %v5038
        %v5072 = vsub.f32 %v4905, %v5039
        %v5073 = vsub.f32 %v4906, %v5040
        %v5074 = vsub.f32 %v4907, %v5041
        %v5075 = vsub.f32 %v4908, %v5042
        %v5076 = vsub.f32 %v4909, %v5043
        %v5077 = vsub.f32 %v4910, %v5044
        %v5078 = vsub.f32 %v4911, %v5045
        %v5079 = vsub.f32 %v4912, %v5046
        %v5080 = vsub.f32 %v4913, %v5047
        %v5081 = vsub.f32 %v4914, %v5048
        %v5082 = vsub.f32 %v4915, %v5049
        %v5083 = vsub.f32 %v4916, %v5050
        %v5084 = vsub.f32 %v4917, %v5051
        %v5085 = vsub.f32 %v4918, %v5052
        %v5086 = vsub.f32 %v4919, %v5053
        %v5087 = vmul.f32 %v5054, %v5054
        %v5088 = vmul.f32 %v5055, %v5055
        %v5089 = vmul.f32 %v5056, %v5056
        %v5090 = vmul.f32 %v5057, %v5057
        %v5091 = vmul.f32 %v5058, %v5058
        %v5092 = vmul.f32 %v5059, %v5059
        %v5093 = vmul.f32 %v5060, %v5060
        %v5094 = vmul.f32 %v5061, %v5061
        %v5095 = vmul.f32 %v5062, %v5062
        %v5096 = vmul.f32 %v5063, %v5063
        %v5097 = vmul.f32 %v5064, %v5064
        %v5098 = vmul.f32 %v5065, %v5065
        %v5099 = vmul.f32 %v5066, %v5066
        %v5100 = vmul.f32 %v5067, %v5067
        %v5101 = vmul.f32 %v5068, %v5068
        %v5102 = vmul.f32 %v5069, %v5069
        %v5103 = vmul.f32 %v5070, %v5070
        %v5104 = vmul.f32 %v5071, %v5071
        %v5105 = vmul.f32 %v5072, %v5072
        %v5106 = vmul.f32 %v5073, %v5073
        %v5107 = vmul.f32 %v5074, %v5074
        %v5108 = vmul.f32 %v5075, %v5075
        %v5109 = vmul.f32 %v5076, %v5076
        %v5110 = vmul.f32 %v5077, %v5077
        %v5111 = vmul.f32 %v5078, %v5078
        %v5112 = vmul.f32 %v5079, %v5079
        %v5113 = vmul.f32 %v5080, %v5080
        %v5114 = vmul.f32 %v5081, %v5081
        %v5115 = vmul.f32 %v5082, %v5082
        %v5116 = vmul.f32 %v5083, %v5083
        %v5117 = vmul.f32 %v5084, %v5084
        %v5118 = vmul.f32 %v5085, %v5085
        %v5119 = vmul.f32 %v5086, %v5086
        %v5120 = vsel %vm1691, %v5087, 0.0
        %5121 = vadd.xlane.f32.xlu0 %v5120
        %v5122 = vpop.xlane.xlu0 %5121
        %v5123 = vsel %vm1691, %v5088, 0.0
        %5124 = vadd.xlane.f32.xlu0 %v5123
        %v5125 = vpop.xlane.xlu0 %5124
        %v5126 = vsel %vm1691, %v5089, 0.0
        %5127 = vadd.xlane.f32.xlu0 %v5126
        %v5128 = vpop.xlane.xlu0 %5127
        %v5129 = vsel %vm1691, %v5090, 0.0
        %5130 = vadd.xlane.f32.xlu0 %v5129
        %v5131 = vpop.xlane.xlu0 %5130
        %v5132 = vsel %vm1691, %v5091, 0.0
        %5133 = vadd.xlane.f32.xlu0 %v5132
        %v5134 = vpop.xlane.xlu0 %5133
        %v5135 = vsel %vm1691, %v5092, 0.0
        %5136 = vadd.xlane.f32.xlu0 %v5135
        %v5137 = vpop.xlane.xlu0 %5136
        %v5138 = vsel %vm1691, %v5093, 0.0
        %5139 = vadd.xlane.f32.xlu0 %v5138
        %v5140 = vpop.xlane.xlu0 %5139
        %v5141 = vsel %vm1691, %v5094, 0.0
        %5142 = vadd.xlane.f32.xlu0 %v5141
        %v5143 = vpop.xlane.xlu0 %5142
        %v5144 = vsel %vm1691, %v5095, 0.0
        %5145 = vadd.xlane.f32.xlu0 %v5144
        %v5146 = vpop.xlane.xlu0 %5145
        %v5147 = vsel %vm1691, %v5096, 0.0
        %5148 = vadd.xlane.f32.xlu0 %v5147
        %v5149 = vpop.xlane.xlu0 %5148
        %v5150 = vsel %vm1691, %v5097, 0.0
        %5151 = vadd.xlane.f32.xlu0 %v5150
        %v5152 = vpop.xlane.xlu0 %5151
        %v5153 = vsel %vm1691, %v5098, 0.0
        %5154 = vadd.xlane.f32.xlu0 %v5153
        %v5155 = vpop.xlane.xlu0 %5154
        %v5156 = vsel %vm1691, %v5099, 0.0
        %5157 = vadd.xlane.f32.xlu0 %v5156
        %v5158 = vpop.xlane.xlu0 %5157
        %v5159 = vsel %vm1691, %v5100, 0.0
        %5160 = vadd.xlane.f32.xlu0 %v5159
        %v5161 = vpop.xlane.xlu0 %5160
        %v5162 = vsel %vm1691, %v5101, 0.0
        %5163 = vadd.xlane.f32.xlu0 %v5162
        %v5164 = vpop.xlane.xlu0 %5163
        %v5165 = vsel %vm1691, %v5102, 0.0
        %5166 = vadd.xlane.f32.xlu0 %v5165
        %v5167 = vpop.xlane.xlu0 %5166
        %v5168 = vsel %vm1691, %v5103, 0.0
        %5169 = vadd.xlane.f32.xlu0 %v5168
        %v5170 = vpop.xlane.xlu0 %5169
        %v5171 = vsel %vm1691, %v5104, 0.0
        %5172 = vadd.xlane.f32.xlu0 %v5171
        %v5173 = vpop.xlane.xlu0 %5172
        %v5174 = vsel %vm1691, %v5105, 0.0
        %5175 = vadd.xlane.f32.xlu0 %v5174
        %v5176 = vpop.xlane.xlu0 %5175
        %v5177 = vsel %vm1691, %v5106, 0.0
        %5178 = vadd.xlane.f32.xlu0 %v5177
        %v5179 = vpop.xlane.xlu0 %5178
        %v5180 = vsel %vm1691, %v5107, 0.0
        %5181 = vadd.xlane.f32.xlu0 %v5180
        %v5182 = vpop.xlane.xlu0 %5181
        %v5183 = vsel %vm1691, %v5108, 0.0
        %5184 = vadd.xlane.f32.xlu0 %v5183
        %v5185 = vpop.xlane.xlu0 %5184
        %v5186 = vsel %vm1691, %v5109, 0.0
        %5187 = vadd.xlane.f32.xlu0 %v5186
        %v5188 = vpop.xlane.xlu0 %5187
        %v5189 = vsel %vm1691, %v5110, 0.0
        %5190 = vadd.xlane.f32.xlu0 %v5189
        %v5191 = vpop.xlane.xlu0 %5190
        %v5192 = vsel %vm1691, %v5111, 0.0
        %5193 = vadd.xlane.f32.xlu0 %v5192
        %v5194 = vpop.xlane.xlu0 %5193
        %v5195 = vsel %vm1691, %v5112, 0.0
        %5196 = vadd.xlane.f32.xlu0 %v5195
        %v5197 = vpop.xlane.xlu0 %5196
        %v5198 = vsel %vm1691, %v5113, 0.0
        %5199 = vadd.xlane.f32.xlu0 %v5198
        %v5200 = vpop.xlane.xlu0 %5199
        %v5201 = vsel %vm1691, %v5114, 0.0
        %5202 = vadd.xlane.f32.xlu0 %v5201
        %v5203 = vpop.xlane.xlu0 %5202
        %v5204 = vsel %vm1691, %v5115, 0.0
        %5205 = vadd.xlane.f32.xlu0 %v5204
        %v5206 = vpop.xlane.xlu0 %5205
        %v5207 = vsel %vm1691, %v5116, 0.0
        %5208 = vadd.xlane.f32.xlu0 %v5207
        %v5209 = vpop.xlane.xlu0 %5208
        %v5210 = vsel %vm1691, %v5117, 0.0
        %5211 = vadd.xlane.f32.xlu0 %v5210
        %v5212 = vpop.xlane.xlu0 %5211
        %v5213 = vsel %vm1691, %v5118, 0.0
        %5214 = vadd.xlane.f32.xlu0 %v5213
        %v5215 = vpop.xlane.xlu0 %5214
        %v5216 = vsel %vm1691, %v5119, 0.0
        %5217 = vadd.xlane.f32.xlu0 %v5216
        %v5218 = vpop.xlane.xlu0 %5217
        %v5219 = vmul.f32 %v5122, %v1791
        %v5220 = vmul.f32 %v5125, %v1791
        %v5221 = vmul.f32 %v5128, %v1791
        %v5222 = vmul.f32 %v5131, %v1791
        %v5223 = vmul.f32 %v5134, %v1791
        %v5224 = vmul.f32 %v5137, %v1791
        %v5225 = vmul.f32 %v5140, %v1791
        %v5226 = vmul.f32 %v5143, %v1791
        %v5227 = vmul.f32 %v5146, %v1791
        %v5228 = vmul.f32 %v5149, %v1791
        %v5229 = vmul.f32 %v5152, %v1791
        %v5230 = vmul.f32 %v5155, %v1791
        %v5231 = vmul.f32 %v5158, %v1791
        %v5232 = vmul.f32 %v5161, %v1791
        %v5233 = vmul.f32 %v5164, %v1791
        %v5234 = vmul.f32 %v5167, %v1791
        %v5235 = vmul.f32 %v5170, %v1791
        %v5236 = vmul.f32 %v5173, %v1791
        %v5237 = vmul.f32 %v5176, %v1791
        %v5238 = vmul.f32 %v5179, %v1791
        %v5239 = vmul.f32 %v5182, %v1791
        %v5240 = vmul.f32 %v5185, %v1791
        %v5241 = vmul.f32 %v5188, %v1791
        %v5242 = vmul.f32 %v5191, %v1791
        %v5243 = vmul.f32 %v5194, %v1791
        %v5244 = vmul.f32 %v5197, %v1791
        %v5245 = vmul.f32 %v5200, %v1791
        %v5246 = vmul.f32 %v5203, %v1791
        %v5247 = vmul.f32 %v5206, %v1791
        %v5248 = vmul.f32 %v5209, %v1791
        %v5249 = vmul.f32 %v5212, %v1791
        %v5250 = vmul.f32 %v5215, %v1791
        %v5251 = vmul.f32 %v5218, %v1791
        %v5252 = vadd.f32 %v5219, 1e-06
        %v5253 = vadd.f32 %v5220, 1e-06
        %v5254 = vadd.f32 %v5221, 1e-06
        %v5255 = vadd.f32 %v5222, 1e-06
        %v5256 = vadd.f32 %v5223, 1e-06
        %v5257 = vadd.f32 %v5224, 1e-06
        %v5258 = vadd.f32 %v5225, 1e-06
        %v5259 = vadd.f32 %v5226, 1e-06
        %v5260 = vadd.f32 %v5227, 1e-06
        %v5261 = vadd.f32 %v5228, 1e-06
        %v5262 = vadd.f32 %v5229, 1e-06
        %v5263 = vadd.f32 %v5230, 1e-06
        %v5264 = vadd.f32 %v5231, 1e-06
        %v5265 = vadd.f32 %v5232, 1e-06
        %v5266 = vadd.f32 %v5233, 1e-06
        %v5267 = vadd.f32 %v5234, 1e-06
        %v5268 = vadd.f32 %v5235, 1e-06
        %v5269 = vadd.f32 %v5236, 1e-06
        %v5270 = vadd.f32 %v5237, 1e-06
        %v5271 = vadd.f32 %v5238, 1e-06
        %v5272 = vadd.f32 %v5239, 1e-06
        %v5273 = vadd.f32 %v5240, 1e-06
        %v5274 = vadd.f32 %v5241, 1e-06
        %v5275 = vadd.f32 %v5242, 1e-06
        %v5276 = vadd.f32 %v5243, 1e-06
        %v5277 = vadd.f32 %v5244, 1e-06
        %v5278 = vadd.f32 %v5245, 1e-06
        %v5279 = vadd.f32 %v5246, 1e-06
        %v5280 = vadd.f32 %v5247, 1e-06
        %v5281 = vadd.f32 %v5248, 1e-06
        %v5282 = vadd.f32 %v5249, 1e-06
        %v5283 = vadd.f32 %v5250, 1e-06
        %v5284 = vadd.f32 %v5251, 1e-06
        %v5285 = vrsqrt.pop %v5252
        %v5286 = vrsqrt.pop %v5253
        %v5287 = vrsqrt.pop %v5254
        %v5288 = vrsqrt.pop %v5255
        %v5289 = vrsqrt.pop %v5256
        %v5290 = vrsqrt.pop %v5257
        %v5291 = vrsqrt.pop %v5258
        %v5292 = vrsqrt.pop %v5259
        %v5293 = vrsqrt.pop %v5260
        %v5294 = vrsqrt.pop %v5261
        %v5295 = vrsqrt.pop %v5262
        %v5296 = vrsqrt.pop %v5263
        %v5297 = vrsqrt.pop %v5264
        %v5298 = vrsqrt.pop %v5265
        %v5299 = vrsqrt.pop %v5266
        %v5300 = vrsqrt.pop %v5267
        %v5301 = vrsqrt.pop %v5268
        %v5302 = vrsqrt.pop %v5269
        %v5303 = vrsqrt.pop %v5270
        %v5304 = vrsqrt.pop %v5271
        %v5305 = vrsqrt.pop %v5272
        %v5306 = vrsqrt.pop %v5273
        %v5307 = vrsqrt.pop %v5274
        %v5308 = vrsqrt.pop %v5275
        %v5309 = vrsqrt.pop %v5276
        %v5310 = vrsqrt.pop %v5277
        %v5311 = vrsqrt.pop %v5278
        %v5312 = vrsqrt.pop %v5279
        %v5313 = vrsqrt.pop %v5280
        %v5314 = vrsqrt.pop %v5281
        %v5315 = vrsqrt.pop %v5282
        %v5316 = vrsqrt.pop %v5283
        %v5317 = vrsqrt.pop %v5284
        %v5318 = vmul.f32 %v5054, %v5285
        %v5319 = vmul.f32 %v5055, %v5286
        %v5320 = vmul.f32 %v5056, %v5287
        %v5321 = vmul.f32 %v5057, %v5288
        %v5322 = vmul.f32 %v5058, %v5289
        %v5323 = vmul.f32 %v5059, %v5290
        %v5324 = vmul.f32 %v5060, %v5291
        %v5325 = vmul.f32 %v5061, %v5292
        %v5326 = vmul.f32 %v5062, %v5293
        %v5327 = vmul.f32 %v5063, %v5294
        %v5328 = vmul.f32 %v5064, %v5295
        %v5329 = vmul.f32 %v5065, %v5296
        %v5330 = vmul.f32 %v5066, %v5297
        %v5331 = vmul.f32 %v5067, %v5298
        %v5332 = vmul.f32 %v5068, %v5299
        %v5333 = vmul.f32 %v5069, %v5300
        %v5334 = vmul.f32 %v5070, %v5301
        %v5335 = vmul.f32 %v5071, %v5302
        %v5336 = vmul.f32 %v5072, %v5303
        %v5337 = vmul.f32 %v5073, %v5304
        %v5338 = vmul.f32 %v5074, %v5305
        %v5339 = vmul.f32 %v5075, %v5306
        %v5340 = vmul.f32 %v5076, %v5307
        %v5341 = vmul.f32 %v5077, %v5308
        %v5342 = vmul.f32 %v5078, %v5309
        %v5343 = vmul.f32 %v5079, %v5310
        %v5344 = vmul.f32 %v5080, %v5311
        %v5345 = vmul.f32 %v5081, %v5312
        %v5346 = vmul.f32 %v5082, %v5313
        %v5347 = vmul.f32 %v5083, %v5314
        %v5348 = vmul.f32 %v5084, %v5315
        %v5349 = vmul.f32 %v5085, %v5316
        %v5350 = vmul.f32 %v5086, %v5317
        %v5352 = vlaneseq
        %v5353 = vshrl.u32 %v5352, 7
        %v5354 = vsub.s32 0, %v5353
        %v5355 = vrot.slane %v4920, %v5354
        %v5357 = vmul.f32 %v5318, %v5355
        %v5358 = vmul.f32 %v5319, %v5355
        %v5359 = vmul.f32 %v5320, %v5355
        %v5360 = vmul.f32 %v5321, %v5355
        %v5361 = vmul.f32 %v5322, %v5355
        %v5362 = vmul.f32 %v5323, %v5355
        %v5363 = vmul.f32 %v5324, %v5355
        %v5364 = vmul.f32 %v5325, %v5355
        %v5365 = vmul.f32 %v5326, %v5355
        %v5366 = vmul.f32 %v5327, %v5355
        %v5367 = vmul.f32 %v5328, %v5355
        %v5368 = vmul.f32 %v5329, %v5355
        %v5369 = vmul.f32 %v5330, %v5355
        %v5370 = vmul.f32 %v5331, %v5355
        %v5371 = vmul.f32 %v5332, %v5355
        %v5372 = vmul.f32 %v5333, %v5355
        %v5373 = vmul.f32 %v5334, %v5355
        %v5374 = vmul.f32 %v5335, %v5355
        %v5375 = vmul.f32 %v5336, %v5355
        %v5376 = vmul.f32 %v5337, %v5355
        %v5377 = vmul.f32 %v5338, %v5355
        %v5378 = vmul.f32 %v5339, %v5355
        %v5379 = vmul.f32 %v5340, %v5355
        %v5380 = vmul.f32 %v5341, %v5355
        %v5381 = vmul.f32 %v5342, %v5355
        %v5382 = vmul.f32 %v5343, %v5355
        %v5383 = vmul.f32 %v5344, %v5355
        %v5384 = vmul.f32 %v5345, %v5355
        %v5385 = vmul.f32 %v5346, %v5355
        %v5386 = vmul.f32 %v5347, %v5355
        %v5387 = vmul.f32 %v5348, %v5355
        %v5388 = vmul.f32 %v5349, %v5355
        %v5389 = vmul.f32 %v5350, %v5355
        %v5391 = vlaneseq
        %v5392 = vshrl.u32 %v5391, 7
        %v5393 = vsub.s32 0, %v5392
        %v5394 = vrot.slane %v4921, %v5393
        %v5396 = vadd.f32 %v5357, %v5394
        %v5397 = vadd.f32 %v5358, %v5394
        %v5398 = vadd.f32 %v5359, %v5394
        %v5399 = vadd.f32 %v5360, %v5394
        %v5400 = vadd.f32 %v5361, %v5394
        %v5401 = vadd.f32 %v5362, %v5394
        %v5402 = vadd.f32 %v5363, %v5394
        %v5403 = vadd.f32 %v5364, %v5394
        %v5404 = vadd.f32 %v5365, %v5394
        %v5405 = vadd.f32 %v5366, %v5394
        %v5406 = vadd.f32 %v5367, %v5394
        %v5407 = vadd.f32 %v5368, %v5394
        %v5408 = vadd.f32 %v5369, %v5394
        %v5409 = vadd.f32 %v5370, %v5394
        %v5410 = vadd.f32 %v5371, %v5394
        %v5411 = vadd.f32 %v5372, %v5394
        %v5412 = vadd.f32 %v5373, %v5394
        %v5413 = vadd.f32 %v5374, %v5394
        %v5414 = vadd.f32 %v5375, %v5394
        %v5415 = vadd.f32 %v5376, %v5394
        %v5416 = vadd.f32 %v5377, %v5394
        %v5417 = vadd.f32 %v5378, %v5394
        %v5418 = vadd.f32 %v5379, %v5394
        %v5419 = vadd.f32 %v5380, %v5394
        %v5420 = vadd.f32 %v5381, %v5394
        %v5421 = vadd.f32 %v5382, %v5394
        %v5422 = vadd.f32 %v5383, %v5394
        %v5423 = vadd.f32 %v5384, %v5394
        %v5424 = vadd.f32 %v5385, %v5394
        %v5425 = vadd.f32 %v5386, %v5394
        %v5426 = vadd.f32 %v5387, %v5394
        %v5427 = vadd.f32 %v5388, %v5394
        %v5428 = vadd.f32 %v5389, %v5394
        %v5429 = vpack.c.bf16 %v5397, %v5396
        %v5430 = vpack.c.bf16 %v5399, %v5398
        %v5431 = vpack.c.bf16 %v5401, %v5400
        %v5432 = vpack.c.bf16 %v5403, %v5402
        %v5433 = vpack.c.bf16 %v5405, %v5404
        %v5434 = vpack.c.bf16 %v5407, %v5406
        %v5435 = vpack.c.bf16 %v5409, %v5408
        %v5436 = vpack.c.bf16 %v5411, %v5410
        %v5437 = vpack.c.bf16 %v5413, %v5412
        %v5438 = vpack.c.bf16 %v5415, %v5414
        %v5439 = vpack.c.bf16 %v5417, %v5416
        %v5440 = vpack.c.bf16 %v5419, %v5418
        %v5441 = vpack.c.bf16 %v5421, %v5420
        %v5442 = vpack.c.bf16 %v5423, %v5422
        %v5443 = vpack.c.bf16 %v5425, %v5424
        %v5444 = vpack.c.bf16 %v5427, %v5426
        %v5445 = vpack.c.bf16 %v5428, %v5428
        %v5446 = vld [vmem:[%s12] sm:$0xf]
        %v5447 = vld [vmem:[%s12 + $0x4] sm:$0xf]
        %v5448 = vld [vmem:[%s12 + $0x8] sm:$0xf]
        %v5449 = vld [vmem:[%s12 + $0xc] sm:$0xf]
        %v5450 = vld [vmem:[%s13] sm:$0x1]
        %v5452 = vlaneseq
        %v5453 = vshrl.u32 %v5452, 7
        %v5454 = vsub.s32 0, %v5453
        %v5455 = vrot.slane %v5450, %v5454
        %v5461 = vunpack.c.l.b16 %v5446
        %v5462 = vunpack.c.l.b16 %v5447
        %v5463 = vunpack.c.l.b16 %v5448
        %v5464 = vunpack.c.l.b16 %v5449
        %v5465 = vpack.c.b16 %v5462, %v5461
        %v5466 = vpack.c.b16 %v5464, %v5463
        %v5470 = vsel %vm1691, %v5429, 0
        %v5473 = vsel %vm1691, %v5430, 0
        %v5476 = vsel %vm1691, %v5431, 0
        %v5479 = vsel %vm1691, %v5432, 0
        %v5482 = vsel %vm1691, %v5433, 0
        %v5485 = vsel %vm1691, %v5434, 0
        %v5488 = vsel %vm1691, %v5435, 0
        %v5491 = vsel %vm1691, %v5436, 0
        %v5494 = vsel %vm1691, %v5437, 0
        %v5497 = vsel %vm1691, %v5438, 0
        %v5500 = vsel %vm1691, %v5439, 0
        %v5503 = vsel %vm1691, %v5440, 0
        %v5506 = vsel %vm1691, %v5441, 0
        %v5509 = vsel %vm1691, %v5442, 0
        %v5512 = vsel %vm1691, %v5443, 0
        %v5515 = vsel %vm1691, %v5444, 0
        %v5518 = vsel %vm1691, %v5445, 0
        %5520 = vmatprep.subr.bf16.mxu0 0
        %5521 = vmatpush1.bf16.msra.mxu0 %v5465
        %5522 = vmatprep.subr.bf16.mxu0 0
        %5523 = vmatpush1.bf16.msra.mxu0 %v5466
        %5524 = vmatprep.subr.bf16.mxu0 0
        %5525 = vmatpush1.bf16.msra.mxu0 0
        %5526 = vmatprep.subr.bf16.mxu0 0
        %5527 = vmatpush1.bf16.msra.mxu0 0
        %5528 = vmatprep.subr.bf16.mxu0 0
        %5529 = vmatpush1.bf16.msra.mxu0 0
        %5530 = vmatprep.subr.bf16.mxu0 0
        %5531 = vmatpush1.bf16.msra.mxu0 0
        %5532 = vmatprep.subr.bf16.mxu0 0
        %5533 = vmatpush1.bf16.msra.mxu0 0
        %5534 = vmatprep.subr.bf16.mxu0 0
        %5535 = vmatpush1.bf16.msra.mxu0 0
        %5536 = vmatprep.subr.bf16.mxu0 0
        %5537 = vmatpush1.bf16.msra.mxu0 0
        %5538 = vmatprep.subr.bf16.mxu0 0
        %5539 = vmatpush1.bf16.msra.mxu0 0
        %5540 = vmatprep.subr.bf16.mxu0 0
        %5541 = vmatpush1.bf16.msra.mxu0 0
        %5542 = vmatprep.subr.bf16.mxu0 0
        %5543 = vmatpush1.bf16.msra.mxu0 0
        %5544 = vmatprep.subr.bf16.mxu0 0
        %5545 = vmatpush1.bf16.msra.mxu0 0
        %5546 = vmatprep.subr.bf16.mxu0 0
        %5547 = vmatpush1.bf16.msra.mxu0 0
        %5548 = vmatprep.subr.bf16.mxu0 0
        %5549 = vmatpush1.bf16.msra.mxu0 0
        %5550 = vmatprep.subr.bf16.mxu0 0
        %5551 = vmatpush1.bf16.msra.mxu0 0
        %5552 = vmatprep.mubr.bf16.mxu0 0
        %5553 = vmatmul.mubr.bf16.gmra.mrb[0].mxu0 %v5470
        %v5554 = vpop.f32.mrb[0].mxu0
        %v5555 = vadd.f32 %v5455, %v5554
        %v5556 = vpop.f32.mrb[0].mxu0
        %v5557 = vpop.f32.mrb[0].mxu0
        %v5558 = vadd.f32 %v5455, %v5557
        %v5559 = vpop.f32.mrb[0].mxu0
        %5560 = vmatprep.mubr.bf16.mxu0 0
        %5561 = vmatmul.mubr.bf16.gmra.mrb[0].mxu0 %v5473
        %v5562 = vpop.f32.mrb[0].mxu0
        %v5563 = vadd.f32 %v5455, %v5562
        %v5564 = vpop.f32.mrb[0].mxu0
        %v5565 = vpop.f32.mrb[0].mxu0
        %v5566 = vadd.f32 %v5455, %v5565
        %v5567 = vpop.f32.mrb[0].mxu0
        %5568 = vmatprep.mubr.bf16.mxu0 0
        %5569 = vmatmul.mubr.bf16.gmra.mrb[0].mxu0 %v5476
        %v5570 = vpop.f32.mrb[0].mxu0
        %v5571 = vadd.f32 %v5455, %v5570
        %v5572 = vpop.f32.mrb[0].mxu0
        %v5573 = vpop.f32.mrb[0].mxu0
        %v5574 = vadd.f32 %v5455, %v5573
        %v5575 = vpop.f32.mrb[0].mxu0
        %5576 = vmatprep.mubr.bf16.mxu0 0
        %5577 = vmatmul.mubr.bf16.gmra.mrb[0].mxu0 %v5479
        %v5578 = vpop.f32.mrb[0].mxu0
        %v5579 = vadd.f32 %v5455, %v5578
        %v5580 = vpop.f32.mrb[0].mxu0
        %v5581 = vpop.f32.mrb[0].mxu0
        %v5582 = vadd.f32 %v5455, %v5581
        %v5583 = vpop.f32.mrb[0].mxu0
        %5584 = vmatprep.mubr.bf16.mxu0 0
        %5585 = vmatmul.mubr.bf16.gmra.mrb[0].mxu0 %v5482
        %v5586 = vpop.f32.mrb[0].mxu0
        %v5587 = vadd.f32 %v5455, %v5586
        %v5588 = vpop.f32.mrb[0].mxu0
        %v5589 = vpop.f32.mrb[0].mxu0
        %v5590 = vadd.f32 %v5455, %v5589
        %v5591 = vpop.f32.mrb[0].mxu0
        %5592 = vmatprep.mubr.bf16.mxu0 0
        %5593 = vmatmul.mubr.bf16.gmra.mrb[0].mxu0 %v5485
        %v5594 = vpop.f32.mrb[0].mxu0
        %v5595 = vadd.f32 %v5455, %v5594
        %v5596 = vpop.f32.mrb[0].mxu0
        %v5597 = vpop.f32.mrb[0].mxu0
        %v5598 = vadd.f32 %v5455, %v5597
        %v5599 = vpop.f32.mrb[0].mxu0
        %5600 = vmatprep.mubr.bf16.mxu0 0
        %5601 = vmatmul.mubr.bf16.gmra.mrb[0].mxu0 %v5488
        %v5602 = vpop.f32.mrb[0].mxu0
        %v5603 = vadd.f32 %v5455, %v5602
        %v5604 = vpop.f32.mrb[0].mxu0
        %v5605 = vpop.f32.mrb[0].mxu0
        %v5606 = vadd.f32 %v5455, %v5605
        %v5607 = vpop.f32.mrb[0].mxu0
        %5608 = vmatprep.mubr.bf16.mxu0 0
        %5609 = vmatmul.mubr.bf16.gmra.mrb[0].mxu0 %v5491
        %v5610 = vpop.f32.mrb[0].mxu0
        %v5611 = vadd.f32 %v5455, %v5610
        %v5612 = vpop.f32.mrb[0].mxu0
        %v5613 = vpop.f32.mrb[0].mxu0
        %v5614 = vadd.f32 %v5455, %v5613
        %v5615 = vpop.f32.mrb[0].mxu0
        %5616 = vmatprep.mubr.bf16.mxu0 0
        %5617 = vmatmul.mubr.bf16.gmra.mrb[0].mxu0 %v5494
        %v5618 = vpop.f32.mrb[0].mxu0
        %v5619 = vadd.f32 %v5455, %v5618
        %v5620 = vpop.f32.mrb[0].mxu0
        %v5621 = vpop.f32.mrb[0].mxu0
        %v5622 = vadd.f32 %v5455, %v5621
        %v5623 = vpop.f32.mrb[0].mxu0
        %5624 = vmatprep.mubr.bf16.mxu0 0
        %5625 = vmatmul.mubr.bf16.gmra.mrb[0].mxu0 %v5497
        %v5626 = vpop.f32.mrb[0].mxu0
        %v5627 = vadd.f32 %v5455, %v5626
        %v5628 = vpop.f32.mrb[0].mxu0
        %v5629 = vpop.f32.mrb[0].mxu0
        %v5630 = vadd.f32 %v5455, %v5629
        %v5631 = vpop.f32.mrb[0].mxu0
        %5632 = vmatprep.mubr.bf16.mxu0 0
        %5633 = vmatmul.mubr.bf16.gmra.mrb[0].mxu0 %v5500
        %v5634 = vpop.f32.mrb[0].mxu0
        %v5635 = vadd.f32 %v5455, %v5634
        %v5636 = vpop.f32.mrb[0].mxu0
        %v5637 = vpop.f32.mrb[0].mxu0
        %v5638 = vadd.f32 %v5455, %v5637
        %v5639 = vpop.f32.mrb[0].mxu0
        %5640 = vmatprep.mubr.bf16.mxu0 0
        %5641 = vmatmul.mubr.bf16.gmra.mrb[0].mxu0 %v5503
        %v5642 = vpop.f32.mrb[0].mxu0
        %v5643 = vadd.f32 %v5455, %v5642
        %v5644 = vpop.f32.mrb[0].mxu0
        %v5645 = vpop.f32.mrb[0].mxu0
        %v5646 = vadd.f32 %v5455, %v5645
        %v5647 = vpop.f32.mrb[0].mxu0
        %5648 = vmatprep.mubr.bf16.mxu0 0
        %5649 = vmatmul.mubr.bf16.gmra.mrb[0].mxu0 %v5506
        %v5650 = vpop.f32.mrb[0].mxu0
        %v5651 = vadd.f32 %v5455, %v5650
        %v5652 = vpop.f32.mrb[0].mxu0
        %v5653 = vpop.f32.mrb[0].mxu0
        %v5654 = vadd.f32 %v5455, %v5653
        %v5655 = vpop.f32.mrb[0].mxu0
        %5656 = vmatprep.mubr.bf16.mxu0 0
        %5657 = vmatmul.mubr.bf16.gmra.mrb[0].mxu0 %v5509
        %v5658 = vpop.f32.mrb[0].mxu0
        %v5659 = vadd.f32 %v5455, %v5658
        %v5660 = vpop.f32.mrb[0].mxu0
        %v5661 = vpop.f32.mrb[0].mxu0
        %v5662 = vadd.f32 %v5455, %v5661
        %v5663 = vpop.f32.mrb[0].mxu0
        %5664 = vmatprep.mubr.bf16.mxu0 0
        %5665 = vmatmul.mubr.bf16.gmra.mrb[0].mxu0 %v5512
        %v5666 = vpop.f32.mrb[0].mxu0
        %v5667 = vadd.f32 %v5455, %v5666
        %v5668 = vpop.f32.mrb[0].mxu0
        %v5669 = vpop.f32.mrb[0].mxu0
        %v5670 = vadd.f32 %v5455, %v5669
        %v5671 = vpop.f32.mrb[0].mxu0
        %5672 = vmatprep.mubr.bf16.mxu0 0
        %5673 = vmatmul.mubr.bf16.gmra.mrb[0].mxu0 %v5515
        %v5674 = vpop.f32.mrb[0].mxu0
        %v5675 = vadd.f32 %v5455, %v5674
        %v5676 = vpop.f32.mrb[0].mxu0
        %v5677 = vpop.f32.mrb[0].mxu0
        %v5678 = vadd.f32 %v5455, %v5677
        %v5679 = vpop.f32.mrb[0].mxu0
        %5680 = vmatprep.mubr.bf16.mxu0 0
        %5681 = vmatmul.mubr.bf16.gmra.mrb[0].mxu0 %v5518
        %v5682 = vpop.f32.mrb[0].mxu0
        %v5683 = vadd.f32 %v5455, %v5682
        %v5684 = vpop.f32.mrb[0].mxu0
        %v5685 = vpop.f32.mrb[0].mxu0
        %v5686 = vpop.f32.mrb[0].mxu0
        %5687 = vdwg.mxu0
        %v5688 = vmul.f32 %v5555, %v5555
        %v5689 = vmul.f32 %v5558, %v5558
        %v5690 = vmul.f32 %v5563, %v5563
        %v5691 = vmul.f32 %v5566, %v5566
        %v5692 = vmul.f32 %v5571, %v5571
        %v5693 = vmul.f32 %v5574, %v5574
        %v5694 = vmul.f32 %v5579, %v5579
        %v5695 = vmul.f32 %v5582, %v5582
        %v5696 = vmul.f32 %v5587, %v5587
        %v5697 = vmul.f32 %v5590, %v5590
        %v5698 = vmul.f32 %v5595, %v5595
        %v5699 = vmul.f32 %v5598, %v5598
        %v5700 = vmul.f32 %v5603, %v5603
        %v5701 = vmul.f32 %v5606, %v5606
        %v5702 = vmul.f32 %v5611, %v5611
        %v5703 = vmul.f32 %v5614, %v5614
        %v5704 = vmul.f32 %v5619, %v5619
        %v5705 = vmul.f32 %v5622, %v5622
        %v5706 = vmul.f32 %v5627, %v5627
        %v5707 = vmul.f32 %v5630, %v5630
        %v5708 = vmul.f32 %v5635, %v5635
        %v5709 = vmul.f32 %v5638, %v5638
        %v5710 = vmul.f32 %v5643, %v5643
        %v5711 = vmul.f32 %v5646, %v5646
        %v5712 = vmul.f32 %v5651, %v5651
        %v5713 = vmul.f32 %v5654, %v5654
        %v5714 = vmul.f32 %v5659, %v5659
        %v5715 = vmul.f32 %v5662, %v5662
        %v5716 = vmul.f32 %v5667, %v5667
        %v5717 = vmul.f32 %v5670, %v5670
        %v5718 = vmul.f32 %v5675, %v5675
        %v5719 = vmul.f32 %v5678, %v5678
        %v5720 = vmul.f32 %v5683, %v5683
        %v5721 = vmul.f32 %v5555, %v5688
        %v5722 = vmul.f32 %v5558, %v5689
        %v5723 = vmul.f32 %v5563, %v5690
        %v5724 = vmul.f32 %v5566, %v5691
        %v5725 = vmul.f32 %v5571, %v5692
        %v5726 = vmul.f32 %v5574, %v5693
        %v5727 = vmul.f32 %v5579, %v5694
        %v5728 = vmul.f32 %v5582, %v5695
        %v5729 = vmul.f32 %v5587, %v5696
        %v5730 = vmul.f32 %v5590, %v5697
        %v5731 = vmul.f32 %v5595, %v5698
        %v5732 = vmul.f32 %v5598, %v5699
        %v5733 = vmul.f32 %v5603, %v5700
        %v5734 = vmul.f32 %v5606, %v5701
        %v5735 = vmul.f32 %v5611, %v5702
        %v5736 = vmul.f32 %v5614, %v5703
        %v5737 = vmul.f32 %v5619, %v5704
        %v5738 = vmul.f32 %v5622, %v5705
        %v5739 = vmul.f32 %v5627, %v5706
        %v5740 = vmul.f32 %v5630, %v5707
        %v5741 = vmul.f32 %v5635, %v5708
        %v5742 = vmul.f32 %v5638, %v5709
        %v5743 = vmul.f32 %v5643, %v5710
        %v5744 = vmul.f32 %v5646, %v5711
        %v5745 = vmul.f32 %v5651, %v5712
        %v5746 = vmul.f32 %v5654, %v5713
        %v5747 = vmul.f32 %v5659, %v5714
        %v5748 = vmul.f32 %v5662, %v5715
        %v5749 = vmul.f32 %v5667, %v5716
        %v5750 = vmul.f32 %v5670, %v5717
        %v5751 = vmul.f32 %v5675, %v5718
        %v5752 = vmul.f32 %v5678, %v5719
        %v5753 = vmul.f32 %v5683, %v5720
        %v5754 = vmul.f32 %v5721, 0.044715
        %v5755 = vmul.f32 %v5722, 0.044715
        %v5756 = vmul.f32 %v5723, 0.044715
        %v5757 = vmul.f32 %v5724, 0.044715
        %v5758 = vmul.f32 %v5725, 0.044715
        %v5759 = vmul.f32 %v5726, 0.044715
        %v5760 = vmul.f32 %v5727, 0.044715
        %v5761 = vmul.f32 %v5728, 0.044715
        %v5762 = vmul.f32 %v5729, 0.044715
        %v5763 = vmul.f32 %v5730, 0.044715
        %v5764 = vmul.f32 %v5731, 0.044715
        %v5765 = vmul.f32 %v5732, 0.044715
        %v5766 = vmul.f32 %v5733, 0.044715
        %v5767 = vmul.f32 %v5734, 0.044715
        %v5768 = vmul.f32 %v5735, 0.044715
        %v5769 = vmul.f32 %v5736, 0.044715
        %v5770 = vmul.f32 %v5737, 0.044715
        %v5771 = vmul.f32 %v5738, 0.044715
        %v5772 = vmul.f32 %v5739, 0.044715
        %v5773 = vmul.f32 %v5740, 0.044715
        %v5774 = vmul.f32 %v5741, 0.044715
        %v5775 = vmul.f32 %v5742, 0.044715
        %v5776 = vmul.f32 %v5743, 0.044715
        %v5777 = vmul.f32 %v5744, 0.044715
        %v5778 = vmul.f32 %v5745, 0.044715
        %v5779 = vmul.f32 %v5746, 0.044715
        %v5780 = vmul.f32 %v5747, 0.044715
        %v5781 = vmul.f32 %v5748, 0.044715
        %v5782 = vmul.f32 %v5749, 0.044715
        %v5783 = vmul.f32 %v5750, 0.044715
        %v5784 = vmul.f32 %v5751, 0.044715
        %v5785 = vmul.f32 %v5752, 0.044715
        %v5786 = vmul.f32 %v5753, 0.044715
        %v5787 = vadd.f32 %v5555, %v5754
        %v5788 = vadd.f32 %v5558, %v5755
        %v5789 = vadd.f32 %v5563, %v5756
        %v5790 = vadd.f32 %v5566, %v5757
        %v5791 = vadd.f32 %v5571, %v5758
        %v5792 = vadd.f32 %v5574, %v5759
        %v5793 = vadd.f32 %v5579, %v5760
        %v5794 = vadd.f32 %v5582, %v5761
        %v5795 = vadd.f32 %v5587, %v5762
        %v5796 = vadd.f32 %v5590, %v5763
        %v5797 = vadd.f32 %v5595, %v5764
        %v5798 = vadd.f32 %v5598, %v5765
        %v5799 = vadd.f32 %v5603, %v5766
        %v5800 = vadd.f32 %v5606, %v5767
        %v5801 = vadd.f32 %v5611, %v5768
        %v5802 = vadd.f32 %v5614, %v5769
        %v5803 = vadd.f32 %v5619, %v5770
        %v5804 = vadd.f32 %v5622, %v5771
        %v5805 = vadd.f32 %v5627, %v5772
        %v5806 = vadd.f32 %v5630, %v5773
        %v5807 = vadd.f32 %v5635, %v5774
        %v5808 = vadd.f32 %v5638, %v5775
        %v5809 = vadd.f32 %v5643, %v5776
        %v5810 = vadd.f32 %v5646, %v5777
        %v5811 = vadd.f32 %v5651, %v5778
        %v5812 = vadd.f32 %v5654, %v5779
        %v5813 = vadd.f32 %v5659, %v5780
        %v5814 = vadd.f32 %v5662, %v5781
        %v5815 = vadd.f32 %v5667, %v5782
        %v5816 = vadd.f32 %v5670, %v5783
        %v5817 = vadd.f32 %v5675, %v5784
        %v5818 = vadd.f32 %v5678, %v5785
        %v5819 = vadd.f32 %v5683, %v5786
        %v5820 = vmul.f32 %v5787, 0.7978846
        %v5821 = vmul.f32 %v5788, 0.7978846
        %v5822 = vmul.f32 %v5789, 0.7978846
        %v5823 = vmul.f32 %v5790, 0.7978846
        %v5824 = vmul.f32 %v5791, 0.7978846
        %v5825 = vmul.f32 %v5792, 0.7978846
        %v5826 = vmul.f32 %v5793, 0.7978846
        %v5827 = vmul.f32 %v5794, 0.7978846
        %v5828 = vmul.f32 %v5795, 0.7978846
        %v5829 = vmul.f32 %v5796, 0.7978846
        %v5830 = vmul.f32 %v5797, 0.7978846
        %v5831 = vmul.f32 %v5798, 0.7978846
        %v5832 = vmul.f32 %v5799, 0.7978846
        %v5833 = vmul.f32 %v5800, 0.7978846
        %v5834 = vmul.f32 %v5801, 0.7978846
        %v5835 = vmul.f32 %v5802, 0.7978846
        %v5836 = vmul.f32 %v5803, 0.7978846
        %v5837 = vmul.f32 %v5804, 0.7978846
        %v5838 = vmul.f32 %v5805, 0.7978846
        %v5839 = vmul.f32 %v5806, 0.7978846
        %v5840 = vmul.f32 %v5807, 0.7978846
        %v5841 = vmul.f32 %v5808, 0.7978846
        %v5842 = vmul.f32 %v5809, 0.7978846
        %v5843 = vmul.f32 %v5810, 0.7978846
        %v5844 = vmul.f32 %v5811, 0.7978846
        %v5845 = vmul.f32 %v5812, 0.7978846
        %v5846 = vmul.f32 %v5813, 0.7978846
        %v5847 = vmul.f32 %v5814, 0.7978846
        %v5848 = vmul.f32 %v5815, 0.7978846
        %v5849 = vmul.f32 %v5816, 0.7978846
        %v5850 = vmul.f32 %v5817, 0.7978846
        %v5851 = vmul.f32 %v5818, 0.7978846
        %v5852 = vmul.f32 %v5819, 0.7978846
        %v5853 = vtanh.pop %v5820
        %v5854 = vtanh.pop %v5821
        %v5855 = vtanh.pop %v5822
        %v5856 = vtanh.pop %v5823
        %v5857 = vtanh.pop %v5824
        %v5858 = vtanh.pop %v5825
        %v5859 = vtanh.pop %v5826
        %v5860 = vtanh.pop %v5827
        %v5861 = vtanh.pop %v5828
        %v5862 = vtanh.pop %v5829
        %v5863 = vtanh.pop %v5830
        %v5864 = vtanh.pop %v5831
        %v5865 = vtanh.pop %v5832
        %v5866 = vtanh.pop %v5833
        %v5867 = vtanh.pop %v5834
        %v5868 = vtanh.pop %v5835
        %v5869 = vtanh.pop %v5836
        %v5870 = vtanh.pop %v5837
        %v5871 = vtanh.pop %v5838
        %v5872 = vtanh.pop %v5839
        %v5873 = vtanh.pop %v5840
        %v5874 = vtanh.pop %v5841
        %v5875 = vtanh.pop %v5842
        %v5876 = vtanh.pop %v5843
        %v5877 = vtanh.pop %v5844
        %v5878 = vtanh.pop %v5845
        %v5879 = vtanh.pop %v5846
        %v5880 = vtanh.pop %v5847
        %v5881 = vtanh.pop %v5848
        %v5882 = vtanh.pop %v5849
        %v5883 = vtanh.pop %v5850
        %v5884 = vtanh.pop %v5851
        %v5885 = vtanh.pop %v5852
        %v5886 = vadd.f32 %v5853, 1.0
        %v5887 = vadd.f32 %v5854, 1.0
        %v5888 = vadd.f32 %v5855, 1.0
        %v5889 = vadd.f32 %v5856, 1.0
        %v5890 = vadd.f32 %v5857, 1.0
        %v5891 = vadd.f32 %v5858, 1.0
        %v5892 = vadd.f32 %v5859, 1.0
        %v5893 = vadd.f32 %v5860, 1.0
        %v5894 = vadd.f32 %v5861, 1.0
        %v5895 = vadd.f32 %v5862, 1.0
        %v5896 = vadd.f32 %v5863, 1.0
        %v5897 = vadd.f32 %v5864, 1.0
        %v5898 = vadd.f32 %v5865, 1.0
        %v5899 = vadd.f32 %v5866, 1.0
        %v5900 = vadd.f32 %v5867, 1.0
        %v5901 = vadd.f32 %v5868, 1.0
        %v5902 = vadd.f32 %v5869, 1.0
        %v5903 = vadd.f32 %v5870, 1.0
        %v5904 = vadd.f32 %v5871, 1.0
        %v5905 = vadd.f32 %v5872, 1.0
        %v5906 = vadd.f32 %v5873, 1.0
        %v5907 = vadd.f32 %v5874, 1.0
        %v5908 = vadd.f32 %v5875, 1.0
        %v5909 = vadd.f32 %v5876, 1.0
        %v5910 = vadd.f32 %v5877, 1.0
        %v5911 = vadd.f32 %v5878, 1.0
        %v5912 = vadd.f32 %v5879, 1.0
        %v5913 = vadd.f32 %v5880, 1.0
        %v5914 = vadd.f32 %v5881, 1.0
        %v5915 = vadd.f32 %v5882, 1.0
        %v5916 = vadd.f32 %v5883, 1.0
        %v5917 = vadd.f32 %v5884, 1.0
        %v5918 = vadd.f32 %v5885, 1.0
        %v5919 = vmul.f32 %v5886, 0.5
        %v5920 = vmul.f32 %v5887, 0.5
        %v5921 = vmul.f32 %v5888, 0.5
        %v5922 = vmul.f32 %v5889, 0.5
        %v5923 = vmul.f32 %v5890, 0.5
        %v5924 = vmul.f32 %v5891, 0.5
        %v5925 = vmul.f32 %v5892, 0.5
        %v5926 = vmul.f32 %v5893, 0.5
        %v5927 = vmul.f32 %v5894, 0.5
        %v5928 = vmul.f32 %v5895, 0.5
        %v5929 = vmul.f32 %v5896, 0.5
        %v5930 = vmul.f32 %v5897, 0.5
        %v5931 = vmul.f32 %v5898, 0.5
        %v5932 = vmul.f32 %v5899, 0.5
        %v5933 = vmul.f32 %v5900, 0.5
        %v5934 = vmul.f32 %v5901, 0.5
        %v5935 = vmul.f32 %v5902, 0.5
        %v5936 = vmul.f32 %v5903, 0.5
        %v5937 = vmul.f32 %v5904, 0.5
        %v5938 = vmul.f32 %v5905, 0.5
        %v5939 = vmul.f32 %v5906, 0.5
        %v5940 = vmul.f32 %v5907, 0.5
        %v5941 = vmul.f32 %v5908, 0.5
        %v5942 = vmul.f32 %v5909, 0.5
        %v5943 = vmul.f32 %v5910, 0.5
        %v5944 = vmul.f32 %v5911, 0.5
        %v5945 = vmul.f32 %v5912, 0.5
        %v5946 = vmul.f32 %v5913, 0.5
        %v5947 = vmul.f32 %v5914, 0.5
        %v5948 = vmul.f32 %v5915, 0.5
        %v5949 = vmul.f32 %v5916, 0.5
        %v5950 = vmul.f32 %v5917, 0.5
        %v5951 = vmul.f32 %v5918, 0.5
        %v5952 = vmul.f32 %v5555, %v5919
        %v5953 = vmul.f32 %v5558, %v5920
        %v5954 = vmul.f32 %v5563, %v5921
        %v5955 = vmul.f32 %v5566, %v5922
        %v5956 = vmul.f32 %v5571, %v5923
        %v5957 = vmul.f32 %v5574, %v5924
        %v5958 = vmul.f32 %v5579, %v5925
        %v5959 = vmul.f32 %v5582, %v5926
        %v5960 = vmul.f32 %v5587, %v5927
        %v5961 = vmul.f32 %v5590, %v5928
        %v5962 = vmul.f32 %v5595, %v5929
        %v5963 = vmul.f32 %v5598, %v5930
        %v5964 = vmul.f32 %v5603, %v5931
        %v5965 = vmul.f32 %v5606, %v5932
        %v5966 = vmul.f32 %v5611, %v5933
        %v5967 = vmul.f32 %v5614, %v5934
        %v5968 = vmul.f32 %v5619, %v5935
        %v5969 = vmul.f32 %v5622, %v5936
        %v5970 = vmul.f32 %v5627, %v5937
        %v5971 = vmul.f32 %v5630, %v5938
        %v5972 = vmul.f32 %v5635, %v5939
        %v5973 = vmul.f32 %v5638, %v5940
        %v5974 = vmul.f32 %v5643, %v5941
        %v5975 = vmul.f32 %v5646, %v5942
        %v5976 = vmul.f32 %v5651, %v5943
        %v5977 = vmul.f32 %v5654, %v5944
        %v5978 = vmul.f32 %v5659, %v5945
        %v5979 = vmul.f32 %v5662, %v5946
        %v5980 = vmul.f32 %v5667, %v5947
        %v5981 = vmul.f32 %v5670, %v5948
        %v5982 = vmul.f32 %v5675, %v5949
        %v5983 = vmul.f32 %v5678, %v5950
        %v5984 = vmul.f32 %v5683, %v5951
        %v5985 = vpack.c.bf16 %v5953, %v5952
        %v5986 = vpack.c.bf16 %v5955, %v5954
        %v5987 = vpack.c.bf16 %v5957, %v5956
        %v5988 = vpack.c.bf16 %v5959, %v5958
        %v5989 = vpack.c.bf16 %v5961, %v5960
        %v5990 = vpack.c.bf16 %v5963, %v5962
        %v5991 = vpack.c.bf16 %v5965, %v5964
        %v5992 = vpack.c.bf16 %v5967, %v5966
        %v5993 = vpack.c.bf16 %v5969, %v5968
        %v5994 = vpack.c.bf16 %v5971, %v5970
        %v5995 = vpack.c.bf16 %v5973, %v5972
        %v5996 = vpack.c.bf16 %v5975, %v5974
        %v5997 = vpack.c.bf16 %v5977, %v5976
        %v5998 = vpack.c.bf16 %v5979, %v5978
        %v5999 = vpack.c.bf16 %v5981, %v5980
        %v6000 = vpack.c.bf16 %v5983, %v5982
        %v6001 = vpack.c.bf16 %v5984, %v5984
        %v6002 = vld [vmem:[%s14] sm:$0xf]
        %v6003 = vld [vmem:[%s14 + $0x4] sm:$0xf]
        %v6004 = vld [vmem:[%s14 + $0x8] sm:$0xf]
        %v6005 = vld [vmem:[%s14 + $0xc] sm:$0xf]
        %v6006 = vld [vmem:[%s14 + $0x10] sm:$0xf]
        %v6007 = vld [vmem:[%s14 + $0x14] sm:$0xf]
        %v6008 = vld [vmem:[%s14 + $0x18] sm:$0xf]
        %v6009 = vld [vmem:[%s14 + $0x1c] sm:$0xf]
        %v6010 = vld [vmem:[%s14 + $0x20] sm:$0xf]
        %v6011 = vld [vmem:[%s14 + $0x24] sm:$0xf]
        %v6012 = vld [vmem:[%s14 + $0x28] sm:$0xf]
        %v6013 = vld [vmem:[%s14 + $0x2c] sm:$0xf]
        %v6014 = vld [vmem:[%s14 + $0x30] sm:$0xf]
        %v6015 = vld [vmem:[%s14 + $0x34] sm:$0xf]
        %v6016 = vld [vmem:[%s14 + $0x38] sm:$0xf]
        %v6017 = vld [vmem:[%s14 + $0x3c] sm:$0xf]
        %v6018 = vld [vmem:[%s15] sm:$0x1]
        %v6020 = vlaneseq
        %v6021 = vshrl.u32 %v6020, 7
        %v6022 = vsub.s32 0, %v6021
        %v6023 = vrot.slane %v6018, %v6022
        %v6041 = vunpack.c.l.b16 %v6002
        %v6042 = vunpack.c.l.b16 %v6003
        %v6043 = vunpack.c.l.b16 %v6004
        %v6044 = vunpack.c.l.b16 %v6005
        %v6045 = vunpack.c.l.b16 %v6006
        %v6046 = vunpack.c.l.b16 %v6007
        %v6047 = vunpack.c.l.b16 %v6008
        %v6048 = vunpack.c.l.b16 %v6009
        %v6049 = vunpack.c.l.b16 %v6010
        %v6050 = vunpack.c.l.b16 %v6011
        %v6051 = vunpack.c.l.b16 %v6012
        %v6052 = vunpack.c.l.b16 %v6013
        %v6053 = vunpack.c.l.b16 %v6014
        %v6054 = vunpack.c.l.b16 %v6015
        %v6055 = vunpack.c.l.b16 %v6016
        %v6056 = vunpack.c.l.b16 %v6017
        %v6057 = vpack.c.b16 %v6042, %v6041
        %v6058 = vpack.c.b16 %v6044, %v6043
        %v6059 = vpack.c.b16 %v6046, %v6045
        %v6060 = vpack.c.b16 %v6048, %v6047
        %v6061 = vpack.c.b16 %v6050, %v6049
        %v6062 = vpack.c.b16 %v6052, %v6051
        %v6063 = vpack.c.b16 %v6054, %v6053
        %v6064 = vpack.c.b16 %v6056, %v6055
        %6073 = vmatprep.subr.bf16.mxu0 0
        %6074 = vmatpush1.bf16.msra.mxu0 %v6057
        %6075 = vmatprep.subr.bf16.mxu0 0
        %6076 = vmatpush1.bf16.msra.mxu0 %v6058
        %6077 = vmatprep.subr.bf16.mxu0 0
        %6078 = vmatpush1.bf16.msra.mxu0 %v6059
        %6079 = vmatprep.subr.bf16.mxu0 0
        %6080 = vmatpush1.bf16.msra.mxu0 %v6060
        %6081 = vmatprep.subr.bf16.mxu0 0
        %6082 = vmatpush1.bf16.msra.mxu0 %v6061
        %6083 = vmatprep.subr.bf16.mxu0 0
        %6084 = vmatpush1.bf16.msra.mxu0 %v6062
        %6085 = vmatprep.subr.bf16.mxu0 0
        %6086 = vmatpush1.bf16.msra.mxu0 %v6063
        %6087 = vmatprep.subr.bf16.mxu0 0
        %6088 = vmatpush1.bf16.msra.mxu0 %v6064
        %6089 = vmatprep.subr.bf16.mxu0 0
        %6090 = vmatpush1.bf16.msra.mxu0 0
        %6091 = vmatprep.subr.bf16.mxu0 0
        %6092 = vmatpush1.bf16.msra.mxu0 0
        %6093 = vmatprep.subr.bf16.mxu0 0
        %6094 = vmatpush1.bf16.msra.mxu0 0
        %6095 = vmatprep.subr.bf16.mxu0 0
        %6096 = vmatpush1.bf16.msra.mxu0 0
        %6097 = vmatprep.subr.bf16.mxu0 0
        %6098 = vmatpush1.bf16.msra.mxu0 0
        %6099 = vmatprep.subr.bf16.mxu0 0
        %6100 = vmatpush1.bf16.msra.mxu0 0
        %6101 = vmatprep.subr.bf16.mxu0 0
        %6102 = vmatpush1.bf16.msra.mxu0 0
        %6103 = vmatprep.subr.bf16.mxu0 0
        %6104 = vmatpush1.bf16.msra.mxu0 0
        %6105 = vmatprep.mubr.bf16.mxu0 0
        %6106 = vmatmul.mubr.bf16.gmra.mrb[0].mxu0 %v5985
        %v6107 = vpop.f32.mrb[0].mxu0
        %v6108 = vadd.f32 %v6023, %v6107
        %v6109 = vpop.f32.mrb[0].mxu0
        %v6110 = vpop.f32.mrb[0].mxu0
        %v6111 = vadd.f32 %v6023, %v6110
        %v6112 = vpop.f32.mrb[0].mxu0
        %6113 = vmatprep.mubr.bf16.mxu0 0
        %6114 = vmatmul.mubr.bf16.gmra.mrb[0].mxu0 %v5986
        %v6115 = vpop.f32.mrb[0].mxu0
        %v6116 = vadd.f32 %v6023, %v6115
        %v6117 = vpop.f32.mrb[0].mxu0
        %v6118 = vpop.f32.mrb[0].mxu0
        %v6119 = vadd.f32 %v6023, %v6118
        %v6120 = vpop.f32.mrb[0].mxu0
        %6121 = vmatprep.mubr.bf16.mxu0 0
        %6122 = vmatmul.mubr.bf16.gmra.mrb[0].mxu0 %v5987
        %v6123 = vpop.f32.mrb[0].mxu0
        %v6124 = vadd.f32 %v6023, %v6123
        %v6125 = vpop.f32.mrb[0].mxu0
        %v6126 = vpop.f32.mrb[0].mxu0
        %v6127 = vadd.f32 %v6023, %v6126
        %v6128 = vpop.f32.mrb[0].mxu0
        %6129 = vmatprep.mubr.bf16.mxu0 0
        %6130 = vmatmul.mubr.bf16.gmra.mrb[0].mxu0 %v5988
        %v6131 = vpop.f32.mrb[0].mxu0
        %v6132 = vadd.f32 %v6023, %v6131
        %v6133 = vpop.f32.mrb[0].mxu0
        %v6134 = vpop.f32.mrb[0].mxu0
        %v6135 = vadd.f32 %v6023, %v6134
        %v6136 = vpop.f32.mrb[0].mxu0
        %6137 = vmatprep.mubr.bf16.mxu0 0
        %6138 = vmatmul.mubr.bf16.gmra.mrb[0].mxu0 %v5989
        %v6139 = vpop.f32.mrb[0].mxu0
        %v6140 = vadd.f32 %v6023, %v6139
        %v6141 = vpop.f32.mrb[0].mxu0
        %v6142 = vpop.f32.mrb[0].mxu0
        %v6143 = vadd.f32 %v6023, %v6142
        %v6144 = vpop.f32.mrb[0].mxu0
        %6145 = vmatprep.mubr.bf16.mxu0 0
        %6146 = vmatmul.mubr.bf16.gmra.mrb[0].mxu0 %v5990
        %v6147 = vpop.f32.mrb[0].mxu0
        %v6148 = vadd.f32 %v6023, %v6147
        %v6149 = vpop.f32.mrb[0].mxu0
        %v6150 = vpop.f32.mrb[0].mxu0
        %v6151 = vadd.f32 %v6023, %v6150
        %v6152 = vpop.f32.mrb[0].mxu0
        %6153 = vmatprep.mubr.bf16.mxu0 0
        %6154 = vmatmul.mubr.bf16.gmra.mrb[0].mxu0 %v5991
        %v6155 = vpop.f32.mrb[0].mxu0
        %v6156 = vadd.f32 %v6023, %v6155
        %v6157 = vpop.f32.mrb[0].mxu0
        %v6158 = vpop.f32.mrb[0].mxu0
        %v6159 = vadd.f32 %v6023, %v6158
        %v6160 = vpop.f32.mrb[0].mxu0
        %6161 = vmatprep.mubr.bf16.mxu0 0
        %6162 = vmatmul.mubr.bf16.gmra.mrb[0].mxu0 %v5992
        %v6163 = vpop.f32.mrb[0].mxu0
        %v6164 = vadd.f32 %v6023, %v6163
        %v6165 = vpop.f32.mrb[0].mxu0
        %v6166 = vpop.f32.mrb[0].mxu0
        %v6167 = vadd.f32 %v6023, %v6166
        %v6168 = vpop.f32.mrb[0].mxu0
        %6169 = vmatprep.mubr.bf16.mxu0 0
        %6170 = vmatmul.mubr.bf16.gmra.mrb[0].mxu0 %v5993
        %v6171 = vpop.f32.mrb[0].mxu0
        %v6172 = vadd.f32 %v6023, %v6171
        %v6173 = vpop.f32.mrb[0].mxu0
        %v6174 = vpop.f32.mrb[0].mxu0
        %v6175 = vadd.f32 %v6023, %v6174
        %v6176 = vpop.f32.mrb[0].mxu0
        %6177 = vmatprep.mubr.bf16.mxu0 0
        %6178 = vmatmul.mubr.bf16.gmra.mrb[0].mxu0 %v5994
        %v6179 = vpop.f32.mrb[0].mxu0
        %v6180 = vadd.f32 %v6023, %v6179
        %v6181 = vpop.f32.mrb[0].mxu0
        %v6182 = vpop.f32.mrb[0].mxu0
        %v6183 = vadd.f32 %v6023, %v6182
        %v6184 = vpop.f32.mrb[0].mxu0
        %6185 = vmatprep.mubr.bf16.mxu0 0
        %6186 = vmatmul.mubr.bf16.gmra.mrb[0].mxu0 %v5995
        %v6187 = vpop.f32.mrb[0].mxu0
        %v6188 = vadd.f32 %v6023, %v6187
        %v6189 = vpop.f32.mrb[0].mxu0
        %v6190 = vpop.f32.mrb[0].mxu0
        %v6191 = vadd.f32 %v6023, %v6190
        %v6192 = vpop.f32.mrb[0].mxu0
        %6193 = vmatprep.mubr.bf16.mxu0 0
        %6194 = vmatmul.mubr.bf16.gmra.mrb[0].mxu0 %v5996
        %v6195 = vpop.f32.mrb[0].mxu0
        %v6196 = vadd.f32 %v6023, %v6195
        %v6197 = vpop.f32.mrb[0].mxu0
        %v6198 = vpop.f32.mrb[0].mxu0
        %v6199 = vadd.f32 %v6023, %v6198
        %v6200 = vpop.f32.mrb[0].mxu0
        %6201 = vmatprep.mubr.bf16.mxu0 0
        %6202 = vmatmul.mubr.bf16.gmra.mrb[0].mxu0 %v5997
        %v6203 = vpop.f32.mrb[0].mxu0
        %v6204 = vadd.f32 %v6023, %v6203
        %v6205 = vpop.f32.mrb[0].mxu0
        %v6206 = vpop.f32.mrb[0].mxu0
        %v6207 = vadd.f32 %v6023, %v6206
        %v6208 = vpop.f32.mrb[0].mxu0
        %6209 = vmatprep.mubr.bf16.mxu0 0
        %6210 = vmatmul.mubr.bf16.gmra.mrb[0].mxu0 %v5998
        %v6211 = vpop.f32.mrb[0].mxu0
        %v6212 = vadd.f32 %v6023, %v6211
        %v6213 = vpop.f32.mrb[0].mxu0
        %v6214 = vpop.f32.mrb[0].mxu0
        %v6215 = vadd.f32 %v6023, %v6214
        %v6216 = vpop.f32.mrb[0].mxu0
        %6217 = vmatprep.mubr.bf16.mxu0 0
        %6218 = vmatmul.mubr.bf16.gmra.mrb[0].mxu0 %v5999
        %v6219 = vpop.f32.mrb[0].mxu0
        %v6220 = vadd.f32 %v6023, %v6219
        %v6221 = vpop.f32.mrb[0].mxu0
        %v6222 = vpop.f32.mrb[0].mxu0
        %v6223 = vadd.f32 %v6023, %v6222
        %v6224 = vpop.f32.mrb[0].mxu0
        %6225 = vmatprep.mubr.bf16.mxu0 0
        %6226 = vmatmul.mubr.bf16.gmra.mrb[0].mxu0 %v6000
        %v6227 = vpop.f32.mrb[0].mxu0
        %v6228 = vadd.f32 %v6023, %v6227
        %v6229 = vpop.f32.mrb[0].mxu0
        %v6230 = vpop.f32.mrb[0].mxu0
        %v6231 = vadd.f32 %v6023, %v6230
        %v6232 = vpop.f32.mrb[0].mxu0
        %6233 = vmatprep.mubr.bf16.mxu0 0
        %6234 = vmatmul.mubr.bf16.gmra.mrb[0].mxu0 %v6001
        %v6235 = vpop.f32.mrb[0].mxu0
        %v6236 = vadd.f32 %v6023, %v6235
        %v6237 = vpop.f32.mrb[0].mxu0
        %v6238 = vpop.f32.mrb[0].mxu0
        %v6239 = vpop.f32.mrb[0].mxu0
        %6240 = vdwg.mxu0
        %v6241 = vadd.f32 %v4887, %v6108
        %v6242 = vadd.f32 %v4888, %v6111
        %v6243 = vadd.f32 %v4889, %v6116
        %v6244 = vadd.f32 %v4890, %v6119
        %v6245 = vadd.f32 %v4891, %v6124
        %v6246 = vadd.f32 %v4892, %v6127
        %v6247 = vadd.f32 %v4893, %v6132
        %v6248 = vadd.f32 %v4894, %v6135
        %v6249 = vadd.f32 %v4895, %v6140
        %v6250 = vadd.f32 %v4896, %v6143
        %v6251 = vadd.f32 %v4897, %v6148
        %v6252 = vadd.f32 %v4898, %v6151
        %v6253 = vadd.f32 %v4899, %v6156
        %v6254 = vadd.f32 %v4900, %v6159
        %v6255 = vadd.f32 %v4901, %v6164
        %v6256 = vadd.f32 %v4902, %v6167
        %v6257 = vadd.f32 %v4903, %v6172
        %v6258 = vadd.f32 %v4904, %v6175
        %v6259 = vadd.f32 %v4905, %v6180
        %v6260 = vadd.f32 %v4906, %v6183
        %v6261 = vadd.f32 %v4907, %v6188
        %v6262 = vadd.f32 %v4908, %v6191
        %v6263 = vadd.f32 %v4909, %v6196
        %v6264 = vadd.f32 %v4910, %v6199
        %v6265 = vadd.f32 %v4911, %v6204
        %v6266 = vadd.f32 %v4912, %v6207
        %v6267 = vadd.f32 %v4913, %v6212
        %v6268 = vadd.f32 %v4914, %v6215
        %v6269 = vadd.f32 %v4915, %v6220
        %v6270 = vadd.f32 %v4916, %v6223
        %v6271 = vadd.f32 %v4917, %v6228
        %v6272 = vadd.f32 %v4918, %v6231
        %v6273 = vadd.f32 %v4919, %v6236
        %s6274 = scalar_lea.vmem %s4, 1
        %v6275 = vld [vmem:[%s6274] sm:$0x1]
        %s6276 = scalar_lea.vmem %s5, 1
        %v6277 = vld [vmem:[%s6276] sm:$0x1]
        %v6278 = vsel %vm1691, %v6241, 0.0
        %6279 = vadd.xlane.f32.xlu0 %v6278
        %v6280 = vpop.xlane.xlu0 %6279
        %v6281 = vsel %vm1691, %v6242, 0.0
        %6282 = vadd.xlane.f32.xlu0 %v6281
        %v6283 = vpop.xlane.xlu0 %6282
        %v6284 = vsel %vm1691, %v6243, 0.0
        %6285 = vadd.xlane.f32.xlu0 %v6284
        %v6286 = vpop.xlane.xlu0 %6285
        %v6287 = vsel %vm1691, %v6244, 0.0
        %6288 = vadd.xlane.f32.xlu0 %v6287
        %v6289 = vpop.xlane.xlu0 %6288
        %v6290 = vsel %vm1691, %v6245, 0.0
        %6291 = vadd.xlane.f32.xlu0 %v6290
        %v6292 = vpop.xlane.xlu0 %6291
        %v6293 = vsel %vm1691, %v6246, 0.0
        %6294 = vadd.xlane.f32.xlu0 %v6293
        %v6295 = vpop.xlane.xlu0 %6294
        %v6296 = vsel %vm1691, %v6247, 0.0
        %6297 = vadd.xlane.f32.xlu0 %v6296
        %v6298 = vpop.xlane.xlu0 %6297
        %v6299 = vsel %vm1691, %v6248, 0.0
        %6300 = vadd.xlane.f32.xlu0 %v6299
        %v6301 = vpop.xlane.xlu0 %6300
        %v6302 = vsel %vm1691, %v6249, 0.0
        %6303 = vadd.xlane.f32.xlu0 %v6302
        %v6304 = vpop.xlane.xlu0 %6303
        %v6305 = vsel %vm1691, %v6250, 0.0
        %6306 = vadd.xlane.f32.xlu0 %v6305
        %v6307 = vpop.xlane.xlu0 %6306
        %v6308 = vsel %vm1691, %v6251, 0.0
        %6309 = vadd.xlane.f32.xlu0 %v6308
        %v6310 = vpop.xlane.xlu0 %6309
        %v6311 = vsel %vm1691, %v6252, 0.0
        %6312 = vadd.xlane.f32.xlu0 %v6311
        %v6313 = vpop.xlane.xlu0 %6312
        %v6314 = vsel %vm1691, %v6253, 0.0
        %6315 = vadd.xlane.f32.xlu0 %v6314
        %v6316 = vpop.xlane.xlu0 %6315
        %v6317 = vsel %vm1691, %v6254, 0.0
        %6318 = vadd.xlane.f32.xlu0 %v6317
        %v6319 = vpop.xlane.xlu0 %6318
        %v6320 = vsel %vm1691, %v6255, 0.0
        %6321 = vadd.xlane.f32.xlu0 %v6320
        %v6322 = vpop.xlane.xlu0 %6321
        %v6323 = vsel %vm1691, %v6256, 0.0
        %6324 = vadd.xlane.f32.xlu0 %v6323
        %v6325 = vpop.xlane.xlu0 %6324
        %v6326 = vsel %vm1691, %v6257, 0.0
        %6327 = vadd.xlane.f32.xlu0 %v6326
        %v6328 = vpop.xlane.xlu0 %6327
        %v6329 = vsel %vm1691, %v6258, 0.0
        %6330 = vadd.xlane.f32.xlu0 %v6329
        %v6331 = vpop.xlane.xlu0 %6330
        %v6332 = vsel %vm1691, %v6259, 0.0
        %6333 = vadd.xlane.f32.xlu0 %v6332
        %v6334 = vpop.xlane.xlu0 %6333
        %v6335 = vsel %vm1691, %v6260, 0.0
        %6336 = vadd.xlane.f32.xlu0 %v6335
        %v6337 = vpop.xlane.xlu0 %6336
        %v6338 = vsel %vm1691, %v6261, 0.0
        %6339 = vadd.xlane.f32.xlu0 %v6338
        %v6340 = vpop.xlane.xlu0 %6339
        %v6341 = vsel %vm1691, %v6262, 0.0
        %6342 = vadd.xlane.f32.xlu0 %v6341
        %v6343 = vpop.xlane.xlu0 %6342
        %v6344 = vsel %vm1691, %v6263, 0.0
        %6345 = vadd.xlane.f32.xlu0 %v6344
        %v6346 = vpop.xlane.xlu0 %6345
        %v6347 = vsel %vm1691, %v6264, 0.0
        %6348 = vadd.xlane.f32.xlu0 %v6347
        %v6349 = vpop.xlane.xlu0 %6348
        %v6350 = vsel %vm1691, %v6265, 0.0
        %6351 = vadd.xlane.f32.xlu0 %v6350
        %v6352 = vpop.xlane.xlu0 %6351
        %v6353 = vsel %vm1691, %v6266, 0.0
        %6354 = vadd.xlane.f32.xlu0 %v6353
        %v6355 = vpop.xlane.xlu0 %6354
        %v6356 = vsel %vm1691, %v6267, 0.0
        %6357 = vadd.xlane.f32.xlu0 %v6356
        %v6358 = vpop.xlane.xlu0 %6357
        %v6359 = vsel %vm1691, %v6268, 0.0
        %6360 = vadd.xlane.f32.xlu0 %v6359
        %v6361 = vpop.xlane.xlu0 %6360
        %v6362 = vsel %vm1691, %v6269, 0.0
        %6363 = vadd.xlane.f32.xlu0 %v6362
        %v6364 = vpop.xlane.xlu0 %6363
        %v6365 = vsel %vm1691, %v6270, 0.0
        %6366 = vadd.xlane.f32.xlu0 %v6365
        %v6367 = vpop.xlane.xlu0 %6366
        %v6368 = vsel %vm1691, %v6271, 0.0
        %6369 = vadd.xlane.f32.xlu0 %v6368
        %v6370 = vpop.xlane.xlu0 %6369
        %v6371 = vsel %vm1691, %v6272, 0.0
        %6372 = vadd.xlane.f32.xlu0 %v6371
        %v6373 = vpop.xlane.xlu0 %6372
        %v6374 = vsel %vm1691, %v6273, 0.0
        %6375 = vadd.xlane.f32.xlu0 %v6374
        %v6376 = vpop.xlane.xlu0 %6375
        %v6377 = vmul.f32 %v6280, %v1791
        %v6378 = vmul.f32 %v6283, %v1791
        %v6379 = vmul.f32 %v6286, %v1791
        %v6380 = vmul.f32 %v6289, %v1791
        %v6381 = vmul.f32 %v6292, %v1791
        %v6382 = vmul.f32 %v6295, %v1791
        %v6383 = vmul.f32 %v6298, %v1791
        %v6384 = vmul.f32 %v6301, %v1791
        %v6385 = vmul.f32 %v6304, %v1791
        %v6386 = vmul.f32 %v6307, %v1791
        %v6387 = vmul.f32 %v6310, %v1791
        %v6388 = vmul.f32 %v6313, %v1791
        %v6389 = vmul.f32 %v6316, %v1791
        %v6390 = vmul.f32 %v6319, %v1791
        %v6391 = vmul.f32 %v6322, %v1791
        %v6392 = vmul.f32 %v6325, %v1791
        %v6393 = vmul.f32 %v6328, %v1791
        %v6394 = vmul.f32 %v6331, %v1791
        %v6395 = vmul.f32 %v6334, %v1791
        %v6396 = vmul.f32 %v6337, %v1791
        %v6397 = vmul.f32 %v6340, %v1791
        %v6398 = vmul.f32 %v6343, %v1791
        %v6399 = vmul.f32 %v6346, %v1791
        %v6400 = vmul.f32 %v6349, %v1791
        %v6401 = vmul.f32 %v6352, %v1791
        %v6402 = vmul.f32 %v6355, %v1791
        %v6403 = vmul.f32 %v6358, %v1791
        %v6404 = vmul.f32 %v6361, %v1791
        %v6405 = vmul.f32 %v6364, %v1791
        %v6406 = vmul.f32 %v6367, %v1791
        %v6407 = vmul.f32 %v6370, %v1791
        %v6408 = vmul.f32 %v6373, %v1791
        %v6409 = vmul.f32 %v6376, %v1791
        %v6410 = vsub.f32 %v6241, %v6377
        %v6411 = vsub.f32 %v6242, %v6378
        %v6412 = vsub.f32 %v6243, %v6379
        %v6413 = vsub.f32 %v6244, %v6380
        %v6414 = vsub.f32 %v6245, %v6381
        %v6415 = vsub.f32 %v6246, %v6382
        %v6416 = vsub.f32 %v6247, %v6383
        %v6417 = vsub.f32 %v6248, %v6384
        %v6418 = vsub.f32 %v6249, %v6385
        %v6419 = vsub.f32 %v6250, %v6386
        %v6420 = vsub.f32 %v6251, %v6387
        %v6421 = vsub.f32 %v6252, %v6388
        %v6422 = vsub.f32 %v6253, %v6389
        %v6423 = vsub.f32 %v6254, %v6390
        %v6424 = vsub.f32 %v6255, %v6391
        %v6425 = vsub.f32 %v6256, %v6392
        %v6426 = vsub.f32 %v6257, %v6393
        %v6427 = vsub.f32 %v6258, %v6394
        %v6428 = vsub.f32 %v6259, %v6395
        %v6429 = vsub.f32 %v6260, %v6396
        %v6430 = vsub.f32 %v6261, %v6397
        %v6431 = vsub.f32 %v6262, %v6398
        %v6432 = vsub.f32 %v6263, %v6399
        %v6433 = vsub.f32 %v6264, %v6400
        %v6434 = vsub.f32 %v6265, %v6401
        %v6435 = vsub.f32 %v6266, %v6402
        %v6436 = vsub.f32 %v6267, %v6403
        %v6437 = vsub.f32 %v6268, %v6404
        %v6438 = vsub.f32 %v6269, %v6405
        %v6439 = vsub.f32 %v6270, %v6406
        %v6440 = vsub.f32 %v6271, %v6407
        %v6441 = vsub.f32 %v6272, %v6408
        %v6442 = vsub.f32 %v6273, %v6409
        %v6443 = vmul.f32 %v6410, %v6410
        %v6444 = vmul.f32 %v6411, %v6411
        %v6445 = vmul.f32 %v6412, %v6412
        %v6446 = vmul.f32 %v6413, %v6413
        %v6447 = vmul.f32 %v6414, %v6414
        %v6448 = vmul.f32 %v6415, %v6415
        %v6449 = vmul.f32 %v6416, %v6416
        %v6450 = vmul.f32 %v6417, %v6417
        %v6451 = vmul.f32 %v6418, %v6418
        %v6452 = vmul.f32 %v6419, %v6419
        %v6453 = vmul.f32 %v6420, %v6420
        %v6454 = vmul.f32 %v6421, %v6421
        %v6455 = vmul.f32 %v6422, %v6422
        %v6456 = vmul.f32 %v6423, %v6423
        %v6457 = vmul.f32 %v6424, %v6424
        %v6458 = vmul.f32 %v6425, %v6425
        %v6459 = vmul.f32 %v6426, %v6426
        %v6460 = vmul.f32 %v6427, %v6427
        %v6461 = vmul.f32 %v6428, %v6428
        %v6462 = vmul.f32 %v6429, %v6429
        %v6463 = vmul.f32 %v6430, %v6430
        %v6464 = vmul.f32 %v6431, %v6431
        %v6465 = vmul.f32 %v6432, %v6432
        %v6466 = vmul.f32 %v6433, %v6433
        %v6467 = vmul.f32 %v6434, %v6434
        %v6468 = vmul.f32 %v6435, %v6435
        %v6469 = vmul.f32 %v6436, %v6436
        %v6470 = vmul.f32 %v6437, %v6437
        %v6471 = vmul.f32 %v6438, %v6438
        %v6472 = vmul.f32 %v6439, %v6439
        %v6473 = vmul.f32 %v6440, %v6440
        %v6474 = vmul.f32 %v6441, %v6441
        %v6475 = vmul.f32 %v6442, %v6442
        %v6476 = vsel %vm1691, %v6443, 0.0
        %6477 = vadd.xlane.f32.xlu0 %v6476
        %v6478 = vpop.xlane.xlu0 %6477
        %v6479 = vsel %vm1691, %v6444, 0.0
        %6480 = vadd.xlane.f32.xlu0 %v6479
        %v6481 = vpop.xlane.xlu0 %6480
        %v6482 = vsel %vm1691, %v6445, 0.0
        %6483 = vadd.xlane.f32.xlu0 %v6482
        %v6484 = vpop.xlane.xlu0 %6483
        %v6485 = vsel %vm1691, %v6446, 0.0
        %6486 = vadd.xlane.f32.xlu0 %v6485
        %v6487 = vpop.xlane.xlu0 %6486
        %v6488 = vsel %vm1691, %v6447, 0.0
        %6489 = vadd.xlane.f32.xlu0 %v6488
        %v6490 = vpop.xlane.xlu0 %6489
        %v6491 = vsel %vm1691, %v6448, 0.0
        %6492 = vadd.xlane.f32.xlu0 %v6491
        %v6493 = vpop.xlane.xlu0 %6492
        %v6494 = vsel %vm1691, %v6449, 0.0
        %6495 = vadd.xlane.f32.xlu0 %v6494
        %v6496 = vpop.xlane.xlu0 %6495
        %v6497 = vsel %vm1691, %v6450, 0.0
        %6498 = vadd.xlane.f32.xlu0 %v6497
        %v6499 = vpop.xlane.xlu0 %6498
        %v6500 = vsel %vm1691, %v6451, 0.0
        %6501 = vadd.xlane.f32.xlu0 %v6500
        %v6502 = vpop.xlane.xlu0 %6501
        %v6503 = vsel %vm1691, %v6452, 0.0
        %6504 = vadd.xlane.f32.xlu0 %v6503
        %v6505 = vpop.xlane.xlu0 %6504
        %v6506 = vsel %vm1691, %v6453, 0.0
        %6507 = vadd.xlane.f32.xlu0 %v6506
        %v6508 = vpop.xlane.xlu0 %6507
        %v6509 = vsel %vm1691, %v6454, 0.0
        %6510 = vadd.xlane.f32.xlu0 %v6509
        %v6511 = vpop.xlane.xlu0 %6510
        %v6512 = vsel %vm1691, %v6455, 0.0
        %6513 = vadd.xlane.f32.xlu0 %v6512
        %v6514 = vpop.xlane.xlu0 %6513
        %v6515 = vsel %vm1691, %v6456, 0.0
        %6516 = vadd.xlane.f32.xlu0 %v6515
        %v6517 = vpop.xlane.xlu0 %6516
        %v6518 = vsel %vm1691, %v6457, 0.0
        %6519 = vadd.xlane.f32.xlu0 %v6518
        %v6520 = vpop.xlane.xlu0 %6519
        %v6521 = vsel %vm1691, %v6458, 0.0
        %6522 = vadd.xlane.f32.xlu0 %v6521
        %v6523 = vpop.xlane.xlu0 %6522
        %v6524 = vsel %vm1691, %v6459, 0.0
        %6525 = vadd.xlane.f32.xlu0 %v6524
        %v6526 = vpop.xlane.xlu0 %6525
        %v6527 = vsel %vm1691, %v6460, 0.0
        %6528 = vadd.xlane.f32.xlu0 %v6527
        %v6529 = vpop.xlane.xlu0 %6528
        %v6530 = vsel %vm1691, %v6461, 0.0
        %6531 = vadd.xlane.f32.xlu0 %v6530
        %v6532 = vpop.xlane.xlu0 %6531
        %v6533 = vsel %vm1691, %v6462, 0.0
        %6534 = vadd.xlane.f32.xlu0 %v6533
        %v6535 = vpop.xlane.xlu0 %6534
        %v6536 = vsel %vm1691, %v6463, 0.0
        %6537 = vadd.xlane.f32.xlu0 %v6536
        %v6538 = vpop.xlane.xlu0 %6537
        %v6539 = vsel %vm1691, %v6464, 0.0
        %6540 = vadd.xlane.f32.xlu0 %v6539
        %v6541 = vpop.xlane.xlu0 %6540
        %v6542 = vsel %vm1691, %v6465, 0.0
        %6543 = vadd.xlane.f32.xlu0 %v6542
        %v6544 = vpop.xlane.xlu0 %6543
        %v6545 = vsel %vm1691, %v6466, 0.0
        %6546 = vadd.xlane.f32.xlu0 %v6545
        %v6547 = vpop.xlane.xlu0 %6546
        %v6548 = vsel %vm1691, %v6467, 0.0
        %6549 = vadd.xlane.f32.xlu0 %v6548
        %v6550 = vpop.xlane.xlu0 %6549
        %v6551 = vsel %vm1691, %v6468, 0.0
        %6552 = vadd.xlane.f32.xlu0 %v6551
        %v6553 = vpop.xlane.xlu0 %6552
        %v6554 = vsel %vm1691, %v6469, 0.0
        %6555 = vadd.xlane.f32.xlu0 %v6554
        %v6556 = vpop.xlane.xlu0 %6555
        %v6557 = vsel %vm1691, %v6470, 0.0
        %6558 = vadd.xlane.f32.xlu0 %v6557
        %v6559 = vpop.xlane.xlu0 %6558
        %v6560 = vsel %vm1691, %v6471, 0.0
        %6561 = vadd.xlane.f32.xlu0 %v6560
        %v6562 = vpop.xlane.xlu0 %6561
        %v6563 = vsel %vm1691, %v6472, 0.0
        %6564 = vadd.xlane.f32.xlu0 %v6563
        %v6565 = vpop.xlane.xlu0 %6564
        %v6566 = vsel %vm1691, %v6473, 0.0
        %6567 = vadd.xlane.f32.xlu0 %v6566
        %v6568 = vpop.xlane.xlu0 %6567
        %v6569 = vsel %vm1691, %v6474, 0.0
        %6570 = vadd.xlane.f32.xlu0 %v6569
        %v6571 = vpop.xlane.xlu0 %6570
        %v6572 = vsel %vm1691, %v6475, 0.0
        %6573 = vadd.xlane.f32.xlu0 %v6572
        %v6574 = vpop.xlane.xlu0 %6573
        %v6575 = vmul.f32 %v6478, %v1791
        %v6576 = vmul.f32 %v6481, %v1791
        %v6577 = vmul.f32 %v6484, %v1791
        %v6578 = vmul.f32 %v6487, %v1791
        %v6579 = vmul.f32 %v6490, %v1791
        %v6580 = vmul.f32 %v6493, %v1791
        %v6581 = vmul.f32 %v6496, %v1791
        %v6582 = vmul.f32 %v6499, %v1791
        %v6583 = vmul.f32 %v6502, %v1791
        %v6584 = vmul.f32 %v6505, %v1791
        %v6585 = vmul.f32 %v6508, %v1791
        %v6586 = vmul.f32 %v6511, %v1791
        %v6587 = vmul.f32 %v6514, %v1791
        %v6588 = vmul.f32 %v6517, %v1791
        %v6589 = vmul.f32 %v6520, %v1791
        %v6590 = vmul.f32 %v6523, %v1791
        %v6591 = vmul.f32 %v6526, %v1791
        %v6592 = vmul.f32 %v6529, %v1791
        %v6593 = vmul.f32 %v6532, %v1791
        %v6594 = vmul.f32 %v6535, %v1791
        %v6595 = vmul.f32 %v6538, %v1791
        %v6596 = vmul.f32 %v6541, %v1791
        %v6597 = vmul.f32 %v6544, %v1791
        %v6598 = vmul.f32 %v6547, %v1791
        %v6599 = vmul.f32 %v6550, %v1791
        %v6600 = vmul.f32 %v6553, %v1791
        %v6601 = vmul.f32 %v6556, %v1791
        %v6602 = vmul.f32 %v6559, %v1791
        %v6603 = vmul.f32 %v6562, %v1791
        %v6604 = vmul.f32 %v6565, %v1791
        %v6605 = vmul.f32 %v6568, %v1791
        %v6606 = vmul.f32 %v6571, %v1791
        %v6607 = vmul.f32 %v6574, %v1791
        %v6608 = vadd.f32 %v6575, 1e-06
        %v6609 = vadd.f32 %v6576, 1e-06
        %v6610 = vadd.f32 %v6577, 1e-06
        %v6611 = vadd.f32 %v6578, 1e-06
        %v6612 = vadd.f32 %v6579, 1e-06
        %v6613 = vadd.f32 %v6580, 1e-06
        %v6614 = vadd.f32 %v6581, 1e-06
        %v6615 = vadd.f32 %v6582, 1e-06
        %v6616 = vadd.f32 %v6583, 1e-06
        %v6617 = vadd.f32 %v6584, 1e-06
        %v6618 = vadd.f32 %v6585, 1e-06
        %v6619 = vadd.f32 %v6586, 1e-06
        %v6620 = vadd.f32 %v6587, 1e-06
        %v6621 = vadd.f32 %v6588, 1e-06
        %v6622 = vadd.f32 %v6589, 1e-06
        %v6623 = vadd.f32 %v6590, 1e-06
        %v6624 = vadd.f32 %v6591, 1e-06
        %v6625 = vadd.f32 %v6592, 1e-06
        %v6626 = vadd.f32 %v6593, 1e-06
        %v6627 = vadd.f32 %v6594, 1e-06
        %v6628 = vadd.f32 %v6595, 1e-06
        %v6629 = vadd.f32 %v6596, 1e-06
        %v6630 = vadd.f32 %v6597, 1e-06
        %v6631 = vadd.f32 %v6598, 1e-06
        %v6632 = vadd.f32 %v6599, 1e-06
        %v6633 = vadd.f32 %v6600, 1e-06
        %v6634 = vadd.f32 %v6601, 1e-06
        %v6635 = vadd.f32 %v6602, 1e-06
        %v6636 = vadd.f32 %v6603, 1e-06
        %v6637 = vadd.f32 %v6604, 1e-06
        %v6638 = vadd.f32 %v6605, 1e-06
        %v6639 = vadd.f32 %v6606, 1e-06
        %v6640 = vadd.f32 %v6607, 1e-06
        %v6641 = vrsqrt.pop %v6608
        %v6642 = vrsqrt.pop %v6609
        %v6643 = vrsqrt.pop %v6610
        %v6644 = vrsqrt.pop %v6611
        %v6645 = vrsqrt.pop %v6612
        %v6646 = vrsqrt.pop %v6613
        %v6647 = vrsqrt.pop %v6614
        %v6648 = vrsqrt.pop %v6615
        %v6649 = vrsqrt.pop %v6616
        %v6650 = vrsqrt.pop %v6617
        %v6651 = vrsqrt.pop %v6618
        %v6652 = vrsqrt.pop %v6619
        %v6653 = vrsqrt.pop %v6620
        %v6654 = vrsqrt.pop %v6621
        %v6655 = vrsqrt.pop %v6622
        %v6656 = vrsqrt.pop %v6623
        %v6657 = vrsqrt.pop %v6624
        %v6658 = vrsqrt.pop %v6625
        %v6659 = vrsqrt.pop %v6626
        %v6660 = vrsqrt.pop %v6627
        %v6661 = vrsqrt.pop %v6628
        %v6662 = vrsqrt.pop %v6629
        %v6663 = vrsqrt.pop %v6630
        %v6664 = vrsqrt.pop %v6631
        %v6665 = vrsqrt.pop %v6632
        %v6666 = vrsqrt.pop %v6633
        %v6667 = vrsqrt.pop %v6634
        %v6668 = vrsqrt.pop %v6635
        %v6669 = vrsqrt.pop %v6636
        %v6670 = vrsqrt.pop %v6637
        %v6671 = vrsqrt.pop %v6638
        %v6672 = vrsqrt.pop %v6639
        %v6673 = vrsqrt.pop %v6640
        %v6674 = vmul.f32 %v6410, %v6641
        %v6675 = vmul.f32 %v6411, %v6642
        %v6676 = vmul.f32 %v6412, %v6643
        %v6677 = vmul.f32 %v6413, %v6644
        %v6678 = vmul.f32 %v6414, %v6645
        %v6679 = vmul.f32 %v6415, %v6646
        %v6680 = vmul.f32 %v6416, %v6647
        %v6681 = vmul.f32 %v6417, %v6648
        %v6682 = vmul.f32 %v6418, %v6649
        %v6683 = vmul.f32 %v6419, %v6650
        %v6684 = vmul.f32 %v6420, %v6651
        %v6685 = vmul.f32 %v6421, %v6652
        %v6686 = vmul.f32 %v6422, %v6653
        %v6687 = vmul.f32 %v6423, %v6654
        %v6688 = vmul.f32 %v6424, %v6655
        %v6689 = vmul.f32 %v6425, %v6656
        %v6690 = vmul.f32 %v6426, %v6657
        %v6691 = vmul.f32 %v6427, %v6658
        %v6692 = vmul.f32 %v6428, %v6659
        %v6693 = vmul.f32 %v6429, %v6660
        %v6694 = vmul.f32 %v6430, %v6661
        %v6695 = vmul.f32 %v6431, %v6662
        %v6696 = vmul.f32 %v6432, %v6663
        %v6697 = vmul.f32 %v6433, %v6664
        %v6698 = vmul.f32 %v6434, %v6665
        %v6699 = vmul.f32 %v6435, %v6666
        %v6700 = vmul.f32 %v6436, %v6667
        %v6701 = vmul.f32 %v6437, %v6668
        %v6702 = vmul.f32 %v6438, %v6669
        %v6703 = vmul.f32 %v6439, %v6670
        %v6704 = vmul.f32 %v6440, %v6671
        %v6705 = vmul.f32 %v6441, %v6672
        %v6706 = vmul.f32 %v6442, %v6673
        %v6708 = vlaneseq
        %v6709 = vshrl.u32 %v6708, 7
        %v6710 = vsub.s32 0, %v6709
        %v6711 = vrot.slane %v6275, %v6710
        %v6713 = vmul.f32 %v6674, %v6711
        %v6714 = vmul.f32 %v6675, %v6711
        %v6715 = vmul.f32 %v6676, %v6711
        %v6716 = vmul.f32 %v6677, %v6711
        %v6717 = vmul.f32 %v6678, %v6711
        %v6718 = vmul.f32 %v6679, %v6711
        %v6719 = vmul.f32 %v6680, %v6711
        %v6720 = vmul.f32 %v6681, %v6711
        %v6721 = vmul.f32 %v6682, %v6711
        %v6722 = vmul.f32 %v6683, %v6711
        %v6723 = vmul.f32 %v6684, %v6711
        %v6724 = vmul.f32 %v6685, %v6711
        %v6725 = vmul.f32 %v6686, %v6711
        %v6726 = vmul.f32 %v6687, %v6711
        %v6727 = vmul.f32 %v6688, %v6711
        %v6728 = vmul.f32 %v6689, %v6711
        %v6729 = vmul.f32 %v6690, %v6711
        %v6730 = vmul.f32 %v6691, %v6711
        %v6731 = vmul.f32 %v6692, %v6711
        %v6732 = vmul.f32 %v6693, %v6711
        %v6733 = vmul.f32 %v6694, %v6711
        %v6734 = vmul.f32 %v6695, %v6711
        %v6735 = vmul.f32 %v6696, %v6711
        %v6736 = vmul.f32 %v6697, %v6711
        %v6737 = vmul.f32 %v6698, %v6711
        %v6738 = vmul.f32 %v6699, %v6711
        %v6739 = vmul.f32 %v6700, %v6711
        %v6740 = vmul.f32 %v6701, %v6711
        %v6741 = vmul.f32 %v6702, %v6711
        %v6742 = vmul.f32 %v6703, %v6711
        %v6743 = vmul.f32 %v6704, %v6711
        %v6744 = vmul.f32 %v6705, %v6711
        %v6745 = vmul.f32 %v6706, %v6711
        %v6747 = vlaneseq
        %v6748 = vshrl.u32 %v6747, 7
        %v6749 = vsub.s32 0, %v6748
        %v6750 = vrot.slane %v6277, %v6749
        %v6752 = vadd.f32 %v6713, %v6750
        %v6753 = vadd.f32 %v6714, %v6750
        %v6754 = vadd.f32 %v6715, %v6750
        %v6755 = vadd.f32 %v6716, %v6750
        %v6756 = vadd.f32 %v6717, %v6750
        %v6757 = vadd.f32 %v6718, %v6750
        %v6758 = vadd.f32 %v6719, %v6750
        %v6759 = vadd.f32 %v6720, %v6750
        %v6760 = vadd.f32 %v6721, %v6750
        %v6761 = vadd.f32 %v6722, %v6750
        %v6762 = vadd.f32 %v6723, %v6750
        %v6763 = vadd.f32 %v6724, %v6750
        %v6764 = vadd.f32 %v6725, %v6750
        %v6765 = vadd.f32 %v6726, %v6750
        %v6766 = vadd.f32 %v6727, %v6750
        %v6767 = vadd.f32 %v6728, %v6750
        %v6768 = vadd.f32 %v6729, %v6750
        %v6769 = vadd.f32 %v6730, %v6750
        %v6770 = vadd.f32 %v6731, %v6750
        %v6771 = vadd.f32 %v6732, %v6750
        %v6772 = vadd.f32 %v6733, %v6750
        %v6773 = vadd.f32 %v6734, %v6750
        %v6774 = vadd.f32 %v6735, %v6750
        %v6775 = vadd.f32 %v6736, %v6750
        %v6776 = vadd.f32 %v6737, %v6750
        %v6777 = vadd.f32 %v6738, %v6750
        %v6778 = vadd.f32 %v6739, %v6750
        %v6779 = vadd.f32 %v6740, %v6750
        %v6780 = vadd.f32 %v6741, %v6750
        %v6781 = vadd.f32 %v6742, %v6750
        %v6782 = vadd.f32 %v6743, %v6750
        %v6783 = vadd.f32 %v6744, %v6750
        %v6784 = vadd.f32 %v6745, %v6750
        %v6785 = vpack.c.bf16 %v6753, %v6752
        %v6786 = vpack.c.bf16 %v6755, %v6754
        %v6787 = vpack.c.bf16 %v6757, %v6756
        %v6788 = vpack.c.bf16 %v6759, %v6758
        %v6789 = vpack.c.bf16 %v6761, %v6760
        %v6790 = vpack.c.bf16 %v6763, %v6762
        %v6791 = vpack.c.bf16 %v6765, %v6764
        %v6792 = vpack.c.bf16 %v6767, %v6766
        %v6793 = vpack.c.bf16 %v6769, %v6768
        %v6794 = vpack.c.bf16 %v6771, %v6770
        %v6795 = vpack.c.bf16 %v6773, %v6772
        %v6796 = vpack.c.bf16 %v6775, %v6774
        %v6797 = vpack.c.bf16 %v6777, %v6776
        %v6798 = vpack.c.bf16 %v6779, %v6778
        %v6799 = vpack.c.bf16 %v6781, %v6780
        %v6800 = vpack.c.bf16 %v6783, %v6782
        %v6801 = vpack.c.bf16 %v6784, %v6784
        %s6802 = scalar_lea.vmem %s6, 16
        %v6803 = vld [vmem:[%s6802] sm:$0xf]
        %v6804 = vld [vmem:[%s6802 + $0x4] sm:$0xf]
        %v6805 = vld [vmem:[%s6802 + $0x8] sm:$0xf]
        %v6806 = vld [vmem:[%s6802 + $0xc] sm:$0xf]
        %s6807 = scalar_lea.vmem %s7, 1
        %v6808 = vld [vmem:[%s6807] sm:$0x1]
        %v6810 = vlaneseq
        %v6811 = vshrl.u32 %v6810, 7
        %v6812 = vsub.s32 0, %v6811
        %v6813 = vrot.slane %v6808, %v6812
        %v6819 = vunpack.c.l.b16 %v6803
        %v6820 = vunpack.c.l.b16 %v6804
        %v6821 = vunpack.c.l.b16 %v6805
        %v6822 = vunpack.c.l.b16 %v6806
        %v6823 = vpack.c.b16 %v6820, %v6819
        %v6824 = vpack.c.b16 %v6822, %v6821
        %v6828 = vsel %vm1691, %v6785, 0
        %v6831 = vsel %vm1691, %v6786, 0
        %v6834 = vsel %vm1691, %v6787, 0
        %v6837 = vsel %vm1691, %v6788, 0
        %v6840 = vsel %vm1691, %v6789, 0
        %v6843 = vsel %vm1691, %v6790, 0
        %v6846 = vsel %vm1691, %v6791, 0
        %v6849 = vsel %vm1691, %v6792, 0
        %v6852 = vsel %vm1691, %v6793, 0
        %v6855 = vsel %vm1691, %v6794, 0
        %v6858 = vsel %vm1691, %v6795, 0
        %v6861 = vsel %vm1691, %v6796, 0
        %v6864 = vsel %vm1691, %v6797, 0
        %v6867 = vsel %vm1691, %v6798, 0
        %v6870 = vsel %vm1691, %v6799, 0
        %v6873 = vsel %vm1691, %v6800, 0
        %v6876 = vsel %vm1691, %v6801, 0
        %6878 = vmatprep.subr.bf16.mxu0 0
        %6879 = vmatpush1.bf16.msra.mxu0 %v6823
        %6880 = vmatprep.subr.bf16.mxu0 0
        %6881 = vmatpush1.bf16.msra.mxu0 %v6824
        %6882 = vmatprep.subr.bf16.mxu0 0
        %6883 = vmatpush1.bf16.msra.mxu0 0
        %6884 = vmatprep.subr.bf16.mxu0 0
        %6885 = vmatpush1.bf16.msra.mxu0 0
        %6886 = vmatprep.subr.bf16.mxu0 0
        %6887 = vmatpush1.bf16.msra.mxu0 0
        %6888 = vmatprep.subr.bf16.mxu0 0
        %6889 = vmatpush1.bf16.msra.mxu0 0
        %6890 = vmatprep.subr.bf16.mxu0 0
        %6891 = vmatpush1.bf16.msra.mxu0 0
        %6892 = vmatprep.subr.bf16.mxu0 0
        %6893 = vmatpush1.bf16.msra.mxu0 0
        %6894 = vmatprep.subr.bf16.mxu0 0
        %6895 = vmatpush1.bf16.msra.mxu0 0
        %6896 = vmatprep.subr.bf16.mxu0 0
        %6897 = vmatpush1.bf16.msra.mxu0 0
        %6898 = vmatprep.subr.bf16.mxu0 0
        %6899 = vmatpush1.bf16.msra.mxu0 0
        %6900 = vmatprep.subr.bf16.mxu0 0
        %6901 = vmatpush1.bf16.msra.mxu0 0
        %6902 = vmatprep.subr.bf16.mxu0 0
        %6903 = vmatpush1.bf16.msra.mxu0 0
        %6904 = vmatprep.subr.bf16.mxu0 0
        %6905 = vmatpush1.bf16.msra.mxu0 0
        %6906 = vmatprep.subr.bf16.mxu0 0
        %6907 = vmatpush1.bf16.msra.mxu0 0
        %6908 = vmatprep.subr.bf16.mxu0 0
        %6909 = vmatpush1.bf16.msra.mxu0 0
        %6910 = vmatprep.mubr.bf16.mxu0 0
        %6911 = vmatmul.mubr.bf16.gmra.mrb[0].mxu0 %v6828
        %v6912 = vpop.f32.mrb[0].mxu0
        %v6913 = vadd.f32 %v6813, %v6912
        %v6914 = vpop.f32.mrb[0].mxu0
        %v6915 = vpop.f32.mrb[0].mxu0
        %v6916 = vadd.f32 %v6813, %v6915
        %v6917 = vpop.f32.mrb[0].mxu0
        %6918 = vmatprep.mubr.bf16.mxu0 0
        %6919 = vmatmul.mubr.bf16.gmra.mrb[0].mxu0 %v6831
        %v6920 = vpop.f32.mrb[0].mxu0
        %v6921 = vadd.f32 %v6813, %v6920
        %v6922 = vpop.f32.mrb[0].mxu0
        %v6923 = vpop.f32.mrb[0].mxu0
        %v6924 = vadd.f32 %v6813, %v6923
        %v6925 = vpop.f32.mrb[0].mxu0
        %6926 = vmatprep.mubr.bf16.mxu0 0
        %6927 = vmatmul.mubr.bf16.gmra.mrb[0].mxu0 %v6834
        %v6928 = vpop.f32.mrb[0].mxu0
        %v6929 = vadd.f32 %v6813, %v6928
        %v6930 = vpop.f32.mrb[0].mxu0
        %v6931 = vpop.f32.mrb[0].mxu0
        %v6932 = vadd.f32 %v6813, %v6931
        %v6933 = vpop.f32.mrb[0].mxu0
        %6934 = vmatprep.mubr.bf16.mxu0 0
        %6935 = vmatmul.mubr.bf16.gmra.mrb[0].mxu0 %v6837
        %v6936 = vpop.f32.mrb[0].mxu0
        %v6937 = vadd.f32 %v6813, %v6936
        %v6938 = vpop.f32.mrb[0].mxu0
        %v6939 = vpop.f32.mrb[0].mxu0
        %v6940 = vadd.f32 %v6813, %v6939
        %v6941 = vpop.f32.mrb[0].mxu0
        %6942 = vmatprep.mubr.bf16.mxu0 0
        %6943 = vmatmul.mubr.bf16.gmra.mrb[0].mxu0 %v6840
        %v6944 = vpop.f32.mrb[0].mxu0
        %v6945 = vadd.f32 %v6813, %v6944
        %v6946 = vpop.f32.mrb[0].mxu0
        %v6947 = vpop.f32.mrb[0].mxu0
        %v6948 = vadd.f32 %v6813, %v6947
        %v6949 = vpop.f32.mrb[0].mxu0
        %6950 = vmatprep.mubr.bf16.mxu0 0
        %6951 = vmatmul.mubr.bf16.gmra.mrb[0].mxu0 %v6843
        %v6952 = vpop.f32.mrb[0].mxu0
        %v6953 = vadd.f32 %v6813, %v6952
        %v6954 = vpop.f32.mrb[0].mxu0
        %v6955 = vpop.f32.mrb[0].mxu0
        %v6956 = vadd.f32 %v6813, %v6955
        %v6957 = vpop.f32.mrb[0].mxu0
        %6958 = vmatprep.mubr.bf16.mxu0 0
        %6959 = vmatmul.mubr.bf16.gmra.mrb[0].mxu0 %v6846
        %v6960 = vpop.f32.mrb[0].mxu0
        %v6961 = vadd.f32 %v6813, %v6960
        %v6962 = vpop.f32.mrb[0].mxu0
        %v6963 = vpop.f32.mrb[0].mxu0
        %v6964 = vadd.f32 %v6813, %v6963
        %v6965 = vpop.f32.mrb[0].mxu0
        %6966 = vmatprep.mubr.bf16.mxu0 0
        %6967 = vmatmul.mubr.bf16.gmra.mrb[0].mxu0 %v6849
        %v6968 = vpop.f32.mrb[0].mxu0
        %v6969 = vadd.f32 %v6813, %v6968
        %v6970 = vpop.f32.mrb[0].mxu0
        %v6971 = vpop.f32.mrb[0].mxu0
        %v6972 = vadd.f32 %v6813, %v6971
        %v6973 = vpop.f32.mrb[0].mxu0
        %6974 = vmatprep.mubr.bf16.mxu0 0
        %6975 = vmatmul.mubr.bf16.gmra.mrb[0].mxu0 %v6852
        %v6976 = vpop.f32.mrb[0].mxu0
        %v6977 = vadd.f32 %v6813, %v6976
        %v6978 = vpop.f32.mrb[0].mxu0
        %v6979 = vpop.f32.mrb[0].mxu0
        %v6980 = vadd.f32 %v6813, %v6979
        %v6981 = vpop.f32.mrb[0].mxu0
        %6982 = vmatprep.mubr.bf16.mxu0 0
        %6983 = vmatmul.mubr.bf16.gmra.mrb[0].mxu0 %v6855
        %v6984 = vpop.f32.mrb[0].mxu0
        %v6985 = vadd.f32 %v6813, %v6984
        %v6986 = vpop.f32.mrb[0].mxu0
        %v6987 = vpop.f32.mrb[0].mxu0
        %v6988 = vadd.f32 %v6813, %v6987
        %v6989 = vpop.f32.mrb[0].mxu0
        %6990 = vmatprep.mubr.bf16.mxu0 0
        %6991 = vmatmul.mubr.bf16.gmra.mrb[0].mxu0 %v6858
        %v6992 = vpop.f32.mrb[0].mxu0
        %v6993 = vadd.f32 %v6813, %v6992
        %v6994 = vpop.f32.mrb[0].mxu0
        %v6995 = vpop.f32.mrb[0].mxu0
        %v6996 = vadd.f32 %v6813, %v6995
        %v6997 = vpop.f32.mrb[0].mxu0
        %6998 = vmatprep.mubr.bf16.mxu0 0
        %6999 = vmatmul.mubr.bf16.gmra.mrb[0].mxu0 %v6861
        %v7000 = vpop.f32.mrb[0].mxu0
        %v7001 = vadd.f32 %v6813, %v7000
        %v7002 = vpop.f32.mrb[0].mxu0
        %v7003 = vpop.f32.mrb[0].mxu0
        %v7004 = vadd.f32 %v6813, %v7003
        %v7005 = vpop.f32.mrb[0].mxu0
        %7006 = vmatprep.mubr.bf16.mxu0 0
        %7007 = vmatmul.mubr.bf16.gmra.mrb[0].mxu0 %v6864
        %v7008 = vpop.f32.mrb[0].mxu0
        %v7009 = vadd.f32 %v6813, %v7008
        %v7010 = vpop.f32.mrb[0].mxu0
        %v7011 = vpop.f32.mrb[0].mxu0
        %v7012 = vadd.f32 %v6813, %v7011
        %v7013 = vpop.f32.mrb[0].mxu0
        %7014 = vmatprep.mubr.bf16.mxu0 0
        %7015 = vmatmul.mubr.bf16.gmra.mrb[0].mxu0 %v6867
        %v7016 = vpop.f32.mrb[0].mxu0
        %v7017 = vadd.f32 %v6813, %v7016
        %v7018 = vpop.f32.mrb[0].mxu0
        %v7019 = vpop.f32.mrb[0].mxu0
        %v7020 = vadd.f32 %v6813, %v7019
        %v7021 = vpop.f32.mrb[0].mxu0
        %7022 = vmatprep.mubr.bf16.mxu0 0
        %7023 = vmatmul.mubr.bf16.gmra.mrb[0].mxu0 %v6870
        %v7024 = vpop.f32.mrb[0].mxu0
        %v7025 = vadd.f32 %v6813, %v7024
        %v7026 = vpop.f32.mrb[0].mxu0
        %v7027 = vpop.f32.mrb[0].mxu0
        %v7028 = vadd.f32 %v6813, %v7027
        %v7029 = vpop.f32.mrb[0].mxu0
        %7030 = vmatprep.mubr.bf16.mxu0 0
        %7031 = vmatmul.mubr.bf16.gmra.mrb[0].mxu0 %v6873
        %v7032 = vpop.f32.mrb[0].mxu0
        %v7033 = vadd.f32 %v6813, %v7032
        %v7034 = vpop.f32.mrb[0].mxu0
        %v7035 = vpop.f32.mrb[0].mxu0
        %v7036 = vadd.f32 %v6813, %v7035
        %v7037 = vpop.f32.mrb[0].mxu0
        %7038 = vmatprep.mubr.bf16.mxu0 0
        %7039 = vmatmul.mubr.bf16.gmra.mrb[0].mxu0 %v6876
        %v7040 = vpop.f32.mrb[0].mxu0
        %v7041 = vadd.f32 %v6813, %v7040
        %v7042 = vpop.f32.mrb[0].mxu0
        %v7043 = vpop.f32.mrb[0].mxu0
        %v7044 = vpop.f32.mrb[0].mxu0
        %7045 = vdwg.mxu0
        %v7046 = vpack.c.bf16 %v6916, %v6913
        %v7047 = vpack.c.bf16 %v6924, %v6921
        %v7048 = vpack.c.bf16 %v6932, %v6929
        %v7049 = vpack.c.bf16 %v6940, %v6937
        %v7050 = vpack.c.bf16 %v6948, %v6945
        %v7051 = vpack.c.bf16 %v6956, %v6953
        %v7052 = vpack.c.bf16 %v6964, %v6961
        %v7053 = vpack.c.bf16 %v6972, %v6969
        %v7054 = vpack.c.bf16 %v6980, %v6977
        %v7055 = vpack.c.bf16 %v6988, %v6985
        %v7056 = vpack.c.bf16 %v6996, %v6993
        %v7057 = vpack.c.bf16 %v7004, %v7001
        %v7058 = vpack.c.bf16 %v7012, %v7009
        %v7059 = vpack.c.bf16 %v7020, %v7017
        %v7060 = vpack.c.bf16 %v7028, %v7025
        %v7061 = vpack.c.bf16 %v7036, %v7033
        %v7062 = vpack.c.bf16 %v7041, %v7041
        %7080 = vrot.lane.b32.xlu0 %v7046, 96
        %v7081 = vpop.permute.xlu0 %7080
        %7082 = vrot.lane.b32.xlu0 %v7047, 96
        %v7083 = vpop.permute.xlu0 %7082
        %7084 = vrot.lane.b32.xlu0 %v7048, 96
        %v7085 = vpop.permute.xlu0 %7084
        %7086 = vrot.lane.b32.xlu0 %v7049, 96
        %v7087 = vpop.permute.xlu0 %7086
        %7088 = vrot.lane.b32.xlu0 %v7050, 96
        %v7089 = vpop.permute.xlu0 %7088
        %7090 = vrot.lane.b32.xlu0 %v7051, 96
        %v7091 = vpop.permute.xlu0 %7090
        %7092 = vrot.lane.b32.xlu0 %v7052, 96
        %v7093 = vpop.permute.xlu0 %7092
        %7094 = vrot.lane.b32.xlu0 %v7053, 96
        %v7095 = vpop.permute.xlu0 %7094
        %7096 = vrot.lane.b32.xlu0 %v7054, 96
        %v7097 = vpop.permute.xlu0 %7096
        %7098 = vrot.lane.b32.xlu0 %v7055, 96
        %v7099 = vpop.permute.xlu0 %7098
        %7100 = vrot.lane.b32.xlu0 %v7056, 96
        %v7101 = vpop.permute.xlu0 %7100
        %7102 = vrot.lane.b32.xlu0 %v7057, 96
        %v7103 = vpop.permute.xlu0 %7102
        %7104 = vrot.lane.b32.xlu0 %v7058, 96
        %v7105 = vpop.permute.xlu0 %7104
        %7106 = vrot.lane.b32.xlu0 %v7059, 96
        %v7107 = vpop.permute.xlu0 %7106
        %7108 = vrot.lane.b32.xlu0 %v7060, 96
        %v7109 = vpop.permute.xlu0 %7108
        %7110 = vrot.lane.b32.xlu0 %v7061, 96
        %v7111 = vpop.permute.xlu0 %7110
        %7112 = vrot.lane.b32.xlu0 %v7062, 96
        %v7113 = vpop.permute.xlu0 %7112
        %v7131 = vsel %vm2688, %v7113, 0
        %7133 = vmatprep.subr.bf16.mxu0 0
        %7134 = vmatpush1.bf16.msra.mxu0 %v7081
        %7135 = vmatprep.subr.bf16.mxu0 0
        %7136 = vmatpush1.bf16.msra.mxu0 %v7083
        %7137 = vmatprep.subr.bf16.mxu0 0
        %7138 = vmatpush1.bf16.msra.mxu0 %v7085
        %7139 = vmatprep.subr.bf16.mxu0 0
        %7140 = vmatpush1.bf16.msra.mxu0 %v7087
        %7141 = vmatprep.subr.bf16.mxu0 0
        %7142 = vmatpush1.bf16.msra.mxu0 %v7089
        %7143 = vmatprep.subr.bf16.mxu0 0
        %7144 = vmatpush1.bf16.msra.mxu0 %v7091
        %7145 = vmatprep.subr.bf16.mxu0 0
        %7146 = vmatpush1.bf16.msra.mxu0 %v7093
        %7147 = vmatprep.subr.bf16.mxu0 0
        %7148 = vmatpush1.bf16.msra.mxu0 %v7095
        %7149 = vmatprep.subr.bf16.mxu0 0
        %7150 = vmatpush1.bf16.msra.mxu0 %v7097
        %7151 = vmatprep.subr.bf16.mxu0 0
        %7152 = vmatpush1.bf16.msra.mxu0 %v7099
        %7153 = vmatprep.subr.bf16.mxu0 0
        %7154 = vmatpush1.bf16.msra.mxu0 %v7101
        %7155 = vmatprep.subr.bf16.mxu0 0
        %7156 = vmatpush1.bf16.msra.mxu0 %v7103
        %7157 = vmatprep.subr.bf16.mxu0 0
        %7158 = vmatpush1.bf16.msra.mxu0 %v7105
        %7159 = vmatprep.subr.bf16.mxu0 0
        %7160 = vmatpush1.bf16.msra.mxu0 %v7107
        %7161 = vmatprep.subr.bf16.mxu0 0
        %7162 = vmatpush1.bf16.msra.mxu0 %v7109
        %7163 = vmatprep.subr.bf16.mxu0 0
        %7164 = vmatpush1.bf16.msra.mxu0 %v7111
        %7165 = vmatprep.mubr.bf16.mxu0 %v2557
        %7166 = vmatmul.mubr.bf16.gmra.mrb[0].mxu0 %v2556
        %v7167 = vpop.f32.mrb[0].mxu0
        %v7168 = vadd.f32 0.0, %v7167
        %v7169 = vpop.f32.mrb[0].mxu0
        %v7170 = vpop.f32.mrb[0].mxu0
        %v7171 = vadd.f32 0.0, %v7170
        %v7172 = vpop.f32.mrb[0].mxu0
        %7173 = vmatprep.mubr.bf16.mxu0 %v2560
        %7174 = vmatmul.mubr.bf16.gmra.mrb[0].mxu0 %v2559
        %v7175 = vpop.f32.mrb[0].mxu0
        %v7176 = vadd.f32 0.0, %v7175
        %v7177 = vpop.f32.mrb[0].mxu0
        %v7178 = vpop.f32.mrb[0].mxu0
        %v7179 = vadd.f32 0.0, %v7178
        %v7180 = vpop.f32.mrb[0].mxu0
        %7181 = vmatprep.mubr.bf16.mxu0 %v2563
        %7182 = vmatmul.mubr.bf16.gmra.mrb[0].mxu0 %v2562
        %v7183 = vpop.f32.mrb[0].mxu0
        %v7184 = vadd.f32 0.0, %v7183
        %v7185 = vpop.f32.mrb[0].mxu0
        %v7186 = vpop.f32.mrb[0].mxu0
        %v7187 = vadd.f32 0.0, %v7186
        %v7188 = vpop.f32.mrb[0].mxu0
        %7189 = vmatprep.mubr.bf16.mxu0 %v2566
        %7190 = vmatmul.mubr.bf16.gmra.mrb[0].mxu0 %v2565
        %v7191 = vpop.f32.mrb[0].mxu0
        %v7192 = vadd.f32 0.0, %v7191
        %v7193 = vpop.f32.mrb[0].mxu0
        %v7194 = vpop.f32.mrb[0].mxu0
        %v7195 = vadd.f32 0.0, %v7194
        %v7196 = vpop.f32.mrb[0].mxu0
        %7197 = vmatprep.mubr.bf16.mxu0 %v2569
        %7198 = vmatmul.mubr.bf16.gmra.mrb[0].mxu0 %v2568
        %v7199 = vpop.f32.mrb[0].mxu0
        %v7200 = vadd.f32 0.0, %v7199
        %v7201 = vpop.f32.mrb[0].mxu0
        %v7202 = vpop.f32.mrb[0].mxu0
        %v7203 = vadd.f32 0.0, %v7202
        %v7204 = vpop.f32.mrb[0].mxu0
        %7205 = vmatprep.mubr.bf16.mxu0 %v2572
        %7206 = vmatmul.mubr.bf16.gmra.mrb[0].mxu0 %v2571
        %v7207 = vpop.f32.mrb[0].mxu0
        %v7208 = vadd.f32 0.0, %v7207
        %v7209 = vpop.f32.mrb[0].mxu0
        %v7210 = vpop.f32.mrb[0].mxu0
        %v7211 = vadd.f32 0.0, %v7210
        %v7212 = vpop.f32.mrb[0].mxu0
        %7213 = vmatprep.mubr.bf16.mxu0 %v2575
        %7214 = vmatmul.mubr.bf16.gmra.mrb[0].mxu0 %v2574
        %v7215 = vpop.f32.mrb[0].mxu0
        %v7216 = vadd.f32 0.0, %v7215
        %v7217 = vpop.f32.mrb[0].mxu0
        %v7218 = vpop.f32.mrb[0].mxu0
        %v7219 = vadd.f32 0.0, %v7218
        %v7220 = vpop.f32.mrb[0].mxu0
        %7221 = vmatprep.mubr.bf16.mxu0 %v2578
        %7222 = vmatmul.mubr.bf16.gmra.mrb[0].mxu0 %v2577
        %v7223 = vpop.f32.mrb[0].mxu0
        %v7224 = vadd.f32 0.0, %v7223
        %v7225 = vpop.f32.mrb[0].mxu0
        %v7226 = vpop.f32.mrb[0].mxu0
        %v7227 = vadd.f32 0.0, %v7226
        %v7228 = vpop.f32.mrb[0].mxu0
        %7229 = vdwg.mxu0
        %7230 = vmatprep.subr.bf16.mxu0 0
        %7231 = vmatpush1.bf16.msra.mxu0 %v7131
        %7232 = vmatprep.subr.bf16.mxu0 0
        %7233 = vmatpush1.bf16.msra.mxu0 0
        %7234 = vmatprep.subr.bf16.mxu0 0
        %7235 = vmatpush1.bf16.msra.mxu0 0
        %7236 = vmatprep.subr.bf16.mxu0 0
        %7237 = vmatpush1.bf16.msra.mxu0 0
        %7238 = vmatprep.subr.bf16.mxu0 0
        %7239 = vmatpush1.bf16.msra.mxu0 0
        %7240 = vmatprep.subr.bf16.mxu0 0
        %7241 = vmatpush1.bf16.msra.mxu0 0
        %7242 = vmatprep.subr.bf16.mxu0 0
        %7243 = vmatpush1.bf16.msra.mxu0 0
        %7244 = vmatprep.subr.bf16.mxu0 0
        %7245 = vmatpush1.bf16.msra.mxu0 0
        %7246 = vmatprep.subr.bf16.mxu0 0
        %7247 = vmatpush1.bf16.msra.mxu0 0
        %7248 = vmatprep.subr.bf16.mxu0 0
        %7249 = vmatpush1.bf16.msra.mxu0 0
        %7250 = vmatprep.subr.bf16.mxu0 0
        %7251 = vmatpush1.bf16.msra.mxu0 0
        %7252 = vmatprep.subr.bf16.mxu0 0
        %7253 = vmatpush1.bf16.msra.mxu0 0
        %7254 = vmatprep.subr.bf16.mxu0 0
        %7255 = vmatpush1.bf16.msra.mxu0 0
        %7256 = vmatprep.subr.bf16.mxu0 0
        %7257 = vmatpush1.bf16.msra.mxu0 0
        %7258 = vmatprep.subr.bf16.mxu0 0
        %7259 = vmatpush1.bf16.msra.mxu0 0
        %7260 = vmatprep.subr.bf16.mxu0 0
        %7261 = vmatpush1.bf16.msra.mxu0 0
        %7262 = vmatprep.mubr.bf16.mxu0 0
        %7263 = vmatmul.mubr.bf16.gmra.mrb[0].mxu0 %v2665
        %v7264 = vpop.f32.mrb[0].mxu0
        %v7265 = vadd.f32 %v7168, %v7264
        %v7266 = vpop.f32.mrb[0].mxu0
        %v7267 = vpop.f32.mrb[0].mxu0
        %v7268 = vadd.f32 %v7171, %v7267
        %v7269 = vpop.f32.mrb[0].mxu0
        %7270 = vmatprep.mubr.bf16.mxu0 0
        %7271 = vmatmul.mubr.bf16.gmra.mrb[0].mxu0 %v2668
        %v7272 = vpop.f32.mrb[0].mxu0
        %v7273 = vadd.f32 %v7176, %v7272
        %v7274 = vpop.f32.mrb[0].mxu0
        %v7275 = vpop.f32.mrb[0].mxu0
        %v7276 = vadd.f32 %v7179, %v7275
        %v7277 = vpop.f32.mrb[0].mxu0
        %7278 = vmatprep.mubr.bf16.mxu0 0
        %7279 = vmatmul.mubr.bf16.gmra.mrb[0].mxu0 %v2671
        %v7280 = vpop.f32.mrb[0].mxu0
        %v7281 = vadd.f32 %v7184, %v7280
        %v7282 = vpop.f32.mrb[0].mxu0
        %v7283 = vpop.f32.mrb[0].mxu0
        %v7284 = vadd.f32 %v7187, %v7283
        %v7285 = vpop.f32.mrb[0].mxu0
        %7286 = vmatprep.mubr.bf16.mxu0 0
        %7287 = vmatmul.mubr.bf16.gmra.mrb[0].mxu0 %v2674
        %v7288 = vpop.f32.mrb[0].mxu0
        %v7289 = vadd.f32 %v7192, %v7288
        %v7290 = vpop.f32.mrb[0].mxu0
        %v7291 = vpop.f32.mrb[0].mxu0
        %v7292 = vadd.f32 %v7195, %v7291
        %v7293 = vpop.f32.mrb[0].mxu0
        %7294 = vmatprep.mubr.bf16.mxu0 0
        %7295 = vmatmul.mubr.bf16.gmra.mrb[0].mxu0 %v2677
        %v7296 = vpop.f32.mrb[0].mxu0
        %v7297 = vadd.f32 %v7200, %v7296
        %v7298 = vpop.f32.mrb[0].mxu0
        %v7299 = vpop.f32.mrb[0].mxu0
        %v7300 = vadd.f32 %v7203, %v7299
        %v7301 = vpop.f32.mrb[0].mxu0
        %7302 = vmatprep.mubr.bf16.mxu0 0
        %7303 = vmatmul.mubr.bf16.gmra.mrb[0].mxu0 %v2680
        %v7304 = vpop.f32.mrb[0].mxu0
        %v7305 = vadd.f32 %v7208, %v7304
        %v7306 = vpop.f32.mrb[0].mxu0
        %v7307 = vpop.f32.mrb[0].mxu0
        %v7308 = vadd.f32 %v7211, %v7307
        %v7309 = vpop.f32.mrb[0].mxu0
        %7310 = vmatprep.mubr.bf16.mxu0 0
        %7311 = vmatmul.mubr.bf16.gmra.mrb[0].mxu0 %v2683
        %v7312 = vpop.f32.mrb[0].mxu0
        %v7313 = vadd.f32 %v7216, %v7312
        %v7314 = vpop.f32.mrb[0].mxu0
        %v7315 = vpop.f32.mrb[0].mxu0
        %v7316 = vadd.f32 %v7219, %v7315
        %v7317 = vpop.f32.mrb[0].mxu0
        %7318 = vmatprep.mubr.bf16.mxu0 0
        %7319 = vmatmul.mubr.bf16.gmra.mrb[0].mxu0 %v2686
        %v7320 = vpop.f32.mrb[0].mxu0
        %v7321 = vadd.f32 %v7224, %v7320
        %v7322 = vpop.f32.mrb[0].mxu0
        %v7323 = vpop.f32.mrb[0].mxu0
        %v7324 = vadd.f32 %v7227, %v7323
        %v7325 = vpop.f32.mrb[0].mxu0
        %7326 = vdwg.mxu0
        %v7327 = vpack.c.bf16 %v7268, %v7265
        %v7328 = vpack.c.bf16 %v7276, %v7273
        %v7329 = vpack.c.bf16 %v7284, %v7281
        %v7330 = vpack.c.bf16 %v7292, %v7289
        %v7331 = vpack.c.bf16 %v7300, %v7297
        %v7332 = vpack.c.bf16 %v7308, %v7305
        %v7333 = vpack.c.bf16 %v7316, %v7313
        %v7334 = vpack.c.bf16 %v7324, %v7321
        %v7336 = vsel %vm2894, %v7046, 0
        %v7339 = vsel %vm2894, %v7047, 0
        %v7342 = vsel %vm2894, %v7048, 0
        %v7345 = vsel %vm2894, %v7049, 0
        %v7348 = vsel %vm2894, %v7050, 0
        %v7351 = vsel %vm2894, %v7051, 0
        %v7354 = vsel %vm2894, %v7052, 0
        %v7357 = vsel %vm2894, %v7053, 0
        %v7360 = vsel %vm2894, %v7054, 0
        %v7363 = vsel %vm2894, %v7055, 0
        %v7366 = vsel %vm2894, %v7056, 0
        %v7369 = vsel %vm2894, %v7057, 0
        %v7372 = vsel %vm2894, %v7058, 0
        %v7375 = vsel %vm2894, %v7059, 0
        %v7378 = vsel %vm2894, %v7060, 0
        %v7381 = vsel %vm2894, %v7061, 0
        %v7384 = vsel %vm2894, %v7062, 0
        %v7387 = vsel %vm2894, %v7327, 0
        %v7390 = vsel %vm2894, %v7328, 0
        %v7393 = vsel %vm2894, %v7329, 0
        %v7396 = vsel %vm2894, %v7330, 0
        %v7399 = vsel %vm2894, %v7331, 0
        %v7402 = vsel %vm2894, %v7332, 0
        %v7405 = vsel %vm2894, %v7333, 0
        %v7408 = vsel %vm2894, %v7334, 0
        %7410 = vmatprep.subr.bf16.mxu0 0
        %7411 = vmatpush1.bf16.xpose.msra.mxu0 %v7387
        %7412 = vmatprep.subr.bf16.mxu0 0
        %7413 = vmatpush1.bf16.xpose.msra.mxu0 %v7390
        %7414 = vmatprep.subr.bf16.mxu0 0
        %7415 = vmatpush1.bf16.xpose.msra.mxu0 %v7393
        %7416 = vmatprep.subr.bf16.mxu0 0
        %7417 = vmatpush1.bf16.xpose.msra.mxu0 %v7396
        %7418 = vmatprep.subr.bf16.mxu0 0
        %7419 = vmatpush1.bf16.xpose.msra.mxu0 %v7399
        %7420 = vmatprep.subr.bf16.mxu0 0
        %7421 = vmatpush1.bf16.xpose.msra.mxu0 %v7402
        %7422 = vmatprep.subr.bf16.mxu0 0
        %7423 = vmatpush1.bf16.xpose.msra.mxu0 %v7405
        %7424 = vmatprep.subr.bf16.mxu0 0
        %7425 = vmatpush1.bf16.xpose.msra.mxu0 %v7408
        %7426 = vmatprep.subr.bf16.mxu0 0
        %7427 = vmatpush1.bf16.xpose.msra.mxu0 0
        %7428 = vmatprep.subr.bf16.mxu0 0
        %7429 = vmatpush1.bf16.xpose.msra.mxu0 0
        %7430 = vmatprep.subr.bf16.mxu0 0
        %7431 = vmatpush1.bf16.xpose.msra.mxu0 0
        %7432 = vmatprep.subr.bf16.mxu0 0
        %7433 = vmatpush1.bf16.xpose.msra.mxu0 0
        %7434 = vmatprep.subr.bf16.mxu0 0
        %7435 = vmatpush1.bf16.xpose.msra.mxu0 0
        %7436 = vmatprep.subr.bf16.mxu0 0
        %7437 = vmatpush1.bf16.xpose.msra.mxu0 0
        %7438 = vmatprep.subr.bf16.mxu0 0
        %7439 = vmatpush1.bf16.xpose.msra.mxu0 0
        %7440 = vmatprep.subr.bf16.mxu0 0
        %7441 = vmatpush1.bf16.xpose.msra.mxu0 0
        %7442 = vmatprep.mubr.bf16.mxu0 0
        %7443 = vmatmul.mubr.bf16.gmra.mrb[0].mxu0 %v7336
        %v7444 = vpop.f32.mrb[0].mxu0
        %v7445 = vadd.f32 0.0, %v7444
        %v7446 = vpop.f32.mrb[0].mxu0
        %v7447 = vpop.f32.mrb[0].mxu0
        %v7448 = vadd.f32 0.0, %v7447
        %v7449 = vpop.f32.mrb[0].mxu0
        %7450 = vmatprep.mubr.bf16.mxu0 0
        %7451 = vmatmul.mubr.bf16.gmra.mrb[0].mxu0 %v7339
        %v7452 = vpop.f32.mrb[0].mxu0
        %v7453 = vadd.f32 0.0, %v7452
        %v7454 = vpop.f32.mrb[0].mxu0
        %v7455 = vpop.f32.mrb[0].mxu0
        %v7456 = vadd.f32 0.0, %v7455
        %v7457 = vpop.f32.mrb[0].mxu0
        %7458 = vmatprep.mubr.bf16.mxu0 0
        %7459 = vmatmul.mubr.bf16.gmra.mrb[0].mxu0 %v7342
        %v7460 = vpop.f32.mrb[0].mxu0
        %v7461 = vadd.f32 0.0, %v7460
        %v7462 = vpop.f32.mrb[0].mxu0
        %v7463 = vpop.f32.mrb[0].mxu0
        %v7464 = vadd.f32 0.0, %v7463
        %v7465 = vpop.f32.mrb[0].mxu0
        %7466 = vmatprep.mubr.bf16.mxu0 0
        %7467 = vmatmul.mubr.bf16.gmra.mrb[0].mxu0 %v7345
        %v7468 = vpop.f32.mrb[0].mxu0
        %v7469 = vadd.f32 0.0, %v7468
        %v7470 = vpop.f32.mrb[0].mxu0
        %v7471 = vpop.f32.mrb[0].mxu0
        %v7472 = vadd.f32 0.0, %v7471
        %v7473 = vpop.f32.mrb[0].mxu0
        %7474 = vmatprep.mubr.bf16.mxu0 0
        %7475 = vmatmul.mubr.bf16.gmra.mrb[0].mxu0 %v7348
        %v7476 = vpop.f32.mrb[0].mxu0
        %v7477 = vadd.f32 0.0, %v7476
        %v7478 = vpop.f32.mrb[0].mxu0
        %v7479 = vpop.f32.mrb[0].mxu0
        %v7480 = vadd.f32 0.0, %v7479
        %v7481 = vpop.f32.mrb[0].mxu0
        %7482 = vmatprep.mubr.bf16.mxu0 0
        %7483 = vmatmul.mubr.bf16.gmra.mrb[0].mxu0 %v7351
        %v7484 = vpop.f32.mrb[0].mxu0
        %v7485 = vadd.f32 0.0, %v7484
        %v7486 = vpop.f32.mrb[0].mxu0
        %v7487 = vpop.f32.mrb[0].mxu0
        %v7488 = vadd.f32 0.0, %v7487
        %v7489 = vpop.f32.mrb[0].mxu0
        %7490 = vmatprep.mubr.bf16.mxu0 0
        %7491 = vmatmul.mubr.bf16.gmra.mrb[0].mxu0 %v7354
        %v7492 = vpop.f32.mrb[0].mxu0
        %v7493 = vadd.f32 0.0, %v7492
        %v7494 = vpop.f32.mrb[0].mxu0
        %v7495 = vpop.f32.mrb[0].mxu0
        %v7496 = vadd.f32 0.0, %v7495
        %v7497 = vpop.f32.mrb[0].mxu0
        %7498 = vmatprep.mubr.bf16.mxu0 0
        %7499 = vmatmul.mubr.bf16.gmra.mrb[0].mxu0 %v7357
        %v7500 = vpop.f32.mrb[0].mxu0
        %v7501 = vadd.f32 0.0, %v7500
        %v7502 = vpop.f32.mrb[0].mxu0
        %v7503 = vpop.f32.mrb[0].mxu0
        %v7504 = vadd.f32 0.0, %v7503
        %v7505 = vpop.f32.mrb[0].mxu0
        %7506 = vmatprep.mubr.bf16.mxu0 0
        %7507 = vmatmul.mubr.bf16.gmra.mrb[0].mxu0 %v7360
        %v7508 = vpop.f32.mrb[0].mxu0
        %v7509 = vadd.f32 0.0, %v7508
        %v7510 = vpop.f32.mrb[0].mxu0
        %v7511 = vpop.f32.mrb[0].mxu0
        %v7512 = vadd.f32 0.0, %v7511
        %v7513 = vpop.f32.mrb[0].mxu0
        %7514 = vmatprep.mubr.bf16.mxu0 0
        %7515 = vmatmul.mubr.bf16.gmra.mrb[0].mxu0 %v7363
        %v7516 = vpop.f32.mrb[0].mxu0
        %v7517 = vadd.f32 0.0, %v7516
        %v7518 = vpop.f32.mrb[0].mxu0
        %v7519 = vpop.f32.mrb[0].mxu0
        %v7520 = vadd.f32 0.0, %v7519
        %v7521 = vpop.f32.mrb[0].mxu0
        %7522 = vmatprep.mubr.bf16.mxu0 0
        %7523 = vmatmul.mubr.bf16.gmra.mrb[0].mxu0 %v7366
        %v7524 = vpop.f32.mrb[0].mxu0
        %v7525 = vadd.f32 0.0, %v7524
        %v7526 = vpop.f32.mrb[0].mxu0
        %v7527 = vpop.f32.mrb[0].mxu0
        %v7528 = vadd.f32 0.0, %v7527
        %v7529 = vpop.f32.mrb[0].mxu0
        %7530 = vmatprep.mubr.bf16.mxu0 0
        %7531 = vmatmul.mubr.bf16.gmra.mrb[0].mxu0 %v7369
        %v7532 = vpop.f32.mrb[0].mxu0
        %v7533 = vadd.f32 0.0, %v7532
        %v7534 = vpop.f32.mrb[0].mxu0
        %v7535 = vpop.f32.mrb[0].mxu0
        %v7536 = vadd.f32 0.0, %v7535
        %v7537 = vpop.f32.mrb[0].mxu0
        %7538 = vmatprep.mubr.bf16.mxu0 0
        %7539 = vmatmul.mubr.bf16.gmra.mrb[0].mxu0 %v7372
        %v7540 = vpop.f32.mrb[0].mxu0
        %v7541 = vadd.f32 0.0, %v7540
        %v7542 = vpop.f32.mrb[0].mxu0
        %v7543 = vpop.f32.mrb[0].mxu0
        %v7544 = vadd.f32 0.0, %v7543
        %v7545 = vpop.f32.mrb[0].mxu0
        %7546 = vmatprep.mubr.bf16.mxu0 0
        %7547 = vmatmul.mubr.bf16.gmra.mrb[0].mxu0 %v7375
        %v7548 = vpop.f32.mrb[0].mxu0
        %v7549 = vadd.f32 0.0, %v7548
        %v7550 = vpop.f32.mrb[0].mxu0
        %v7551 = vpop.f32.mrb[0].mxu0
        %v7552 = vadd.f32 0.0, %v7551
        %v7553 = vpop.f32.mrb[0].mxu0
        %7554 = vmatprep.mubr.bf16.mxu0 0
        %7555 = vmatmul.mubr.bf16.gmra.mrb[0].mxu0 %v7378
        %v7556 = vpop.f32.mrb[0].mxu0
        %v7557 = vadd.f32 0.0, %v7556
        %v7558 = vpop.f32.mrb[0].mxu0
        %v7559 = vpop.f32.mrb[0].mxu0
        %v7560 = vadd.f32 0.0, %v7559
        %v7561 = vpop.f32.mrb[0].mxu0
        %7562 = vmatprep.mubr.bf16.mxu0 0
        %7563 = vmatmul.mubr.bf16.gmra.mrb[0].mxu0 %v7381
        %v7564 = vpop.f32.mrb[0].mxu0
        %v7565 = vadd.f32 0.0, %v7564
        %v7566 = vpop.f32.mrb[0].mxu0
        %v7567 = vpop.f32.mrb[0].mxu0
        %v7568 = vadd.f32 0.0, %v7567
        %v7569 = vpop.f32.mrb[0].mxu0
        %7570 = vmatprep.mubr.bf16.mxu0 0
        %7571 = vmatmul.mubr.bf16.gmra.mrb[0].mxu0 %v7384
        %v7572 = vpop.f32.mrb[0].mxu0
        %v7573 = vadd.f32 0.0, %v7572
        %v7574 = vpop.f32.mrb[0].mxu0
        %v7575 = vpop.f32.mrb[0].mxu0
        %v7576 = vpop.f32.mrb[0].mxu0
        %7577 = vdwg.mxu0
        %v7578 = vmul.f32 %v7445, 0.25
        %v7579 = vmul.f32 %v7448, 0.25
        %v7580 = vmul.f32 %v7453, 0.25
        %v7581 = vmul.f32 %v7456, 0.25
        %v7582 = vmul.f32 %v7461, 0.25
        %v7583 = vmul.f32 %v7464, 0.25
        %v7584 = vmul.f32 %v7469, 0.25
        %v7585 = vmul.f32 %v7472, 0.25
        %v7586 = vmul.f32 %v7477, 0.25
        %v7587 = vmul.f32 %v7480, 0.25
        %v7588 = vmul.f32 %v7485, 0.25
        %v7589 = vmul.f32 %v7488, 0.25
        %v7590 = vmul.f32 %v7493, 0.25
        %v7591 = vmul.f32 %v7496, 0.25
        %v7592 = vmul.f32 %v7501, 0.25
        %v7593 = vmul.f32 %v7504, 0.25
        %v7594 = vmul.f32 %v7509, 0.25
        %v7595 = vmul.f32 %v7512, 0.25
        %v7596 = vmul.f32 %v7517, 0.25
        %v7597 = vmul.f32 %v7520, 0.25
        %v7598 = vmul.f32 %v7525, 0.25
        %v7599 = vmul.f32 %v7528, 0.25
        %v7600 = vmul.f32 %v7533, 0.25
        %v7601 = vmul.f32 %v7536, 0.25
        %v7602 = vmul.f32 %v7541, 0.25
        %v7603 = vmul.f32 %v7544, 0.25
        %v7604 = vmul.f32 %v7549, 0.25
        %v7605 = vmul.f32 %v7552, 0.25
        %v7606 = vmul.f32 %v7557, 0.25
        %v7607 = vmul.f32 %v7560, 0.25
        %v7608 = vmul.f32 %v7565, 0.25
        %v7609 = vmul.f32 %v7568, 0.25
        %v7610 = vmul.f32 %v7573, 0.25
        %v7611 = vadd.f32 %v7578, %v1688
        %v7612 = vadd.f32 %v7579, %v1688
        %v7613 = vadd.f32 %v7580, %v1688
        %v7614 = vadd.f32 %v7581, %v1688
        %v7615 = vadd.f32 %v7582, %v1688
        %v7616 = vadd.f32 %v7583, %v1688
        %v7617 = vadd.f32 %v7584, %v1688
        %v7618 = vadd.f32 %v7585, %v1688
        %v7619 = vadd.f32 %v7586, %v1688
        %v7620 = vadd.f32 %v7587, %v1688
        %v7621 = vadd.f32 %v7588, %v1688
        %v7622 = vadd.f32 %v7589, %v1688
        %v7623 = vadd.f32 %v7590, %v1688
        %v7624 = vadd.f32 %v7591, %v1688
        %v7625 = vadd.f32 %v7592, %v1688
        %v7626 = vadd.f32 %v7593, %v1688
        %v7627 = vadd.f32 %v7594, %v1688
        %v7628 = vadd.f32 %v7595, %v1688
        %v7629 = vadd.f32 %v7596, %v1688
        %v7630 = vadd.f32 %v7597, %v1688
        %v7631 = vadd.f32 %v7598, %v1688
        %v7632 = vadd.f32 %v7599, %v1688
        %v7633 = vadd.f32 %v7600, %v1688
        %v7634 = vadd.f32 %v7601, %v1688
        %v7635 = vadd.f32 %v7602, %v1688
        %v7636 = vadd.f32 %v7603, %v1688
        %v7637 = vadd.f32 %v7604, %v1688
        %v7638 = vadd.f32 %v7605, %v1688
        %v7639 = vadd.f32 %v7606, %v1688
        %v7640 = vadd.f32 %v7607, %v1688
        %v7641 = vadd.f32 %v7608, %v1688
        %v7642 = vadd.f32 %v7609, %v1688
        %v7643 = vadd.f32 %v7610, %v1688
        %7644 = vmax.xlane.f32.xlu0 %v7611
        %v7645 = vpop.xlane.xlu0 %7644
        %7646 = vmax.xlane.f32.xlu0 %v7612
        %v7647 = vpop.xlane.xlu0 %7646
        %7648 = vmax.xlane.f32.xlu0 %v7613
        %v7649 = vpop.xlane.xlu0 %7648
        %7650 = vmax.xlane.f32.xlu0 %v7614
        %v7651 = vpop.xlane.xlu0 %7650
        %7652 = vmax.xlane.f32.xlu0 %v7615
        %v7653 = vpop.xlane.xlu0 %7652
        %7654 = vmax.xlane.f32.xlu0 %v7616
        %v7655 = vpop.xlane.xlu0 %7654
        %7656 = vmax.xlane.f32.xlu0 %v7617
        %v7657 = vpop.xlane.xlu0 %7656
        %7658 = vmax.xlane.f32.xlu0 %v7618
        %v7659 = vpop.xlane.xlu0 %7658
        %7660 = vmax.xlane.f32.xlu0 %v7619
        %v7661 = vpop.xlane.xlu0 %7660
        %7662 = vmax.xlane.f32.xlu0 %v7620
        %v7663 = vpop.xlane.xlu0 %7662
        %7664 = vmax.xlane.f32.xlu0 %v7621
        %v7665 = vpop.xlane.xlu0 %7664
        %7666 = vmax.xlane.f32.xlu0 %v7622
        %v7667 = vpop.xlane.xlu0 %7666
        %7668 = vmax.xlane.f32.xlu0 %v7623
        %v7669 = vpop.xlane.xlu0 %7668
        %7670 = vmax.xlane.f32.xlu0 %v7624
        %v7671 = vpop.xlane.xlu0 %7670
        %7672 = vmax.xlane.f32.xlu0 %v7625
        %v7673 = vpop.xlane.xlu0 %7672
        %7674 = vmax.xlane.f32.xlu0 %v7626
        %v7675 = vpop.xlane.xlu0 %7674
        %7676 = vmax.xlane.f32.xlu0 %v7627
        %v7677 = vpop.xlane.xlu0 %7676
        %7678 = vmax.xlane.f32.xlu0 %v7628
        %v7679 = vpop.xlane.xlu0 %7678
        %7680 = vmax.xlane.f32.xlu0 %v7629
        %v7681 = vpop.xlane.xlu0 %7680
        %7682 = vmax.xlane.f32.xlu0 %v7630
        %v7683 = vpop.xlane.xlu0 %7682
        %7684 = vmax.xlane.f32.xlu0 %v7631
        %v7685 = vpop.xlane.xlu0 %7684
        %7686 = vmax.xlane.f32.xlu0 %v7632
        %v7687 = vpop.xlane.xlu0 %7686
        %7688 = vmax.xlane.f32.xlu0 %v7633
        %v7689 = vpop.xlane.xlu0 %7688
        %7690 = vmax.xlane.f32.xlu0 %v7634
        %v7691 = vpop.xlane.xlu0 %7690
        %7692 = vmax.xlane.f32.xlu0 %v7635
        %v7693 = vpop.xlane.xlu0 %7692
        %7694 = vmax.xlane.f32.xlu0 %v7636
        %v7695 = vpop.xlane.xlu0 %7694
        %7696 = vmax.xlane.f32.xlu0 %v7637
        %v7697 = vpop.xlane.xlu0 %7696
        %7698 = vmax.xlane.f32.xlu0 %v7638
        %v7699 = vpop.xlane.xlu0 %7698
        %7700 = vmax.xlane.f32.xlu0 %v7639
        %v7701 = vpop.xlane.xlu0 %7700
        %7702 = vmax.xlane.f32.xlu0 %v7640
        %v7703 = vpop.xlane.xlu0 %7702
        %7704 = vmax.xlane.f32.xlu0 %v7641
        %v7705 = vpop.xlane.xlu0 %7704
        %7706 = vmax.xlane.f32.xlu0 %v7642
        %v7707 = vpop.xlane.xlu0 %7706
        %7708 = vmax.xlane.f32.xlu0 %v7643
        %v7709 = vpop.xlane.xlu0 %7708
        %v7710 = vsub.f32 %v7611, %v7645
        %v7711 = vsub.f32 %v7612, %v7647
        %v7712 = vsub.f32 %v7613, %v7649
        %v7713 = vsub.f32 %v7614, %v7651
        %v7714 = vsub.f32 %v7615, %v7653
        %v7715 = vsub.f32 %v7616, %v7655
        %v7716 = vsub.f32 %v7617, %v7657
        %v7717 = vsub.f32 %v7618, %v7659
        %v7718 = vsub.f32 %v7619, %v7661
        %v7719 = vsub.f32 %v7620, %v7663
        %v7720 = vsub.f32 %v7621, %v7665
        %v7721 = vsub.f32 %v7622, %v7667
        %v7722 = vsub.f32 %v7623, %v7669
        %v7723 = vsub.f32 %v7624, %v7671
        %v7724 = vsub.f32 %v7625, %v7673
        %v7725 = vsub.f32 %v7626, %v7675
        %v7726 = vsub.f32 %v7627, %v7677
        %v7727 = vsub.f32 %v7628, %v7679
        %v7728 = vsub.f32 %v7629, %v7681
        %v7729 = vsub.f32 %v7630, %v7683
        %v7730 = vsub.f32 %v7631, %v7685
        %v7731 = vsub.f32 %v7632, %v7687
        %v7732 = vsub.f32 %v7633, %v7689
        %v7733 = vsub.f32 %v7634, %v7691
        %v7734 = vsub.f32 %v7635, %v7693
        %v7735 = vsub.f32 %v7636, %v7695
        %v7736 = vsub.f32 %v7637, %v7697
        %v7737 = vsub.f32 %v7638, %v7699
        %v7738 = vsub.f32 %v7639, %v7701
        %v7739 = vsub.f32 %v7640, %v7703
        %v7740 = vsub.f32 %v7641, %v7705
        %v7741 = vsub.f32 %v7642, %v7707
        %v7742 = vsub.f32 %v7643, %v7709
        %v7743 = vmul.f32 %v7710, 1.442695
        %v7744 = vpow.pop %v7743
        %v7745 = vmul.f32 %v7711, 1.442695
        %v7746 = vpow.pop %v7745
        %v7747 = vmul.f32 %v7712, 1.442695
        %v7748 = vpow.pop %v7747
        %v7749 = vmul.f32 %v7713, 1.442695
        %v7750 = vpow.pop %v7749
        %v7751 = vmul.f32 %v7714, 1.442695
        %v7752 = vpow.pop %v7751
        %v7753 = vmul.f32 %v7715, 1.442695
        %v7754 = vpow.pop %v7753
        %v7755 = vmul.f32 %v7716, 1.442695
        %v7756 = vpow.pop %v7755
        %v7757 = vmul.f32 %v7717, 1.442695
        %v7758 = vpow.pop %v7757
        %v7759 = vmul.f32 %v7718, 1.442695
        %v7760 = vpow.pop %v7759
        %v7761 = vmul.f32 %v7719, 1.442695
        %v7762 = vpow.pop %v7761
        %v7763 = vmul.f32 %v7720, 1.442695
        %v7764 = vpow.pop %v7763
        %v7765 = vmul.f32 %v7721, 1.442695
        %v7766 = vpow.pop %v7765
        %v7767 = vmul.f32 %v7722, 1.442695
        %v7768 = vpow.pop %v7767
        %v7769 = vmul.f32 %v7723, 1.442695
        %v7770 = vpow.pop %v7769
        %v7771 = vmul.f32 %v7724, 1.442695
        %v7772 = vpow.pop %v7771
        %v7773 = vmul.f32 %v7725, 1.442695
        %v7774 = vpow.pop %v7773
        %v7775 = vmul.f32 %v7726, 1.442695
        %v7776 = vpow.pop %v7775
        %v7777 = vmul.f32 %v7727, 1.442695
        %v7778 = vpow.pop %v7777
        %v7779 = vmul.f32 %v7728, 1.442695
        %v7780 = vpow.pop %v7779
        %v7781 = vmul.f32 %v7729, 1.442695
        %v7782 = vpow.pop %v7781
        %v7783 = vmul.f32 %v7730, 1.442695
        %v7784 = vpow.pop %v7783
        %v7785 = vmul.f32 %v7731, 1.442695
        %v7786 = vpow.pop %v7785
        %v7787 = vmul.f32 %v7732, 1.442695
        %v7788 = vpow.pop %v7787
        %v7789 = vmul.f32 %v7733, 1.442695
        %v7790 = vpow.pop %v7789
        %v7791 = vmul.f32 %v7734, 1.442695
        %v7792 = vpow.pop %v7791
        %v7793 = vmul.f32 %v7735, 1.442695
        %v7794 = vpow.pop %v7793
        %v7795 = vmul.f32 %v7736, 1.442695
        %v7796 = vpow.pop %v7795
        %v7797 = vmul.f32 %v7737, 1.442695
        %v7798 = vpow.pop %v7797
        %v7799 = vmul.f32 %v7738, 1.442695
        %v7800 = vpow.pop %v7799
        %v7801 = vmul.f32 %v7739, 1.442695
        %v7802 = vpow.pop %v7801
        %v7803 = vmul.f32 %v7740, 1.442695
        %v7804 = vpow.pop %v7803
        %v7805 = vmul.f32 %v7741, 1.442695
        %v7806 = vpow.pop %v7805
        %v7807 = vmul.f32 %v7742, 1.442695
        %v7808 = vpow.pop %v7807
        %7809 = vadd.xlane.f32.xlu0 %v7744
        %v7810 = vpop.xlane.xlu0 %7809
        %7811 = vadd.xlane.f32.xlu0 %v7746
        %v7812 = vpop.xlane.xlu0 %7811
        %7813 = vadd.xlane.f32.xlu0 %v7748
        %v7814 = vpop.xlane.xlu0 %7813
        %7815 = vadd.xlane.f32.xlu0 %v7750
        %v7816 = vpop.xlane.xlu0 %7815
        %7817 = vadd.xlane.f32.xlu0 %v7752
        %v7818 = vpop.xlane.xlu0 %7817
        %7819 = vadd.xlane.f32.xlu0 %v7754
        %v7820 = vpop.xlane.xlu0 %7819
        %7821 = vadd.xlane.f32.xlu0 %v7756
        %v7822 = vpop.xlane.xlu0 %7821
        %7823 = vadd.xlane.f32.xlu0 %v7758
        %v7824 = vpop.xlane.xlu0 %7823
        %7825 = vadd.xlane.f32.xlu0 %v7760
        %v7826 = vpop.xlane.xlu0 %7825
        %7827 = vadd.xlane.f32.xlu0 %v7762
        %v7828 = vpop.xlane.xlu0 %7827
        %7829 = vadd.xlane.f32.xlu0 %v7764
        %v7830 = vpop.xlane.xlu0 %7829
        %7831 = vadd.xlane.f32.xlu0 %v7766
        %v7832 = vpop.xlane.xlu0 %7831
        %7833 = vadd.xlane.f32.xlu0 %v7768
        %v7834 = vpop.xlane.xlu0 %7833
        %7835 = vadd.xlane.f32.xlu0 %v7770
        %v7836 = vpop.xlane.xlu0 %7835
        %7837 = vadd.xlane.f32.xlu0 %v7772
        %v7838 = vpop.xlane.xlu0 %7837
        %7839 = vadd.xlane.f32.xlu0 %v7774
        %v7840 = vpop.xlane.xlu0 %7839
        %7841 = vadd.xlane.f32.xlu0 %v7776
        %v7842 = vpop.xlane.xlu0 %7841
        %7843 = vadd.xlane.f32.xlu0 %v7778
        %v7844 = vpop.xlane.xlu0 %7843
        %7845 = vadd.xlane.f32.xlu0 %v7780
        %v7846 = vpop.xlane.xlu0 %7845
        %7847 = vadd.xlane.f32.xlu0 %v7782
        %v7848 = vpop.xlane.xlu0 %7847
        %7849 = vadd.xlane.f32.xlu0 %v7784
        %v7850 = vpop.xlane.xlu0 %7849
        %7851 = vadd.xlane.f32.xlu0 %v7786
        %v7852 = vpop.xlane.xlu0 %7851
        %7853 = vadd.xlane.f32.xlu0 %v7788
        %v7854 = vpop.xlane.xlu0 %7853
        %7855 = vadd.xlane.f32.xlu0 %v7790
        %v7856 = vpop.xlane.xlu0 %7855
        %7857 = vadd.xlane.f32.xlu0 %v7792
        %v7858 = vpop.xlane.xlu0 %7857
        %7859 = vadd.xlane.f32.xlu0 %v7794
        %v7860 = vpop.xlane.xlu0 %7859
        %7861 = vadd.xlane.f32.xlu0 %v7796
        %v7862 = vpop.xlane.xlu0 %7861
        %7863 = vadd.xlane.f32.xlu0 %v7798
        %v7864 = vpop.xlane.xlu0 %7863
        %7865 = vadd.xlane.f32.xlu0 %v7800
        %v7866 = vpop.xlane.xlu0 %7865
        %7867 = vadd.xlane.f32.xlu0 %v7802
        %v7868 = vpop.xlane.xlu0 %7867
        %7869 = vadd.xlane.f32.xlu0 %v7804
        %v7870 = vpop.xlane.xlu0 %7869
        %7871 = vadd.xlane.f32.xlu0 %v7806
        %v7872 = vpop.xlane.xlu0 %7871
        %7873 = vadd.xlane.f32.xlu0 %v7808
        %v7874 = vpop.xlane.xlu0 %7873
        %v7875 = vrcp.pop %v7810
        %v7876 = vrcp.pop %v7812
        %v7877 = vrcp.pop %v7814
        %v7878 = vrcp.pop %v7816
        %v7879 = vrcp.pop %v7818
        %v7880 = vrcp.pop %v7820
        %v7881 = vrcp.pop %v7822
        %v7882 = vrcp.pop %v7824
        %v7883 = vrcp.pop %v7826
        %v7884 = vrcp.pop %v7828
        %v7885 = vrcp.pop %v7830
        %v7886 = vrcp.pop %v7832
        %v7887 = vrcp.pop %v7834
        %v7888 = vrcp.pop %v7836
        %v7889 = vrcp.pop %v7838
        %v7890 = vrcp.pop %v7840
        %v7891 = vrcp.pop %v7842
        %v7892 = vrcp.pop %v7844
        %v7893 = vrcp.pop %v7846
        %v7894 = vrcp.pop %v7848
        %v7895 = vrcp.pop %v7850
        %v7896 = vrcp.pop %v7852
        %v7897 = vrcp.pop %v7854
        %v7898 = vrcp.pop %v7856
        %v7899 = vrcp.pop %v7858
        %v7900 = vrcp.pop %v7860
        %v7901 = vrcp.pop %v7862
        %v7902 = vrcp.pop %v7864
        %v7903 = vrcp.pop %v7866
        %v7904 = vrcp.pop %v7868
        %v7905 = vrcp.pop %v7870
        %v7906 = vrcp.pop %v7872
        %v7907 = vrcp.pop %v7874
        %v7908 = vmul.f32 %v7744, %v7875
        %v7909 = vmul.f32 %v7746, %v7876
        %v7910 = vmul.f32 %v7748, %v7877
        %v7911 = vmul.f32 %v7750, %v7878
        %v7912 = vmul.f32 %v7752, %v7879
        %v7913 = vmul.f32 %v7754, %v7880
        %v7914 = vmul.f32 %v7756, %v7881
        %v7915 = vmul.f32 %v7758, %v7882
        %v7916 = vmul.f32 %v7760, %v7883
        %v7917 = vmul.f32 %v7762, %v7884
        %v7918 = vmul.f32 %v7764, %v7885
        %v7919 = vmul.f32 %v7766, %v7886
        %v7920 = vmul.f32 %v7768, %v7887
        %v7921 = vmul.f32 %v7770, %v7888
        %v7922 = vmul.f32 %v7772, %v7889
        %v7923 = vmul.f32 %v7774, %v7890
        %v7924 = vmul.f32 %v7776, %v7891
        %v7925 = vmul.f32 %v7778, %v7892
        %v7926 = vmul.f32 %v7780, %v7893
        %v7927 = vmul.f32 %v7782, %v7894
        %v7928 = vmul.f32 %v7784, %v7895
        %v7929 = vmul.f32 %v7786, %v7896
        %v7930 = vmul.f32 %v7788, %v7897
        %v7931 = vmul.f32 %v7790, %v7898
        %v7932 = vmul.f32 %v7792, %v7899
        %v7933 = vmul.f32 %v7794, %v7900
        %v7934 = vmul.f32 %v7796, %v7901
        %v7935 = vmul.f32 %v7798, %v7902
        %v7936 = vmul.f32 %v7800, %v7903
        %v7937 = vmul.f32 %v7802, %v7904
        %v7938 = vmul.f32 %v7804, %v7905
        %v7939 = vmul.f32 %v7806, %v7906
        %v7940 = vmul.f32 %v7808, %v7907
        %v7941 = vpack.c.bf16 %v7909, %v7908
        %v7942 = vpack.c.bf16 %v7911, %v7910
        %v7943 = vpack.c.bf16 %v7913, %v7912
        %v7944 = vpack.c.bf16 %v7915, %v7914
        %v7945 = vpack.c.bf16 %v7917, %v7916
        %v7946 = vpack.c.bf16 %v7919, %v7918
        %v7947 = vpack.c.bf16 %v7921, %v7920
        %v7948 = vpack.c.bf16 %v7923, %v7922
        %v7949 = vpack.c.bf16 %v7925, %v7924
        %v7950 = vpack.c.bf16 %v7927, %v7926
        %v7951 = vpack.c.bf16 %v7929, %v7928
        %v7952 = vpack.c.bf16 %v7931, %v7930
        %v7953 = vpack.c.bf16 %v7933, %v7932
        %v7954 = vpack.c.bf16 %v7935, %v7934
        %v7955 = vpack.c.bf16 %v7937, %v7936
        %v7956 = vpack.c.bf16 %v7939, %v7938
        %v7957 = vpack.c.bf16 %v7940, %v7940
        %7966 = vrot.lane.b32.xlu0 %v7327, 96
        %v7967 = vpop.permute.xlu0 %7966
        %7968 = vrot.lane.b32.xlu0 %v7328, 96
        %v7969 = vpop.permute.xlu0 %7968
        %7970 = vrot.lane.b32.xlu0 %v7329, 96
        %v7971 = vpop.permute.xlu0 %7970
        %7972 = vrot.lane.b32.xlu0 %v7330, 96
        %v7973 = vpop.permute.xlu0 %7972
        %7974 = vrot.lane.b32.xlu0 %v7331, 96
        %v7975 = vpop.permute.xlu0 %7974
        %7976 = vrot.lane.b32.xlu0 %v7332, 96
        %v7977 = vpop.permute.xlu0 %7976
        %7978 = vrot.lane.b32.xlu0 %v7333, 96
        %v7979 = vpop.permute.xlu0 %7978
        %7980 = vrot.lane.b32.xlu0 %v7334, 96
        %v7981 = vpop.permute.xlu0 %7980
        %7990 = vmatprep.subr.bf16.mxu0 0
        %7991 = vmatpush1.bf16.msra.mxu0 %v7967
        %7992 = vmatprep.subr.bf16.mxu0 0
        %7993 = vmatpush1.bf16.msra.mxu0 %v7969
        %7994 = vmatprep.subr.bf16.mxu0 0
        %7995 = vmatpush1.bf16.msra.mxu0 %v7971
        %7996 = vmatprep.subr.bf16.mxu0 0
        %7997 = vmatpush1.bf16.msra.mxu0 %v7973
        %7998 = vmatprep.subr.bf16.mxu0 0
        %7999 = vmatpush1.bf16.msra.mxu0 %v7975
        %8000 = vmatprep.subr.bf16.mxu0 0
        %8001 = vmatpush1.bf16.msra.mxu0 %v7977
        %8002 = vmatprep.subr.bf16.mxu0 0
        %8003 = vmatpush1.bf16.msra.mxu0 %v7979
        %8004 = vmatprep.subr.bf16.mxu0 0
        %8005 = vmatpush1.bf16.msra.mxu0 %v7981
        %8006 = vmatprep.subr.bf16.mxu0 0
        %8007 = vmatpush1.bf16.msra.mxu0 0
        %8008 = vmatprep.subr.bf16.mxu0 0
        %8009 = vmatpush1.bf16.msra.mxu0 0
        %8010 = vmatprep.subr.bf16.mxu0 0
        %8011 = vmatpush1.bf16.msra.mxu0 0
        %8012 = vmatprep.subr.bf16.mxu0 0
        %8013 = vmatpush1.bf16.msra.mxu0 0
        %8014 = vmatprep.subr.bf16.mxu0 0
        %8015 = vmatpush1.bf16.msra.mxu0 0
        %8016 = vmatprep.subr.bf16.mxu0 0
        %8017 = vmatpush1.bf16.msra.mxu0 0
        %8018 = vmatprep.subr.bf16.mxu0 0
        %8019 = vmatpush1.bf16.msra.mxu0 0
        %8020 = vmatprep.subr.bf16.mxu0 0
        %8021 = vmatpush1.bf16.msra.mxu0 0
        %8022 = vmatprep.mubr.bf16.mxu0 0
        %8023 = vmatmul.mubr.bf16.gmra.mrb[0].mxu0 %v7941
        %v8024 = vpop.f32.mrb[0].mxu0
        %v8025 = vadd.f32 0.0, %v8024
        %v8026 = vpop.f32.mrb[0].mxu0
        %v8027 = vpop.f32.mrb[0].mxu0
        %v8028 = vadd.f32 0.0, %v8027
        %v8029 = vpop.f32.mrb[0].mxu0
        %8030 = vmatprep.mubr.bf16.mxu0 0
        %8031 = vmatmul.mubr.bf16.gmra.mrb[0].mxu0 %v7942
        %v8032 = vpop.f32.mrb[0].mxu0
        %v8033 = vadd.f32 0.0, %v8032
        %v8034 = vpop.f32.mrb[0].mxu0
        %v8035 = vpop.f32.mrb[0].mxu0
        %v8036 = vadd.f32 0.0, %v8035
        %v8037 = vpop.f32.mrb[0].mxu0
        %8038 = vmatprep.mubr.bf16.mxu0 0
        %8039 = vmatmul.mubr.bf16.gmra.mrb[0].mxu0 %v7943
        %v8040 = vpop.f32.mrb[0].mxu0
        %v8041 = vadd.f32 0.0, %v8040
        %v8042 = vpop.f32.mrb[0].mxu0
        %v8043 = vpop.f32.mrb[0].mxu0
        %v8044 = vadd.f32 0.0, %v8043
        %v8045 = vpop.f32.mrb[0].mxu0
        %8046 = vmatprep.mubr.bf16.mxu0 0
        %8047 = vmatmul.mubr.bf16.gmra.mrb[0].mxu0 %v7944
        %v8048 = vpop.f32.mrb[0].mxu0
        %v8049 = vadd.f32 0.0, %v8048
        %v8050 = vpop.f32.mrb[0].mxu0
        %v8051 = vpop.f32.mrb[0].mxu0
        %v8052 = vadd.f32 0.0, %v8051
        %v8053 = vpop.f32.mrb[0].mxu0
        %8054 = vmatprep.mubr.bf16.mxu0 0
        %8055 = vmatmul.mubr.bf16.gmra.mrb[0].mxu0 %v7945
        %v8056 = vpop.f32.mrb[0].mxu0
        %v8057 = vadd.f32 0.0, %v8056
        %v8058 = vpop.f32.mrb[0].mxu0
        %v8059 = vpop.f32.mrb[0].mxu0
        %v8060 = vadd.f32 0.0, %v8059
        %v8061 = vpop.f32.mrb[0].mxu0
        %8062 = vmatprep.mubr.bf16.mxu0 0
        %8063 = vmatmul.mubr.bf16.gmra.mrb[0].mxu0 %v7946
        %v8064 = vpop.f32.mrb[0].mxu0
        %v8065 = vadd.f32 0.0, %v8064
        %v8066 = vpop.f32.mrb[0].mxu0
        %v8067 = vpop.f32.mrb[0].mxu0
        %v8068 = vadd.f32 0.0, %v8067
        %v8069 = vpop.f32.mrb[0].mxu0
        %8070 = vmatprep.mubr.bf16.mxu0 0
        %8071 = vmatmul.mubr.bf16.gmra.mrb[0].mxu0 %v7947
        %v8072 = vpop.f32.mrb[0].mxu0
        %v8073 = vadd.f32 0.0, %v8072
        %v8074 = vpop.f32.mrb[0].mxu0
        %v8075 = vpop.f32.mrb[0].mxu0
        %v8076 = vadd.f32 0.0, %v8075
        %v8077 = vpop.f32.mrb[0].mxu0
        %8078 = vmatprep.mubr.bf16.mxu0 0
        %8079 = vmatmul.mubr.bf16.gmra.mrb[0].mxu0 %v7948
        %v8080 = vpop.f32.mrb[0].mxu0
        %v8081 = vadd.f32 0.0, %v8080
        %v8082 = vpop.f32.mrb[0].mxu0
        %v8083 = vpop.f32.mrb[0].mxu0
        %v8084 = vadd.f32 0.0, %v8083
        %v8085 = vpop.f32.mrb[0].mxu0
        %8086 = vmatprep.mubr.bf16.mxu0 0
        %8087 = vmatmul.mubr.bf16.gmra.mrb[0].mxu0 %v7949
        %v8088 = vpop.f32.mrb[0].mxu0
        %v8089 = vadd.f32 0.0, %v8088
        %v8090 = vpop.f32.mrb[0].mxu0
        %v8091 = vpop.f32.mrb[0].mxu0
        %v8092 = vadd.f32 0.0, %v8091
        %v8093 = vpop.f32.mrb[0].mxu0
        %8094 = vmatprep.mubr.bf16.mxu0 0
        %8095 = vmatmul.mubr.bf16.gmra.mrb[0].mxu0 %v7950
        %v8096 = vpop.f32.mrb[0].mxu0
        %v8097 = vadd.f32 0.0, %v8096
        %v8098 = vpop.f32.mrb[0].mxu0
        %v8099 = vpop.f32.mrb[0].mxu0
        %v8100 = vadd.f32 0.0, %v8099
        %v8101 = vpop.f32.mrb[0].mxu0
        %8102 = vmatprep.mubr.bf16.mxu0 0
        %8103 = vmatmul.mubr.bf16.gmra.mrb[0].mxu0 %v7951
        %v8104 = vpop.f32.mrb[0].mxu0
        %v8105 = vadd.f32 0.0, %v8104
        %v8106 = vpop.f32.mrb[0].mxu0
        %v8107 = vpop.f32.mrb[0].mxu0
        %v8108 = vadd.f32 0.0, %v8107
        %v8109 = vpop.f32.mrb[0].mxu0
        %8110 = vmatprep.mubr.bf16.mxu0 0
        %8111 = vmatmul.mubr.bf16.gmra.mrb[0].mxu0 %v7952
        %v8112 = vpop.f32.mrb[0].mxu0
        %v8113 = vadd.f32 0.0, %v8112
        %v8114 = vpop.f32.mrb[0].mxu0
        %v8115 = vpop.f32.mrb[0].mxu0
        %v8116 = vadd.f32 0.0, %v8115
        %v8117 = vpop.f32.mrb[0].mxu0
        %8118 = vmatprep.mubr.bf16.mxu0 0
        %8119 = vmatmul.mubr.bf16.gmra.mrb[0].mxu0 %v7953
        %v8120 = vpop.f32.mrb[0].mxu0
        %v8121 = vadd.f32 0.0, %v8120
        %v8122 = vpop.f32.mrb[0].mxu0
        %v8123 = vpop.f32.mrb[0].mxu0
        %v8124 = vadd.f32 0.0, %v8123
        %v8125 = vpop.f32.mrb[0].mxu0
        %8126 = vmatprep.mubr.bf16.mxu0 0
        %8127 = vmatmul.mubr.bf16.gmra.mrb[0].mxu0 %v7954
        %v8128 = vpop.f32.mrb[0].mxu0
        %v8129 = vadd.f32 0.0, %v8128
        %v8130 = vpop.f32.mrb[0].mxu0
        %v8131 = vpop.f32.mrb[0].mxu0
        %v8132 = vadd.f32 0.0, %v8131
        %v8133 = vpop.f32.mrb[0].mxu0
        %8134 = vmatprep.mubr.bf16.mxu0 0
        %8135 = vmatmul.mubr.bf16.gmra.mrb[0].mxu0 %v7955
        %v8136 = vpop.f32.mrb[0].mxu0
        %v8137 = vadd.f32 0.0, %v8136
        %v8138 = vpop.f32.mrb[0].mxu0
        %v8139 = vpop.f32.mrb[0].mxu0
        %v8140 = vadd.f32 0.0, %v8139
        %v8141 = vpop.f32.mrb[0].mxu0
        %8142 = vmatprep.mubr.bf16.mxu0 0
        %8143 = vmatmul.mubr.bf16.gmra.mrb[0].mxu0 %v7956
        %v8144 = vpop.f32.mrb[0].mxu0
        %v8145 = vadd.f32 0.0, %v8144
        %v8146 = vpop.f32.mrb[0].mxu0
        %v8147 = vpop.f32.mrb[0].mxu0
        %v8148 = vadd.f32 0.0, %v8147
        %v8149 = vpop.f32.mrb[0].mxu0
        %8150 = vmatprep.mubr.bf16.mxu0 0
        %8151 = vmatmul.mubr.bf16.gmra.mrb[0].mxu0 %v7957
        %v8152 = vpop.f32.mrb[0].mxu0
        %v8153 = vadd.f32 0.0, %v8152
        %v8154 = vpop.f32.mrb[0].mxu0
        %v8155 = vpop.f32.mrb[0].mxu0
        %v8156 = vpop.f32.mrb[0].mxu0
        %8157 = vdwg.mxu0
        %8158 = vrot.lane.b32.xlu0 %v7046, 112
        %v8159 = vpop.permute.xlu0 %8158
        %8160 = vrot.lane.b32.xlu0 %v7047, 112
        %v8161 = vpop.permute.xlu0 %8160
        %8162 = vrot.lane.b32.xlu0 %v7048, 112
        %v8163 = vpop.permute.xlu0 %8162
        %8164 = vrot.lane.b32.xlu0 %v7049, 112
        %v8165 = vpop.permute.xlu0 %8164
        %8166 = vrot.lane.b32.xlu0 %v7050, 112
        %v8167 = vpop.permute.xlu0 %8166
        %8168 = vrot.lane.b32.xlu0 %v7051, 112
        %v8169 = vpop.permute.xlu0 %8168
        %8170 = vrot.lane.b32.xlu0 %v7052, 112
        %v8171 = vpop.permute.xlu0 %8170
        %8172 = vrot.lane.b32.xlu0 %v7053, 112
        %v8173 = vpop.permute.xlu0 %8172
        %8174 = vrot.lane.b32.xlu0 %v7054, 112
        %v8175 = vpop.permute.xlu0 %8174
        %8176 = vrot.lane.b32.xlu0 %v7055, 112
        %v8177 = vpop.permute.xlu0 %8176
        %8178 = vrot.lane.b32.xlu0 %v7056, 112
        %v8179 = vpop.permute.xlu0 %8178
        %8180 = vrot.lane.b32.xlu0 %v7057, 112
        %v8181 = vpop.permute.xlu0 %8180
        %8182 = vrot.lane.b32.xlu0 %v7058, 112
        %v8183 = vpop.permute.xlu0 %8182
        %8184 = vrot.lane.b32.xlu0 %v7059, 112
        %v8185 = vpop.permute.xlu0 %8184
        %8186 = vrot.lane.b32.xlu0 %v7060, 112
        %v8187 = vpop.permute.xlu0 %8186
        %8188 = vrot.lane.b32.xlu0 %v7061, 112
        %v8189 = vpop.permute.xlu0 %8188
        %8190 = vrot.lane.b32.xlu0 %v7062, 112
        %v8191 = vpop.permute.xlu0 %8190
        %8192 = vrot.lane.b32.xlu0 %v7327, 112
        %v8193 = vpop.permute.xlu0 %8192
        %8194 = vrot.lane.b32.xlu0 %v7328, 112
        %v8195 = vpop.permute.xlu0 %8194
        %8196 = vrot.lane.b32.xlu0 %v7329, 112
        %v8197 = vpop.permute.xlu0 %8196
        %8198 = vrot.lane.b32.xlu0 %v7330, 112
        %v8199 = vpop.permute.xlu0 %8198
        %8200 = vrot.lane.b32.xlu0 %v7331, 112
        %v8201 = vpop.permute.xlu0 %8200
        %8202 = vrot.lane.b32.xlu0 %v7332, 112
        %v8203 = vpop.permute.xlu0 %8202
        %8204 = vrot.lane.b32.xlu0 %v7333, 112
        %v8205 = vpop.permute.xlu0 %8204
        %8206 = vrot.lane.b32.xlu0 %v7334, 112
        %v8207 = vpop.permute.xlu0 %8206
        %v8209 = vsel %vm2894, %v8159, 0
        %v8212 = vsel %vm2894, %v8161, 0
        %v8215 = vsel %vm2894, %v8163, 0
        %v8218 = vsel %vm2894, %v8165, 0
        %v8221 = vsel %vm2894, %v8167, 0
        %v8224 = vsel %vm2894, %v8169, 0
        %v8227 = vsel %vm2894, %v8171, 0
        %v8230 = vsel %vm2894, %v8173, 0
        %v8233 = vsel %vm2894, %v8175, 0
        %v8236 = vsel %vm2894, %v8177, 0
        %v8239 = vsel %vm2894, %v8179, 0
        %v8242 = vsel %vm2894, %v8181, 0
        %v8245 = vsel %vm2894, %v8183, 0
        %v8248 = vsel %vm2894, %v8185, 0
        %v8251 = vsel %vm2894, %v8187, 0
        %v8254 = vsel %vm2894, %v8189, 0
        %v8257 = vsel %vm2894, %v8191, 0
        %v8260 = vsel %vm2894, %v8193, 0
        %v8263 = vsel %vm2894, %v8195, 0
        %v8266 = vsel %vm2894, %v8197, 0
        %v8269 = vsel %vm2894, %v8199, 0
        %v8272 = vsel %vm2894, %v8201, 0
        %v8275 = vsel %vm2894, %v8203, 0
        %v8278 = vsel %vm2894, %v8205, 0
        %v8281 = vsel %vm2894, %v8207, 0
        %8283 = vmatprep.subr.bf16.mxu0 0
        %8284 = vmatpush1.bf16.xpose.msra.mxu0 %v8260
        %8285 = vmatprep.subr.bf16.mxu0 0
        %8286 = vmatpush1.bf16.xpose.msra.mxu0 %v8263
        %8287 = vmatprep.subr.bf16.mxu0 0
        %8288 = vmatpush1.bf16.xpose.msra.mxu0 %v8266
        %8289 = vmatprep.subr.bf16.mxu0 0
        %8290 = vmatpush1.bf16.xpose.msra.mxu0 %v8269
        %8291 = vmatprep.subr.bf16.mxu0 0
        %8292 = vmatpush1.bf16.xpose.msra.mxu0 %v8272
        %8293 = vmatprep.subr.bf16.mxu0 0
        %8294 = vmatpush1.bf16.xpose.msra.mxu0 %v8275
        %8295 = vmatprep.subr.bf16.mxu0 0
        %8296 = vmatpush1.bf16.xpose.msra.mxu0 %v8278
        %8297 = vmatprep.subr.bf16.mxu0 0
        %8298 = vmatpush1.bf16.xpose.msra.mxu0 %v8281
        %8299 = vmatprep.subr.bf16.mxu0 0
        %8300 = vmatpush1.bf16.xpose.msra.mxu0 0
        %8301 = vmatprep.subr.bf16.mxu0 0
        %8302 = vmatpush1.bf16.xpose.msra.mxu0 0
        %8303 = vmatprep.subr.bf16.mxu0 0
        %8304 = vmatpush1.bf16.xpose.msra.mxu0 0
        %8305 = vmatprep.subr.bf16.mxu0 0
        %8306 = vmatpush1.bf16.xpose.msra.mxu0 0
        %8307 = vmatprep.subr.bf16.mxu0 0
        %8308 = vmatpush1.bf16.xpose.msra.mxu0 0
        %8309 = vmatprep.subr.bf16.mxu0 0
        %8310 = vmatpush1.bf16.xpose.msra.mxu0 0
        %8311 = vmatprep.subr.bf16.mxu0 0
        %8312 = vmatpush1.bf16.xpose.msra.mxu0 0
        %8313 = vmatprep.subr.bf16.mxu0 0
        %8314 = vmatpush1.bf16.xpose.msra.mxu0 0
        %8315 = vmatprep.mubr.bf16.mxu0 0
        %8316 = vmatmul.mubr.bf16.gmra.mrb[0].mxu0 %v8209
        %v8317 = vpop.f32.mrb[0].mxu0
        %v8318 = vadd.f32 0.0, %v8317
        %v8319 = vpop.f32.mrb[0].mxu0
        %v8320 = vpop.f32.mrb[0].mxu0
        %v8321 = vadd.f32 0.0, %v8320
        %v8322 = vpop.f32.mrb[0].mxu0
        %8323 = vmatprep.mubr.bf16.mxu0 0
        %8324 = vmatmul.mubr.bf16.gmra.mrb[0].mxu0 %v8212
        %v8325 = vpop.f32.mrb[0].mxu0
        %v8326 = vadd.f32 0.0, %v8325
        %v8327 = vpop.f32.mrb[0].mxu0
        %v8328 = vpop.f32.mrb[0].mxu0
        %v8329 = vadd.f32 0.0, %v8328
        %v8330 = vpop.f32.mrb[0].mxu0
        %8331 = vmatprep.mubr.bf16.mxu0 0
        %8332 = vmatmul.mubr.bf16.gmra.mrb[0].mxu0 %v8215
        %v8333 = vpop.f32.mrb[0].mxu0
        %v8334 = vadd.f32 0.0, %v8333
        %v8335 = vpop.f32.mrb[0].mxu0
        %v8336 = vpop.f32.mrb[0].mxu0
        %v8337 = vadd.f32 0.0, %v8336
        %v8338 = vpop.f32.mrb[0].mxu0
        %8339 = vmatprep.mubr.bf16.mxu0 0
        %8340 = vmatmul.mubr.bf16.gmra.mrb[0].mxu0 %v8218
        %v8341 = vpop.f32.mrb[0].mxu0
        %v8342 = vadd.f32 0.0, %v8341
        %v8343 = vpop.f32.mrb[0].mxu0
        %v8344 = vpop.f32.mrb[0].mxu0
        %v8345 = vadd.f32 0.0, %v8344
        %v8346 = vpop.f32.mrb[0].mxu0
        %8347 = vmatprep.mubr.bf16.mxu0 0
        %8348 = vmatmul.mubr.bf16.gmra.mrb[0].mxu0 %v8221
        %v8349 = vpop.f32.mrb[0].mxu0
        %v8350 = vadd.f32 0.0, %v8349
        %v8351 = vpop.f32.mrb[0].mxu0
        %v8352 = vpop.f32.mrb[0].mxu0
        %v8353 = vadd.f32 0.0, %v8352
        %v8354 = vpop.f32.mrb[0].mxu0
        %8355 = vmatprep.mubr.bf16.mxu0 0
        %8356 = vmatmul.mubr.bf16.gmra.mrb[0].mxu0 %v8224
        %v8357 = vpop.f32.mrb[0].mxu0
        %v8358 = vadd.f32 0.0, %v8357
        %v8359 = vpop.f32.mrb[0].mxu0
        %v8360 = vpop.f32.mrb[0].mxu0
        %v8361 = vadd.f32 0.0, %v8360
        %v8362 = vpop.f32.mrb[0].mxu0
        %8363 = vmatprep.mubr.bf16.mxu0 0
        %8364 = vmatmul.mubr.bf16.gmra.mrb[0].mxu0 %v8227
        %v8365 = vpop.f32.mrb[0].mxu0
        %v8366 = vadd.f32 0.0, %v8365
        %v8367 = vpop.f32.mrb[0].mxu0
        %v8368 = vpop.f32.mrb[0].mxu0
        %v8369 = vadd.f32 0.0, %v8368
        %v8370 = vpop.f32.mrb[0].mxu0
        %8371 = vmatprep.mubr.bf16.mxu0 0
        %8372 = vmatmul.mubr.bf16.gmra.mrb[0].mxu0 %v8230
        %v8373 = vpop.f32.mrb[0].mxu0
        %v8374 = vadd.f32 0.0, %v8373
        %v8375 = vpop.f32.mrb[0].mxu0
        %v8376 = vpop.f32.mrb[0].mxu0
        %v8377 = vadd.f32 0.0, %v8376
        %v8378 = vpop.f32.mrb[0].mxu0
        %8379 = vmatprep.mubr.bf16.mxu0 0
        %8380 = vmatmul.mubr.bf16.gmra.mrb[0].mxu0 %v8233
        %v8381 = vpop.f32.mrb[0].mxu0
        %v8382 = vadd.f32 0.0, %v8381
        %v8383 = vpop.f32.mrb[0].mxu0
        %v8384 = vpop.f32.mrb[0].mxu0
        %v8385 = vadd.f32 0.0, %v8384
        %v8386 = vpop.f32.mrb[0].mxu0
        %8387 = vmatprep.mubr.bf16.mxu0 0
        %8388 = vmatmul.mubr.bf16.gmra.mrb[0].mxu0 %v8236
        %v8389 = vpop.f32.mrb[0].mxu0
        %v8390 = vadd.f32 0.0, %v8389
        %v8391 = vpop.f32.mrb[0].mxu0
        %v8392 = vpop.f32.mrb[0].mxu0
        %v8393 = vadd.f32 0.0, %v8392
        %v8394 = vpop.f32.mrb[0].mxu0
        %8395 = vmatprep.mubr.bf16.mxu0 0
        %8396 = vmatmul.mubr.bf16.gmra.mrb[0].mxu0 %v8239
        %v8397 = vpop.f32.mrb[0].mxu0
        %v8398 = vadd.f32 0.0, %v8397
        %v8399 = vpop.f32.mrb[0].mxu0
        %v8400 = vpop.f32.mrb[0].mxu0
        %v8401 = vadd.f32 0.0, %v8400
        %v8402 = vpop.f32.mrb[0].mxu0
        %8403 = vmatprep.mubr.bf16.mxu0 0
        %8404 = vmatmul.mubr.bf16.gmra.mrb[0].mxu0 %v8242
        %v8405 = vpop.f32.mrb[0].mxu0
        %v8406 = vadd.f32 0.0, %v8405
        %v8407 = vpop.f32.mrb[0].mxu0
        %v8408 = vpop.f32.mrb[0].mxu0
        %v8409 = vadd.f32 0.0, %v8408
        %v8410 = vpop.f32.mrb[0].mxu0
        %8411 = vmatprep.mubr.bf16.mxu0 0
        %8412 = vmatmul.mubr.bf16.gmra.mrb[0].mxu0 %v8245
        %v8413 = vpop.f32.mrb[0].mxu0
        %v8414 = vadd.f32 0.0, %v8413
        %v8415 = vpop.f32.mrb[0].mxu0
        %v8416 = vpop.f32.mrb[0].mxu0
        %v8417 = vadd.f32 0.0, %v8416
        %v8418 = vpop.f32.mrb[0].mxu0
        %8419 = vmatprep.mubr.bf16.mxu0 0
        %8420 = vmatmul.mubr.bf16.gmra.mrb[0].mxu0 %v8248
        %v8421 = vpop.f32.mrb[0].mxu0
        %v8422 = vadd.f32 0.0, %v8421
        %v8423 = vpop.f32.mrb[0].mxu0
        %v8424 = vpop.f32.mrb[0].mxu0
        %v8425 = vadd.f32 0.0, %v8424
        %v8426 = vpop.f32.mrb[0].mxu0
        %8427 = vmatprep.mubr.bf16.mxu0 0
        %8428 = vmatmul.mubr.bf16.gmra.mrb[0].mxu0 %v8251
        %v8429 = vpop.f32.mrb[0].mxu0
        %v8430 = vadd.f32 0.0, %v8429
        %v8431 = vpop.f32.mrb[0].mxu0
        %v8432 = vpop.f32.mrb[0].mxu0
        %v8433 = vadd.f32 0.0, %v8432
        %v8434 = vpop.f32.mrb[0].mxu0
        %8435 = vmatprep.mubr.bf16.mxu0 0
        %8436 = vmatmul.mubr.bf16.gmra.mrb[0].mxu0 %v8254
        %v8437 = vpop.f32.mrb[0].mxu0
        %v8438 = vadd.f32 0.0, %v8437
        %v8439 = vpop.f32.mrb[0].mxu0
        %v8440 = vpop.f32.mrb[0].mxu0
        %v8441 = vadd.f32 0.0, %v8440
        %v8442 = vpop.f32.mrb[0].mxu0
        %8443 = vmatprep.mubr.bf16.mxu0 0
        %8444 = vmatmul.mubr.bf16.gmra.mrb[0].mxu0 %v8257
        %v8445 = vpop.f32.mrb[0].mxu0
        %v8446 = vadd.f32 0.0, %v8445
        %v8447 = vpop.f32.mrb[0].mxu0
        %v8448 = vpop.f32.mrb[0].mxu0
        %v8449 = vpop.f32.mrb[0].mxu0
        %8450 = vdwg.mxu0
        %v8451 = vmul.f32 %v8318, 0.25
        %v8452 = vmul.f32 %v8321, 0.25
        %v8453 = vmul.f32 %v8326, 0.25
        %v8454 = vmul.f32 %v8329, 0.25
        %v8455 = vmul.f32 %v8334, 0.25
        %v8456 = vmul.f32 %v8337, 0.25
        %v8457 = vmul.f32 %v8342, 0.25
        %v8458 = vmul.f32 %v8345, 0.25
        %v8459 = vmul.f32 %v8350, 0.25
        %v8460 = vmul.f32 %v8353, 0.25
        %v8461 = vmul.f32 %v8358, 0.25
        %v8462 = vmul.f32 %v8361, 0.25
        %v8463 = vmul.f32 %v8366, 0.25
        %v8464 = vmul.f32 %v8369, 0.25
        %v8465 = vmul.f32 %v8374, 0.25
        %v8466 = vmul.f32 %v8377, 0.25
        %v8467 = vmul.f32 %v8382, 0.25
        %v8468 = vmul.f32 %v8385, 0.25
        %v8469 = vmul.f32 %v8390, 0.25
        %v8470 = vmul.f32 %v8393, 0.25
        %v8471 = vmul.f32 %v8398, 0.25
        %v8472 = vmul.f32 %v8401, 0.25
        %v8473 = vmul.f32 %v8406, 0.25
        %v8474 = vmul.f32 %v8409, 0.25
        %v8475 = vmul.f32 %v8414, 0.25
        %v8476 = vmul.f32 %v8417, 0.25
        %v8477 = vmul.f32 %v8422, 0.25
        %v8478 = vmul.f32 %v8425, 0.25
        %v8479 = vmul.f32 %v8430, 0.25
        %v8480 = vmul.f32 %v8433, 0.25
        %v8481 = vmul.f32 %v8438, 0.25
        %v8482 = vmul.f32 %v8441, 0.25
        %v8483 = vmul.f32 %v8446, 0.25
        %v8484 = vadd.f32 %v8451, %v1688
        %v8485 = vadd.f32 %v8452, %v1688
        %v8486 = vadd.f32 %v8453, %v1688
        %v8487 = vadd.f32 %v8454, %v1688
        %v8488 = vadd.f32 %v8455, %v1688
        %v8489 = vadd.f32 %v8456, %v1688
        %v8490 = vadd.f32 %v8457, %v1688
        %v8491 = vadd.f32 %v8458, %v1688
        %v8492 = vadd.f32 %v8459, %v1688
        %v8493 = vadd.f32 %v8460, %v1688
        %v8494 = vadd.f32 %v8461, %v1688
        %v8495 = vadd.f32 %v8462, %v1688
        %v8496 = vadd.f32 %v8463, %v1688
        %v8497 = vadd.f32 %v8464, %v1688
        %v8498 = vadd.f32 %v8465, %v1688
        %v8499 = vadd.f32 %v8466, %v1688
        %v8500 = vadd.f32 %v8467, %v1688
        %v8501 = vadd.f32 %v8468, %v1688
        %v8502 = vadd.f32 %v8469, %v1688
        %v8503 = vadd.f32 %v8470, %v1688
        %v8504 = vadd.f32 %v8471, %v1688
        %v8505 = vadd.f32 %v8472, %v1688
        %v8506 = vadd.f32 %v8473, %v1688
        %v8507 = vadd.f32 %v8474, %v1688
        %v8508 = vadd.f32 %v8475, %v1688
        %v8509 = vadd.f32 %v8476, %v1688
        %v8510 = vadd.f32 %v8477, %v1688
        %v8511 = vadd.f32 %v8478, %v1688
        %v8512 = vadd.f32 %v8479, %v1688
        %v8513 = vadd.f32 %v8480, %v1688
        %v8514 = vadd.f32 %v8481, %v1688
        %v8515 = vadd.f32 %v8482, %v1688
        %v8516 = vadd.f32 %v8483, %v1688
        %8517 = vmax.xlane.f32.xlu0 %v8484
        %v8518 = vpop.xlane.xlu0 %8517
        %8519 = vmax.xlane.f32.xlu0 %v8485
        %v8520 = vpop.xlane.xlu0 %8519
        %8521 = vmax.xlane.f32.xlu0 %v8486
        %v8522 = vpop.xlane.xlu0 %8521
        %8523 = vmax.xlane.f32.xlu0 %v8487
        %v8524 = vpop.xlane.xlu0 %8523
        %8525 = vmax.xlane.f32.xlu0 %v8488
        %v8526 = vpop.xlane.xlu0 %8525
        %8527 = vmax.xlane.f32.xlu0 %v8489
        %v8528 = vpop.xlane.xlu0 %8527
        %8529 = vmax.xlane.f32.xlu0 %v8490
        %v8530 = vpop.xlane.xlu0 %8529
        %8531 = vmax.xlane.f32.xlu0 %v8491
        %v8532 = vpop.xlane.xlu0 %8531
        %8533 = vmax.xlane.f32.xlu0 %v8492
        %v8534 = vpop.xlane.xlu0 %8533
        %8535 = vmax.xlane.f32.xlu0 %v8493
        %v8536 = vpop.xlane.xlu0 %8535
        %8537 = vmax.xlane.f32.xlu0 %v8494
        %v8538 = vpop.xlane.xlu0 %8537
        %8539 = vmax.xlane.f32.xlu0 %v8495
        %v8540 = vpop.xlane.xlu0 %8539
        %8541 = vmax.xlane.f32.xlu0 %v8496
        %v8542 = vpop.xlane.xlu0 %8541
        %8543 = vmax.xlane.f32.xlu0 %v8497
        %v8544 = vpop.xlane.xlu0 %8543
        %8545 = vmax.xlane.f32.xlu0 %v8498
        %v8546 = vpop.xlane.xlu0 %8545
        %8547 = vmax.xlane.f32.xlu0 %v8499
        %v8548 = vpop.xlane.xlu0 %8547
        %8549 = vmax.xlane.f32.xlu0 %v8500
        %v8550 = vpop.xlane.xlu0 %8549
        %8551 = vmax.xlane.f32.xlu0 %v8501
        %v8552 = vpop.xlane.xlu0 %8551
        %8553 = vmax.xlane.f32.xlu0 %v8502
        %v8554 = vpop.xlane.xlu0 %8553
        %8555 = vmax.xlane.f32.xlu0 %v8503
        %v8556 = vpop.xlane.xlu0 %8555
        %8557 = vmax.xlane.f32.xlu0 %v8504
        %v8558 = vpop.xlane.xlu0 %8557
        %8559 = vmax.xlane.f32.xlu0 %v8505
        %v8560 = vpop.xlane.xlu0 %8559
        %8561 = vmax.xlane.f32.xlu0 %v8506
        %v8562 = vpop.xlane.xlu0 %8561
        %8563 = vmax.xlane.f32.xlu0 %v8507
        %v8564 = vpop.xlane.xlu0 %8563
        %8565 = vmax.xlane.f32.xlu0 %v8508
        %v8566 = vpop.xlane.xlu0 %8565
        %8567 = vmax.xlane.f32.xlu0 %v8509
        %v8568 = vpop.xlane.xlu0 %8567
        %8569 = vmax.xlane.f32.xlu0 %v8510
        %v8570 = vpop.xlane.xlu0 %8569
        %8571 = vmax.xlane.f32.xlu0 %v8511
        %v8572 = vpop.xlane.xlu0 %8571
        %8573 = vmax.xlane.f32.xlu0 %v8512
        %v8574 = vpop.xlane.xlu0 %8573
        %8575 = vmax.xlane.f32.xlu0 %v8513
        %v8576 = vpop.xlane.xlu0 %8575
        %8577 = vmax.xlane.f32.xlu0 %v8514
        %v8578 = vpop.xlane.xlu0 %8577
        %8579 = vmax.xlane.f32.xlu0 %v8515
        %v8580 = vpop.xlane.xlu0 %8579
        %8581 = vmax.xlane.f32.xlu0 %v8516
        %v8582 = vpop.xlane.xlu0 %8581
        %v8583 = vsub.f32 %v8484, %v8518
        %v8584 = vsub.f32 %v8485, %v8520
        %v8585 = vsub.f32 %v8486, %v8522
        %v8586 = vsub.f32 %v8487, %v8524
        %v8587 = vsub.f32 %v8488, %v8526
        %v8588 = vsub.f32 %v8489, %v8528
        %v8589 = vsub.f32 %v8490, %v8530
        %v8590 = vsub.f32 %v8491, %v8532
        %v8591 = vsub.f32 %v8492, %v8534
        %v8592 = vsub.f32 %v8493, %v8536
        %v8593 = vsub.f32 %v8494, %v8538
        %v8594 = vsub.f32 %v8495, %v8540
        %v8595 = vsub.f32 %v8496, %v8542
        %v8596 = vsub.f32 %v8497, %v8544
        %v8597 = vsub.f32 %v8498, %v8546
        %v8598 = vsub.f32 %v8499, %v8548
        %v8599 = vsub.f32 %v8500, %v8550
        %v8600 = vsub.f32 %v8501, %v8552
        %v8601 = vsub.f32 %v8502, %v8554
        %v8602 = vsub.f32 %v8503, %v8556
        %v8603 = vsub.f32 %v8504, %v8558
        %v8604 = vsub.f32 %v8505, %v8560
        %v8605 = vsub.f32 %v8506, %v8562
        %v8606 = vsub.f32 %v8507, %v8564
        %v8607 = vsub.f32 %v8508, %v8566
        %v8608 = vsub.f32 %v8509, %v8568
        %v8609 = vsub.f32 %v8510, %v8570
        %v8610 = vsub.f32 %v8511, %v8572
        %v8611 = vsub.f32 %v8512, %v8574
        %v8612 = vsub.f32 %v8513, %v8576
        %v8613 = vsub.f32 %v8514, %v8578
        %v8614 = vsub.f32 %v8515, %v8580
        %v8615 = vsub.f32 %v8516, %v8582
        %v8616 = vmul.f32 %v8583, 1.442695
        %v8617 = vpow.pop %v8616
        %v8618 = vmul.f32 %v8584, 1.442695
        %v8619 = vpow.pop %v8618
        %v8620 = vmul.f32 %v8585, 1.442695
        %v8621 = vpow.pop %v8620
        %v8622 = vmul.f32 %v8586, 1.442695
        %v8623 = vpow.pop %v8622
        %v8624 = vmul.f32 %v8587, 1.442695
        %v8625 = vpow.pop %v8624
        %v8626 = vmul.f32 %v8588, 1.442695
        %v8627 = vpow.pop %v8626
        %v8628 = vmul.f32 %v8589, 1.442695
        %v8629 = vpow.pop %v8628
        %v8630 = vmul.f32 %v8590, 1.442695
        %v8631 = vpow.pop %v8630
        %v8632 = vmul.f32 %v8591, 1.442695
        %v8633 = vpow.pop %v8632
        %v8634 = vmul.f32 %v8592, 1.442695
        %v8635 = vpow.pop %v8634
        %v8636 = vmul.f32 %v8593, 1.442695
        %v8637 = vpow.pop %v8636
        %v8638 = vmul.f32 %v8594, 1.442695
        %v8639 = vpow.pop %v8638
        %v8640 = vmul.f32 %v8595, 1.442695
        %v8641 = vpow.pop %v8640
        %v8642 = vmul.f32 %v8596, 1.442695
        %v8643 = vpow.pop %v8642
        %v8644 = vmul.f32 %v8597, 1.442695
        %v8645 = vpow.pop %v8644
        %v8646 = vmul.f32 %v8598, 1.442695
        %v8647 = vpow.pop %v8646
        %v8648 = vmul.f32 %v8599, 1.442695
        %v8649 = vpow.pop %v8648
        %v8650 = vmul.f32 %v8600, 1.442695
        %v8651 = vpow.pop %v8650
        %v8652 = vmul.f32 %v8601, 1.442695
        %v8653 = vpow.pop %v8652
        %v8654 = vmul.f32 %v8602, 1.442695
        %v8655 = vpow.pop %v8654
        %v8656 = vmul.f32 %v8603, 1.442695
        %v8657 = vpow.pop %v8656
        %v8658 = vmul.f32 %v8604, 1.442695
        %v8659 = vpow.pop %v8658
        %v8660 = vmul.f32 %v8605, 1.442695
        %v8661 = vpow.pop %v8660
        %v8662 = vmul.f32 %v8606, 1.442695
        %v8663 = vpow.pop %v8662
        %v8664 = vmul.f32 %v8607, 1.442695
        %v8665 = vpow.pop %v8664
        %v8666 = vmul.f32 %v8608, 1.442695
        %v8667 = vpow.pop %v8666
        %v8668 = vmul.f32 %v8609, 1.442695
        %v8669 = vpow.pop %v8668
        %v8670 = vmul.f32 %v8610, 1.442695
        %v8671 = vpow.pop %v8670
        %v8672 = vmul.f32 %v8611, 1.442695
        %v8673 = vpow.pop %v8672
        %v8674 = vmul.f32 %v8612, 1.442695
        %v8675 = vpow.pop %v8674
        %v8676 = vmul.f32 %v8613, 1.442695
        %v8677 = vpow.pop %v8676
        %v8678 = vmul.f32 %v8614, 1.442695
        %v8679 = vpow.pop %v8678
        %v8680 = vmul.f32 %v8615, 1.442695
        %v8681 = vpow.pop %v8680
        %8682 = vadd.xlane.f32.xlu0 %v8617
        %v8683 = vpop.xlane.xlu0 %8682
        %8684 = vadd.xlane.f32.xlu0 %v8619
        %v8685 = vpop.xlane.xlu0 %8684
        %8686 = vadd.xlane.f32.xlu0 %v8621
        %v8687 = vpop.xlane.xlu0 %8686
        %8688 = vadd.xlane.f32.xlu0 %v8623
        %v8689 = vpop.xlane.xlu0 %8688
        %8690 = vadd.xlane.f32.xlu0 %v8625
        %v8691 = vpop.xlane.xlu0 %8690
        %8692 = vadd.xlane.f32.xlu0 %v8627
        %v8693 = vpop.xlane.xlu0 %8692
        %8694 = vadd.xlane.f32.xlu0 %v8629
        %v8695 = vpop.xlane.xlu0 %8694
        %8696 = vadd.xlane.f32.xlu0 %v8631
        %v8697 = vpop.xlane.xlu0 %8696
        %8698 = vadd.xlane.f32.xlu0 %v8633
        %v8699 = vpop.xlane.xlu0 %8698
        %8700 = vadd.xlane.f32.xlu0 %v8635
        %v8701 = vpop.xlane.xlu0 %8700
        %8702 = vadd.xlane.f32.xlu0 %v8637
        %v8703 = vpop.xlane.xlu0 %8702
        %8704 = vadd.xlane.f32.xlu0 %v8639
        %v8705 = vpop.xlane.xlu0 %8704
        %8706 = vadd.xlane.f32.xlu0 %v8641
        %v8707 = vpop.xlane.xlu0 %8706
        %8708 = vadd.xlane.f32.xlu0 %v8643
        %v8709 = vpop.xlane.xlu0 %8708
        %8710 = vadd.xlane.f32.xlu0 %v8645
        %v8711 = vpop.xlane.xlu0 %8710
        %8712 = vadd.xlane.f32.xlu0 %v8647
        %v8713 = vpop.xlane.xlu0 %8712
        %8714 = vadd.xlane.f32.xlu0 %v8649
        %v8715 = vpop.xlane.xlu0 %8714
        %8716 = vadd.xlane.f32.xlu0 %v8651
        %v8717 = vpop.xlane.xlu0 %8716
        %8718 = vadd.xlane.f32.xlu0 %v8653
        %v8719 = vpop.xlane.xlu0 %8718
        %8720 = vadd.xlane.f32.xlu0 %v8655
        %v8721 = vpop.xlane.xlu0 %8720
        %8722 = vadd.xlane.f32.xlu0 %v8657
        %v8723 = vpop.xlane.xlu0 %8722
        %8724 = vadd.xlane.f32.xlu0 %v8659
        %v8725 = vpop.xlane.xlu0 %8724
        %8726 = vadd.xlane.f32.xlu0 %v8661
        %v8727 = vpop.xlane.xlu0 %8726
        %8728 = vadd.xlane.f32.xlu0 %v8663
        %v8729 = vpop.xlane.xlu0 %8728
        %8730 = vadd.xlane.f32.xlu0 %v8665
        %v8731 = vpop.xlane.xlu0 %8730
        %8732 = vadd.xlane.f32.xlu0 %v8667
        %v8733 = vpop.xlane.xlu0 %8732
        %8734 = vadd.xlane.f32.xlu0 %v8669
        %v8735 = vpop.xlane.xlu0 %8734
        %8736 = vadd.xlane.f32.xlu0 %v8671
        %v8737 = vpop.xlane.xlu0 %8736
        %8738 = vadd.xlane.f32.xlu0 %v8673
        %v8739 = vpop.xlane.xlu0 %8738
        %8740 = vadd.xlane.f32.xlu0 %v8675
        %v8741 = vpop.xlane.xlu0 %8740
        %8742 = vadd.xlane.f32.xlu0 %v8677
        %v8743 = vpop.xlane.xlu0 %8742
        %8744 = vadd.xlane.f32.xlu0 %v8679
        %v8745 = vpop.xlane.xlu0 %8744
        %8746 = vadd.xlane.f32.xlu0 %v8681
        %v8747 = vpop.xlane.xlu0 %8746
        %v8748 = vrcp.pop %v8683
        %v8749 = vrcp.pop %v8685
        %v8750 = vrcp.pop %v8687
        %v8751 = vrcp.pop %v8689
        %v8752 = vrcp.pop %v8691
        %v8753 = vrcp.pop %v8693
        %v8754 = vrcp.pop %v8695
        %v8755 = vrcp.pop %v8697
        %v8756 = vrcp.pop %v8699
        %v8757 = vrcp.pop %v8701
        %v8758 = vrcp.pop %v8703
        %v8759 = vrcp.pop %v8705
        %v8760 = vrcp.pop %v8707
        %v8761 = vrcp.pop %v8709
        %v8762 = vrcp.pop %v8711
        %v8763 = vrcp.pop %v8713
        %v8764 = vrcp.pop %v8715
        %v8765 = vrcp.pop %v8717
        %v8766 = vrcp.pop %v8719
        %v8767 = vrcp.pop %v8721
        %v8768 = vrcp.pop %v8723
        %v8769 = vrcp.pop %v8725
        %v8770 = vrcp.pop %v8727
        %v8771 = vrcp.pop %v8729
        %v8772 = vrcp.pop %v8731
        %v8773 = vrcp.pop %v8733
        %v8774 = vrcp.pop %v8735
        %v8775 = vrcp.pop %v8737
        %v8776 = vrcp.pop %v8739
        %v8777 = vrcp.pop %v8741
        %v8778 = vrcp.pop %v8743
        %v8779 = vrcp.pop %v8745
        %v8780 = vrcp.pop %v8747
        %v8781 = vmul.f32 %v8617, %v8748
        %v8782 = vmul.f32 %v8619, %v8749
        %v8783 = vmul.f32 %v8621, %v8750
        %v8784 = vmul.f32 %v8623, %v8751
        %v8785 = vmul.f32 %v8625, %v8752
        %v8786 = vmul.f32 %v8627, %v8753
        %v8787 = vmul.f32 %v8629, %v8754
        %v8788 = vmul.f32 %v8631, %v8755
        %v8789 = vmul.f32 %v8633, %v8756
        %v8790 = vmul.f32 %v8635, %v8757
        %v8791 = vmul.f32 %v8637, %v8758
        %v8792 = vmul.f32 %v8639, %v8759
        %v8793 = vmul.f32 %v8641, %v8760
        %v8794 = vmul.f32 %v8643, %v8761
        %v8795 = vmul.f32 %v8645, %v8762
        %v8796 = vmul.f32 %v8647, %v8763
        %v8797 = vmul.f32 %v8649, %v8764
        %v8798 = vmul.f32 %v8651, %v8765
        %v8799 = vmul.f32 %v8653, %v8766
        %v8800 = vmul.f32 %v8655, %v8767
        %v8801 = vmul.f32 %v8657, %v8768
        %v8802 = vmul.f32 %v8659, %v8769
        %v8803 = vmul.f32 %v8661, %v8770
        %v8804 = vmul.f32 %v8663, %v8771
        %v8805 = vmul.f32 %v8665, %v8772
        %v8806 = vmul.f32 %v8667, %v8773
        %v8807 = vmul.f32 %v8669, %v8774
        %v8808 = vmul.f32 %v8671, %v8775
        %v8809 = vmul.f32 %v8673, %v8776
        %v8810 = vmul.f32 %v8675, %v8777
        %v8811 = vmul.f32 %v8677, %v8778
        %v8812 = vmul.f32 %v8679, %v8779
        %v8813 = vmul.f32 %v8681, %v8780
        %v8814 = vpack.c.bf16 %v8782, %v8781
        %v8815 = vpack.c.bf16 %v8784, %v8783
        %v8816 = vpack.c.bf16 %v8786, %v8785
        %v8817 = vpack.c.bf16 %v8788, %v8787
        %v8818 = vpack.c.bf16 %v8790, %v8789
        %v8819 = vpack.c.bf16 %v8792, %v8791
        %v8820 = vpack.c.bf16 %v8794, %v8793
        %v8821 = vpack.c.bf16 %v8796, %v8795
        %v8822 = vpack.c.bf16 %v8798, %v8797
        %v8823 = vpack.c.bf16 %v8800, %v8799
        %v8824 = vpack.c.bf16 %v8802, %v8801
        %v8825 = vpack.c.bf16 %v8804, %v8803
        %v8826 = vpack.c.bf16 %v8806, %v8805
        %v8827 = vpack.c.bf16 %v8808, %v8807
        %v8828 = vpack.c.bf16 %v8810, %v8809
        %v8829 = vpack.c.bf16 %v8812, %v8811
        %v8830 = vpack.c.bf16 %v8813, %v8813
        %8831 = vmatprep.subr.bf16.mxu0 0
        %8832 = vmatpush1.bf16.msra.mxu0 %v7967
        %8833 = vmatprep.subr.bf16.mxu0 0
        %8834 = vmatpush1.bf16.msra.mxu0 %v7969
        %8835 = vmatprep.subr.bf16.mxu0 0
        %8836 = vmatpush1.bf16.msra.mxu0 %v7971
        %8837 = vmatprep.subr.bf16.mxu0 0
        %8838 = vmatpush1.bf16.msra.mxu0 %v7973
        %8839 = vmatprep.subr.bf16.mxu0 0
        %8840 = vmatpush1.bf16.msra.mxu0 %v7975
        %8841 = vmatprep.subr.bf16.mxu0 0
        %8842 = vmatpush1.bf16.msra.mxu0 %v7977
        %8843 = vmatprep.subr.bf16.mxu0 0
        %8844 = vmatpush1.bf16.msra.mxu0 %v7979
        %8845 = vmatprep.subr.bf16.mxu0 0
        %8846 = vmatpush1.bf16.msra.mxu0 %v7981
        %8847 = vmatprep.subr.bf16.mxu0 0
        %8848 = vmatpush1.bf16.msra.mxu0 0
        %8849 = vmatprep.subr.bf16.mxu0 0
        %8850 = vmatpush1.bf16.msra.mxu0 0
        %8851 = vmatprep.subr.bf16.mxu0 0
        %8852 = vmatpush1.bf16.msra.mxu0 0
        %8853 = vmatprep.subr.bf16.mxu0 0
        %8854 = vmatpush1.bf16.msra.mxu0 0
        %8855 = vmatprep.subr.bf16.mxu0 0
        %8856 = vmatpush1.bf16.msra.mxu0 0
        %8857 = vmatprep.subr.bf16.mxu0 0
        %8858 = vmatpush1.bf16.msra.mxu0 0
        %8859 = vmatprep.subr.bf16.mxu0 0
        %8860 = vmatpush1.bf16.msra.mxu0 0
        %8861 = vmatprep.subr.bf16.mxu0 0
        %8862 = vmatpush1.bf16.msra.mxu0 0
        %8863 = vmatprep.mubr.bf16.mxu0 0
        %8864 = vmatmul.mubr.bf16.gmra.mrb[0].mxu0 %v8814
        %v8865 = vpop.f32.mrb[0].mxu0
        %v8866 = vadd.f32 0.0, %v8865
        %v8867 = vpop.f32.mrb[0].mxu0
        %v8868 = vpop.f32.mrb[0].mxu0
        %v8869 = vadd.f32 0.0, %v8868
        %v8870 = vpop.f32.mrb[0].mxu0
        %8871 = vmatprep.mubr.bf16.mxu0 0
        %8872 = vmatmul.mubr.bf16.gmra.mrb[0].mxu0 %v8815
        %v8873 = vpop.f32.mrb[0].mxu0
        %v8874 = vadd.f32 0.0, %v8873
        %v8875 = vpop.f32.mrb[0].mxu0
        %v8876 = vpop.f32.mrb[0].mxu0
        %v8877 = vadd.f32 0.0, %v8876
        %v8878 = vpop.f32.mrb[0].mxu0
        %8879 = vmatprep.mubr.bf16.mxu0 0
        %8880 = vmatmul.mubr.bf16.gmra.mrb[0].mxu0 %v8816
        %v8881 = vpop.f32.mrb[0].mxu0
        %v8882 = vadd.f32 0.0, %v8881
        %v8883 = vpop.f32.mrb[0].mxu0
        %v8884 = vpop.f32.mrb[0].mxu0
        %v8885 = vadd.f32 0.0, %v8884
        %v8886 = vpop.f32.mrb[0].mxu0
        %8887 = vmatprep.mubr.bf16.mxu0 0
        %8888 = vmatmul.mubr.bf16.gmra.mrb[0].mxu0 %v8817
        %v8889 = vpop.f32.mrb[0].mxu0
        %v8890 = vadd.f32 0.0, %v8889
        %v8891 = vpop.f32.mrb[0].mxu0
        %v8892 = vpop.f32.mrb[0].mxu0
        %v8893 = vadd.f32 0.0, %v8892
        %v8894 = vpop.f32.mrb[0].mxu0
        %8895 = vmatprep.mubr.bf16.mxu0 0
        %8896 = vmatmul.mubr.bf16.gmra.mrb[0].mxu0 %v8818
        %v8897 = vpop.f32.mrb[0].mxu0
        %v8898 = vadd.f32 0.0, %v8897
        %v8899 = vpop.f32.mrb[0].mxu0
        %v8900 = vpop.f32.mrb[0].mxu0
        %v8901 = vadd.f32 0.0, %v8900
        %v8902 = vpop.f32.mrb[0].mxu0
        %8903 = vmatprep.mubr.bf16.mxu0 0
        %8904 = vmatmul.mubr.bf16.gmra.mrb[0].mxu0 %v8819
        %v8905 = vpop.f32.mrb[0].mxu0
        %v8906 = vadd.f32 0.0, %v8905
        %v8907 = vpop.f32.mrb[0].mxu0
        %v8908 = vpop.f32.mrb[0].mxu0
        %v8909 = vadd.f32 0.0, %v8908
        %v8910 = vpop.f32.mrb[0].mxu0
        %8911 = vmatprep.mubr.bf16.mxu0 0
        %8912 = vmatmul.mubr.bf16.gmra.mrb[0].mxu0 %v8820
        %v8913 = vpop.f32.mrb[0].mxu0
        %v8914 = vadd.f32 0.0, %v8913
        %v8915 = vpop.f32.mrb[0].mxu0
        %v8916 = vpop.f32.mrb[0].mxu0
        %v8917 = vadd.f32 0.0, %v8916
        %v8918 = vpop.f32.mrb[0].mxu0
        %8919 = vmatprep.mubr.bf16.mxu0 0
        %8920 = vmatmul.mubr.bf16.gmra.mrb[0].mxu0 %v8821
        %v8921 = vpop.f32.mrb[0].mxu0
        %v8922 = vadd.f32 0.0, %v8921
        %v8923 = vpop.f32.mrb[0].mxu0
        %v8924 = vpop.f32.mrb[0].mxu0
        %v8925 = vadd.f32 0.0, %v8924
        %v8926 = vpop.f32.mrb[0].mxu0
        %8927 = vmatprep.mubr.bf16.mxu0 0
        %8928 = vmatmul.mubr.bf16.gmra.mrb[0].mxu0 %v8822
        %v8929 = vpop.f32.mrb[0].mxu0
        %v8930 = vadd.f32 0.0, %v8929
        %v8931 = vpop.f32.mrb[0].mxu0
        %v8932 = vpop.f32.mrb[0].mxu0
        %v8933 = vadd.f32 0.0, %v8932
        %v8934 = vpop.f32.mrb[0].mxu0
        %8935 = vmatprep.mubr.bf16.mxu0 0
        %8936 = vmatmul.mubr.bf16.gmra.mrb[0].mxu0 %v8823
        %v8937 = vpop.f32.mrb[0].mxu0
        %v8938 = vadd.f32 0.0, %v8937
        %v8939 = vpop.f32.mrb[0].mxu0
        %v8940 = vpop.f32.mrb[0].mxu0
        %v8941 = vadd.f32 0.0, %v8940
        %v8942 = vpop.f32.mrb[0].mxu0
        %8943 = vmatprep.mubr.bf16.mxu0 0
        %8944 = vmatmul.mubr.bf16.gmra.mrb[0].mxu0 %v8824
        %v8945 = vpop.f32.mrb[0].mxu0
        %v8946 = vadd.f32 0.0, %v8945
        %v8947 = vpop.f32.mrb[0].mxu0
        %v8948 = vpop.f32.mrb[0].mxu0
        %v8949 = vadd.f32 0.0, %v8948
        %v8950 = vpop.f32.mrb[0].mxu0
        %8951 = vmatprep.mubr.bf16.mxu0 0
        %8952 = vmatmul.mubr.bf16.gmra.mrb[0].mxu0 %v8825
        %v8953 = vpop.f32.mrb[0].mxu0
        %v8954 = vadd.f32 0.0, %v8953
        %v8955 = vpop.f32.mrb[0].mxu0
        %v8956 = vpop.f32.mrb[0].mxu0
        %v8957 = vadd.f32 0.0, %v8956
        %v8958 = vpop.f32.mrb[0].mxu0
        %8959 = vmatprep.mubr.bf16.mxu0 0
        %8960 = vmatmul.mubr.bf16.gmra.mrb[0].mxu0 %v8826
        %v8961 = vpop.f32.mrb[0].mxu0
        %v8962 = vadd.f32 0.0, %v8961
        %v8963 = vpop.f32.mrb[0].mxu0
        %v8964 = vpop.f32.mrb[0].mxu0
        %v8965 = vadd.f32 0.0, %v8964
        %v8966 = vpop.f32.mrb[0].mxu0
        %8967 = vmatprep.mubr.bf16.mxu0 0
        %8968 = vmatmul.mubr.bf16.gmra.mrb[0].mxu0 %v8827
        %v8969 = vpop.f32.mrb[0].mxu0
        %v8970 = vadd.f32 0.0, %v8969
        %v8971 = vpop.f32.mrb[0].mxu0
        %v8972 = vpop.f32.mrb[0].mxu0
        %v8973 = vadd.f32 0.0, %v8972
        %v8974 = vpop.f32.mrb[0].mxu0
        %8975 = vmatprep.mubr.bf16.mxu0 0
        %8976 = vmatmul.mubr.bf16.gmra.mrb[0].mxu0 %v8828
        %v8977 = vpop.f32.mrb[0].mxu0
        %v8978 = vadd.f32 0.0, %v8977
        %v8979 = vpop.f32.mrb[0].mxu0
        %v8980 = vpop.f32.mrb[0].mxu0
        %v8981 = vadd.f32 0.0, %v8980
        %v8982 = vpop.f32.mrb[0].mxu0
        %8983 = vmatprep.mubr.bf16.mxu0 0
        %8984 = vmatmul.mubr.bf16.gmra.mrb[0].mxu0 %v8829
        %v8985 = vpop.f32.mrb[0].mxu0
        %v8986 = vadd.f32 0.0, %v8985
        %v8987 = vpop.f32.mrb[0].mxu0
        %v8988 = vpop.f32.mrb[0].mxu0
        %v8989 = vadd.f32 0.0, %v8988
        %v8990 = vpop.f32.mrb[0].mxu0
        %8991 = vmatprep.mubr.bf16.mxu0 0
        %8992 = vmatmul.mubr.bf16.gmra.mrb[0].mxu0 %v8830
        %v8993 = vpop.f32.mrb[0].mxu0
        %v8994 = vadd.f32 0.0, %v8993
        %v8995 = vpop.f32.mrb[0].mxu0
        %v8996 = vpop.f32.mrb[0].mxu0
        %v8997 = vpop.f32.mrb[0].mxu0
        %8998 = vdwg.mxu0
        %v8999 = vsel %vm4561, %v8025, %v8866
        %v9000 = vsel %vm4561, %v8028, %v8869
        %v9001 = vsel %vm4561, %v8033, %v8874
        %v9002 = vsel %vm4561, %v8036, %v8877
        %v9003 = vsel %vm4561, %v8041, %v8882
        %v9004 = vsel %vm4561, %v8044, %v8885
        %v9005 = vsel %vm4561, %v8049, %v8890
        %v9006 = vsel %vm4561, %v8052, %v8893
        %v9007 = vsel %vm4561, %v8057, %v8898
        %v9008 = vsel %vm4561, %v8060, %v8901
        %v9009 = vsel %vm4561, %v8065, %v8906
        %v9010 = vsel %vm4561, %v8068, %v8909
        %v9011 = vsel %vm4561, %v8073, %v8914
        %v9012 = vsel %vm4561, %v8076, %v8917
        %v9013 = vsel %vm4561, %v8081, %v8922
        %v9014 = vsel %vm4561, %v8084, %v8925
        %v9015 = vsel %vm4561, %v8089, %v8930
        %v9016 = vsel %vm4561, %v8092, %v8933
        %v9017 = vsel %vm4561, %v8097, %v8938
        %v9018 = vsel %vm4561, %v8100, %v8941
        %v9019 = vsel %vm4561, %v8105, %v8946
        %v9020 = vsel %vm4561, %v8108, %v8949
        %v9021 = vsel %vm4561, %v8113, %v8954
        %v9022 = vsel %vm4561, %v8116, %v8957
        %v9023 = vsel %vm4561, %v8121, %v8962
        %v9024 = vsel %vm4561, %v8124, %v8965
        %v9025 = vsel %vm4561, %v8129, %v8970
        %v9026 = vsel %vm4561, %v8132, %v8973
        %v9027 = vsel %vm4561, %v8137, %v8978
        %v9028 = vsel %vm4561, %v8140, %v8981
        %v9029 = vsel %vm4561, %v8145, %v8986
        %v9030 = vsel %vm4561, %v8148, %v8989
        %v9031 = vsel %vm4561, %v8153, %v8994
        %v9032 = vadd.f32 %v8999, %v6913
        %v9033 = vadd.f32 %v9000, %v6916
        %v9034 = vadd.f32 %v9001, %v6921
        %v9035 = vadd.f32 %v9002, %v6924
        %v9036 = vadd.f32 %v9003, %v6929
        %v9037 = vadd.f32 %v9004, %v6932
        %v9038 = vadd.f32 %v9005, %v6937
        %v9039 = vadd.f32 %v9006, %v6940
        %v9040 = vadd.f32 %v9007, %v6945
        %v9041 = vadd.f32 %v9008, %v6948
        %v9042 = vadd.f32 %v9009, %v6953
        %v9043 = vadd.f32 %v9010, %v6956
        %v9044 = vadd.f32 %v9011, %v6961
        %v9045 = vadd.f32 %v9012, %v6964
        %v9046 = vadd.f32 %v9013, %v6969
        %v9047 = vadd.f32 %v9014, %v6972
        %v9048 = vadd.f32 %v9015, %v6977
        %v9049 = vadd.f32 %v9016, %v6980
        %v9050 = vadd.f32 %v9017, %v6985
        %v9051 = vadd.f32 %v9018, %v6988
        %v9052 = vadd.f32 %v9019, %v6993
        %v9053 = vadd.f32 %v9020, %v6996
        %v9054 = vadd.f32 %v9021, %v7001
        %v9055 = vadd.f32 %v9022, %v7004
        %v9056 = vadd.f32 %v9023, %v7009
        %v9057 = vadd.f32 %v9024, %v7012
        %v9058 = vadd.f32 %v9025, %v7017
        %v9059 = vadd.f32 %v9026, %v7020
        %v9060 = vadd.f32 %v9027, %v7025
        %v9061 = vadd.f32 %v9028, %v7028
        %v9062 = vadd.f32 %v9029, %v7033
        %v9063 = vadd.f32 %v9030, %v7036
        %v9064 = vadd.f32 %v9031, %v7041
        %v9065 = vpack.c.bf16 %v9033, %v9032
        %v9066 = vpack.c.bf16 %v9035, %v9034
        %v9067 = vpack.c.bf16 %v9037, %v9036
        %v9068 = vpack.c.bf16 %v9039, %v9038
        %v9069 = vpack.c.bf16 %v9041, %v9040
        %v9070 = vpack.c.bf16 %v9043, %v9042
        %v9071 = vpack.c.bf16 %v9045, %v9044
        %v9072 = vpack.c.bf16 %v9047, %v9046
        %v9073 = vpack.c.bf16 %v9049, %v9048
        %v9074 = vpack.c.bf16 %v9051, %v9050
        %v9075 = vpack.c.bf16 %v9053, %v9052
        %v9076 = vpack.c.bf16 %v9055, %v9054
        %v9077 = vpack.c.bf16 %v9057, %v9056
        %v9078 = vpack.c.bf16 %v9059, %v9058
        %v9079 = vpack.c.bf16 %v9061, %v9060
        %v9080 = vpack.c.bf16 %v9063, %v9062
        %v9081 = vpack.c.bf16 %v9064, %v9064
        %s9082 = scalar_lea.vmem %s8, 16
        %v9083 = vld [vmem:[%s9082] sm:$0xf]
        %v9084 = vld [vmem:[%s9082 + $0x4] sm:$0xf]
        %v9085 = vld [vmem:[%s9082 + $0x8] sm:$0xf]
        %v9086 = vld [vmem:[%s9082 + $0xc] sm:$0xf]
        %s9087 = scalar_lea.vmem %s9, 1
        %v9088 = vld [vmem:[%s9087] sm:$0x1]
        %v9090 = vlaneseq
        %v9091 = vshrl.u32 %v9090, 7
        %v9092 = vsub.s32 0, %v9091
        %v9093 = vrot.slane %v9088, %v9092
        %v9099 = vunpack.c.l.b16 %v9083
        %v9100 = vunpack.c.l.b16 %v9084
        %v9101 = vunpack.c.l.b16 %v9085
        %v9102 = vunpack.c.l.b16 %v9086
        %v9103 = vpack.c.b16 %v9100, %v9099
        %v9104 = vpack.c.b16 %v9102, %v9101
        %v9108 = vsel %vm1691, %v9065, 0
        %v9111 = vsel %vm1691, %v9066, 0
        %v9114 = vsel %vm1691, %v9067, 0
        %v9117 = vsel %vm1691, %v9068, 0
        %v9120 = vsel %vm1691, %v9069, 0
        %v9123 = vsel %vm1691, %v9070, 0
        %v9126 = vsel %vm1691, %v9071, 0
        %v9129 = vsel %vm1691, %v9072, 0
        %v9132 = vsel %vm1691, %v9073, 0
        %v9135 = vsel %vm1691, %v9074, 0
        %v9138 = vsel %vm1691, %v9075, 0
        %v9141 = vsel %vm1691, %v9076, 0
        %v9144 = vsel %vm1691, %v9077, 0
        %v9147 = vsel %vm1691, %v9078, 0
        %v9150 = vsel %vm1691, %v9079, 0
        %v9153 = vsel %vm1691, %v9080, 0
        %v9156 = vsel %vm1691, %v9081, 0
        %9158 = vmatprep.subr.bf16.mxu0 0
        %9159 = vmatpush1.bf16.msra.mxu0 %v9103
        %9160 = vmatprep.subr.bf16.mxu0 0
        %9161 = vmatpush1.bf16.msra.mxu0 %v9104
        %9162 = vmatprep.subr.bf16.mxu0 0
        %9163 = vmatpush1.bf16.msra.mxu0 0
        %9164 = vmatprep.subr.bf16.mxu0 0
        %9165 = vmatpush1.bf16.msra.mxu0 0
        %9166 = vmatprep.subr.bf16.mxu0 0
        %9167 = vmatpush1.bf16.msra.mxu0 0
        %9168 = vmatprep.subr.bf16.mxu0 0
        %9169 = vmatpush1.bf16.msra.mxu0 0
        %9170 = vmatprep.subr.bf16.mxu0 0
        %9171 = vmatpush1.bf16.msra.mxu0 0
        %9172 = vmatprep.subr.bf16.mxu0 0
        %9173 = vmatpush1.bf16.msra.mxu0 0
        %9174 = vmatprep.subr.bf16.mxu0 0
        %9175 = vmatpush1.bf16.msra.mxu0 0
        %9176 = vmatprep.subr.bf16.mxu0 0
        %9177 = vmatpush1.bf16.msra.mxu0 0
        %9178 = vmatprep.subr.bf16.mxu0 0
        %9179 = vmatpush1.bf16.msra.mxu0 0
        %9180 = vmatprep.subr.bf16.mxu0 0
        %9181 = vmatpush1.bf16.msra.mxu0 0
        %9182 = vmatprep.subr.bf16.mxu0 0
        %9183 = vmatpush1.bf16.msra.mxu0 0
        %9184 = vmatprep.subr.bf16.mxu0 0
        %9185 = vmatpush1.bf16.msra.mxu0 0
        %9186 = vmatprep.subr.bf16.mxu0 0
        %9187 = vmatpush1.bf16.msra.mxu0 0
        %9188 = vmatprep.subr.bf16.mxu0 0
        %9189 = vmatpush1.bf16.msra.mxu0 0
        %9190 = vmatprep.mubr.bf16.mxu0 0
        %9191 = vmatmul.mubr.bf16.gmra.mrb[0].mxu0 %v9108
        %v9192 = vpop.f32.mrb[0].mxu0
        %v9193 = vadd.f32 %v9093, %v9192
        %v9194 = vpop.f32.mrb[0].mxu0
        %v9195 = vpop.f32.mrb[0].mxu0
        %v9196 = vadd.f32 %v9093, %v9195
        %v9197 = vpop.f32.mrb[0].mxu0
        %9198 = vmatprep.mubr.bf16.mxu0 0
        %9199 = vmatmul.mubr.bf16.gmra.mrb[0].mxu0 %v9111
        %v9200 = vpop.f32.mrb[0].mxu0
        %v9201 = vadd.f32 %v9093, %v9200
        %v9202 = vpop.f32.mrb[0].mxu0
        %v9203 = vpop.f32.mrb[0].mxu0
        %v9204 = vadd.f32 %v9093, %v9203
        %v9205 = vpop.f32.mrb[0].mxu0
        %9206 = vmatprep.mubr.bf16.mxu0 0
        %9207 = vmatmul.mubr.bf16.gmra.mrb[0].mxu0 %v9114
        %v9208 = vpop.f32.mrb[0].mxu0
        %v9209 = vadd.f32 %v9093, %v9208
        %v9210 = vpop.f32.mrb[0].mxu0
        %v9211 = vpop.f32.mrb[0].mxu0
        %v9212 = vadd.f32 %v9093, %v9211
        %v9213 = vpop.f32.mrb[0].mxu0
        %9214 = vmatprep.mubr.bf16.mxu0 0
        %9215 = vmatmul.mubr.bf16.gmra.mrb[0].mxu0 %v9117
        %v9216 = vpop.f32.mrb[0].mxu0
        %v9217 = vadd.f32 %v9093, %v9216
        %v9218 = vpop.f32.mrb[0].mxu0
        %v9219 = vpop.f32.mrb[0].mxu0
        %v9220 = vadd.f32 %v9093, %v9219
        %v9221 = vpop.f32.mrb[0].mxu0
        %9222 = vmatprep.mubr.bf16.mxu0 0
        %9223 = vmatmul.mubr.bf16.gmra.mrb[0].mxu0 %v9120
        %v9224 = vpop.f32.mrb[0].mxu0
        %v9225 = vadd.f32 %v9093, %v9224
        %v9226 = vpop.f32.mrb[0].mxu0
        %v9227 = vpop.f32.mrb[0].mxu0
        %v9228 = vadd.f32 %v9093, %v9227
        %v9229 = vpop.f32.mrb[0].mxu0
        %9230 = vmatprep.mubr.bf16.mxu0 0
        %9231 = vmatmul.mubr.bf16.gmra.mrb[0].mxu0 %v9123
        %v9232 = vpop.f32.mrb[0].mxu0
        %v9233 = vadd.f32 %v9093, %v9232
        %v9234 = vpop.f32.mrb[0].mxu0
        %v9235 = vpop.f32.mrb[0].mxu0
        %v9236 = vadd.f32 %v9093, %v9235
        %v9237 = vpop.f32.mrb[0].mxu0
        %9238 = vmatprep.mubr.bf16.mxu0 0
        %9239 = vmatmul.mubr.bf16.gmra.mrb[0].mxu0 %v9126
        %v9240 = vpop.f32.mrb[0].mxu0
        %v9241 = vadd.f32 %v9093, %v9240
        %v9242 = vpop.f32.mrb[0].mxu0
        %v9243 = vpop.f32.mrb[0].mxu0
        %v9244 = vadd.f32 %v9093, %v9243
        %v9245 = vpop.f32.mrb[0].mxu0
        %9246 = vmatprep.mubr.bf16.mxu0 0
        %9247 = vmatmul.mubr.bf16.gmra.mrb[0].mxu0 %v9129
        %v9248 = vpop.f32.mrb[0].mxu0
        %v9249 = vadd.f32 %v9093, %v9248
        %v9250 = vpop.f32.mrb[0].mxu0
        %v9251 = vpop.f32.mrb[0].mxu0
        %v9252 = vadd.f32 %v9093, %v9251
        %v9253 = vpop.f32.mrb[0].mxu0
        %9254 = vmatprep.mubr.bf16.mxu0 0
        %9255 = vmatmul.mubr.bf16.gmra.mrb[0].mxu0 %v9132
        %v9256 = vpop.f32.mrb[0].mxu0
        %v9257 = vadd.f32 %v9093, %v9256
        %v9258 = vpop.f32.mrb[0].mxu0
        %v9259 = vpop.f32.mrb[0].mxu0
        %v9260 = vadd.f32 %v9093, %v9259
        %v9261 = vpop.f32.mrb[0].mxu0
        %9262 = vmatprep.mubr.bf16.mxu0 0
        %9263 = vmatmul.mubr.bf16.gmra.mrb[0].mxu0 %v9135
        %v9264 = vpop.f32.mrb[0].mxu0
        %v9265 = vadd.f32 %v9093, %v9264
        %v9266 = vpop.f32.mrb[0].mxu0
        %v9267 = vpop.f32.mrb[0].mxu0
        %v9268 = vadd.f32 %v9093, %v9267
        %v9269 = vpop.f32.mrb[0].mxu0
        %9270 = vmatprep.mubr.bf16.mxu0 0
        %9271 = vmatmul.mubr.bf16.gmra.mrb[0].mxu0 %v9138
        %v9272 = vpop.f32.mrb[0].mxu0
        %v9273 = vadd.f32 %v9093, %v9272
        %v9274 = vpop.f32.mrb[0].mxu0
        %v9275 = vpop.f32.mrb[0].mxu0
        %v9276 = vadd.f32 %v9093, %v9275
        %v9277 = vpop.f32.mrb[0].mxu0
        %9278 = vmatprep.mubr.bf16.mxu0 0
        %9279 = vmatmul.mubr.bf16.gmra.mrb[0].mxu0 %v9141
        %v9280 = vpop.f32.mrb[0].mxu0
        %v9281 = vadd.f32 %v9093, %v9280
        %v9282 = vpop.f32.mrb[0].mxu0
        %v9283 = vpop.f32.mrb[0].mxu0
        %v9284 = vadd.f32 %v9093, %v9283
        %v9285 = vpop.f32.mrb[0].mxu0
        %9286 = vmatprep.mubr.bf16.mxu0 0
        %9287 = vmatmul.mubr.bf16.gmra.mrb[0].mxu0 %v9144
        %v9288 = vpop.f32.mrb[0].mxu0
        %v9289 = vadd.f32 %v9093, %v9288
        %v9290 = vpop.f32.mrb[0].mxu0
        %v9291 = vpop.f32.mrb[0].mxu0
        %v9292 = vadd.f32 %v9093, %v9291
        %v9293 = vpop.f32.mrb[0].mxu0
        %9294 = vmatprep.mubr.bf16.mxu0 0
        %9295 = vmatmul.mubr.bf16.gmra.mrb[0].mxu0 %v9147
        %v9296 = vpop.f32.mrb[0].mxu0
        %v9297 = vadd.f32 %v9093, %v9296
        %v9298 = vpop.f32.mrb[0].mxu0
        %v9299 = vpop.f32.mrb[0].mxu0
        %v9300 = vadd.f32 %v9093, %v9299
        %v9301 = vpop.f32.mrb[0].mxu0
        %9302 = vmatprep.mubr.bf16.mxu0 0
        %9303 = vmatmul.mubr.bf16.gmra.mrb[0].mxu0 %v9150
        %v9304 = vpop.f32.mrb[0].mxu0
        %v9305 = vadd.f32 %v9093, %v9304
        %v9306 = vpop.f32.mrb[0].mxu0
        %v9307 = vpop.f32.mrb[0].mxu0
        %v9308 = vadd.f32 %v9093, %v9307
        %v9309 = vpop.f32.mrb[0].mxu0
        %9310 = vmatprep.mubr.bf16.mxu0 0
        %9311 = vmatmul.mubr.bf16.gmra.mrb[0].mxu0 %v9153
        %v9312 = vpop.f32.mrb[0].mxu0
        %v9313 = vadd.f32 %v9093, %v9312
        %v9314 = vpop.f32.mrb[0].mxu0
        %v9315 = vpop.f32.mrb[0].mxu0
        %v9316 = vadd.f32 %v9093, %v9315
        %v9317 = vpop.f32.mrb[0].mxu0
        %9318 = vmatprep.mubr.bf16.mxu0 0
        %9319 = vmatmul.mubr.bf16.gmra.mrb[0].mxu0 %v9156
        %v9320 = vpop.f32.mrb[0].mxu0
        %v9321 = vadd.f32 %v9093, %v9320
        %v9322 = vpop.f32.mrb[0].mxu0
        %v9323 = vpop.f32.mrb[0].mxu0
        %v9324 = vpop.f32.mrb[0].mxu0
        %9325 = vdwg.mxu0
        %v9326 = vadd.f32 %v6241, %v9193
        %v9327 = vadd.f32 %v6242, %v9196
        %v9328 = vadd.f32 %v6243, %v9201
        %v9329 = vadd.f32 %v6244, %v9204
        %v9330 = vadd.f32 %v6245, %v9209
        %v9331 = vadd.f32 %v6246, %v9212
        %v9332 = vadd.f32 %v6247, %v9217
        %v9333 = vadd.f32 %v6248, %v9220
        %v9334 = vadd.f32 %v6249, %v9225
        %v9335 = vadd.f32 %v6250, %v9228
        %v9336 = vadd.f32 %v6251, %v9233
        %v9337 = vadd.f32 %v6252, %v9236
        %v9338 = vadd.f32 %v6253, %v9241
        %v9339 = vadd.f32 %v6254, %v9244
        %v9340 = vadd.f32 %v6255, %v9249
        %v9341 = vadd.f32 %v6256, %v9252
        %v9342 = vadd.f32 %v6257, %v9257
        %v9343 = vadd.f32 %v6258, %v9260
        %v9344 = vadd.f32 %v6259, %v9265
        %v9345 = vadd.f32 %v6260, %v9268
        %v9346 = vadd.f32 %v6261, %v9273
        %v9347 = vadd.f32 %v6262, %v9276
        %v9348 = vadd.f32 %v6263, %v9281
        %v9349 = vadd.f32 %v6264, %v9284
        %v9350 = vadd.f32 %v6265, %v9289
        %v9351 = vadd.f32 %v6266, %v9292
        %v9352 = vadd.f32 %v6267, %v9297
        %v9353 = vadd.f32 %v6268, %v9300
        %v9354 = vadd.f32 %v6269, %v9305
        %v9355 = vadd.f32 %v6270, %v9308
        %v9356 = vadd.f32 %v6271, %v9313
        %v9357 = vadd.f32 %v6272, %v9316
        %v9358 = vadd.f32 %v6273, %v9321
        %s9359 = scalar_lea.vmem %s10, 1
        %v9360 = vld [vmem:[%s9359] sm:$0x1]
        %s9361 = scalar_lea.vmem %s11, 1
        %v9362 = vld [vmem:[%s9361] sm:$0x1]
        %v9363 = vsel %vm1691, %v9326, 0.0
        %9364 = vadd.xlane.f32.xlu0 %v9363
        %v9365 = vpop.xlane.xlu0 %9364
        %v9366 = vsel %vm1691, %v9327, 0.0
        %9367 = vadd.xlane.f32.xlu0 %v9366
        %v9368 = vpop.xlane.xlu0 %9367
        %v9369 = vsel %vm1691, %v9328, 0.0
        %9370 = vadd.xlane.f32.xlu0 %v9369
        %v9371 = vpop.xlane.xlu0 %9370
        %v9372 = vsel %vm1691, %v9329, 0.0
        %9373 = vadd.xlane.f32.xlu0 %v9372
        %v9374 = vpop.xlane.xlu0 %9373
        %v9375 = vsel %vm1691, %v9330, 0.0
        %9376 = vadd.xlane.f32.xlu0 %v9375
        %v9377 = vpop.xlane.xlu0 %9376
        %v9378 = vsel %vm1691, %v9331, 0.0
        %9379 = vadd.xlane.f32.xlu0 %v9378
        %v9380 = vpop.xlane.xlu0 %9379
        %v9381 = vsel %vm1691, %v9332, 0.0
        %9382 = vadd.xlane.f32.xlu0 %v9381
        %v9383 = vpop.xlane.xlu0 %9382
        %v9384 = vsel %vm1691, %v9333, 0.0
        %9385 = vadd.xlane.f32.xlu0 %v9384
        %v9386 = vpop.xlane.xlu0 %9385
        %v9387 = vsel %vm1691, %v9334, 0.0
        %9388 = vadd.xlane.f32.xlu0 %v9387
        %v9389 = vpop.xlane.xlu0 %9388
        %v9390 = vsel %vm1691, %v9335, 0.0
        %9391 = vadd.xlane.f32.xlu0 %v9390
        %v9392 = vpop.xlane.xlu0 %9391
        %v9393 = vsel %vm1691, %v9336, 0.0
        %9394 = vadd.xlane.f32.xlu0 %v9393
        %v9395 = vpop.xlane.xlu0 %9394
        %v9396 = vsel %vm1691, %v9337, 0.0
        %9397 = vadd.xlane.f32.xlu0 %v9396
        %v9398 = vpop.xlane.xlu0 %9397
        %v9399 = vsel %vm1691, %v9338, 0.0
        %9400 = vadd.xlane.f32.xlu0 %v9399
        %v9401 = vpop.xlane.xlu0 %9400
        %v9402 = vsel %vm1691, %v9339, 0.0
        %9403 = vadd.xlane.f32.xlu0 %v9402
        %v9404 = vpop.xlane.xlu0 %9403
        %v9405 = vsel %vm1691, %v9340, 0.0
        %9406 = vadd.xlane.f32.xlu0 %v9405
        %v9407 = vpop.xlane.xlu0 %9406
        %v9408 = vsel %vm1691, %v9341, 0.0
        %9409 = vadd.xlane.f32.xlu0 %v9408
        %v9410 = vpop.xlane.xlu0 %9409
        %v9411 = vsel %vm1691, %v9342, 0.0
        %9412 = vadd.xlane.f32.xlu0 %v9411
        %v9413 = vpop.xlane.xlu0 %9412
        %v9414 = vsel %vm1691, %v9343, 0.0
        %9415 = vadd.xlane.f32.xlu0 %v9414
        %v9416 = vpop.xlane.xlu0 %9415
        %v9417 = vsel %vm1691, %v9344, 0.0
        %9418 = vadd.xlane.f32.xlu0 %v9417
        %v9419 = vpop.xlane.xlu0 %9418
        %v9420 = vsel %vm1691, %v9345, 0.0
        %9421 = vadd.xlane.f32.xlu0 %v9420
        %v9422 = vpop.xlane.xlu0 %9421
        %v9423 = vsel %vm1691, %v9346, 0.0
        %9424 = vadd.xlane.f32.xlu0 %v9423
        %v9425 = vpop.xlane.xlu0 %9424
        %v9426 = vsel %vm1691, %v9347, 0.0
        %9427 = vadd.xlane.f32.xlu0 %v9426
        %v9428 = vpop.xlane.xlu0 %9427
        %v9429 = vsel %vm1691, %v9348, 0.0
        %9430 = vadd.xlane.f32.xlu0 %v9429
        %v9431 = vpop.xlane.xlu0 %9430
        %v9432 = vsel %vm1691, %v9349, 0.0
        %9433 = vadd.xlane.f32.xlu0 %v9432
        %v9434 = vpop.xlane.xlu0 %9433
        %v9435 = vsel %vm1691, %v9350, 0.0
        %9436 = vadd.xlane.f32.xlu0 %v9435
        %v9437 = vpop.xlane.xlu0 %9436
        %v9438 = vsel %vm1691, %v9351, 0.0
        %9439 = vadd.xlane.f32.xlu0 %v9438
        %v9440 = vpop.xlane.xlu0 %9439
        %v9441 = vsel %vm1691, %v9352, 0.0
        %9442 = vadd.xlane.f32.xlu0 %v9441
        %v9443 = vpop.xlane.xlu0 %9442
        %v9444 = vsel %vm1691, %v9353, 0.0
        %9445 = vadd.xlane.f32.xlu0 %v9444
        %v9446 = vpop.xlane.xlu0 %9445
        %v9447 = vsel %vm1691, %v9354, 0.0
        %9448 = vadd.xlane.f32.xlu0 %v9447
        %v9449 = vpop.xlane.xlu0 %9448
        %v9450 = vsel %vm1691, %v9355, 0.0
        %9451 = vadd.xlane.f32.xlu0 %v9450
        %v9452 = vpop.xlane.xlu0 %9451
        %v9453 = vsel %vm1691, %v9356, 0.0
        %9454 = vadd.xlane.f32.xlu0 %v9453
        %v9455 = vpop.xlane.xlu0 %9454
        %v9456 = vsel %vm1691, %v9357, 0.0
        %9457 = vadd.xlane.f32.xlu0 %v9456
        %v9458 = vpop.xlane.xlu0 %9457
        %v9459 = vsel %vm1691, %v9358, 0.0
        %9460 = vadd.xlane.f32.xlu0 %v9459
        %v9461 = vpop.xlane.xlu0 %9460
        %v9462 = vmul.f32 %v9365, %v1791
        %v9463 = vmul.f32 %v9368, %v1791
        %v9464 = vmul.f32 %v9371, %v1791
        %v9465 = vmul.f32 %v9374, %v1791
        %v9466 = vmul.f32 %v9377, %v1791
        %v9467 = vmul.f32 %v9380, %v1791
        %v9468 = vmul.f32 %v9383, %v1791
        %v9469 = vmul.f32 %v9386, %v1791
        %v9470 = vmul.f32 %v9389, %v1791
        %v9471 = vmul.f32 %v9392, %v1791
        %v9472 = vmul.f32 %v9395, %v1791
        %v9473 = vmul.f32 %v9398, %v1791
        %v9474 = vmul.f32 %v9401, %v1791
        %v9475 = vmul.f32 %v9404, %v1791
        %v9476 = vmul.f32 %v9407, %v1791
        %v9477 = vmul.f32 %v9410, %v1791
        %v9478 = vmul.f32 %v9413, %v1791
        %v9479 = vmul.f32 %v9416, %v1791
        %v9480 = vmul.f32 %v9419, %v1791
        %v9481 = vmul.f32 %v9422, %v1791
        %v9482 = vmul.f32 %v9425, %v1791
        %v9483 = vmul.f32 %v9428, %v1791
        %v9484 = vmul.f32 %v9431, %v1791
        %v9485 = vmul.f32 %v9434, %v1791
        %v9486 = vmul.f32 %v9437, %v1791
        %v9487 = vmul.f32 %v9440, %v1791
        %v9488 = vmul.f32 %v9443, %v1791
        %v9489 = vmul.f32 %v9446, %v1791
        %v9490 = vmul.f32 %v9449, %v1791
        %v9491 = vmul.f32 %v9452, %v1791
        %v9492 = vmul.f32 %v9455, %v1791
        %v9493 = vmul.f32 %v9458, %v1791
        %v9494 = vmul.f32 %v9461, %v1791
        %v9495 = vsub.f32 %v9326, %v9462
        %v9496 = vsub.f32 %v9327, %v9463
        %v9497 = vsub.f32 %v9328, %v9464
        %v9498 = vsub.f32 %v9329, %v9465
        %v9499 = vsub.f32 %v9330, %v9466
        %v9500 = vsub.f32 %v9331, %v9467
        %v9501 = vsub.f32 %v9332, %v9468
        %v9502 = vsub.f32 %v9333, %v9469
        %v9503 = vsub.f32 %v9334, %v9470
        %v9504 = vsub.f32 %v9335, %v9471
        %v9505 = vsub.f32 %v9336, %v9472
        %v9506 = vsub.f32 %v9337, %v9473
        %v9507 = vsub.f32 %v9338, %v9474
        %v9508 = vsub.f32 %v9339, %v9475
        %v9509 = vsub.f32 %v9340, %v9476
        %v9510 = vsub.f32 %v9341, %v9477
        %v9511 = vsub.f32 %v9342, %v9478
        %v9512 = vsub.f32 %v9343, %v9479
        %v9513 = vsub.f32 %v9344, %v9480
        %v9514 = vsub.f32 %v9345, %v9481
        %v9515 = vsub.f32 %v9346, %v9482
        %v9516 = vsub.f32 %v9347, %v9483
        %v9517 = vsub.f32 %v9348, %v9484
        %v9518 = vsub.f32 %v9349, %v9485
        %v9519 = vsub.f32 %v9350, %v9486
        %v9520 = vsub.f32 %v9351, %v9487
        %v9521 = vsub.f32 %v9352, %v9488
        %v9522 = vsub.f32 %v9353, %v9489
        %v9523 = vsub.f32 %v9354, %v9490
        %v9524 = vsub.f32 %v9355, %v9491
        %v9525 = vsub.f32 %v9356, %v9492
        %v9526 = vsub.f32 %v9357, %v9493
        %v9527 = vsub.f32 %v9358, %v9494
        %v9528 = vmul.f32 %v9495, %v9495
        %v9529 = vmul.f32 %v9496, %v9496
        %v9530 = vmul.f32 %v9497, %v9497
        %v9531 = vmul.f32 %v9498, %v9498
        %v9532 = vmul.f32 %v9499, %v9499
        %v9533 = vmul.f32 %v9500, %v9500
        %v9534 = vmul.f32 %v9501, %v9501
        %v9535 = vmul.f32 %v9502, %v9502
        %v9536 = vmul.f32 %v9503, %v9503
        %v9537 = vmul.f32 %v9504, %v9504
        %v9538 = vmul.f32 %v9505, %v9505
        %v9539 = vmul.f32 %v9506, %v9506
        %v9540 = vmul.f32 %v9507, %v9507
        %v9541 = vmul.f32 %v9508, %v9508
        %v9542 = vmul.f32 %v9509, %v9509
        %v9543 = vmul.f32 %v9510, %v9510
        %v9544 = vmul.f32 %v9511, %v9511
        %v9545 = vmul.f32 %v9512, %v9512
        %v9546 = vmul.f32 %v9513, %v9513
        %v9547 = vmul.f32 %v9514, %v9514
        %v9548 = vmul.f32 %v9515, %v9515
        %v9549 = vmul.f32 %v9516, %v9516
        %v9550 = vmul.f32 %v9517, %v9517
        %v9551 = vmul.f32 %v9518, %v9518
        %v9552 = vmul.f32 %v9519, %v9519
        %v9553 = vmul.f32 %v9520, %v9520
        %v9554 = vmul.f32 %v9521, %v9521
        %v9555 = vmul.f32 %v9522, %v9522
        %v9556 = vmul.f32 %v9523, %v9523
        %v9557 = vmul.f32 %v9524, %v9524
        %v9558 = vmul.f32 %v9525, %v9525
        %v9559 = vmul.f32 %v9526, %v9526
        %v9560 = vmul.f32 %v9527, %v9527
        %v9561 = vsel %vm1691, %v9528, 0.0
        %9562 = vadd.xlane.f32.xlu0 %v9561
        %v9563 = vpop.xlane.xlu0 %9562
        %v9564 = vsel %vm1691, %v9529, 0.0
        %9565 = vadd.xlane.f32.xlu0 %v9564
        %v9566 = vpop.xlane.xlu0 %9565
        %v9567 = vsel %vm1691, %v9530, 0.0
        %9568 = vadd.xlane.f32.xlu0 %v9567
        %v9569 = vpop.xlane.xlu0 %9568
        %v9570 = vsel %vm1691, %v9531, 0.0
        %9571 = vadd.xlane.f32.xlu0 %v9570
        %v9572 = vpop.xlane.xlu0 %9571
        %v9573 = vsel %vm1691, %v9532, 0.0
        %9574 = vadd.xlane.f32.xlu0 %v9573
        %v9575 = vpop.xlane.xlu0 %9574
        %v9576 = vsel %vm1691, %v9533, 0.0
        %9577 = vadd.xlane.f32.xlu0 %v9576
        %v9578 = vpop.xlane.xlu0 %9577
        %v9579 = vsel %vm1691, %v9534, 0.0
        %9580 = vadd.xlane.f32.xlu0 %v9579
        %v9581 = vpop.xlane.xlu0 %9580
        %v9582 = vsel %vm1691, %v9535, 0.0
        %9583 = vadd.xlane.f32.xlu0 %v9582
        %v9584 = vpop.xlane.xlu0 %9583
        %v9585 = vsel %vm1691, %v9536, 0.0
        %9586 = vadd.xlane.f32.xlu0 %v9585
        %v9587 = vpop.xlane.xlu0 %9586
        %v9588 = vsel %vm1691, %v9537, 0.0
        %9589 = vadd.xlane.f32.xlu0 %v9588
        %v9590 = vpop.xlane.xlu0 %9589
        %v9591 = vsel %vm1691, %v9538, 0.0
        %9592 = vadd.xlane.f32.xlu0 %v9591
        %v9593 = vpop.xlane.xlu0 %9592
        %v9594 = vsel %vm1691, %v9539, 0.0
        %9595 = vadd.xlane.f32.xlu0 %v9594
        %v9596 = vpop.xlane.xlu0 %9595
        %v9597 = vsel %vm1691, %v9540, 0.0
        %9598 = vadd.xlane.f32.xlu0 %v9597
        %v9599 = vpop.xlane.xlu0 %9598
        %v9600 = vsel %vm1691, %v9541, 0.0
        %9601 = vadd.xlane.f32.xlu0 %v9600
        %v9602 = vpop.xlane.xlu0 %9601
        %v9603 = vsel %vm1691, %v9542, 0.0
        %9604 = vadd.xlane.f32.xlu0 %v9603
        %v9605 = vpop.xlane.xlu0 %9604
        %v9606 = vsel %vm1691, %v9543, 0.0
        %9607 = vadd.xlane.f32.xlu0 %v9606
        %v9608 = vpop.xlane.xlu0 %9607
        %v9609 = vsel %vm1691, %v9544, 0.0
        %9610 = vadd.xlane.f32.xlu0 %v9609
        %v9611 = vpop.xlane.xlu0 %9610
        %v9612 = vsel %vm1691, %v9545, 0.0
        %9613 = vadd.xlane.f32.xlu0 %v9612
        %v9614 = vpop.xlane.xlu0 %9613
        %v9615 = vsel %vm1691, %v9546, 0.0
        %9616 = vadd.xlane.f32.xlu0 %v9615
        %v9617 = vpop.xlane.xlu0 %9616
        %v9618 = vsel %vm1691, %v9547, 0.0
        %9619 = vadd.xlane.f32.xlu0 %v9618
        %v9620 = vpop.xlane.xlu0 %9619
        %v9621 = vsel %vm1691, %v9548, 0.0
        %9622 = vadd.xlane.f32.xlu0 %v9621
        %v9623 = vpop.xlane.xlu0 %9622
        %v9624 = vsel %vm1691, %v9549, 0.0
        %9625 = vadd.xlane.f32.xlu0 %v9624
        %v9626 = vpop.xlane.xlu0 %9625
        %v9627 = vsel %vm1691, %v9550, 0.0
        %9628 = vadd.xlane.f32.xlu0 %v9627
        %v9629 = vpop.xlane.xlu0 %9628
        %v9630 = vsel %vm1691, %v9551, 0.0
        %9631 = vadd.xlane.f32.xlu0 %v9630
        %v9632 = vpop.xlane.xlu0 %9631
        %v9633 = vsel %vm1691, %v9552, 0.0
        %9634 = vadd.xlane.f32.xlu0 %v9633
        %v9635 = vpop.xlane.xlu0 %9634
        %v9636 = vsel %vm1691, %v9553, 0.0
        %9637 = vadd.xlane.f32.xlu0 %v9636
        %v9638 = vpop.xlane.xlu0 %9637
        %v9639 = vsel %vm1691, %v9554, 0.0
        %9640 = vadd.xlane.f32.xlu0 %v9639
        %v9641 = vpop.xlane.xlu0 %9640
        %v9642 = vsel %vm1691, %v9555, 0.0
        %9643 = vadd.xlane.f32.xlu0 %v9642
        %v9644 = vpop.xlane.xlu0 %9643
        %v9645 = vsel %vm1691, %v9556, 0.0
        %9646 = vadd.xlane.f32.xlu0 %v9645
        %v9647 = vpop.xlane.xlu0 %9646
        %v9648 = vsel %vm1691, %v9557, 0.0
        %9649 = vadd.xlane.f32.xlu0 %v9648
        %v9650 = vpop.xlane.xlu0 %9649
        %v9651 = vsel %vm1691, %v9558, 0.0
        %9652 = vadd.xlane.f32.xlu0 %v9651
        %v9653 = vpop.xlane.xlu0 %9652
        %v9654 = vsel %vm1691, %v9559, 0.0
        %9655 = vadd.xlane.f32.xlu0 %v9654
        %v9656 = vpop.xlane.xlu0 %9655
        %v9657 = vsel %vm1691, %v9560, 0.0
        %9658 = vadd.xlane.f32.xlu0 %v9657
        %v9659 = vpop.xlane.xlu0 %9658
        %v9660 = vmul.f32 %v9563, %v1791
        %v9661 = vmul.f32 %v9566, %v1791
        %v9662 = vmul.f32 %v9569, %v1791
        %v9663 = vmul.f32 %v9572, %v1791
        %v9664 = vmul.f32 %v9575, %v1791
        %v9665 = vmul.f32 %v9578, %v1791
        %v9666 = vmul.f32 %v9581, %v1791
        %v9667 = vmul.f32 %v9584, %v1791
        %v9668 = vmul.f32 %v9587, %v1791
        %v9669 = vmul.f32 %v9590, %v1791
        %v9670 = vmul.f32 %v9593, %v1791
        %v9671 = vmul.f32 %v9596, %v1791
        %v9672 = vmul.f32 %v9599, %v1791
        %v9673 = vmul.f32 %v9602, %v1791
        %v9674 = vmul.f32 %v9605, %v1791
        %v9675 = vmul.f32 %v9608, %v1791
        %v9676 = vmul.f32 %v9611, %v1791
        %v9677 = vmul.f32 %v9614, %v1791
        %v9678 = vmul.f32 %v9617, %v1791
        %v9679 = vmul.f32 %v9620, %v1791
        %v9680 = vmul.f32 %v9623, %v1791
        %v9681 = vmul.f32 %v9626, %v1791
        %v9682 = vmul.f32 %v9629, %v1791
        %v9683 = vmul.f32 %v9632, %v1791
        %v9684 = vmul.f32 %v9635, %v1791
        %v9685 = vmul.f32 %v9638, %v1791
        %v9686 = vmul.f32 %v9641, %v1791
        %v9687 = vmul.f32 %v9644, %v1791
        %v9688 = vmul.f32 %v9647, %v1791
        %v9689 = vmul.f32 %v9650, %v1791
        %v9690 = vmul.f32 %v9653, %v1791
        %v9691 = vmul.f32 %v9656, %v1791
        %v9692 = vmul.f32 %v9659, %v1791
        %v9693 = vadd.f32 %v9660, 1e-06
        %v9694 = vadd.f32 %v9661, 1e-06
        %v9695 = vadd.f32 %v9662, 1e-06
        %v9696 = vadd.f32 %v9663, 1e-06
        %v9697 = vadd.f32 %v9664, 1e-06
        %v9698 = vadd.f32 %v9665, 1e-06
        %v9699 = vadd.f32 %v9666, 1e-06
        %v9700 = vadd.f32 %v9667, 1e-06
        %v9701 = vadd.f32 %v9668, 1e-06
        %v9702 = vadd.f32 %v9669, 1e-06
        %v9703 = vadd.f32 %v9670, 1e-06
        %v9704 = vadd.f32 %v9671, 1e-06
        %v9705 = vadd.f32 %v9672, 1e-06
        %v9706 = vadd.f32 %v9673, 1e-06
        %v9707 = vadd.f32 %v9674, 1e-06
        %v9708 = vadd.f32 %v9675, 1e-06
        %v9709 = vadd.f32 %v9676, 1e-06
        %v9710 = vadd.f32 %v9677, 1e-06
        %v9711 = vadd.f32 %v9678, 1e-06
        %v9712 = vadd.f32 %v9679, 1e-06
        %v9713 = vadd.f32 %v9680, 1e-06
        %v9714 = vadd.f32 %v9681, 1e-06
        %v9715 = vadd.f32 %v9682, 1e-06
        %v9716 = vadd.f32 %v9683, 1e-06
        %v9717 = vadd.f32 %v9684, 1e-06
        %v9718 = vadd.f32 %v9685, 1e-06
        %v9719 = vadd.f32 %v9686, 1e-06
        %v9720 = vadd.f32 %v9687, 1e-06
        %v9721 = vadd.f32 %v9688, 1e-06
        %v9722 = vadd.f32 %v9689, 1e-06
        %v9723 = vadd.f32 %v9690, 1e-06
        %v9724 = vadd.f32 %v9691, 1e-06
        %v9725 = vadd.f32 %v9692, 1e-06
        %v9726 = vrsqrt.pop %v9693
        %v9727 = vrsqrt.pop %v9694
        %v9728 = vrsqrt.pop %v9695
        %v9729 = vrsqrt.pop %v9696
        %v9730 = vrsqrt.pop %v9697
        %v9731 = vrsqrt.pop %v9698
        %v9732 = vrsqrt.pop %v9699
        %v9733 = vrsqrt.pop %v9700
        %v9734 = vrsqrt.pop %v9701
        %v9735 = vrsqrt.pop %v9702
        %v9736 = vrsqrt.pop %v9703
        %v9737 = vrsqrt.pop %v9704
        %v9738 = vrsqrt.pop %v9705
        %v9739 = vrsqrt.pop %v9706
        %v9740 = vrsqrt.pop %v9707
        %v9741 = vrsqrt.pop %v9708
        %v9742 = vrsqrt.pop %v9709
        %v9743 = vrsqrt.pop %v9710
        %v9744 = vrsqrt.pop %v9711
        %v9745 = vrsqrt.pop %v9712
        %v9746 = vrsqrt.pop %v9713
        %v9747 = vrsqrt.pop %v9714
        %v9748 = vrsqrt.pop %v9715
        %v9749 = vrsqrt.pop %v9716
        %v9750 = vrsqrt.pop %v9717
        %v9751 = vrsqrt.pop %v9718
        %v9752 = vrsqrt.pop %v9719
        %v9753 = vrsqrt.pop %v9720
        %v9754 = vrsqrt.pop %v9721
        %v9755 = vrsqrt.pop %v9722
        %v9756 = vrsqrt.pop %v9723
        %v9757 = vrsqrt.pop %v9724
        %v9758 = vrsqrt.pop %v9725
        %v9759 = vmul.f32 %v9495, %v9726
        %v9760 = vmul.f32 %v9496, %v9727
        %v9761 = vmul.f32 %v9497, %v9728
        %v9762 = vmul.f32 %v9498, %v9729
        %v9763 = vmul.f32 %v9499, %v9730
        %v9764 = vmul.f32 %v9500, %v9731
        %v9765 = vmul.f32 %v9501, %v9732
        %v9766 = vmul.f32 %v9502, %v9733
        %v9767 = vmul.f32 %v9503, %v9734
        %v9768 = vmul.f32 %v9504, %v9735
        %v9769 = vmul.f32 %v9505, %v9736
        %v9770 = vmul.f32 %v9506, %v9737
        %v9771 = vmul.f32 %v9507, %v9738
        %v9772 = vmul.f32 %v9508, %v9739
        %v9773 = vmul.f32 %v9509, %v9740
        %v9774 = vmul.f32 %v9510, %v9741
        %v9775 = vmul.f32 %v9511, %v9742
        %v9776 = vmul.f32 %v9512, %v9743
        %v9777 = vmul.f32 %v9513, %v9744
        %v9778 = vmul.f32 %v9514, %v9745
        %v9779 = vmul.f32 %v9515, %v9746
        %v9780 = vmul.f32 %v9516, %v9747
        %v9781 = vmul.f32 %v9517, %v9748
        %v9782 = vmul.f32 %v9518, %v9749
        %v9783 = vmul.f32 %v9519, %v9750
        %v9784 = vmul.f32 %v9520, %v9751
        %v9785 = vmul.f32 %v9521, %v9752
        %v9786 = vmul.f32 %v9522, %v9753
        %v9787 = vmul.f32 %v9523, %v9754
        %v9788 = vmul.f32 %v9524, %v9755
        %v9789 = vmul.f32 %v9525, %v9756
        %v9790 = vmul.f32 %v9526, %v9757
        %v9791 = vmul.f32 %v9527, %v9758
        %v9793 = vlaneseq
        %v9794 = vshrl.u32 %v9793, 7
        %v9795 = vsub.s32 0, %v9794
        %v9796 = vrot.slane %v9360, %v9795
        %v9798 = vmul.f32 %v9759, %v9796
        %v9799 = vmul.f32 %v9760, %v9796
        %v9800 = vmul.f32 %v9761, %v9796
        %v9801 = vmul.f32 %v9762, %v9796
        %v9802 = vmul.f32 %v9763, %v9796
        %v9803 = vmul.f32 %v9764, %v9796
        %v9804 = vmul.f32 %v9765, %v9796
        %v9805 = vmul.f32 %v9766, %v9796
        %v9806 = vmul.f32 %v9767, %v9796
        %v9807 = vmul.f32 %v9768, %v9796
        %v9808 = vmul.f32 %v9769, %v9796
        %v9809 = vmul.f32 %v9770, %v9796
        %v9810 = vmul.f32 %v9771, %v9796
        %v9811 = vmul.f32 %v9772, %v9796
        %v9812 = vmul.f32 %v9773, %v9796
        %v9813 = vmul.f32 %v9774, %v9796
        %v9814 = vmul.f32 %v9775, %v9796
        %v9815 = vmul.f32 %v9776, %v9796
        %v9816 = vmul.f32 %v9777, %v9796
        %v9817 = vmul.f32 %v9778, %v9796
        %v9818 = vmul.f32 %v9779, %v9796
        %v9819 = vmul.f32 %v9780, %v9796
        %v9820 = vmul.f32 %v9781, %v9796
        %v9821 = vmul.f32 %v9782, %v9796
        %v9822 = vmul.f32 %v9783, %v9796
        %v9823 = vmul.f32 %v9784, %v9796
        %v9824 = vmul.f32 %v9785, %v9796
        %v9825 = vmul.f32 %v9786, %v9796
        %v9826 = vmul.f32 %v9787, %v9796
        %v9827 = vmul.f32 %v9788, %v9796
        %v9828 = vmul.f32 %v9789, %v9796
        %v9829 = vmul.f32 %v9790, %v9796
        %v9830 = vmul.f32 %v9791, %v9796
        %v9832 = vlaneseq
        %v9833 = vshrl.u32 %v9832, 7
        %v9834 = vsub.s32 0, %v9833
        %v9835 = vrot.slane %v9362, %v9834
        %v9837 = vadd.f32 %v9798, %v9835
        %v9838 = vadd.f32 %v9799, %v9835
        %v9839 = vadd.f32 %v9800, %v9835
        %v9840 = vadd.f32 %v9801, %v9835
        %v9841 = vadd.f32 %v9802, %v9835
        %v9842 = vadd.f32 %v9803, %v9835
        %v9843 = vadd.f32 %v9804, %v9835
        %v9844 = vadd.f32 %v9805, %v9835
        %v9845 = vadd.f32 %v9806, %v9835
        %v9846 = vadd.f32 %v9807, %v9835
        %v9847 = vadd.f32 %v9808, %v9835
        %v9848 = vadd.f32 %v9809, %v9835
        %v9849 = vadd.f32 %v9810, %v9835
        %v9850 = vadd.f32 %v9811, %v9835
        %v9851 = vadd.f32 %v9812, %v9835
        %v9852 = vadd.f32 %v9813, %v9835
        %v9853 = vadd.f32 %v9814, %v9835
        %v9854 = vadd.f32 %v9815, %v9835
        %v9855 = vadd.f32 %v9816, %v9835
        %v9856 = vadd.f32 %v9817, %v9835
        %v9857 = vadd.f32 %v9818, %v9835
        %v9858 = vadd.f32 %v9819, %v9835
        %v9859 = vadd.f32 %v9820, %v9835
        %v9860 = vadd.f32 %v9821, %v9835
        %v9861 = vadd.f32 %v9822, %v9835
        %v9862 = vadd.f32 %v9823, %v9835
        %v9863 = vadd.f32 %v9824, %v9835
        %v9864 = vadd.f32 %v9825, %v9835
        %v9865 = vadd.f32 %v9826, %v9835
        %v9866 = vadd.f32 %v9827, %v9835
        %v9867 = vadd.f32 %v9828, %v9835
        %v9868 = vadd.f32 %v9829, %v9835
        %v9869 = vadd.f32 %v9830, %v9835
        %v9870 = vpack.c.bf16 %v9838, %v9837
        %v9871 = vpack.c.bf16 %v9840, %v9839
        %v9872 = vpack.c.bf16 %v9842, %v9841
        %v9873 = vpack.c.bf16 %v9844, %v9843
        %v9874 = vpack.c.bf16 %v9846, %v9845
        %v9875 = vpack.c.bf16 %v9848, %v9847
        %v9876 = vpack.c.bf16 %v9850, %v9849
        %v9877 = vpack.c.bf16 %v9852, %v9851
        %v9878 = vpack.c.bf16 %v9854, %v9853
        %v9879 = vpack.c.bf16 %v9856, %v9855
        %v9880 = vpack.c.bf16 %v9858, %v9857
        %v9881 = vpack.c.bf16 %v9860, %v9859
        %v9882 = vpack.c.bf16 %v9862, %v9861
        %v9883 = vpack.c.bf16 %v9864, %v9863
        %v9884 = vpack.c.bf16 %v9866, %v9865
        %v9885 = vpack.c.bf16 %v9868, %v9867
        %v9886 = vpack.c.bf16 %v9869, %v9869
        %s9887 = scalar_lea.vmem %s12, 16
        %v9888 = vld [vmem:[%s9887] sm:$0xf]
        %v9889 = vld [vmem:[%s9887 + $0x4] sm:$0xf]
        %v9890 = vld [vmem:[%s9887 + $0x8] sm:$0xf]
        %v9891 = vld [vmem:[%s9887 + $0xc] sm:$0xf]
        %s9892 = scalar_lea.vmem %s13, 1
        %v9893 = vld [vmem:[%s9892] sm:$0x1]
        %v9895 = vlaneseq
        %v9896 = vshrl.u32 %v9895, 7
        %v9897 = vsub.s32 0, %v9896
        %v9898 = vrot.slane %v9893, %v9897
        %v9904 = vunpack.c.l.b16 %v9888
        %v9905 = vunpack.c.l.b16 %v9889
        %v9906 = vunpack.c.l.b16 %v9890
        %v9907 = vunpack.c.l.b16 %v9891
        %v9908 = vpack.c.b16 %v9905, %v9904
        %v9909 = vpack.c.b16 %v9907, %v9906
        %v9913 = vsel %vm1691, %v9870, 0
        %v9916 = vsel %vm1691, %v9871, 0
        %v9919 = vsel %vm1691, %v9872, 0
        %v9922 = vsel %vm1691, %v9873, 0
        %v9925 = vsel %vm1691, %v9874, 0
        %v9928 = vsel %vm1691, %v9875, 0
        %v9931 = vsel %vm1691, %v9876, 0
        %v9934 = vsel %vm1691, %v9877, 0
        %v9937 = vsel %vm1691, %v9878, 0
        %v9940 = vsel %vm1691, %v9879, 0
        %v9943 = vsel %vm1691, %v9880, 0
        %v9946 = vsel %vm1691, %v9881, 0
        %v9949 = vsel %vm1691, %v9882, 0
        %v9952 = vsel %vm1691, %v9883, 0
        %v9955 = vsel %vm1691, %v9884, 0
        %v9958 = vsel %vm1691, %v9885, 0
        %v9961 = vsel %vm1691, %v9886, 0
        %9963 = vmatprep.subr.bf16.mxu0 0
        %9964 = vmatpush1.bf16.msra.mxu0 %v9908
        %9965 = vmatprep.subr.bf16.mxu0 0
        %9966 = vmatpush1.bf16.msra.mxu0 %v9909
        %9967 = vmatprep.subr.bf16.mxu0 0
        %9968 = vmatpush1.bf16.msra.mxu0 0
        %9969 = vmatprep.subr.bf16.mxu0 0
        %9970 = vmatpush1.bf16.msra.mxu0 0
        %9971 = vmatprep.subr.bf16.mxu0 0
        %9972 = vmatpush1.bf16.msra.mxu0 0
        %9973 = vmatprep.subr.bf16.mxu0 0
        %9974 = vmatpush1.bf16.msra.mxu0 0
        %9975 = vmatprep.subr.bf16.mxu0 0
        %9976 = vmatpush1.bf16.msra.mxu0 0
        %9977 = vmatprep.subr.bf16.mxu0 0
        %9978 = vmatpush1.bf16.msra.mxu0 0
        %9979 = vmatprep.subr.bf16.mxu0 0
        %9980 = vmatpush1.bf16.msra.mxu0 0
        %9981 = vmatprep.subr.bf16.mxu0 0
        %9982 = vmatpush1.bf16.msra.mxu0 0
        %9983 = vmatprep.subr.bf16.mxu0 0
        %9984 = vmatpush1.bf16.msra.mxu0 0
        %9985 = vmatprep.subr.bf16.mxu0 0
        %9986 = vmatpush1.bf16.msra.mxu0 0
        %9987 = vmatprep.subr.bf16.mxu0 0
        %9988 = vmatpush1.bf16.msra.mxu0 0
        %9989 = vmatprep.subr.bf16.mxu0 0
        %9990 = vmatpush1.bf16.msra.mxu0 0
        %9991 = vmatprep.subr.bf16.mxu0 0
        %9992 = vmatpush1.bf16.msra.mxu0 0
        %9993 = vmatprep.subr.bf16.mxu0 0
        %9994 = vmatpush1.bf16.msra.mxu0 0
        %9995 = vmatprep.mubr.bf16.mxu0 0
        %9996 = vmatmul.mubr.bf16.gmra.mrb[0].mxu0 %v9913
        %v9997 = vpop.f32.mrb[0].mxu0
        %v9998 = vadd.f32 %v9898, %v9997
        %v9999 = vpop.f32.mrb[0].mxu0
        %v10000 = vpop.f32.mrb[0].mxu0
        %v10001 = vadd.f32 %v9898, %v10000
        %v10002 = vpop.f32.mrb[0].mxu0
        %10003 = vmatprep.mubr.bf16.mxu0 0
        %10004 = vmatmul.mubr.bf16.gmra.mrb[0].mxu0 %v9916
        %v10005 = vpop.f32.mrb[0].mxu0
        %v10006 = vadd.f32 %v9898, %v10005
        %v10007 = vpop.f32.mrb[0].mxu0
        %v10008 = vpop.f32.mrb[0].mxu0
        %v10009 = vadd.f32 %v9898, %v10008
        %v10010 = vpop.f32.mrb[0].mxu0
        %10011 = vmatprep.mubr.bf16.mxu0 0
        %10012 = vmatmul.mubr.bf16.gmra.mrb[0].mxu0 %v9919
        %v10013 = vpop.f32.mrb[0].mxu0
        %v10014 = vadd.f32 %v9898, %v10013
        %v10015 = vpop.f32.mrb[0].mxu0
        %v10016 = vpop.f32.mrb[0].mxu0
        %v10017 = vadd.f32 %v9898, %v10016
        %v10018 = vpop.f32.mrb[0].mxu0
        %10019 = vmatprep.mubr.bf16.mxu0 0
        %10020 = vmatmul.mubr.bf16.gmra.mrb[0].mxu0 %v9922
        %v10021 = vpop.f32.mrb[0].mxu0
        %v10022 = vadd.f32 %v9898, %v10021
        %v10023 = vpop.f32.mrb[0].mxu0
        %v10024 = vpop.f32.mrb[0].mxu0
        %v10025 = vadd.f32 %v9898, %v10024
        %v10026 = vpop.f32.mrb[0].mxu0
        %10027 = vmatprep.mubr.bf16.mxu0 0
        %10028 = vmatmul.mubr.bf16.gmra.mrb[0].mxu0 %v9925
        %v10029 = vpop.f32.mrb[0].mxu0
        %v10030 = vadd.f32 %v9898, %v10029
        %v10031 = vpop.f32.mrb[0].mxu0
        %v10032 = vpop.f32.mrb[0].mxu0
        %v10033 = vadd.f32 %v9898, %v10032
        %v10034 = vpop.f32.mrb[0].mxu0
        %10035 = vmatprep.mubr.bf16.mxu0 0
        %10036 = vmatmul.mubr.bf16.gmra.mrb[0].mxu0 %v9928
        %v10037 = vpop.f32.mrb[0].mxu0
        %v10038 = vadd.f32 %v9898, %v10037
        %v10039 = vpop.f32.mrb[0].mxu0
        %v10040 = vpop.f32.mrb[0].mxu0
        %v10041 = vadd.f32 %v9898, %v10040
        %v10042 = vpop.f32.mrb[0].mxu0
        %10043 = vmatprep.mubr.bf16.mxu0 0
        %10044 = vmatmul.mubr.bf16.gmra.mrb[0].mxu0 %v9931
        %v10045 = vpop.f32.mrb[0].mxu0
        %v10046 = vadd.f32 %v9898, %v10045
        %v10047 = vpop.f32.mrb[0].mxu0
        %v10048 = vpop.f32.mrb[0].mxu0
        %v10049 = vadd.f32 %v9898, %v10048
        %v10050 = vpop.f32.mrb[0].mxu0
        %10051 = vmatprep.mubr.bf16.mxu0 0
        %10052 = vmatmul.mubr.bf16.gmra.mrb[0].mxu0 %v9934
        %v10053 = vpop.f32.mrb[0].mxu0
        %v10054 = vadd.f32 %v9898, %v10053
        %v10055 = vpop.f32.mrb[0].mxu0
        %v10056 = vpop.f32.mrb[0].mxu0
        %v10057 = vadd.f32 %v9898, %v10056
        %v10058 = vpop.f32.mrb[0].mxu0
        %10059 = vmatprep.mubr.bf16.mxu0 0
        %10060 = vmatmul.mubr.bf16.gmra.mrb[0].mxu0 %v9937
        %v10061 = vpop.f32.mrb[0].mxu0
        %v10062 = vadd.f32 %v9898, %v10061
        %v10063 = vpop.f32.mrb[0].mxu0
        %v10064 = vpop.f32.mrb[0].mxu0
        %v10065 = vadd.f32 %v9898, %v10064
        %v10066 = vpop.f32.mrb[0].mxu0
        %10067 = vmatprep.mubr.bf16.mxu0 0
        %10068 = vmatmul.mubr.bf16.gmra.mrb[0].mxu0 %v9940
        %v10069 = vpop.f32.mrb[0].mxu0
        %v10070 = vadd.f32 %v9898, %v10069
        %v10071 = vpop.f32.mrb[0].mxu0
        %v10072 = vpop.f32.mrb[0].mxu0
        %v10073 = vadd.f32 %v9898, %v10072
        %v10074 = vpop.f32.mrb[0].mxu0
        %10075 = vmatprep.mubr.bf16.mxu0 0
        %10076 = vmatmul.mubr.bf16.gmra.mrb[0].mxu0 %v9943
        %v10077 = vpop.f32.mrb[0].mxu0
        %v10078 = vadd.f32 %v9898, %v10077
        %v10079 = vpop.f32.mrb[0].mxu0
        %v10080 = vpop.f32.mrb[0].mxu0
        %v10081 = vadd.f32 %v9898, %v10080
        %v10082 = vpop.f32.mrb[0].mxu0
        %10083 = vmatprep.mubr.bf16.mxu0 0
        %10084 = vmatmul.mubr.bf16.gmra.mrb[0].mxu0 %v9946
        %v10085 = vpop.f32.mrb[0].mxu0
        %v10086 = vadd.f32 %v9898, %v10085
        %v10087 = vpop.f32.mrb[0].mxu0
        %v10088 = vpop.f32.mrb[0].mxu0
        %v10089 = vadd.f32 %v9898, %v10088
        %v10090 = vpop.f32.mrb[0].mxu0
        %10091 = vmatprep.mubr.bf16.mxu0 0
        %10092 = vmatmul.mubr.bf16.gmra.mrb[0].mxu0 %v9949
        %v10093 = vpop.f32.mrb[0].mxu0
        %v10094 = vadd.f32 %v9898, %v10093
        %v10095 = vpop.f32.mrb[0].mxu0
        %v10096 = vpop.f32.mrb[0].mxu0
        %v10097 = vadd.f32 %v9898, %v10096
        %v10098 = vpop.f32.mrb[0].mxu0
        %10099 = vmatprep.mubr.bf16.mxu0 0
        %10100 = vmatmul.mubr.bf16.gmra.mrb[0].mxu0 %v9952
        %v10101 = vpop.f32.mrb[0].mxu0
        %v10102 = vadd.f32 %v9898, %v10101
        %v10103 = vpop.f32.mrb[0].mxu0
        %v10104 = vpop.f32.mrb[0].mxu0
        %v10105 = vadd.f32 %v9898, %v10104
        %v10106 = vpop.f32.mrb[0].mxu0
        %10107 = vmatprep.mubr.bf16.mxu0 0
        %10108 = vmatmul.mubr.bf16.gmra.mrb[0].mxu0 %v9955
        %v10109 = vpop.f32.mrb[0].mxu0
        %v10110 = vadd.f32 %v9898, %v10109
        %v10111 = vpop.f32.mrb[0].mxu0
        %v10112 = vpop.f32.mrb[0].mxu0
        %v10113 = vadd.f32 %v9898, %v10112
        %v10114 = vpop.f32.mrb[0].mxu0
        %10115 = vmatprep.mubr.bf16.mxu0 0
        %10116 = vmatmul.mubr.bf16.gmra.mrb[0].mxu0 %v9958
        %v10117 = vpop.f32.mrb[0].mxu0
        %v10118 = vadd.f32 %v9898, %v10117
        %v10119 = vpop.f32.mrb[0].mxu0
        %v10120 = vpop.f32.mrb[0].mxu0
        %v10121 = vadd.f32 %v9898, %v10120
        %v10122 = vpop.f32.mrb[0].mxu0
        %10123 = vmatprep.mubr.bf16.mxu0 0
        %10124 = vmatmul.mubr.bf16.gmra.mrb[0].mxu0 %v9961
        %v10125 = vpop.f32.mrb[0].mxu0
        %v10126 = vadd.f32 %v9898, %v10125
        %v10127 = vpop.f32.mrb[0].mxu0
        %v10128 = vpop.f32.mrb[0].mxu0
        %v10129 = vpop.f32.mrb[0].mxu0
        %10130 = vdwg.mxu0
        %v10131 = vmul.f32 %v9998, %v9998
        %v10132 = vmul.f32 %v10001, %v10001
        %v10133 = vmul.f32 %v10006, %v10006
        %v10134 = vmul.f32 %v10009, %v10009
        %v10135 = vmul.f32 %v10014, %v10014
        %v10136 = vmul.f32 %v10017, %v10017
        %v10137 = vmul.f32 %v10022, %v10022
        %v10138 = vmul.f32 %v10025, %v10025
        %v10139 = vmul.f32 %v10030, %v10030
        %v10140 = vmul.f32 %v10033, %v10033
        %v10141 = vmul.f32 %v10038, %v10038
        %v10142 = vmul.f32 %v10041, %v10041
        %v10143 = vmul.f32 %v10046, %v10046
        %v10144 = vmul.f32 %v10049, %v10049
        %v10145 = vmul.f32 %v10054, %v10054
        %v10146 = vmul.f32 %v10057, %v10057
        %v10147 = vmul.f32 %v10062, %v10062
        %v10148 = vmul.f32 %v10065, %v10065
        %v10149 = vmul.f32 %v10070, %v10070
        %v10150 = vmul.f32 %v10073, %v10073
        %v10151 = vmul.f32 %v10078, %v10078
        %v10152 = vmul.f32 %v10081, %v10081
        %v10153 = vmul.f32 %v10086, %v10086
        %v10154 = vmul.f32 %v10089, %v10089
        %v10155 = vmul.f32 %v10094, %v10094
        %v10156 = vmul.f32 %v10097, %v10097
        %v10157 = vmul.f32 %v10102, %v10102
        %v10158 = vmul.f32 %v10105, %v10105
        %v10159 = vmul.f32 %v10110, %v10110
        %v10160 = vmul.f32 %v10113, %v10113
        %v10161 = vmul.f32 %v10118, %v10118
        %v10162 = vmul.f32 %v10121, %v10121
        %v10163 = vmul.f32 %v10126, %v10126
        %v10164 = vmul.f32 %v9998, %v10131
        %v10165 = vmul.f32 %v10001, %v10132
        %v10166 = vmul.f32 %v10006, %v10133
        %v10167 = vmul.f32 %v10009, %v10134
        %v10168 = vmul.f32 %v10014, %v10135
        %v10169 = vmul.f32 %v10017, %v10136
        %v10170 = vmul.f32 %v10022, %v10137
        %v10171 = vmul.f32 %v10025, %v10138
        %v10172 = vmul.f32 %v10030, %v10139
        %v10173 = vmul.f32 %v10033, %v10140
        %v10174 = vmul.f32 %v10038, %v10141
        %v10175 = vmul.f32 %v10041, %v10142
        %v10176 = vmul.f32 %v10046, %v10143
        %v10177 = vmul.f32 %v10049, %v10144
        %v10178 = vmul.f32 %v10054, %v10145
        %v10179 = vmul.f32 %v10057, %v10146
        %v10180 = vmul.f32 %v10062, %v10147
        %v10181 = vmul.f32 %v10065, %v10148
        %v10182 = vmul.f32 %v10070, %v10149
        %v10183 = vmul.f32 %v10073, %v10150
        %v10184 = vmul.f32 %v10078, %v10151
        %v10185 = vmul.f32 %v10081, %v10152
        %v10186 = vmul.f32 %v10086, %v10153
        %v10187 = vmul.f32 %v10089, %v10154
        %v10188 = vmul.f32 %v10094, %v10155
        %v10189 = vmul.f32 %v10097, %v10156
        %v10190 = vmul.f32 %v10102, %v10157
        %v10191 = vmul.f32 %v10105, %v10158
        %v10192 = vmul.f32 %v10110, %v10159
        %v10193 = vmul.f32 %v10113, %v10160
        %v10194 = vmul.f32 %v10118, %v10161
        %v10195 = vmul.f32 %v10121, %v10162
        %v10196 = vmul.f32 %v10126, %v10163
        %v10197 = vmul.f32 %v10164, 0.044715
        %v10198 = vmul.f32 %v10165, 0.044715
        %v10199 = vmul.f32 %v10166, 0.044715
        %v10200 = vmul.f32 %v10167, 0.044715
        %v10201 = vmul.f32 %v10168, 0.044715
        %v10202 = vmul.f32 %v10169, 0.044715
        %v10203 = vmul.f32 %v10170, 0.044715
        %v10204 = vmul.f32 %v10171, 0.044715
        %v10205 = vmul.f32 %v10172, 0.044715
        %v10206 = vmul.f32 %v10173, 0.044715
        %v10207 = vmul.f32 %v10174, 0.044715
        %v10208 = vmul.f32 %v10175, 0.044715
        %v10209 = vmul.f32 %v10176, 0.044715
        %v10210 = vmul.f32 %v10177, 0.044715
        %v10211 = vmul.f32 %v10178, 0.044715
        %v10212 = vmul.f32 %v10179, 0.044715
        %v10213 = vmul.f32 %v10180, 0.044715
        %v10214 = vmul.f32 %v10181, 0.044715
        %v10215 = vmul.f32 %v10182, 0.044715
        %v10216 = vmul.f32 %v10183, 0.044715
        %v10217 = vmul.f32 %v10184, 0.044715
        %v10218 = vmul.f32 %v10185, 0.044715
        %v10219 = vmul.f32 %v10186, 0.044715
        %v10220 = vmul.f32 %v10187, 0.044715
        %v10221 = vmul.f32 %v10188, 0.044715
        %v10222 = vmul.f32 %v10189, 0.044715
        %v10223 = vmul.f32 %v10190, 0.044715
        %v10224 = vmul.f32 %v10191, 0.044715
        %v10225 = vmul.f32 %v10192, 0.044715
        %v10226 = vmul.f32 %v10193, 0.044715
        %v10227 = vmul.f32 %v10194, 0.044715
        %v10228 = vmul.f32 %v10195, 0.044715
        %v10229 = vmul.f32 %v10196, 0.044715
        %v10230 = vadd.f32 %v9998, %v10197
        %v10231 = vadd.f32 %v10001, %v10198
        %v10232 = vadd.f32 %v10006, %v10199
        %v10233 = vadd.f32 %v10009, %v10200
        %v10234 = vadd.f32 %v10014, %v10201
        %v10235 = vadd.f32 %v10017, %v10202
        %v10236 = vadd.f32 %v10022, %v10203
        %v10237 = vadd.f32 %v10025, %v10204
        %v10238 = vadd.f32 %v10030, %v10205
        %v10239 = vadd.f32 %v10033, %v10206
        %v10240 = vadd.f32 %v10038, %v10207
        %v10241 = vadd.f32 %v10041, %v10208
        %v10242 = vadd.f32 %v10046, %v10209
        %v10243 = vadd.f32 %v10049, %v10210
        %v10244 = vadd.f32 %v10054, %v10211
        %v10245 = vadd.f32 %v10057, %v10212
        %v10246 = vadd.f32 %v10062, %v10213
        %v10247 = vadd.f32 %v10065, %v10214
        %v10248 = vadd.f32 %v10070, %v10215
        %v10249 = vadd.f32 %v10073, %v10216
        %v10250 = vadd.f32 %v10078, %v10217
        %v10251 = vadd.f32 %v10081, %v10218
        %v10252 = vadd.f32 %v10086, %v10219
        %v10253 = vadd.f32 %v10089, %v10220
        %v10254 = vadd.f32 %v10094, %v10221
        %v10255 = vadd.f32 %v10097, %v10222
        %v10256 = vadd.f32 %v10102, %v10223
        %v10257 = vadd.f32 %v10105, %v10224
        %v10258 = vadd.f32 %v10110, %v10225
        %v10259 = vadd.f32 %v10113, %v10226
        %v10260 = vadd.f32 %v10118, %v10227
        %v10261 = vadd.f32 %v10121, %v10228
        %v10262 = vadd.f32 %v10126, %v10229
        %v10263 = vmul.f32 %v10230, 0.7978846
        %v10264 = vmul.f32 %v10231, 0.7978846
        %v10265 = vmul.f32 %v10232, 0.7978846
        %v10266 = vmul.f32 %v10233, 0.7978846
        %v10267 = vmul.f32 %v10234, 0.7978846
        %v10268 = vmul.f32 %v10235, 0.7978846
        %v10269 = vmul.f32 %v10236, 0.7978846
        %v10270 = vmul.f32 %v10237, 0.7978846
        %v10271 = vmul.f32 %v10238, 0.7978846
        %v10272 = vmul.f32 %v10239, 0.7978846
        %v10273 = vmul.f32 %v10240, 0.7978846
        %v10274 = vmul.f32 %v10241, 0.7978846
        %v10275 = vmul.f32 %v10242, 0.7978846
        %v10276 = vmul.f32 %v10243, 0.7978846
        %v10277 = vmul.f32 %v10244, 0.7978846
        %v10278 = vmul.f32 %v10245, 0.7978846
        %v10279 = vmul.f32 %v10246, 0.7978846
        %v10280 = vmul.f32 %v10247, 0.7978846
        %v10281 = vmul.f32 %v10248, 0.7978846
        %v10282 = vmul.f32 %v10249, 0.7978846
        %v10283 = vmul.f32 %v10250, 0.7978846
        %v10284 = vmul.f32 %v10251, 0.7978846
        %v10285 = vmul.f32 %v10252, 0.7978846
        %v10286 = vmul.f32 %v10253, 0.7978846
        %v10287 = vmul.f32 %v10254, 0.7978846
        %v10288 = vmul.f32 %v10255, 0.7978846
        %v10289 = vmul.f32 %v10256, 0.7978846
        %v10290 = vmul.f32 %v10257, 0.7978846
        %v10291 = vmul.f32 %v10258, 0.7978846
        %v10292 = vmul.f32 %v10259, 0.7978846
        %v10293 = vmul.f32 %v10260, 0.7978846
        %v10294 = vmul.f32 %v10261, 0.7978846
        %v10295 = vmul.f32 %v10262, 0.7978846
        %v10296 = vtanh.pop %v10263
        %v10297 = vtanh.pop %v10264
        %v10298 = vtanh.pop %v10265
        %v10299 = vtanh.pop %v10266
        %v10300 = vtanh.pop %v10267
        %v10301 = vtanh.pop %v10268
        %v10302 = vtanh.pop %v10269
        %v10303 = vtanh.pop %v10270
        %v10304 = vtanh.pop %v10271
        %v10305 = vtanh.pop %v10272
        %v10306 = vtanh.pop %v10273
        %v10307 = vtanh.pop %v10274
        %v10308 = vtanh.pop %v10275
        %v10309 = vtanh.pop %v10276
        %v10310 = vtanh.pop %v10277
        %v10311 = vtanh.pop %v10278
        %v10312 = vtanh.pop %v10279
        %v10313 = vtanh.pop %v10280
        %v10314 = vtanh.pop %v10281
        %v10315 = vtanh.pop %v10282
        %v10316 = vtanh.pop %v10283
        %v10317 = vtanh.pop %v10284
        %v10318 = vtanh.pop %v10285
        %v10319 = vtanh.pop %v10286
        %v10320 = vtanh.pop %v10287
        %v10321 = vtanh.pop %v10288
        %v10322 = vtanh.pop %v10289
        %v10323 = vtanh.pop %v10290
        %v10324 = vtanh.pop %v10291
        %v10325 = vtanh.pop %v10292
        %v10326 = vtanh.pop %v10293
        %v10327 = vtanh.pop %v10294
        %v10328 = vtanh.pop %v10295
        %v10329 = vadd.f32 %v10296, 1.0
        %v10330 = vadd.f32 %v10297, 1.0
        %v10331 = vadd.f32 %v10298, 1.0
        %v10332 = vadd.f32 %v10299, 1.0
        %v10333 = vadd.f32 %v10300, 1.0
        %v10334 = vadd.f32 %v10301, 1.0
        %v10335 = vadd.f32 %v10302, 1.0
        %v10336 = vadd.f32 %v10303, 1.0
        %v10337 = vadd.f32 %v10304, 1.0
        %v10338 = vadd.f32 %v10305, 1.0
        %v10339 = vadd.f32 %v10306, 1.0
        %v10340 = vadd.f32 %v10307, 1.0
        %v10341 = vadd.f32 %v10308, 1.0
        %v10342 = vadd.f32 %v10309, 1.0
        %v10343 = vadd.f32 %v10310, 1.0
        %v10344 = vadd.f32 %v10311, 1.0
        %v10345 = vadd.f32 %v10312, 1.0
        %v10346 = vadd.f32 %v10313, 1.0
        %v10347 = vadd.f32 %v10314, 1.0
        %v10348 = vadd.f32 %v10315, 1.0
        %v10349 = vadd.f32 %v10316, 1.0
        %v10350 = vadd.f32 %v10317, 1.0
        %v10351 = vadd.f32 %v10318, 1.0
        %v10352 = vadd.f32 %v10319, 1.0
        %v10353 = vadd.f32 %v10320, 1.0
        %v10354 = vadd.f32 %v10321, 1.0
        %v10355 = vadd.f32 %v10322, 1.0
        %v10356 = vadd.f32 %v10323, 1.0
        %v10357 = vadd.f32 %v10324, 1.0
        %v10358 = vadd.f32 %v10325, 1.0
        %v10359 = vadd.f32 %v10326, 1.0
        %v10360 = vadd.f32 %v10327, 1.0
        %v10361 = vadd.f32 %v10328, 1.0
        %v10362 = vmul.f32 %v10329, 0.5
        %v10363 = vmul.f32 %v10330, 0.5
        %v10364 = vmul.f32 %v10331, 0.5
        %v10365 = vmul.f32 %v10332, 0.5
        %v10366 = vmul.f32 %v10333, 0.5
        %v10367 = vmul.f32 %v10334, 0.5
        %v10368 = vmul.f32 %v10335, 0.5
        %v10369 = vmul.f32 %v10336, 0.5
        %v10370 = vmul.f32 %v10337, 0.5
        %v10371 = vmul.f32 %v10338, 0.5
        %v10372 = vmul.f32 %v10339, 0.5
        %v10373 = vmul.f32 %v10340, 0.5
        %v10374 = vmul.f32 %v10341, 0.5
        %v10375 = vmul.f32 %v10342, 0.5
        %v10376 = vmul.f32 %v10343, 0.5
        %v10377 = vmul.f32 %v10344, 0.5
        %v10378 = vmul.f32 %v10345, 0.5
        %v10379 = vmul.f32 %v10346, 0.5
        %v10380 = vmul.f32 %v10347, 0.5
        %v10381 = vmul.f32 %v10348, 0.5
        %v10382 = vmul.f32 %v10349, 0.5
        %v10383 = vmul.f32 %v10350, 0.5
        %v10384 = vmul.f32 %v10351, 0.5
        %v10385 = vmul.f32 %v10352, 0.5
        %v10386 = vmul.f32 %v10353, 0.5
        %v10387 = vmul.f32 %v10354, 0.5
        %v10388 = vmul.f32 %v10355, 0.5
        %v10389 = vmul.f32 %v10356, 0.5
        %v10390 = vmul.f32 %v10357, 0.5
        %v10391 = vmul.f32 %v10358, 0.5
        %v10392 = vmul.f32 %v10359, 0.5
        %v10393 = vmul.f32 %v10360, 0.5
        %v10394 = vmul.f32 %v10361, 0.5
        %v10395 = vmul.f32 %v9998, %v10362
        %v10396 = vmul.f32 %v10001, %v10363
        %v10397 = vmul.f32 %v10006, %v10364
        %v10398 = vmul.f32 %v10009, %v10365
        %v10399 = vmul.f32 %v10014, %v10366
        %v10400 = vmul.f32 %v10017, %v10367
        %v10401 = vmul.f32 %v10022, %v10368
        %v10402 = vmul.f32 %v10025, %v10369
        %v10403 = vmul.f32 %v10030, %v10370
        %v10404 = vmul.f32 %v10033, %v10371
        %v10405 = vmul.f32 %v10038, %v10372
        %v10406 = vmul.f32 %v10041, %v10373
        %v10407 = vmul.f32 %v10046, %v10374
        %v10408 = vmul.f32 %v10049, %v10375
        %v10409 = vmul.f32 %v10054, %v10376
        %v10410 = vmul.f32 %v10057, %v10377
        %v10411 = vmul.f32 %v10062, %v10378
        %v10412 = vmul.f32 %v10065, %v10379
        %v10413 = vmul.f32 %v10070, %v10380
        %v10414 = vmul.f32 %v10073, %v10381
        %v10415 = vmul.f32 %v10078, %v10382
        %v10416 = vmul.f32 %v10081, %v10383
        %v10417 = vmul.f32 %v10086, %v10384
        %v10418 = vmul.f32 %v10089, %v10385
        %v10419 = vmul.f32 %v10094, %v10386
        %v10420 = vmul.f32 %v10097, %v10387
        %v10421 = vmul.f32 %v10102, %v10388
        %v10422 = vmul.f32 %v10105, %v10389
        %v10423 = vmul.f32 %v10110, %v10390
        %v10424 = vmul.f32 %v10113, %v10391
        %v10425 = vmul.f32 %v10118, %v10392
        %v10426 = vmul.f32 %v10121, %v10393
        %v10427 = vmul.f32 %v10126, %v10394
        %v10428 = vpack.c.bf16 %v10396, %v10395
        %v10429 = vpack.c.bf16 %v10398, %v10397
        %v10430 = vpack.c.bf16 %v10400, %v10399
        %v10431 = vpack.c.bf16 %v10402, %v10401
        %v10432 = vpack.c.bf16 %v10404, %v10403
        %v10433 = vpack.c.bf16 %v10406, %v10405
        %v10434 = vpack.c.bf16 %v10408, %v10407
        %v10435 = vpack.c.bf16 %v10410, %v10409
        %v10436 = vpack.c.bf16 %v10412, %v10411
        %v10437 = vpack.c.bf16 %v10414, %v10413
        %v10438 = vpack.c.bf16 %v10416, %v10415
        %v10439 = vpack.c.bf16 %v10418, %v10417
        %v10440 = vpack.c.bf16 %v10420, %v10419
        %v10441 = vpack.c.bf16 %v10422, %v10421
        %v10442 = vpack.c.bf16 %v10424, %v10423
        %v10443 = vpack.c.bf16 %v10426, %v10425
        %v10444 = vpack.c.bf16 %v10427, %v10427
        %s10445 = scalar_lea.vmem %s14, 64
        %v10446 = vld [vmem:[%s10445] sm:$0xf]
        %v10447 = vld [vmem:[%s10445 + $0x4] sm:$0xf]
        %v10448 = vld [vmem:[%s10445 + $0x8] sm:$0xf]
        %v10449 = vld [vmem:[%s10445 + $0xc] sm:$0xf]
        %v10450 = vld [vmem:[%s10445 + $0x10] sm:$0xf]
        %v10451 = vld [vmem:[%s10445 + $0x14] sm:$0xf]
        %v10452 = vld [vmem:[%s10445 + $0x18] sm:$0xf]
        %v10453 = vld [vmem:[%s10445 + $0x1c] sm:$0xf]
        %v10454 = vld [vmem:[%s10445 + $0x20] sm:$0xf]
        %v10455 = vld [vmem:[%s10445 + $0x24] sm:$0xf]
        %v10456 = vld [vmem:[%s10445 + $0x28] sm:$0xf]
        %v10457 = vld [vmem:[%s10445 + $0x2c] sm:$0xf]
        %v10458 = vld [vmem:[%s10445 + $0x30] sm:$0xf]
        %v10459 = vld [vmem:[%s10445 + $0x34] sm:$0xf]
        %v10460 = vld [vmem:[%s10445 + $0x38] sm:$0xf]
        %v10461 = vld [vmem:[%s10445 + $0x3c] sm:$0xf]
        %s10462 = scalar_lea.vmem %s15, 1
        %v10463 = vld [vmem:[%s10462] sm:$0x1]
        %v10465 = vlaneseq
        %v10466 = vshrl.u32 %v10465, 7
        %v10467 = vsub.s32 0, %v10466
        %v10468 = vrot.slane %v10463, %v10467
        %v10486 = vunpack.c.l.b16 %v10446
        %v10487 = vunpack.c.l.b16 %v10447
        %v10488 = vunpack.c.l.b16 %v10448
        %v10489 = vunpack.c.l.b16 %v10449
        %v10490 = vunpack.c.l.b16 %v10450
        %v10491 = vunpack.c.l.b16 %v10451
        %v10492 = vunpack.c.l.b16 %v10452
        %v10493 = vunpack.c.l.b16 %v10453
        %v10494 = vunpack.c.l.b16 %v10454
        %v10495 = vunpack.c.l.b16 %v10455
        %v10496 = vunpack.c.l.b16 %v10456
        %v10497 = vunpack.c.l.b16 %v10457
        %v10498 = vunpack.c.l.b16 %v10458
        %v10499 = vunpack.c.l.b16 %v10459
        %v10500 = vunpack.c.l.b16 %v10460
        %v10501 = vunpack.c.l.b16 %v10461
        %v10502 = vpack.c.b16 %v10487, %v10486
        %v10503 = vpack.c.b16 %v10489, %v10488
        %v10504 = vpack.c.b16 %v10491, %v10490
        %v10505 = vpack.c.b16 %v10493, %v10492
        %v10506 = vpack.c.b16 %v10495, %v10494
        %v10507 = vpack.c.b16 %v10497, %v10496
        %v10508 = vpack.c.b16 %v10499, %v10498
        %v10509 = vpack.c.b16 %v10501, %v10500
        %10518 = vmatprep.subr.bf16.mxu0 0
        %10519 = vmatpush1.bf16.msra.mxu0 %v10502
        %10520 = vmatprep.subr.bf16.mxu0 0
        %10521 = vmatpush1.bf16.msra.mxu0 %v10503
        %10522 = vmatprep.subr.bf16.mxu0 0
        %10523 = vmatpush1.bf16.msra.mxu0 %v10504
        %10524 = vmatprep.subr.bf16.mxu0 0
        %10525 = vmatpush1.bf16.msra.mxu0 %v10505
        %10526 = vmatprep.subr.bf16.mxu0 0
        %10527 = vmatpush1.bf16.msra.mxu0 %v10506
        %10528 = vmatprep.subr.bf16.mxu0 0
        %10529 = vmatpush1.bf16.msra.mxu0 %v10507
        %10530 = vmatprep.subr.bf16.mxu0 0
        %10531 = vmatpush1.bf16.msra.mxu0 %v10508
        %10532 = vmatprep.subr.bf16.mxu0 0
        %10533 = vmatpush1.bf16.msra.mxu0 %v10509
        %10534 = vmatprep.subr.bf16.mxu0 0
        %10535 = vmatpush1.bf16.msra.mxu0 0
        %10536 = vmatprep.subr.bf16.mxu0 0
        %10537 = vmatpush1.bf16.msra.mxu0 0
        %10538 = vmatprep.subr.bf16.mxu0 0
        %10539 = vmatpush1.bf16.msra.mxu0 0
        %10540 = vmatprep.subr.bf16.mxu0 0
        %10541 = vmatpush1.bf16.msra.mxu0 0
        %10542 = vmatprep.subr.bf16.mxu0 0
        %10543 = vmatpush1.bf16.msra.mxu0 0
        %10544 = vmatprep.subr.bf16.mxu0 0
        %10545 = vmatpush1.bf16.msra.mxu0 0
        %10546 = vmatprep.subr.bf16.mxu0 0
        %10547 = vmatpush1.bf16.msra.mxu0 0
        %10548 = vmatprep.subr.bf16.mxu0 0
        %10549 = vmatpush1.bf16.msra.mxu0 0
        %10550 = vmatprep.mubr.bf16.mxu0 0
        %10551 = vmatmul.mubr.bf16.gmra.mrb[0].mxu0 %v10428
        %v10552 = vpop.f32.mrb[0].mxu0
        %v10553 = vadd.f32 %v10468, %v10552
        %v10554 = vpop.f32.mrb[0].mxu0
        %v10555 = vpop.f32.mrb[0].mxu0
        %v10556 = vpop.f32.mrb[0].mxu0
        %10557 = vmatprep.mubr.bf16.mxu0 0
        %10558 = vmatmul.mubr.bf16.gmra.mrb[0].mxu0 %v10429
        %v10559 = vpop.f32.mrb[0].mxu0
        %v10560 = vpop.f32.mrb[0].mxu0
        %v10561 = vpop.f32.mrb[0].mxu0
        %v10562 = vpop.f32.mrb[0].mxu0
        %10563 = vmatprep.mubr.bf16.mxu0 0
        %10564 = vmatmul.mubr.bf16.gmra.mrb[0].mxu0 %v10430
        %v10565 = vpop.f32.mrb[0].mxu0
        %v10566 = vpop.f32.mrb[0].mxu0
        %v10567 = vpop.f32.mrb[0].mxu0
        %v10568 = vpop.f32.mrb[0].mxu0
        %10569 = vmatprep.mubr.bf16.mxu0 0
        %10570 = vmatmul.mubr.bf16.gmra.mrb[0].mxu0 %v10431
        %v10571 = vpop.f32.mrb[0].mxu0
        %v10572 = vpop.f32.mrb[0].mxu0
        %v10573 = vpop.f32.mrb[0].mxu0
        %v10574 = vpop.f32.mrb[0].mxu0
        %10575 = vmatprep.mubr.bf16.mxu0 0
        %10576 = vmatmul.mubr.bf16.gmra.mrb[0].mxu0 %v10432
        %v10577 = vpop.f32.mrb[0].mxu0
        %v10578 = vpop.f32.mrb[0].mxu0
        %v10579 = vpop.f32.mrb[0].mxu0
        %v10580 = vpop.f32.mrb[0].mxu0
        %10581 = vmatprep.mubr.bf16.mxu0 0
        %10582 = vmatmul.mubr.bf16.gmra.mrb[0].mxu0 %v10433
        %v10583 = vpop.f32.mrb[0].mxu0
        %v10584 = vpop.f32.mrb[0].mxu0
        %v10585 = vpop.f32.mrb[0].mxu0
        %v10586 = vpop.f32.mrb[0].mxu0
        %10587 = vmatprep.mubr.bf16.mxu0 0
        %10588 = vmatmul.mubr.bf16.gmra.mrb[0].mxu0 %v10434
        %v10589 = vpop.f32.mrb[0].mxu0
        %v10590 = vpop.f32.mrb[0].mxu0
        %v10591 = vpop.f32.mrb[0].mxu0
        %v10592 = vpop.f32.mrb[0].mxu0
        %10593 = vmatprep.mubr.bf16.mxu0 0
        %10594 = vmatmul.mubr.bf16.gmra.mrb[0].mxu0 %v10435
        %v10595 = vpop.f32.mrb[0].mxu0
        %v10596 = vpop.f32.mrb[0].mxu0
        %v10597 = vpop.f32.mrb[0].mxu0
        %v10598 = vpop.f32.mrb[0].mxu0
        %10599 = vmatprep.mubr.bf16.mxu0 0
        %10600 = vmatmul.mubr.bf16.gmra.mrb[0].mxu0 %v10436
        %v10601 = vpop.f32.mrb[0].mxu0
        %v10602 = vpop.f32.mrb[0].mxu0
        %v10603 = vpop.f32.mrb[0].mxu0
        %v10604 = vpop.f32.mrb[0].mxu0
        %10605 = vmatprep.mubr.bf16.mxu0 0
        %10606 = vmatmul.mubr.bf16.gmra.mrb[0].mxu0 %v10437
        %v10607 = vpop.f32.mrb[0].mxu0
        %v10608 = vpop.f32.mrb[0].mxu0
        %v10609 = vpop.f32.mrb[0].mxu0
        %v10610 = vpop.f32.mrb[0].mxu0
        %10611 = vmatprep.mubr.bf16.mxu0 0
        %10612 = vmatmul.mubr.bf16.gmra.mrb[0].mxu0 %v10438
        %v10613 = vpop.f32.mrb[0].mxu0
        %v10614 = vpop.f32.mrb[0].mxu0
        %v10615 = vpop.f32.mrb[0].mxu0
        %v10616 = vpop.f32.mrb[0].mxu0
        %10617 = vmatprep.mubr.bf16.mxu0 0
        %10618 = vmatmul.mubr.bf16.gmra.mrb[0].mxu0 %v10439
        %v10619 = vpop.f32.mrb[0].mxu0
        %v10620 = vpop.f32.mrb[0].mxu0
        %v10621 = vpop.f32.mrb[0].mxu0
        %v10622 = vpop.f32.mrb[0].mxu0
        %10623 = vmatprep.mubr.bf16.mxu0 0
        %10624 = vmatmul.mubr.bf16.gmra.mrb[0].mxu0 %v10440
        %v10625 = vpop.f32.mrb[0].mxu0
        %v10626 = vpop.f32.mrb[0].mxu0
        %v10627 = vpop.f32.mrb[0].mxu0
        %v10628 = vpop.f32.mrb[0].mxu0
        %10629 = vmatprep.mubr.bf16.mxu0 0
        %10630 = vmatmul.mubr.bf16.gmra.mrb[0].mxu0 %v10441
        %v10631 = vpop.f32.mrb[0].mxu0
        %v10632 = vpop.f32.mrb[0].mxu0
        %v10633 = vpop.f32.mrb[0].mxu0
        %v10634 = vpop.f32.mrb[0].mxu0
        %10635 = vmatprep.mubr.bf16.mxu0 0
        %10636 = vmatmul.mubr.bf16.gmra.mrb[0].mxu0 %v10442
        %v10637 = vpop.f32.mrb[0].mxu0
        %v10638 = vpop.f32.mrb[0].mxu0
        %v10639 = vpop.f32.mrb[0].mxu0
        %v10640 = vpop.f32.mrb[0].mxu0
        %10641 = vmatprep.mubr.bf16.mxu0 0
        %10642 = vmatmul.mubr.bf16.gmra.mrb[0].mxu0 %v10443
        %v10643 = vpop.f32.mrb[0].mxu0
        %v10644 = vpop.f32.mrb[0].mxu0
        %v10645 = vpop.f32.mrb[0].mxu0
        %v10646 = vpop.f32.mrb[0].mxu0
        %10647 = vmatprep.mubr.bf16.mxu0 0
        %10648 = vmatmul.mubr.bf16.gmra.mrb[0].mxu0 %v10444
        %v10649 = vpop.f32.mrb[0].mxu0
        %v10650 = vpop.f32.mrb[0].mxu0
        %v10651 = vpop.f32.mrb[0].mxu0
        %v10652 = vpop.f32.mrb[0].mxu0
        %10653 = vdwg.mxu0
        %v10654 = vadd.f32 %v9326, %v10553
        %v10655 = vld [vmem:[%s16] sm:$0x1]
        %v10656 = vld [vmem:[%s17] sm:$0x1]
        %vm10657 = vcmask 253952
        %v10658 = vsel %vm10657, %v10654, 0.0
        %10659 = vadd.xlane.f32.xlu0 %v10658
        %v10660 = vpop.xlane.xlu0 %10659
        %v10661 = vmul.f32 %v10660, %v1791
        %v10662 = vsub.f32 %v10654, %v10661
        %v10663 = vmul.f32 %v10662, %v10662
        %v10664 = vsel %vm10657, %v10663, 0.0
        %10665 = vadd.xlane.f32.xlu0 %v10664
        %v10666 = vpop.xlane.xlu0 %10665
        %v10667 = vmul.f32 %v10666, %v1791
        %v10668 = vadd.f32 %v10667, 1e-06
        %v10669 = vrsqrt.pop %v10668
        %v10670 = vmul.f32 %v10662, %v10669
        %v10671 = vmul.f32 %v10670, %v10655
        %v10672 = vadd.f32 %v10671, %v10656
        %v10673 = vld [vmem:[%s18] sm:$0xff]
        %v10674 = vld [vmem:[%s18 + $0x8] sm:$0xff]
        %v10675 = vld [vmem:[%s18 + $0x10] sm:$0xff]
        %v10676 = vld [vmem:[%s18 + $0x18] sm:$0xff]
        %v10677 = vld [vmem:[%s19] sm:$0x1]
        %v10679 = vsel %vm1691, %v10672, 0
        %10681 = vmatprep.subr.mxu0 0.0
        %10682 = vmatpush1.msra.mxu0 %v10673
        %10683 = vmatprep.subr.mxu0 0.0
        %10684 = vmatpush1.msra.mxu0 %v10674
        %10685 = vmatprep.subr.mxu0 0.0
        %10686 = vmatpush1.msra.mxu0 %v10675
        %10687 = vmatprep.subr.mxu0 0.0
        %10688 = vmatpush1.msra.mxu0 %v10676
        %10689 = vmatprep.subr.mxu0 0.0
        %10690 = vmatpush1.msra.mxu0 0.0
        %10691 = vmatprep.subr.mxu0 0.0
        %10692 = vmatpush1.msra.mxu0 0.0
        %10693 = vmatprep.subr.mxu0 0.0
        %10694 = vmatpush1.msra.mxu0 0.0
        %10695 = vmatprep.subr.mxu0 0.0
        %10696 = vmatpush1.msra.mxu0 0.0
        %10697 = vmatprep.subr.mxu0 0.0
        %10698 = vmatpush1.msra.mxu0 0.0
        %10699 = vmatprep.subr.mxu0 0.0
        %10700 = vmatpush1.msra.mxu0 0.0
        %10701 = vmatprep.subr.mxu0 0.0
        %10702 = vmatpush1.msra.mxu0 0.0
        %10703 = vmatprep.subr.mxu0 0.0
        %10704 = vmatpush1.msra.mxu0 0.0
        %10705 = vmatprep.subr.mxu0 0.0
        %10706 = vmatpush1.msra.mxu0 0.0
        %10707 = vmatprep.subr.mxu0 0.0
        %10708 = vmatpush1.msra.mxu0 0.0
        %10709 = vmatprep.subr.mxu0 0.0
        %10710 = vmatpush1.msra.mxu0 0.0
        %10711 = vmatprep.subr.mxu0 0.0
        %10712 = vmatpush1.msra.mxu0 0.0
        %10713 = vmatprep.subr.mxu0 0.0
        %10714 = vmatpush1.msra.mxu0 0.0
        %10715 = vmatprep.subr.mxu0 0.0
        %10716 = vmatpush1.msra.mxu0 0.0
        %10717 = vmatprep.subr.mxu0 0.0
        %10718 = vmatpush1.msra.mxu0 0.0
        %10719 = vmatprep.subr.mxu0 0.0
        %10720 = vmatpush1.msra.mxu0 0.0
        %10721 = vmatprep.subr.mxu0 0.0
        %10722 = vmatpush1.msra.mxu0 0.0
        %10723 = vmatprep.subr.mxu0 0.0
        %10724 = vmatpush1.msra.mxu0 0.0
        %10725 = vmatprep.subr.mxu0 0.0
        %10726 = vmatpush1.msra.mxu0 0.0
        %10727 = vmatprep.subr.mxu0 0.0
        %10728 = vmatpush1.msra.mxu0 0.0
        %10729 = vmatprep.subr.mxu0 0.0
        %10730 = vmatpush1.msra.mxu0 0.0
        %10731 = vmatprep.subr.mxu0 0.0
        %10732 = vmatpush1.msra.mxu0 0.0
        %10733 = vmatprep.subr.mxu0 0.0
        %10734 = vmatpush1.msra.mxu0 0.0
        %10735 = vmatprep.subr.mxu0 0.0
        %10736 = vmatpush1.msra.mxu0 0.0
        %10737 = vmatprep.subr.mxu0 0.0
        %10738 = vmatpush1.msra.mxu0 0.0
        %10739 = vmatprep.subr.mxu0 0.0
        %10740 = vmatpush1.msra.mxu0 0.0
        %10741 = vmatprep.subr.mxu0 0.0
        %10742 = vmatpush1.msra.mxu0 0.0
        %10743 = vmatprep.subr.mxu0 0.0
        %10744 = vmatpush1.msra.mxu0 0.0
        %10745 = vmatprep.mubr.f32.mxu0 0.0
        %10746 = vmatmul.mubr.f32.gmra.mrb[0].mxu0 %v10679
        %v10747 = vpop.f32.mrb[0].mxu0
        %v10748 = vadd.f32 %v10677, %v10747
        %v10749 = vpop.f32.mrb[0].mxu0
        %10750 = vdwg.mxu0
        %vm10751 = vcmask 32768
        %10752 = vst.msk [vmem:[%s621] sm:$0x1] %vm10751, %v10748
        %s10753 = sand.u32 %s467, 1
        %s10754 = scalar_lea.sflag [#allocation3], %s10753
        %s10755 = sand.u32 %s467, 1
        %s10756 = scalar_lea.vmem [#allocation2], %s10755
        // Predicated region
        $region101: #{custom_mvitv2_forward.1} parent=99 // pred_check
          %p10757 = pneg %p477
        $region102: #{custom_mvitv2_forward.1} parent=99 // pred_check_branch
          %10759 = sbr.rel (%p10757) target = $region104
        $region103: #{custom_mvitv2_forward.1} parent=99 // pred_region
          %s10761 = ssub.s32 16, 16
          %10762 = vsyncadd %s10754, %s10761
          %s10763 = smul.addr %s34, 16
          %s10764 = scalar_lea.hbm %s20, %s10763
          %s10766 = sshll.u32 %s10756, 4
          %s10767 = int_to_ptr.vmem [resolvable:$true] %s10766
          %10769 = dma.vmem_to_hbm [thread:$0]  %s10767, 16, %s10764, %s10754
        $region104: #{custom_mvitv2_forward.1} parent=99 // pred_fallthru
          _
      $region100: #{custom_mvitv2_forward.1} parent=5 // pred_fallthru
        _
      %p10770 = scmp.le.s32.totalorder 2, %s29
      // Predicated region
      $region105: #{custom_mvitv2_forward.1} parent=5 // pred_check
        %p10771 = pneg %p10770
      $region106: #{custom_mvitv2_forward.1} parent=5 // pred_check_branch
        %10773 = sbr.rel (%p10771) target = $region108
      $region107: #{custom_mvitv2_forward.1} parent=5 // pred_region
        %s10774 = ssub.s32 %s29, 2
        // Predicated region
        $region109: #{custom_mvitv2_forward.1} parent=107 // pred_check
          %p10775 = pneg %p483
        $region110: #{custom_mvitv2_forward.1} parent=107 // pred_check_branch
          %10777 = sbr.rel (%p10775) target = $region112
        $region111: #{custom_mvitv2_forward.1} parent=107 // pred_region
          %s10778 = sand.u32 %s468, 1
          %s10779 = scalar_lea.sflag [#allocation3], %s10778
          %s10780 = sand.u32 %s468, 1
          %s10781 = scalar_lea.vmem [#allocation2], %s10780
          %10782 = dma.done %s10779, 16
        $region112: #{custom_mvitv2_forward.1} parent=107 // pred_fallthru
          _
      $region108: #{custom_mvitv2_forward.1} parent=5 // pred_fallthru
        _
    $region6: #{custom_mvitv2_forward.1} parent=1 // loop_footer
      %s33 = sadd.s32 1, %s29
    $region7: #{custom_mvitv2_forward.1} parent=1 // loop_footer_branch
      %28 = sbr.rel target = $region3
    $region8: #{custom_mvitv2_forward.1} parent=1 // loop_exit
      _
    %10783 = vsyncpa [#allocation3], 1
    %s10784 = scalar_lea.sflag [#allocation3], 1
    %10785 = vsyncpa %s10784, 1

</llo_original>
